<compile_context>
chip_gen: v7x
topology: tpu7x:2x2x1
jax: 0.10.0
libtpu: 0.0.40
codegen_flags: <defaults>
</compile_context>

<pallas_src>
import functools
import math

import jax
import jax.numpy as jnp
from jax.experimental import pallas as pl
from jax.experimental.pallas import tpu as pltpu

LANE = 128
_BF16 = jnp.bfloat16

CFG = dict(
    in_channels=3,
    backbone_channels=(16, 32),      # backbone.out_channels = 32
    anchor_sizes=(8.0, 16.0, 32.0),  # num_anchors = 3
    feature_stride=4,                # 32 -> 16 -> 8
    rpn_top_n=8,                     # proposals per image
    roi_resolution=4,
    box_head_dim=64,
    num_classes=5,
)

_COMPILER_PARAMS = pltpu.CompilerParams(
    dimension_semantics=("parallel",),      # grid steps shard across TCs (v7x)
    vmem_limit_bytes=32 * 1024 * 1024,      # explicit, safe on v5e/v6e/v7x
)


# ----------------------------------------------------------------------------
# Kernel 1: 3x3 stride-2 conv + bias + ReLU (backbone conv1).
# The stride-2 input arrives as 4 parity planes (space-to-depth of the padded
# image, built in glue for the cost of one image copy), so every tap is a
# unit-stride static window and im2col never round-trips HBM.
# ----------------------------------------------------------------------------
def _conv_s2_kernel(x_ref, w_ref, b_ref, o_ref, *, ho, wo):
    cin = x_ref.shape[-1]
    rows = ho * wo
    acc = jnp.zeros((rows, LANE), jnp.float32)
    for ky in range(3):
        for kx in range(3):
            p = (ky % 2) * 2 + (kx % 2)
            rs, cs = ky // 2, kx // 2
            xs = x_ref[0, p, rs:rs + ho, cs:cs + wo, :]          # (ho, wo, cin)
            xs = xs.reshape(rows, cin).astype(_BF16)
            acc += jnp.dot(xs, w_ref[ky * 3 + kx],
                           preferred_element_type=jnp.float32)
    acc = jnp.maximum(acc + b_ref[...], 0.0)                     # f32 epilogue
    o_ref[...] = acc.reshape(1, ho, wo, LANE)


def conv_s2(planes, w9, b, ho, wo):
    """planes: (B,4,ho+1,wo+1,cin) f32; w9: (9,cin,128) bf16; b: (1,128) f32."""
    B, _, hq, wq, cin = planes.shape
    kernel = functools.partial(_conv_s2_kernel, ho=ho, wo=wo)
    return pl.pallas_call(
        kernel,
        out_shape=jax.ShapeDtypeStruct((B, ho, wo, LANE), jnp.float32),
        grid_spec=pltpu.PrefetchScalarGridSpec(
            num_scalar_prefetch=0,
            grid=(B,),
            in_specs=[
                pl.BlockSpec((1, 4, hq, wq, cin), lambda i: (i, 0, 0, 0, 0)),
                pl.BlockSpec((9, cin, LANE), lambda i: (0, 0, 0)),
                pl.BlockSpec((1, LANE), lambda i: (0, 0)),
            ],
            out_specs=pl.BlockSpec((1, ho, wo, LANE), lambda i: (i, 0, 0, 0)),
        ),
        compiler_params=_COMPILER_PARAMS,
    )(planes, w9, b)


# ----------------------------------------------------------------------------
# Kernel 2: backbone conv2 (3x3 /2) + rpn 3x3 conv + fused rpn cls/bbox heads,
# all in one pallas_call.  The rpn-conv input is the conv2 output, zero-padded
# spatially inside a VMEM scratch (no HBM round-trip between the three stages).
# ----------------------------------------------------------------------------
def _conv2_rpn_kernel(x_ref, w2_ref, b2_ref, wr_ref, br_ref, wh_ref, bh_ref,
                      feat_ref, rpn_ref, pad_ref, *, ho, wo):
    rows = ho * wo

    # ---- conv2: 3x3 stride-2 via parity planes ----
    acc = jnp.zeros((rows, LANE), jnp.float32)
    for ky in range(3):
        for kx in range(3):
            p = (ky % 2) * 2 + (kx % 2)
            rs, cs = ky // 2, kx // 2
            xs = x_ref[0, p, rs:rs + ho, cs:cs + wo, :]          # (ho, wo, 128)
            xs = xs.reshape(rows, LANE).astype(_BF16)
            acc += jnp.dot(xs, w2_ref[ky * 3 + kx],
                           preferred_element_type=jnp.float32)
    feat = jnp.maximum(acc + b2_ref[...], 0.0)                   # (rows, 128) f32
    feat_ref[...] = feat.reshape(1, ho, wo, LANE)

    # ---- rpn 3x3 stride-1 conv over a zero-padded VMEM copy ----
    pad_ref[...] = jnp.zeros_like(pad_ref)
    pad_ref[1:1 + ho, 1:1 + wo, :] = feat.reshape(ho, wo, LANE)
    acc2 = jnp.zeros((rows, LANE), jnp.float32)
    for ky in range(3):
        for kx in range(3):
            xs = pad_ref[ky:ky + ho, kx:kx + wo, :]
            xs = xs.reshape(rows, LANE).astype(_BF16)
            acc2 += jnp.dot(xs, wr_ref[ky * 3 + kx],
                            preferred_element_type=jnp.float32)
    t = jnp.maximum(acc2 + br_ref[...], 0.0)                     # f32

    # ---- fused rpn objectness + bbox-delta 1x1 heads: one matmul ----
    head = jnp.dot(t.astype(_BF16), wh_ref[...],
                   preferred_element_type=jnp.float32) + bh_ref[...]
    rpn_ref[...] = head.reshape(1, ho, wo, LANE)


def conv2_rpn(planes, w2, b2, wr, br, wh, bh, ho, wo):
    B, _, hq, wq, _ = planes.shape
    kernel = functools.partial(_conv2_rpn_kernel, ho=ho, wo=wo)
    return pl.pallas_call(
        kernel,
        out_shape=(
            jax.ShapeDtypeStruct((B, ho, wo, LANE), jnp.float32),   # features
            jax.ShapeDtypeStruct((B, ho, wo, LANE), jnp.float32),   # rpn head out
        ),
        grid_spec=pltpu.PrefetchScalarGridSpec(
            num_scalar_prefetch=0,
            grid=(B,),
            in_specs=[
                pl.BlockSpec((1, 4, hq, wq, LANE), lambda i: (i, 0, 0, 0, 0)),
                pl.BlockSpec((9, LANE, LANE), lambda i: (0, 0, 0)),
                pl.BlockSpec((1, LANE), lambda i: (0, 0)),
                pl.BlockSpec((9, LANE, LANE), lambda i: (0, 0, 0)),
                pl.BlockSpec((1, LANE), lambda i: (0, 0)),
                pl.BlockSpec((LANE, LANE), lambda i: (0, 0)),
                pl.BlockSpec((1, LANE), lambda i: (0, 0)),
            ],
            out_specs=(
                pl.BlockSpec((1, ho, wo, LANE), lambda i: (i, 0, 0, 0)),
                pl.BlockSpec((1, ho, wo, LANE), lambda i: (i, 0, 0, 0)),
            ),
            scratch_shapes=[pltpu.VMEM((ho + 2, wo + 2, LANE), jnp.float32)],
        ),
        compiler_params=_COMPILER_PARAMS,
    )(planes, w2, b2, wr, br, wh, bh)


# ----------------------------------------------------------------------------
# Kernel 3: fused RoI box head  (fc1+ReLU -> fc2+ReLU -> [cls|bbox] matmul,
# masked softmax over the real classes).  All weights stay resident in VMEM;
# no intermediate ever touches HBM.
# ----------------------------------------------------------------------------
def _roi_head_kernel(x_ref, w1_ref, b1_ref, w2_ref, b2_ref, wh_ref, bh_ref,
                     cls_ref, box_ref, *, num_classes):
    h = jnp.dot(x_ref[...], w1_ref[...], preferred_element_type=jnp.float32)
    h = jnp.maximum(h + b1_ref[...], 0.0)
    h = jnp.dot(h.astype(_BF16), w2_ref[...], preferred_element_type=jnp.float32)
    h = jnp.maximum(h + b2_ref[...], 0.0)
    out = jnp.dot(h.astype(_BF16), wh_ref[...], preferred_element_type=jnp.float32)
    out = out + bh_ref[...]
    logits = out[:, :LANE]                 # cls logits (padded to 128 lanes)
    box = out[:, LANE:]                    # bbox deltas (padded to 128 lanes)
    # Softmax over the real classes only (padded lanes masked to -inf-ish, so
    # the real-class probabilities are exact -- the block always holds full N).
    lane = jax.lax.broadcasted_iota(jnp.int32, logits.shape, 1)
    logits = jnp.where(lane < num_classes, logits, -1e30)
    m = jnp.max(logits, axis=-1, keepdims=True)
    e = jnp.exp(logits - m)
    cls_ref[...] = e / jnp.sum(e, axis=-1, keepdims=True)
    box_ref[...] = box


def roi_head_mlp(x, w1, b1, w2, b2, wh, bh, num_classes):
    M, K = x.shape
    # >=2 parallel grid steps (both v7x TCs busy) with sublane-aligned tiles.
    tm = M // 2 if (M % 16 == 0) else M
    kernel = functools.partial(_roi_head_kernel, num_classes=num_classes)
    return pl.pallas_call(
        kernel,
        out_shape=(
            jax.ShapeDtypeStruct((M, LANE), jnp.float32),
            jax.ShapeDtypeStruct((M, LANE), jnp.float32),
        ),
        grid_spec=pltpu.PrefetchScalarGridSpec(
            num_scalar_prefetch=0,
            grid=(M // tm,),
            in_specs=[
                pl.BlockSpec((tm, K), lambda i: (i, 0)),
                pl.BlockSpec((K, LANE), lambda i: (0, 0)),
                pl.BlockSpec((1, LANE), lambda i: (0, 0)),
                pl.BlockSpec((LANE, LANE), lambda i: (0, 0)),
                pl.BlockSpec((1, LANE), lambda i: (0, 0)),
                pl.BlockSpec((LANE, 2 * LANE), lambda i: (0, 0)),
                pl.BlockSpec((1, 2 * LANE), lambda i: (0, 0)),
            ],
            out_specs=(
                pl.BlockSpec((tm, LANE), lambda i: (i, 0)),
                pl.BlockSpec((tm, LANE), lambda i: (i, 0)),
            ),
        ),
        compiler_params=_COMPILER_PARAMS,
    )(x, w1, b1, w2, b2, wh, bh)


# ----------------------------------------------------------------------------
# Box utilities (maskrcnn_benchmark BoxCoder semantics) -- JAX glue
# ----------------------------------------------------------------------------
_BBOX_XFORM_CLIP = math.log(1000.0 / 16.0)


def decode_boxes(deltas, boxes, weights=(1.0, 1.0, 1.0, 1.0)):
    wx, wy, ww, wh = weights
    widths = boxes[..., 2] - boxes[..., 0] + 1.0
    heights = boxes[..., 3] - boxes[..., 1] + 1.0
    ctr_x = boxes[..., 0] + 0.5 * widths
    ctr_y = boxes[..., 1] + 0.5 * heights
    dx = deltas[..., 0] / wx
    dy = deltas[..., 1] / wy
    dw = jnp.minimum(deltas[..., 2] / ww, _BBOX_XFORM_CLIP)
    dh = jnp.minimum(deltas[..., 3] / wh, _BBOX_XFORM_CLIP)
    pred_ctr_x = dx * widths + ctr_x
    pred_ctr_y = dy * heights + ctr_y
    pred_w = jnp.exp(dw) * widths
    pred_h = jnp.exp(dh) * heights
    x1 = pred_ctr_x - 0.5 * pred_w
    y1 = pred_ctr_y - 0.5 * pred_h
    x2 = pred_ctr_x + 0.5 * pred_w - 1.0
    y2 = pred_ctr_y + 0.5 * pred_h - 1.0
    return jnp.stack([x1, y1, x2, y2], axis=-1)


def clip_boxes(boxes, img_h, img_w):
    x1 = jnp.clip(boxes[..., 0], 0.0, img_w - 1.0)
    y1 = jnp.clip(boxes[..., 1], 0.0, img_h - 1.0)
    x2 = jnp.clip(boxes[..., 2], 0.0, img_w - 1.0)
    y2 = jnp.clip(boxes[..., 3], 0.0, img_h - 1.0)
    return jnp.stack([x1, y1, x2, y2], axis=-1)


def generate_anchors(fh, fw, stride, sizes):
    cy = (jnp.arange(fh, dtype=jnp.float32) + 0.5) * stride
    cx = (jnp.arange(fw, dtype=jnp.float32) + 0.5) * stride
    cyg, cxg = jnp.meshgrid(cy, cx, indexing="ij")   # [fh, fw]
    half = jnp.asarray(sizes, jnp.float32) / 2.0     # [A]
    x1 = cxg[..., None] - half
    y1 = cyg[..., None] - half
    x2 = cxg[..., None] + half
    y2 = cyg[..., None] + half
    return jnp.stack([x1, y1, x2, y2], axis=-1).reshape(-1, 4)  # [fh*fw*A, 4]


def roi_pool_nearest(feat, rois, out_size, spatial_scale):
    """Nearest-neighbour RoI pooling.  feat: [B,H,W,C], rois: [B,K,4]."""
    # TODO(synk): true RoIAlign uses bilinear sampling; nearest gather used here.
    # TODO(synk): this gather could move in-kernel via PrefetchScalarGridSpec
    # scalar-prefetched (b, y, x) indices fused with fc1; left in glue at this scale.
    B, H, W, C = feat.shape
    x1 = rois[..., 0] * spatial_scale
    y1 = rois[..., 1] * spatial_scale
    x2 = rois[..., 2] * spatial_scale
    y2 = rois[..., 3] * spatial_scale
    grid = (jnp.arange(out_size, dtype=jnp.float32) + 0.5) / out_size   # [S]
    ys = y1[..., None] + grid * (y2 - y1)[..., None]                    # [B,K,S]
    xs = x1[..., None] + grid * (x2 - x1)[..., None]
    yi = jnp.clip(jnp.round(ys).astype(jnp.int32), 0, H - 1)
    xi = jnp.clip(jnp.round(xs).astype(jnp.int32), 0, W - 1)
    b_idx = jnp.arange(B)[:, None, None, None]
    out = feat[b_idx, yi[:, :, :, None], xi[:, :, None, :], :]          # [B,K,S,S,C]
    return out


# ----------------------------------------------------------------------------
# Parameters (torch-style layouts, identical to the reference toy model)
# ----------------------------------------------------------------------------
def init_params(key):
    c_in = CFG["in_channels"]
    c1, c2 = CFG["backbone_channels"]
    A = len(CFG["anchor_sizes"])
    r = CFG["roi_resolution"]
    d = CFG["box_head_dim"]
    nc = CFG["num_classes"]

    shapes = dict(
        conv1_w=(c1, c_in, 3, 3), conv1_b=(c1,),
        conv2_w=(c2, c1, 3, 3), conv2_b=(c2,),
        rpn_conv_w=(c2, c2, 3, 3), rpn_conv_b=(c2,),
        rpn_cls_w=(A, c2, 1, 1), rpn_cls_b=(A,),
        rpn_bbox_w=(A * 4, c2, 1, 1), rpn_bbox_b=(A * 4,),
        fc1_w=(r * r * c2, d), fc1_b=(d,),          # stored as [in, out]
        fc2_w=(d, d), fc2_b=(d,),
        cls_w=(d, nc), cls_b=(nc,),
        bbox_w=(d, nc * 4), bbox_b=(nc * 4,),
    )
    params = {}
    keys = jax.random.split(key, len(shapes))
    for (name, shape), k in zip(sorted(shapes.items()), keys):
        if name.endswith("_b"):
            params[name] = jnp.zeros(shape, jnp.float32)
        else:
            params[name] = 0.05 * jax.random.normal(k, shape, jnp.float32)
    return params


# ----------------------------------------------------------------------------
# Glue: weight re-layout (pad-to-128 lanes, bf16 cast, head fusion)
# ----------------------------------------------------------------------------
def _pad_last(x, n):
    pad = n - x.shape[-1]
    if pad == 0:
        return x
    cfg = [(0, 0)] * (x.ndim - 1) + [(0, pad)]
    return jnp.pad(x, cfg)


def _prep_conv_w(w, cin_pad, cout_pad):
    """torch (Cout,Cin,kh,kw) -> (kh*kw, cin_pad, cout_pad) bf16, zero padded."""
    cout, cin, kh, kw = w.shape
    wt = jnp.transpose(w, (2, 3, 1, 0))                         # (kh,kw,Cin,Cout)
    wt = jnp.pad(wt, ((0, 0), (0, 0), (0, cin_pad - cin), (0, cout_pad - cout)))
    return wt.reshape(kh * kw, cin_pad, cout_pad).astype(_BF16)


def _prep_bias(b, n_pad):
    return _pad_last(b, n_pad).reshape(1, n_pad).astype(jnp.float32)


def _space_to_depth_planes(x):
    """x: (B, Hp, Wp, C) with Hp, Wp even  ->  (B, 4, Hp//2, Wp//2, C)."""
    planes = [x[:, a::2, c::2, :] for a in (0, 1) for c in (0, 1)]
    return jnp.stack(planes, axis=1)


def _prepare_weights(p):
    c1, c2 = CFG["backbone_channels"]
    A = len(CFG["anchor_sizes"])
    r = CFG["roi_resolution"]
    d = CFG["box_head_dim"]
    nc = CFG["num_classes"]

    w = {}
    w["conv1_w"] = _prep_conv_w(p["conv1_w"], CFG["in_channels"], LANE)
    w["conv1_b"] = _prep_bias(p["conv1_b"], LANE)
    w["conv2_w"] = _prep_conv_w(p["conv2_w"], LANE, LANE)       # cin 16 -> 128 (zeros)
    w["conv2_b"] = _prep_bias(p["conv2_b"], LANE)
    w["rpn_conv_w"] = _prep_conv_w(p["rpn_conv_w"], LANE, LANE)
    w["rpn_conv_b"] = _prep_bias(p["rpn_conv_b"], LANE)

    # fused RPN objectness + bbox 1x1 heads: columns [0:A]=cls, [A:5A]=bbox
    w_cls = p["rpn_cls_w"].reshape(A, c2).T                     # (c2, A)
    w_box = p["rpn_bbox_w"].reshape(A * 4, c2).T                # (c2, 4A)
    wh = jnp.concatenate([w_cls, w_box], axis=1)                # (c2, 5A)
    wh = jnp.pad(wh, ((0, LANE - c2), (0, LANE - 5 * A)))
    w["rpn_head_w"] = wh.astype(_BF16)
    bh = jnp.concatenate([p["rpn_cls_b"], p["rpn_bbox_b"]])
    w["rpn_head_b"] = _prep_bias(bh, LANE)

    # RoI box head; fc1 re-indexed for the channel-padded (128-lane) pooled features
    fc1 = p["fc1_w"].reshape(r * r, c2, d)
    fc1 = jnp.pad(fc1, ((0, 0), (0, LANE - c2), (0, LANE - d)))
    w["fc1_w"] = fc1.reshape(r * r * LANE, LANE).astype(_BF16)
    w["fc1_b"] = _prep_bias(p["fc1_b"], LANE)
    fc2 = jnp.pad(p["fc2_w"], ((0, LANE - d), (0, LANE - d)))
    w["fc2_w"] = fc2.astype(_BF16)
    w["fc2_b"] = _prep_bias(p["fc2_b"], LANE)

    # fused cls + bbox predictor: [d_pad, 256]; cls at [:, :nc], bbox at [:, 128:128+4nc]
    head = jnp.zeros((LANE, 2 * LANE), jnp.float32)
    head = head.at[:d, :nc].set(p["cls_w"])
    head = head.at[:d, LANE:LANE + 4 * nc].set(p["bbox_w"])
    w["head_w"] = head.astype(_BF16)
    hb = jnp.zeros((1, 2 * LANE), jnp.float32)
    hb = hb.at[0, :nc].set(p["cls_b"])
    hb = hb.at[0, LANE:LANE + 4 * nc].set(p["bbox_b"])
    w["head_b"] = hb
    return w


# ----------------------------------------------------------------------------
# Forward (inference semantics of GeneralizedRCNN.forward)
# ----------------------------------------------------------------------------
def _forward_impl(wp, images):
    A = len(CFG["anchor_sizes"])
    nc = CFG["num_classes"]
    r = CFG["roi_resolution"]
    top_n = CFG["rpn_top_n"]

    x = jnp.transpose(images, (0, 2, 3, 1)).astype(jnp.float32)   # NCHW -> NHWC
    B, H, W, _ = x.shape
    image_size = (H, W)

    # ---- backbone conv1 (3x3 /2 + ReLU) ----
    fh1, fw1 = H // 2, W // 2
    xp = jnp.pad(x, ((0, 0), (1, 1), (1, 1), (0, 0)))
    planes1 = _space_to_depth_planes(xp)                          # (B,4,fh1+1,fw1+1,3)
    f1 = conv_s2(planes1, wp["conv1_w"], wp["conv1_b"], fh1, fw1)  # (B,fh1,fw1,128)

    # ---- backbone conv2 + rpn conv + fused rpn heads (one kernel) ----
    fh2, fw2 = fh1 // 2, fw1 // 2
    f1p = jnp.pad(f1, ((0, 0), (1, 1), (1, 1), (0, 0)))
    planes2 = _space_to_depth_planes(f1p)                         # (B,4,fh2+1,fw2+1,128)
    feat, rpn_out = conv2_rpn(planes2,
                              wp["conv2_w"], wp["conv2_b"],
                              wp["rpn_conv_w"], wp["rpn_conv_b"],
                              wp["rpn_head_w"], wp["rpn_head_b"], fh2, fw2)

    # ---- RPN proposal selection (glue) ----
    logits = rpn_out[..., :A]                                     # (B,fh2,fw2,A)
    deltas = rpn_out[..., A:5 * A].reshape(B, -1, 4)
    scores = jax.nn.sigmoid(logits).reshape(B, -1)
    anchors = generate_anchors(fh2, fw2, CFG["feature_stride"], CFG["anchor_sizes"])
    boxes = decode_boxes(deltas, anchors[None, :, :])
    boxes = clip_boxes(boxes, image_size[0], image_size[1])
    _, idx = jax.lax.top_k(scores, top_n)
    gather_idx = jnp.broadcast_to(idx[..., None], (B, top_n, 4))
    proposals = jnp.take_along_axis(boxes, gather_idx, axis=1)    # (B, top_n, 4)
    # TODO(synk): per-image NMS of proposals has no clean Pallas equivalent.

    # ---- RoI heads ----
    pooled = roi_pool_nearest(feat, proposals, r, 1.0 / CFG["feature_stride"])
    xroi = pooled.reshape(B * top_n, -1).astype(_BF16)            # (B*K, r*r*128)
    cls_pad, box_pad = roi_head_mlp(xroi,
                                    wp["fc1_w"], wp["fc1_b"],
                                    wp["fc2_w"], wp["fc2_b"],
                                    wp["head_w"], wp["head_b"], nc)
    cls_prob = cls_pad[:, :nc]                                    # (B*K, nc)
    bbox_pred = box_pad[:, :4 * nc]                               # (B*K, 4*nc)

    labels = jnp.argmax(cls_prob[:, 1:], axis=-1) + 1             # exclude background
    det_scores = jnp.take_along_axis(cls_prob, labels[:, None], axis=1)[:, 0]
    dsel = bbox_pred.reshape(B * top_n, nc, 4)
    sel = jnp.broadcast_to(labels[:, None, None], (B * top_n, 1, 4))
    dsel = jnp.take_along_axis(dsel, sel, axis=1)[:, 0]
    det_boxes = decode_boxes(dsel, proposals.reshape(B * top_n, 4),
                             weights=(10.0, 10.0, 5.0, 5.0))
    det_boxes = clip_boxes(det_boxes, image_size[0], image_size[1])
    # TODO(synk): class-aware NMS / score thresholding of final detections omitted.
    return {
        "boxes": det_boxes.reshape(B, top_n, 4),
        "scores": det_scores.reshape(B, top_n),
        "labels": labels.reshape(B, top_n),
    }


class GeneralizedRCNN:
    def __init__(self, params):
        self.params = params
        self._prepped = _prepare_weights(params)     # one-time weight re-layout
        self._fwd = jax.jit(_forward_impl)

    def forward(self, images, targets=None):
        # TODO(synk): training branch (loss dicts) not implemented; eval path only.
        return self._fwd(self._prepped, images)


# ----------------------------------------------------------------------------
if __name__ == "__main__":
    key = jax.random.PRNGKey(0)
    pkey, ikey = jax.random.split(key)
    params = init_params(pkey)
    # PyTorch-convention NCHW input images.
    images = jax.random.normal(ikey, (2, 3, 32, 32), dtype=jnp.float32)

    model = GeneralizedRCNN(params)
    result = model.forward(images)
    jax.block_until_ready(result)

    assert result["boxes"].shape == (2, CFG["rpn_top_n"], 4)
    assert result["scores"].shape == (2, CFG["rpn_top_n"])
    assert result["labels"].shape == (2, CFG["rpn_top_n"])
    print("KERNEL_OK")
</pallas_src>

<mosaic_0001>
module attributes {stable_mosaic.version = 11 : i64} {
  func.func @_conv_s2_kernel(%arg0: i32, %arg1: memref<1x4x17x17x3xf32, #tpu.memory_space<vmem>>, %arg2: memref<9x3x128xbf16, #tpu.memory_space<vmem>>, %arg3: memref<1x128xf32, #tpu.memory_space<vmem>>, %arg4: memref<1x16x16x128xf32, #tpu.memory_space<vmem>>) attributes {dimension_semantics = [#tpu.dimension_semantics<parallel>], iteration_bounds = array<i64: 2>, scalar_prefetch = 0 : i64, scratch_operands = 0 : i64, tpu.core_type = #tpu.core_type<tc>, window_params = [{transform_indices = @transform_0, window_bounds = array<i64: 1, 4, 17, 17, 3>}, {pipeline_mode = #tpu.pipeline_mode<synchronous>, transform_indices = @transform_1, window_bounds = array<i64: 9, 3, 128>}, {pipeline_mode = #tpu.pipeline_mode<synchronous>, transform_indices = @transform_2, window_bounds = array<i64: 1, 128>}, {transform_indices = @transform_3, window_bounds = array<i64: 1, 16, 16, 128>}]} {
    %cst = arith.constant 0.000000e+00 : f32
    %0 = vector.broadcast %cst : f32 to vector<256x128xf32>
    %c0 = arith.constant 0 : index
    %c0_0 = arith.constant 0 : index
    %c0_1 = arith.constant 0 : index
    %c0_2 = arith.constant 0 : index
    %c0_3 = arith.constant 0 : index
    %1 = vector.load %arg1[%c0, %c0_0, %c0_1, %c0_2, %c0_3] : memref<1x4x17x17x3xf32, #tpu.memory_space<vmem>>, vector<1x1x16x16x3xf32>
    %2 = vector.shape_cast %1 : vector<1x1x16x16x3xf32> to vector<16x16x3xf32>
    %3 = vector.shape_cast %2 : vector<16x16x3xf32> to vector<256x3xf32>
    %4 = arith.truncf %3 : vector<256x3xf32> to vector<256x3xbf16>
    %c0_4 = arith.constant 0 : index
    %c0_5 = arith.constant 0 : index
    %c0_6 = arith.constant 0 : index
    %5 = vector.load %arg2[%c0_4, %c0_5, %c0_6] : memref<9x3x128xbf16, #tpu.memory_space<vmem>>, vector<1x3x128xbf16>
    %6 = vector.shape_cast %5 : vector<1x3x128xbf16> to vector<3x128xbf16>
    %cst_7 = arith.constant dense<0.000000e+00> : vector<256x128xf32>
    %7 = tpu.matmul %4, %6, %cst_7 {dimension_numbers = #tpu.dot_dimension_numbers<[1], [0], [0], [1], [0, 0, 1, 1], [], []>} : vector<256x3xbf16>, vector<3x128xbf16>, vector<256x128xf32> -> vector<256x128xf32>
    %8 = arith.addf %0, %7 : vector<256x128xf32>
    %c0_8 = arith.constant 0 : index
    %c1 = arith.constant 1 : index
    %c0_9 = arith.constant 0 : index
    %c0_10 = arith.constant 0 : index
    %c0_11 = arith.constant 0 : index
    %9 = vector.load %arg1[%c0_8, %c1, %c0_9, %c0_10, %c0_11] : memref<1x4x17x17x3xf32, #tpu.memory_space<vmem>>, vector<1x1x16x16x3xf32>
    %10 = vector.shape_cast %9 : vector<1x1x16x16x3xf32> to vector<16x16x3xf32>
    %11 = vector.shape_cast %10 : vector<16x16x3xf32> to vector<256x3xf32>
    %12 = arith.truncf %11 : vector<256x3xf32> to vector<256x3xbf16>
    %c1_12 = arith.constant 1 : index
    %c0_13 = arith.constant 0 : index
    %c0_14 = arith.constant 0 : index
    %13 = vector.load %arg2[%c1_12, %c0_13, %c0_14] : memref<9x3x128xbf16, #tpu.memory_space<vmem>>, vector<1x3x128xbf16>
    %14 = vector.shape_cast %13 : vector<1x3x128xbf16> to vector<3x128xbf16>
    %cst_15 = arith.constant dense<0.000000e+00> : vector<256x128xf32>
    %15 = tpu.matmul %12, %14, %cst_15 {dimension_numbers = #tpu.dot_dimension_numbers<[1], [0], [0], [1], [0, 0, 1, 1], [], []>} : vector<256x3xbf16>, vector<3x128xbf16>, vector<256x128xf32> -> vector<256x128xf32>
    %16 = arith.addf %8, %15 : vector<256x128xf32>
    %c0_16 = arith.constant 0 : index
    %c0_17 = arith.constant 0 : index
    %c0_18 = arith.constant 0 : index
    %c1_19 = arith.constant 1 : index
    %c0_20 = arith.constant 0 : index
    %17 = vector.load %arg1[%c0_16, %c0_17, %c0_18, %c1_19, %c0_20] : memref<1x4x17x17x3xf32, #tpu.memory_space<vmem>>, vector<1x1x16x16x3xf32>
    %18 = vector.shape_cast %17 : vector<1x1x16x16x3xf32> to vector<16x16x3xf32>
    %19 = vector.shape_cast %18 : vector<16x16x3xf32> to vector<256x3xf32>
    %20 = arith.truncf %19 : vector<256x3xf32> to vector<256x3xbf16>
    %c2 = arith.constant 2 : index
    %c0_21 = arith.constant 0 : index
    %c0_22 = arith.constant 0 : index
    %21 = vector.load %arg2[%c2, %c0_21, %c0_22] : memref<9x3x128xbf16, #tpu.memory_space<vmem>>, vector<1x3x128xbf16>
    %22 = vector.shape_cast %21 : vector<1x3x128xbf16> to vector<3x128xbf16>
    %cst_23 = arith.constant dense<0.000000e+00> : vector<256x128xf32>
    %23 = tpu.matmul %20, %22, %cst_23 {dimension_numbers = #tpu.dot_dimension_numbers<[1], [0], [0], [1], [0, 0, 1, 1], [], []>} : vector<256x3xbf16>, vector<3x128xbf16>, vector<256x128xf32> -> vector<256x128xf32>
    %24 = arith.addf %16, %23 : vector<256x128xf32>
    %c0_24 = arith.constant 0 : index
    %c2_25 = arith.constant 2 : index
    %c0_26 = arith.constant 0 : index
    %c0_27 = arith.constant 0 : index
    %c0_28 = arith.constant 0 : index
    %25 = vector.load %arg1[%c0_24, %c2_25, %c0_26, %c0_27, %c0_28] : memref<1x4x17x17x3xf32, #tpu.memory_space<vmem>>, vector<1x1x16x16x3xf32>
    %26 = vector.shape_cast %25 : vector<1x1x16x16x3xf32> to vector<16x16x3xf32>
    %27 = vector.shape_cast %26 : vector<16x16x3xf32> to vector<256x3xf32>
    %28 = arith.truncf %27 : vector<256x3xf32> to vector<256x3xbf16>
    %c3 = arith.constant 3 : index
    %c0_29 = arith.constant 0 : index
    %c0_30 = arith.constant 0 : index
    %29 = vector.load %arg2[%c3, %c0_29, %c0_30] : memref<9x3x128xbf16, #tpu.memory_space<vmem>>, vector<1x3x128xbf16>
    %30 = vector.shape_cast %29 : vector<1x3x128xbf16> to vector<3x128xbf16>
    %cst_31 = arith.constant dense<0.000000e+00> : vector<256x128xf32>
    %31 = tpu.matmul %28, %30, %cst_31 {dimension_numbers = #tpu.dot_dimension_numbers<[1], [0], [0], [1], [0, 0, 1, 1], [], []>} : vector<256x3xbf16>, vector<3x128xbf16>, vector<256x128xf32> -> vector<256x128xf32>
    %32 = arith.addf %24, %31 : vector<256x128xf32>
    %c0_32 = arith.constant 0 : index
    %c3_33 = arith.constant 3 : index
    %c0_34 = arith.constant 0 : index
    %c0_35 = arith.constant 0 : index
    %c0_36 = arith.constant 0 : index
    %33 = vector.load %arg1[%c0_32, %c3_33, %c0_34, %c0_35, %c0_36] : memref<1x4x17x17x3xf32, #tpu.memory_space<vmem>>, vector<1x1x16x16x3xf32>
    %34 = vector.shape_cast %33 : vector<1x1x16x16x3xf32> to vector<16x16x3xf32>
    %35 = vector.shape_cast %34 : vector<16x16x3xf32> to vector<256x3xf32>
    %36 = arith.truncf %35 : vector<256x3xf32> to vector<256x3xbf16>
    %c4 = arith.constant 4 : index
    %c0_37 = arith.constant 0 : index
    %c0_38 = arith.constant 0 : index
    %37 = vector.load %arg2[%c4, %c0_37, %c0_38] : memref<9x3x128xbf16, #tpu.memory_space<vmem>>, vector<1x3x128xbf16>
    %38 = vector.shape_cast %37 : vector<1x3x128xbf16> to vector<3x128xbf16>
    %cst_39 = arith.constant dense<0.000000e+00> : vector<256x128xf32>
    %39 = tpu.matmul %36, %38, %cst_39 {dimension_numbers = #tpu.dot_dimension_numbers<[1], [0], [0], [1], [0, 0, 1, 1], [], []>} : vector<256x3xbf16>, vector<3x128xbf16>, vector<256x128xf32> -> vector<256x128xf32>
    %40 = arith.addf %32, %39 : vector<256x128xf32>
    %c0_40 = arith.constant 0 : index
    %c2_41 = arith.constant 2 : index
    %c0_42 = arith.constant 0 : index
    %c1_43 = arith.constant 1 : index
    %c0_44 = arith.constant 0 : index
    %41 = vector.load %arg1[%c0_40, %c2_41, %c0_42, %c1_43, %c0_44] : memref<1x4x17x17x3xf32, #tpu.memory_space<vmem>>, vector<1x1x16x16x3xf32>
    %42 = vector.shape_cast %41 : vector<1x1x16x16x3xf32> to vector<16x16x3xf32>
    %43 = vector.shape_cast %42 : vector<16x16x3xf32> to vector<256x3xf32>
    %44 = arith.truncf %43 : vector<256x3xf32> to vector<256x3xbf16>
    %c5 = arith.constant 5 : index
    %c0_45 = arith.constant 0 : index
    %c0_46 = arith.constant 0 : index
    %45 = vector.load %arg2[%c5, %c0_45, %c0_46] : memref<9x3x128xbf16, #tpu.memory_space<vmem>>, vector<1x3x128xbf16>
    %46 = vector.shape_cast %45 : vector<1x3x128xbf16> to vector<3x128xbf16>
    %cst_47 = arith.constant dense<0.000000e+00> : vector<256x128xf32>
    %47 = tpu.matmul %44, %46, %cst_47 {dimension_numbers = #tpu.dot_dimension_numbers<[1], [0], [0], [1], [0, 0, 1, 1], [], []>} : vector<256x3xbf16>, vector<3x128xbf16>, vector<256x128xf32> -> vector<256x128xf32>
    %48 = arith.addf %40, %47 : vector<256x128xf32>
    %c0_48 = arith.constant 0 : index
    %c0_49 = arith.constant 0 : index
    %c1_50 = arith.constant 1 : index
    %c0_51 = arith.constant 0 : index
    %c0_52 = arith.constant 0 : index
    %49 = vector.load %arg1[%c0_48, %c0_49, %c1_50, %c0_51, %c0_52] : memref<1x4x17x17x3xf32, #tpu.memory_space<vmem>>, vector<1x1x16x16x3xf32>
    %50 = vector.shape_cast %49 : vector<1x1x16x16x3xf32> to vector<16x16x3xf32>
    %51 = vector.shape_cast %50 : vector<16x16x3xf32> to vector<256x3xf32>
    %52 = arith.truncf %51 : vector<256x3xf32> to vector<256x3xbf16>
    %c6 = arith.constant 6 : index
    %c0_53 = arith.constant 0 : index
    %c0_54 = arith.constant 0 : index
    %53 = vector.load %arg2[%c6, %c0_53, %c0_54] : memref<9x3x128xbf16, #tpu.memory_space<vmem>>, vector<1x3x128xbf16>
    %54 = vector.shape_cast %53 : vector<1x3x128xbf16> to vector<3x128xbf16>
    %cst_55 = arith.constant dense<0.000000e+00> : vector<256x128xf32>
    %55 = tpu.matmul %52, %54, %cst_55 {dimension_numbers = #tpu.dot_dimension_numbers<[1], [0], [0], [1], [0, 0, 1, 1], [], []>} : vector<256x3xbf16>, vector<3x128xbf16>, vector<256x128xf32> -> vector<256x128xf32>
    %56 = arith.addf %48, %55 : vector<256x128xf32>
    %c0_56 = arith.constant 0 : index
    %c1_57 = arith.constant 1 : index
    %c1_58 = arith.constant 1 : index
    %c0_59 = arith.constant 0 : index
    %c0_60 = arith.constant 0 : index
    %57 = vector.load %arg1[%c0_56, %c1_57, %c1_58, %c0_59, %c0_60] : memref<1x4x17x17x3xf32, #tpu.memory_space<vmem>>, vector<1x1x16x16x3xf32>
    %58 = vector.shape_cast %57 : vector<1x1x16x16x3xf32> to vector<16x16x3xf32>
    %59 = vector.shape_cast %58 : vector<16x16x3xf32> to vector<256x3xf32>
    %60 = arith.truncf %59 : vector<256x3xf32> to vector<256x3xbf16>
    %c7 = arith.constant 7 : index
    %c0_61 = arith.constant 0 : index
    %c0_62 = arith.constant 0 : index
    %61 = vector.load %arg2[%c7, %c0_61, %c0_62] : memref<9x3x128xbf16, #tpu.memory_space<vmem>>, vector<1x3x128xbf16>
    %62 = vector.shape_cast %61 : vector<1x3x128xbf16> to vector<3x128xbf16>
    %cst_63 = arith.constant dense<0.000000e+00> : vector<256x128xf32>
    %63 = tpu.matmul %60, %62, %cst_63 {dimension_numbers = #tpu.dot_dimension_numbers<[1], [0], [0], [1], [0, 0, 1, 1], [], []>} : vector<256x3xbf16>, vector<3x128xbf16>, vector<256x128xf32> -> vector<256x128xf32>
    %64 = arith.addf %56, %63 : vector<256x128xf32>
    %c0_64 = arith.constant 0 : index
    %c0_65 = arith.constant 0 : index
    %c1_66 = arith.constant 1 : index
    %c1_67 = arith.constant 1 : index
    %c0_68 = arith.constant 0 : index
    %65 = vector.load %arg1[%c0_64, %c0_65, %c1_66, %c1_67, %c0_68] : memref<1x4x17x17x3xf32, #tpu.memory_space<vmem>>, vector<1x1x16x16x3xf32>
    %66 = vector.shape_cast %65 : vector<1x1x16x16x3xf32> to vector<16x16x3xf32>
    %67 = vector.shape_cast %66 : vector<16x16x3xf32> to vector<256x3xf32>
    %68 = arith.truncf %67 : vector<256x3xf32> to vector<256x3xbf16>
    %c8 = arith.constant 8 : index
    %c0_69 = arith.constant 0 : index
    %c0_70 = arith.constant 0 : index
    %69 = vector.load %arg2[%c8, %c0_69, %c0_70] : memref<9x3x128xbf16, #tpu.memory_space<vmem>>, vector<1x3x128xbf16>
    %70 = vector.shape_cast %69 : vector<1x3x128xbf16> to vector<3x128xbf16>
    %cst_71 = arith.constant dense<0.000000e+00> : vector<256x128xf32>
    %71 = tpu.matmul %68, %70, %cst_71 {dimension_numbers = #tpu.dot_dimension_numbers<[1], [0], [0], [1], [0, 0, 1, 1], [], []>} : vector<256x3xbf16>, vector<3x128xbf16>, vector<256x128xf32> -> vector<256x128xf32>
    %72 = arith.addf %64, %71 : vector<256x128xf32>
    %c0_72 = arith.constant 0 : index
    %c0_73 = arith.constant 0 : index
    %73 = vector.load %arg3[%c0_72, %c0_73] : memref<1x128xf32, #tpu.memory_space<vmem>>, vector<1x128xf32>
    %74 = vector.broadcast %73 : vector<1x128xf32> to vector<256x128xf32>
    %75 = arith.addf %72, %74 : vector<256x128xf32>
    %cst_74 = arith.constant 0.000000e+00 : f32
    %76 = vector.broadcast %cst_74 : f32 to vector<256x128xf32>
    %77 = arith.maximumf %75, %76 : vector<256x128xf32>
    %78 = vector.shape_cast %77 : vector<256x128xf32> to vector<1x16x16x128xf32>
    %c0_75 = arith.constant 0 : index
    %c0_76 = arith.constant 0 : index
    %c0_77 = arith.constant 0 : index
    %c0_78 = arith.constant 0 : index
    %79 = vector.load %arg4[%c0_75, %c0_76, %c0_77, %c0_78] : memref<1x16x16x128xf32, #tpu.memory_space<vmem>>, vector<1x16x16x128xf32>
    tpu.vector_store %arg4[%c0_75, %c0_76, %c0_77, %c0_78], %78 {strides = array<i32>} : memref<1x16x16x128xf32, #tpu.memory_space<vmem>>, vector<1x16x16x128xf32>,
    return
  }
  func.func @transform_0(%arg0: i32) -> (i32, i32, i32, i32, i32) {
    %c0_i32 = arith.constant 0 : i32
    %c0_i32_0 = arith.constant 0 : i32
    %c0_i32_1 = arith.constant 0 : i32
    %c0_i32_2 = arith.constant 0 : i32
    %c0_i32_3 = arith.constant 0 : i32
    return %arg0, %c0_i32, %c0_i32_0, %c0_i32_1, %c0_i32_2 : i32, i32, i32, i32, i32
  }
  func.func @transform_1(%arg0: i32) -> (i32, i32, i32) {
    %c0_i32 = arith.constant 0 : i32
    %c0_i32_0 = arith.constant 0 : i32
    %c0_i32_1 = arith.constant 0 : i32
    %c0_i32_2 = arith.constant 0 : i32
    return %c0_i32, %c0_i32_0, %c0_i32_1 : i32, i32, i32
  }
  func.func @transform_2(%arg0: i32) -> (i32, i32) {
    %c0_i32 = arith.constant 0 : i32
    %c0_i32_0 = arith.constant 0 : i32
    %c0_i32_1 = arith.constant 0 : i32
    return %c0_i32, %c0_i32_0 : i32, i32
  }
  func.func @transform_3(%arg0: i32) -> (i32, i32, i32, i32) {
    %c0_i32 = arith.constant 0 : i32
    %c0_i32_0 = arith.constant 0 : i32
    %c0_i32_1 = arith.constant 0 : i32
    %c0_i32_2 = arith.constant 0 : i32
    return %arg0, %c0_i32, %c0_i32_0, %c0_i32_1 : i32, i32, i32, i32
  }
}

module attributes {stable_mosaic.version = 11 : i64} {
  func.func @_conv2_rpn_kernel(%arg0: i32, %arg1: memref<1x4x9x9x128xf32, #tpu.memory_space<vmem>>, %arg2: memref<9x128x128xbf16, #tpu.memory_space<vmem>>, %arg3: memref<1x128xf32, #tpu.memory_space<vmem>>, %arg4: memref<9x128x128xbf16, #tpu.memory_space<vmem>>, %arg5: memref<1x128xf32, #tpu.memory_space<vmem>>, %arg6: memref<128x128xbf16, #tpu.memory_space<vmem>>, %arg7: memref<1x128xf32, #tpu.memory_space<vmem>>, %arg8: memref<1x8x8x128xf32, #tpu.memory_space<vmem>>, %arg9: memref<1x8x8x128xf32, #tpu.memory_space<vmem>>, %arg10: memref<10x10x128xf32, #tpu.memory_space<vmem>>) attributes {dimension_semantics = [#tpu.dimension_semantics<parallel>], iteration_bounds = array<i64: 2>, scalar_prefetch = 0 : i64, scratch_operands = 1 : i64, tpu.core_type = #tpu.core_type<tc>, window_params = [{transform_indices = @transform_0, window_bounds = array<i64: 1, 4, 9, 9, 128>}, {pipeline_mode = #tpu.pipeline_mode<synchronous>, transform_indices = @transform_1, window_bounds = array<i64: 9, 128, 128>}, {pipeline_mode = #tpu.pipeline_mode<synchronous>, transform_indices = @transform_2, window_bounds = array<i64: 1, 128>}, {pipeline_mode = #tpu.pipeline_mode<synchronous>, transform_indices = @transform_3, window_bounds = array<i64: 9, 128, 128>}, {pipeline_mode = #tpu.pipeline_mode<synchronous>, transform_indices = @transform_4, window_bounds = array<i64: 1, 128>}, {pipeline_mode = #tpu.pipeline_mode<synchronous>, transform_indices = @transform_5, window_bounds = array<i64: 128, 128>}, {pipeline_mode = #tpu.pipeline_mode<synchronous>, transform_indices = @transform_6, window_bounds = array<i64: 1, 128>}, {transform_indices = @transform_7, window_bounds = array<i64: 1, 8, 8, 128>}, {transform_indices = @transform_8, window_bounds = array<i64: 1, 8, 8, 128>}]} {
    %cst = arith.constant 0.000000e+00 : f32
    %0 = vector.broadcast %cst : f32 to vector<64x128xf32>
    %c0 = arith.constant 0 : index
    %c0_0 = arith.constant 0 : index
    %c0_1 = arith.constant 0 : index
    %c0_2 = arith.constant 0 : index
    %c0_3 = arith.constant 0 : index
    %1 = vector.load %arg1[%c0, %c0_0, %c0_1, %c0_2, %c0_3] : memref<1x4x9x9x128xf32, #tpu.memory_space<vmem>>, vector<1x1x8x8x128xf32>
    %2 = vector.shape_cast %1 : vector<1x1x8x8x128xf32> to vector<8x8x128xf32>
    %3 = vector.shape_cast %2 : vector<8x8x128xf32> to vector<64x128xf32>
    %4 = arith.truncf %3 : vector<64x128xf32> to vector<64x128xbf16>
    %c0_4 = arith.constant 0 : index
    %c0_5 = arith.constant 0 : index
    %c0_6 = arith.constant 0 : index
    %5 = vector.load %arg2[%c0_4, %c0_5, %c0_6] : memref<9x128x128xbf16, #tpu.memory_space<vmem>>, vector<1x128x128xbf16>
    %6 = vector.shape_cast %5 : vector<1x128x128xbf16> to vector<128x128xbf16>
    %cst_7 = arith.constant dense<0.000000e+00> : vector<64x128xf32>
    %7 = tpu.matmul %4, %6, %cst_7 {dimension_numbers = #tpu.dot_dimension_numbers<[1], [0], [0], [1], [0, 0, 1, 1], [], []>} : vector<64x128xbf16>, vector<128x128xbf16>, vector<64x128xf32> -> vector<64x128xf32>
    %8 = arith.addf %0, %7 : vector<64x128xf32>
    %c0_8 = arith.constant 0 : index
    %c1 = arith.constant 1 : index
    %c0_9 = arith.constant 0 : index
    %c0_10 = arith.constant 0 : index
    %c0_11 = arith.constant 0 : index
    %9 = vector.load %arg1[%c0_8, %c1, %c0_9, %c0_10, %c0_11] : memref<1x4x9x9x128xf32, #tpu.memory_space<vmem>>, vector<1x1x8x8x128xf32>
    %10 = vector.shape_cast %9 : vector<1x1x8x8x128xf32> to vector<8x8x128xf32>
    %11 = vector.shape_cast %10 : vector<8x8x128xf32> to vector<64x128xf32>
    %12 = arith.truncf %11 : vector<64x128xf32> to vector<64x128xbf16>
    %c1_12 = arith.constant 1 : index
    %c0_13 = arith.constant 0 : index
    %c0_14 = arith.constant 0 : index
    %13 = vector.load %arg2[%c1_12, %c0_13, %c0_14] : memref<9x128x128xbf16, #tpu.memory_space<vmem>>, vector<1x128x128xbf16>
    %14 = vector.shape_cast %13 : vector<1x128x128xbf16> to vector<128x128xbf16>
    %cst_15 = arith.constant dense<0.000000e+00> : vector<64x128xf32>
    %15 = tpu.matmul %12, %14, %cst_15 {dimension_numbers = #tpu.dot_dimension_numbers<[1], [0], [0], [1], [0, 0, 1, 1], [], []>} : vector<64x128xbf16>, vector<128x128xbf16>, vector<64x128xf32> -> vector<64x128xf32>
    %16 = arith.addf %8, %15 : vector<64x128xf32>
    %c0_16 = arith.constant 0 : index
    %c0_17 = arith.constant 0 : index
    %c0_18 = arith.constant 0 : index
    %c1_19 = arith.constant 1 : index
    %c0_20 = arith.constant 0 : index
    %17 = vector.load %arg1[%c0_16, %c0_17, %c0_18, %c1_19, %c0_20] : memref<1x4x9x9x128xf32, #tpu.memory_space<vmem>>, vector<1x1x8x8x128xf32>
    %18 = vector.shape_cast %17 : vector<1x1x8x8x128xf32> to vector<8x8x128xf32>
    %19 = vector.shape_cast %18 : vector<8x8x128xf32> to vector<64x128xf32>
    %20 = arith.truncf %19 : vector<64x128xf32> to vector<64x128xbf16>
    %c2 = arith.constant 2 : index
    %c0_21 = arith.constant 0 : index
    %c0_22 = arith.constant 0 : index
    %21 = vector.load %arg2[%c2, %c0_21, %c0_22] : memref<9x128x128xbf16, #tpu.memory_space<vmem>>, vector<1x128x128xbf16>
    %22 = vector.shape_cast %21 : vector<1x128x128xbf16> to vector<128x128xbf16>
    %cst_23 = arith.constant dense<0.000000e+00> : vector<64x128xf32>
    %23 = tpu.matmul %20, %22, %cst_23 {dimension_numbers = #tpu.dot_dimension_numbers<[1], [0], [0], [1], [0, 0, 1, 1], [], []>} : vector<64x128xbf16>, vector<128x128xbf16>, vector<64x128xf32> -> vector<64x128xf32>
    %24 = arith.addf %16, %23 : vector<64x128xf32>
    %c0_24 = arith.constant 0 : index
    %c2_25 = arith.constant 2 : index
    %c0_26 = arith.constant 0 : index
    %c0_27 = arith.constant 0 : index
    %c0_28 = arith.constant 0 : index
    %25 = vector.load %arg1[%c0_24, %c2_25, %c0_26, %c0_27, %c0_28] : memref<1x4x9x9x128xf32, #tpu.memory_space<vmem>>, vector<1x1x8x8x128xf32>
    %26 = vector.shape_cast %25 : vector<1x1x8x8x128xf32> to vector<8x8x128xf32>
    %27 = vector.shape_cast %26 : vector<8x8x128xf32> to vector<64x128xf32>
    %28 = arith.truncf %27 : vector<64x128xf32> to vector<64x128xbf16>
    %c3 = arith.constant 3 : index
    %c0_29 = arith.constant 0 : index
    %c0_30 = arith.constant 0 : index
    %29 = vector.load %arg2[%c3, %c0_29, %c0_30] : memref<9x128x128xbf16, #tpu.memory_space<vmem>>, vector<1x128x128xbf16>
    %30 = vector.shape_cast %29 : vector<1x128x128xbf16> to vector<128x128xbf16>
    %cst_31 = arith.constant dense<0.000000e+00> : vector<64x128xf32>
    %31 = tpu.matmul %28, %30, %cst_31 {dimension_numbers = #tpu.dot_dimension_numbers<[1], [0], [0], [1], [0, 0, 1, 1], [], []>} : vector<64x128xbf16>, vector<128x128xbf16>, vector<64x128xf32> -> vector<64x128xf32>
    %32 = arith.addf %24, %31 : vector<64x128xf32>
    %c0_32 = arith.constant 0 : index
    %c3_33 = arith.constant 3 : index
    %c0_34 = arith.constant 0 : index
    %c0_35 = arith.constant 0 : index
    %c0_36 = arith.constant 0 : index
    %33 = vector.load %arg1[%c0_32, %c3_33, %c0_34, %c0_35, %c0_36] : memref<1x4x9x9x128xf32, #tpu.memory_space<vmem>>, vector<1x1x8x8x128xf32>
    %34 = vector.shape_cast %33 : vector<1x1x8x8x128xf32> to vector<8x8x128xf32>
    %35 = vector.shape_cast %34 : vector<8x8x128xf32> to vector<64x128xf32>
    %36 = arith.truncf %35 : vector<64x128xf32> to vector<64x128xbf16>
    %c4 = arith.constant 4 : index
    %c0_37 = arith.constant 0 : index
    %c0_38 = arith.constant 0 : index
    %37 = vector.load %arg2[%c4, %c0_37, %c0_38] : memref<9x128x128xbf16, #tpu.memory_space<vmem>>, vector<1x128x128xbf16>
    %38 = vector.shape_cast %37 : vector<1x128x128xbf16> to vector<128x128xbf16>
    %cst_39 = arith.constant dense<0.000000e+00> : vector<64x128xf32>
    %39 = tpu.matmul %36, %38, %cst_39 {dimension_numbers = #tpu.dot_dimension_numbers<[1], [0], [0], [1], [0, 0, 1, 1], [], []>} : vector<64x128xbf16>, vector<128x128xbf16>, vector<64x128xf32> -> vector<64x128xf32>
    %40 = arith.addf %32, %39 : vector<64x128xf32>
    %c0_40 = arith.constant 0 : index
    %c2_41 = arith.constant 2 : index
    %c0_42 = arith.constant 0 : index
    %c1_43 = arith.constant 1 : index
    %c0_44 = arith.constant 0 : index
    %41 = vector.load %arg1[%c0_40, %c2_41, %c0_42, %c1_43, %c0_44] : memref<1x4x9x9x128xf32, #tpu.memory_space<vmem>>, vector<1x1x8x8x128xf32>
    %42 = vector.shape_cast %41 : vector<1x1x8x8x128xf32> to vector<8x8x128xf32>
    %43 = vector.shape_cast %42 : vector<8x8x128xf32> to vector<64x128xf32>
    %44 = arith.truncf %43 : vector<64x128xf32> to vector<64x128xbf16>
    %c5 = arith.constant 5 : index
    %c0_45 = arith.constant 0 : index
    %c0_46 = arith.constant 0 : index
    %45 = vector.load %arg2[%c5, %c0_45, %c0_46] : memref<9x128x128xbf16, #tpu.memory_space<vmem>>, vector<1x128x128xbf16>
    %46 = vector.shape_cast %45 : vector<1x128x128xbf16> to vector<128x128xbf16>
    %cst_47 = arith.constant dense<0.000000e+00> : vector<64x128xf32>
    %47 = tpu.matmul %44, %46, %cst_47 {dimension_numbers = #tpu.dot_dimension_numbers<[1], [0], [0], [1], [0, 0, 1, 1], [], []>} : vector<64x128xbf16>, vector<128x128xbf16>, vector<64x128xf32> -> vector<64x128xf32>
    %48 = arith.addf %40, %47 : vector<64x128xf32>
    %c0_48 = arith.constant 0 : index
    %c0_49 = arith.constant 0 : index
    %c1_50 = arith.constant 1 : index
    %c0_51 = arith.constant 0 : index
    %c0_52 = arith.constant 0 : index
    %49 = vector.load %arg1[%c0_48, %c0_49, %c1_50, %c0_51, %c0_52] : memref<1x4x9x9x128xf32, #tpu.memory_space<vmem>>, vector<1x1x8x8x128xf32>
    %50 = vector.shape_cast %49 : vector<1x1x8x8x128xf32> to vector<8x8x128xf32>
    %51 = vector.shape_cast %50 : vector<8x8x128xf32> to vector<64x128xf32>
    %52 = arith.truncf %51 : vector<64x128xf32> to vector<64x128xbf16>
    %c6 = arith.constant 6 : index
    %c0_53 = arith.constant 0 : index
    %c0_54 = arith.constant 0 : index
    %53 = vector.load %arg2[%c6, %c0_53, %c0_54] : memref<9x128x128xbf16, #tpu.memory_space<vmem>>, vector<1x128x128xbf16>
    %54 = vector.shape_cast %53 : vector<1x128x128xbf16> to vector<128x128xbf16>
    %cst_55 = arith.constant dense<0.000000e+00> : vector<64x128xf32>
    %55 = tpu.matmul %52, %54, %cst_55 {dimension_numbers = #tpu.dot_dimension_numbers<[1], [0], [0], [1], [0, 0, 1, 1], [], []>} : vector<64x128xbf16>, vector<128x128xbf16>, vector<64x128xf32> -> vector<64x128xf32>
    %56 = arith.addf %48, %55 : vector<64x128xf32>
    %c0_56 = arith.constant 0 : index
    %c1_57 = arith.constant 1 : index
    %c1_58 = arith.constant 1 : index
    %c0_59 = arith.constant 0 : index
    %c0_60 = arith.constant 0 : index
    %57 = vector.load %arg1[%c0_56, %c1_57, %c1_58, %c0_59, %c0_60] : memref<1x4x9x9x128xf32, #tpu.memory_space<vmem>>, vector<1x1x8x8x128xf32>
    %58 = vector.shape_cast %57 : vector<1x1x8x8x128xf32> to vector<8x8x128xf32>
    %59 = vector.shape_cast %58 : vector<8x8x128xf32> to vector<64x128xf32>
    %60 = arith.truncf %59 : vector<64x128xf32> to vector<64x128xbf16>
    %c7 = arith.constant 7 : index
    %c0_61 = arith.constant 0 : index
    %c0_62 = arith.constant 0 : index
    %61 = vector.load %arg2[%c7, %c0_61, %c0_62] : memref<9x128x128xbf16, #tpu.memory_space<vmem>>, vector<1x128x128xbf16>
    %62 = vector.shape_cast %61 : vector<1x128x128xbf16> to vector<128x128xbf16>
    %cst_63 = arith.constant dense<0.000000e+00> : vector<64x128xf32>
    %63 = tpu.matmul %60, %62, %cst_63 {dimension_numbers = #tpu.dot_dimension_numbers<[1], [0], [0], [1], [0, 0, 1, 1], [], []>} : vector<64x128xbf16>, vector<128x128xbf16>, vector<64x128xf32> -> vector<64x128xf32>
    %64 = arith.addf %56, %63 : vector<64x128xf32>
    %c0_64 = arith.constant 0 : index
    %c0_65 = arith.constant 0 : index
    %c1_66 = arith.constant 1 : index
    %c1_67 = arith.constant 1 : index
    %c0_68 = arith.constant 0 : index
    %65 = vector.load %arg1[%c0_64, %c0_65, %c1_66, %c1_67, %c0_68] : memref<1x4x9x9x128xf32, #tpu.memory_space<vmem>>, vector<1x1x8x8x128xf32>
    %66 = vector.shape_cast %65 : vector<1x1x8x8x128xf32> to vector<8x8x128xf32>
    %67 = vector.shape_cast %66 : vector<8x8x128xf32> to vector<64x128xf32>
    %68 = arith.truncf %67 : vector<64x128xf32> to vector<64x128xbf16>
    %c8 = arith.constant 8 : index
    %c0_69 = arith.constant 0 : index
    %c0_70 = arith.constant 0 : index
    %69 = vector.load %arg2[%c8, %c0_69, %c0_70] : memref<9x128x128xbf16, #tpu.memory_space<vmem>>, vector<1x128x128xbf16>
    %70 = vector.shape_cast %69 : vector<1x128x128xbf16> to vector<128x128xbf16>
    %cst_71 = arith.constant dense<0.000000e+00> : vector<64x128xf32>
    %71 = tpu.matmul %68, %70, %cst_71 {dimension_numbers = #tpu.dot_dimension_numbers<[1], [0], [0], [1], [0, 0, 1, 1], [], []>} : vector<64x128xbf16>, vector<128x128xbf16>, vector<64x128xf32> -> vector<64x128xf32>
    %72 = arith.addf %64, %71 : vector<64x128xf32>
    %c0_72 = arith.constant 0 : index
    %c0_73 = arith.constant 0 : index
    %73 = vector.load %arg3[%c0_72, %c0_73] : memref<1x128xf32, #tpu.memory_space<vmem>>, vector<1x128xf32>
    %74 = vector.broadcast %73 : vector<1x128xf32> to vector<64x128xf32>
    %75 = arith.addf %72, %74 : vector<64x128xf32>
    %cst_74 = arith.constant 0.000000e+00 : f32
    %76 = vector.broadcast %cst_74 : f32 to vector<64x128xf32>
    %77 = arith.maximumf %75, %76 : vector<64x128xf32>
    %78 = vector.shape_cast %77 : vector<64x128xf32> to vector<1x8x8x128xf32>
    %c0_75 = arith.constant 0 : index
    %c0_76 = arith.constant 0 : index
    %c0_77 = arith.constant 0 : index
    %c0_78 = arith.constant 0 : index
    %79 = vector.load %arg8[%c0_75, %c0_76, %c0_77, %c0_78] : memref<1x8x8x128xf32, #tpu.memory_space<vmem>>, vector<1x8x8x128xf32>
    tpu.vector_store %arg8[%c0_75, %c0_76, %c0_77, %c0_78], %78 {strides = array<i32>} : memref<1x8x8x128xf32, #tpu.memory_space<vmem>>, vector<1x8x8x128xf32>,
    %cst_79 = arith.constant 0.000000e+00 : f32
    %80 = vector.broadcast %cst_79 : f32 to vector<10x10x128xf32>
    %c0_80 = arith.constant 0 : index
    %c0_81 = arith.constant 0 : index
    %c0_82 = arith.constant 0 : index
    %81 = vector.load %arg10[%c0_80, %c0_81, %c0_82] : memref<10x10x128xf32, #tpu.memory_space<vmem>>, vector<10x10x128xf32>
    tpu.vector_store %arg10[%c0_80, %c0_81, %c0_82], %80 {strides = array<i32>} : memref<10x10x128xf32, #tpu.memory_space<vmem>>, vector<10x10x128xf32>,
    %82 = vector.shape_cast %77 : vector<64x128xf32> to vector<8x8x128xf32>
    %c1_83 = arith.constant 1 : index
    %c1_84 = arith.constant 1 : index
    %c0_85 = arith.constant 0 : index
    %83 = vector.load %arg10[%c1_83, %c1_84, %c0_85] : memref<10x10x128xf32, #tpu.memory_space<vmem>>, vector<8x8x128xf32>
    tpu.vector_store %arg10[%c1_83, %c1_84, %c0_85], %82 {strides = array<i32>} : memref<10x10x128xf32, #tpu.memory_space<vmem>>, vector<8x8x128xf32>,
    %cst_86 = arith.constant 0.000000e+00 : f32
    %84 = vector.broadcast %cst_86 : f32 to vector<64x128xf32>
    %c0_87 = arith.constant 0 : index
    %c0_88 = arith.constant 0 : index
    %c0_89 = arith.constant 0 : index
    %85 = vector.load %arg10[%c0_87, %c0_88, %c0_89] : memref<10x10x128xf32, #tpu.memory_space<vmem>>, vector<8x8x128xf32>
    %86 = vector.shape_cast %85 : vector<8x8x128xf32> to vector<64x128xf32>
    %87 = arith.truncf %86 : vector<64x128xf32> to vector<64x128xbf16>
    %c0_90 = arith.constant 0 : index
    %c0_91 = arith.constant 0 : index
    %c0_92 = arith.constant 0 : index
    %88 = vector.load %arg4[%c0_90, %c0_91, %c0_92] : memref<9x128x128xbf16, #tpu.memory_space<vmem>>, vector<1x128x128xbf16>
    %89 = vector.shape_cast %88 : vector<1x128x128xbf16> to vector<128x128xbf16>
    %cst_93 = arith.constant dense<0.000000e+00> : vector<64x128xf32>
    %90 = tpu.matmul %87, %89, %cst_93 {dimension_numbers = #tpu.dot_dimension_numbers<[1], [0], [0], [1], [0, 0, 1, 1], [], []>} : vector<64x128xbf16>, vector<128x128xbf16>, vector<64x128xf32> -> vector<64x128xf32>
    %91 = arith.addf %84, %90 : vector<64x128xf32>
    %c0_94 = arith.constant 0 : index
    %c1_95 = arith.constant 1 : index
    %c0_96 = arith.constant 0 : index
    %92 = vector.load %arg10[%c0_94, %c1_95, %c0_96] : memref<10x10x128xf32, #tpu.memory_space<vmem>>, vector<8x8x128xf32>
    %93 = vector.shape_cast %92 : vector<8x8x128xf32> to vector<64x128xf32>
    %94 = arith.truncf %93 : vector<64x128xf32> to vector<64x128xbf16>
    %c1_97 = arith.constant 1 : index
    %c0_98 = arith.constant 0 : index
    %c0_99 = arith.constant 0 : index
    %95 = vector.load %arg4[%c1_97, %c0_98, %c0_99] : memref<9x128x128xbf16, #tpu.memory_space<vmem>>, vector<1x128x128xbf16>
    %96 = vector.shape_cast %95 : vector<1x128x128xbf16> to vector<128x128xbf16>
    %cst_100 = arith.constant dense<0.000000e+00> : vector<64x128xf32>
    %97 = tpu.matmul %94, %96, %cst_100 {dimension_numbers = #tpu.dot_dimension_numbers<[1], [0], [0], [1], [0, 0, 1, 1], [], []>} : vector<64x128xbf16>, vector<128x128xbf16>, vector<64x128xf32> -> vector<64x128xf32>
    %98 = arith.addf %91, %97 : vector<64x128xf32>
    %c0_101 = arith.constant 0 : index
    %c2_102 = arith.constant 2 : index
    %c0_103 = arith.constant 0 : index
    %99 = vector.load %arg10[%c0_101, %c2_102, %c0_103] : memref<10x10x128xf32, #tpu.memory_space<vmem>>, vector<8x8x128xf32>
    %100 = vector.shape_cast %99 : vector<8x8x128xf32> to vector<64x128xf32>
    %101 = arith.truncf %100 : vector<64x128xf32> to vector<64x128xbf16>
    %c2_104 = arith.constant 2 : index
    %c0_105 = arith.constant 0 : index
    %c0_106 = arith.constant 0 : index
    %102 = vector.load %arg4[%c2_104, %c0_105, %c0_106] : memref<9x128x128xbf16, #tpu.memory_space<vmem>>, vector<1x128x128xbf16>
    %103 = vector.shape_cast %102 : vector<1x128x128xbf16> to vector<128x128xbf16>
    %cst_107 = arith.constant dense<0.000000e+00> : vector<64x128xf32>
    %104 = tpu.matmul %101, %103, %cst_107 {dimension_numbers = #tpu.dot_dimension_numbers<[1], [0], [0], [1], [0, 0, 1, 1], [], []>} : vector<64x128xbf16>, vector<128x128xbf16>, vector<64x128xf32> -> vector<64x128xf32>
    %105 = arith.addf %98, %104 : vector<64x128xf32>
    %c1_108 = arith.constant 1 : index
    %c0_109 = arith.constant 0 : index
    %c0_110 = arith.constant 0 : index
    %106 = vector.load %arg10[%c1_108, %c0_109, %c0_110] : memref<10x10x128xf32, #tpu.memory_space<vmem>>, vector<8x8x128xf32>
    %107 = vector.shape_cast %106 : vector<8x8x128xf32> to vector<64x128xf32>
    %108 = arith.truncf %107 : vector<64x128xf32> to vector<64x128xbf16>
    %c3_111 = arith.constant 3 : index
    %c0_112 = arith.constant 0 : index
    %c0_113 = arith.constant 0 : index
    %109 = vector.load %arg4[%c3_111, %c0_112, %c0_113] : memref<9x128x128xbf16, #tpu.memory_space<vmem>>, vector<1x128x128xbf16>
    %110 = vector.shape_cast %109 : vector<1x128x128xbf16> to vector<128x128xbf16>
    %cst_114 = arith.constant dense<0.000000e+00> : vector<64x128xf32>
    %111 = tpu.matmul %108, %110, %cst_114 {dimension_numbers = #tpu.dot_dimension_numbers<[1], [0], [0], [1], [0, 0, 1, 1], [], []>} : vector<64x128xbf16>, vector<128x128xbf16>, vector<64x128xf32> -> vector<64x128xf32>
    %112 = arith.addf %105, %111 : vector<64x128xf32>
    %c1_115 = arith.constant 1 : index
    %c1_116 = arith.constant 1 : index
    %c0_117 = arith.constant 0 : index
    %113 = vector.load %arg10[%c1_115, %c1_116, %c0_117] : memref<10x10x128xf32, #tpu.memory_space<vmem>>, vector<8x8x128xf32>
    %114 = vector.shape_cast %113 : vector<8x8x128xf32> to vector<64x128xf32>
    %115 = arith.truncf %114 : vector<64x128xf32> to vector<64x128xbf16>
    %c4_118 = arith.constant 4 : index
    %c0_119 = arith.constant 0 : index
    %c0_120 = arith.constant 0 : index
    %116 = vector.load %arg4[%c4_118, %c0_119, %c0_120] : memref<9x128x128xbf16, #tpu.memory_space<vmem>>, vector<1x128x128xbf16>
    %117 = vector.shape_cast %116 : vector<1x128x128xbf16> to vector<128x128xbf16>
    %cst_121 = arith.constant dense<0.000000e+00> : vector<64x128xf32>
    %118 = tpu.matmul %115, %117, %cst_121 {dimension_numbers = #tpu.dot_dimension_numbers<[1], [0], [0], [1], [0, 0, 1, 1], [], []>} : vector<64x128xbf16>, vector<128x128xbf16>, vector<64x128xf32> -> vector<64x128xf32>
    %119 = arith.addf %112, %118 : vector<64x128xf32>
    %c1_122 = arith.constant 1 : index
    %c2_123 = arith.constant 2 : index
    %c0_124 = arith.constant 0 : index
    %120 = vector.load %arg10[%c1_122, %c2_123, %c0_124] : memref<10x10x128xf32, #tpu.memory_space<vmem>>, vector<8x8x128xf32>
    %121 = vector.shape_cast %120 : vector<8x8x128xf32> to vector<64x128xf32>
    %122 = arith.truncf %121 : vector<64x128xf32> to vector<64x128xbf16>
    %c5_125 = arith.constant 5 : index
    %c0_126 = arith.constant 0 : index
    %c0_127 = arith.constant 0 : index
    %123 = vector.load %arg4[%c5_125, %c0_126, %c0_127] : memref<9x128x128xbf16, #tpu.memory_space<vmem>>, vector<1x128x128xbf16>
    %124 = vector.shape_cast %123 : vector<1x128x128xbf16> to vector<128x128xbf16>
    %cst_128 = arith.constant dense<0.000000e+00> : vector<64x128xf32>
    %125 = tpu.matmul %122, %124, %cst_128 {dimension_numbers = #tpu.dot_dimension_numbers<[1], [0], [0], [1], [0, 0, 1, 1], [], []>} : vector<64x128xbf16>, vector<128x128xbf16>, vector<64x128xf32> -> vector<64x128xf32>
    %126 = arith.addf %119, %125 : vector<64x128xf32>
    %c2_129 = arith.constant 2 : index
    %c0_130 = arith.constant 0 : index
    %c0_131 = arith.constant 0 : index
    %127 = vector.load %arg10[%c2_129, %c0_130, %c0_131] : memref<10x10x128xf32, #tpu.memory_space<vmem>>, vector<8x8x128xf32>
    %128 = vector.shape_cast %127 : vector<8x8x128xf32> to vector<64x128xf32>
    %129 = arith.truncf %128 : vector<64x128xf32> to vector<64x128xbf16>
    %c6_132 = arith.constant 6 : index
    %c0_133 = arith.constant 0 : index
    %c0_134 = arith.constant 0 : index
    %130 = vector.load %arg4[%c6_132, %c0_133, %c0_134] : memref<9x128x128xbf16, #tpu.memory_space<vmem>>, vector<1x128x128xbf16>
    %131 = vector.shape_cast %130 : vector<1x128x128xbf16> to vector<128x128xbf16>
    %cst_135 = arith.constant dense<0.000000e+00> : vector<64x128xf32>
    %132 = tpu.matmul %129, %131, %cst_135 {dimension_numbers = #tpu.dot_dimension_numbers<[1], [0], [0], [1], [0, 0, 1, 1], [], []>} : vector<64x128xbf16>, vector<128x128xbf16>, vector<64x128xf32> -> vector<64x128xf32>
    %133 = arith.addf %126, %132 : vector<64x128xf32>
    %c2_136 = arith.constant 2 : index
    %c1_137 = arith.constant 1 : index
    %c0_138 = arith.constant 0 : index
    %134 = vector.load %arg10[%c2_136, %c1_137, %c0_138] : memref<10x10x128xf32, #tpu.memory_space<vmem>>, vector<8x8x128xf32>
    %135 = vector.shape_cast %134 : vector<8x8x128xf32> to vector<64x128xf32>
    %136 = arith.truncf %135 : vector<64x128xf32> to vector<64x128xbf16>
    %c7_139 = arith.constant 7 : index
    %c0_140 = arith.constant 0 : index
    %c0_141 = arith.constant 0 : index
    %137 = vector.load %arg4[%c7_139, %c0_140, %c0_141] : memref<9x128x128xbf16, #tpu.memory_space<vmem>>, vector<1x128x128xbf16>
    %138 = vector.shape_cast %137 : vector<1x128x128xbf16> to vector<128x128xbf16>
    %cst_142 = arith.constant dense<0.000000e+00> : vector<64x128xf32>
    %139 = tpu.matmul %136, %138, %cst_142 {dimension_numbers = #tpu.dot_dimension_numbers<[1], [0], [0], [1], [0, 0, 1, 1], [], []>} : vector<64x128xbf16>, vector<128x128xbf16>, vector<64x128xf32> -> vector<64x128xf32>
    %140 = arith.addf %133, %139 : vector<64x128xf32>
    %c2_143 = arith.constant 2 : index
    %c2_144 = arith.constant 2 : index
    %c0_145 = arith.constant 0 : index
    %141 = vector.load %arg10[%c2_143, %c2_144, %c0_145] : memref<10x10x128xf32, #tpu.memory_space<vmem>>, vector<8x8x128xf32>
    %142 = vector.shape_cast %141 : vector<8x8x128xf32> to vector<64x128xf32>
    %143 = arith.truncf %142 : vector<64x128xf32> to vector<64x128xbf16>
    %c8_146 = arith.constant 8 : index
    %c0_147 = arith.constant 0 : index
    %c0_148 = arith.constant 0 : index
    %144 = vector.load %arg4[%c8_146, %c0_147, %c0_148] : memref<9x128x128xbf16, #tpu.memory_space<vmem>>, vector<1x128x128xbf16>
    %145 = vector.shape_cast %144 : vector<1x128x128xbf16> to vector<128x128xbf16>
    %cst_149 = arith.constant dense<0.000000e+00> : vector<64x128xf32>
    %146 = tpu.matmul %143, %145, %cst_149 {dimension_numbers = #tpu.dot_dimension_numbers<[1], [0], [0], [1], [0, 0, 1, 1], [], []>} : vector<64x128xbf16>, vector<128x128xbf16>, vector<64x128xf32> -> vector<64x128xf32>
    %147 = arith.addf %140, %146 : vector<64x128xf32>
    %c0_150 = arith.constant 0 : index
    %c0_151 = arith.constant 0 : index
    %148 = vector.load %arg5[%c0_150, %c0_151] : memref<1x128xf32, #tpu.memory_space<vmem>>, vector<1x128xf32>
    %149 = vector.broadcast %148 : vector<1x128xf32> to vector<64x128xf32>
    %150 = arith.addf %147, %149 : vector<64x128xf32>
    %cst_152 = arith.constant 0.000000e+00 : f32
    %151 = vector.broadcast %cst_152 : f32 to vector<64x128xf32>
    %152 = arith.maximumf %150, %151 : vector<64x128xf32>
    %153 = arith.truncf %152 : vector<64x128xf32> to vector<64x128xbf16>
    %c0_153 = arith.constant 0 : index
    %c0_154 = arith.constant 0 : index
    %154 = vector.load %arg6[%c0_153, %c0_154] : memref<128x128xbf16, #tpu.memory_space<vmem>>, vector<128x128xbf16>
    %cst_155 = arith.constant dense<0.000000e+00> : vector<64x128xf32>
    %155 = tpu.matmul %153, %154, %cst_155 {dimension_numbers = #tpu.dot_dimension_numbers<[1], [0], [0], [1], [0, 0, 1, 1], [], []>} : vector<64x128xbf16>, vector<128x128xbf16>, vector<64x128xf32> -> vector<64x128xf32>
    %c0_156 = arith.constant 0 : index
    %c0_157 = arith.constant 0 : index
    %156 = vector.load %arg7[%c0_156, %c0_157] : memref<1x128xf32, #tpu.memory_space<vmem>>, vector<1x128xf32>
    %157 = vector.broadcast %156 : vector<1x128xf32> to vector<64x128xf32>
    %158 = arith.addf %155, %157 : vector<64x128xf32>
    %159 = vector.shape_cast %158 : vector<64x128xf32> to vector<1x8x8x128xf32>
    %c0_158 = arith.constant 0 : index
    %c0_159 = arith.constant 0 : index
    %c0_160 = arith.constant 0 : index
    %c0_161 = arith.constant 0 : index
    %160 = vector.load %arg9[%c0_158, %c0_159, %c0_160, %c0_161] : memref<1x8x8x128xf32, #tpu.memory_space<vmem>>, vector<1x8x8x128xf32>
    tpu.vector_store %arg9[%c0_158, %c0_159, %c0_160, %c0_161], %159 {strides = array<i32>} : memref<1x8x8x128xf32, #tpu.memory_space<vmem>>, vector<1x8x8x128xf32>,
    return
  }
  func.func @transform_0(%arg0: i32) -> (i32, i32, i32, i32, i32) {
    %c0_i32 = arith.constant 0 : i32
    %c0_i32_0 = arith.constant 0 : i32
    %c0_i32_1 = arith.constant 0 : i32
    %c0_i32_2 = arith.constant 0 : i32
    %c0_i32_3 = arith.constant 0 : i32
    return %arg0, %c0_i32, %c0_i32_0, %c0_i32_1, %c0_i32_2 : i32, i32, i32, i32, i32
  }
  func.func @transform_1(%arg0: i32) -> (i32, i32, i32) {
    %c0_i32 = arith.constant 0 : i32
    %c0_i32_0 = arith.constant 0 : i32
    %c0_i32_1 = arith.constant 0 : i32
    %c0_i32_2 = arith.constant 0 : i32
    return %c0_i32, %c0_i32_0, %c0_i32_1 : i32, i32, i32
  }
  func.func @transform_2(%arg0: i32) -> (i32, i32) {
    %c0_i32 = arith.constant 0 : i32
    %c0_i32_0 = arith.constant 0 : i32
    %c0_i32_1 = arith.constant 0 : i32
    return %c0_i32, %c0_i32_0 : i32, i32
  }
  func.func @transform_3(%arg0: i32) -> (i32, i32, i32) {
    %c0_i32 = arith.constant 0 : i32
    %c0_i32_0 = arith.constant 0 : i32
    %c0_i32_1 = arith.constant 0 : i32
    %c0_i32_2 = arith.constant 0 : i32
    return %c0_i32, %c0_i32_0, %c0_i32_1 : i32, i32, i32
  }
  func.func @transform_4(%arg0: i32) -> (i32, i32) {
    %c0_i32 = arith.constant 0 : i32
    %c0_i32_0 = arith.constant 0 : i32
    %c0_i32_1 = arith.constant 0 : i32
    return %c0_i32, %c0_i32_0 : i32, i32
  }
  func.func @transform_5(%arg0: i32) -> (i32, i32) {
    %c0_i32 = arith.constant 0 : i32
    %c0_i32_0 = arith.constant 0 : i32
    %c0_i32_1 = arith.constant 0 : i32
    return %c0_i32, %c0_i32_0 : i32, i32
  }
  func.func @transform_6(%arg0: i32) -> (i32, i32) {
    %c0_i32 = arith.constant 0 : i32
    %c0_i32_0 = arith.constant 0 : i32
    %c0_i32_1 = arith.constant 0 : i32
    return %c0_i32, %c0_i32_0 : i32, i32
  }
  func.func @transform_7(%arg0: i32) -> (i32, i32, i32, i32) {
    %c0_i32 = arith.constant 0 : i32
    %c0_i32_0 = arith.constant 0 : i32
    %c0_i32_1 = arith.constant 0 : i32
    %c0_i32_2 = arith.constant 0 : i32
    return %arg0, %c0_i32, %c0_i32_0, %c0_i32_1 : i32, i32, i32, i32
  }
  func.func @transform_8(%arg0: i32) -> (i32, i32, i32, i32) {
    %c0_i32 = arith.constant 0 : i32
    %c0_i32_0 = arith.constant 0 : i32
    %c0_i32_1 = arith.constant 0 : i32
    %c0_i32_2 = arith.constant 0 : i32
    return %arg0, %c0_i32, %c0_i32_0, %c0_i32_1 : i32, i32, i32, i32
  }
}

module attributes {stable_mosaic.version = 11 : i64} {
  func.func @_roi_head_kernel(%arg0: i32, %arg1: memref<8x2048xbf16, #tpu.memory_space<vmem>>, %arg2: memref<2048x128xbf16, #tpu.memory_space<vmem>>, %arg3: memref<1x128xf32, #tpu.memory_space<vmem>>, %arg4: memref<128x128xbf16, #tpu.memory_space<vmem>>, %arg5: memref<1x128xf32, #tpu.memory_space<vmem>>, %arg6: memref<128x256xbf16, #tpu.memory_space<vmem>>, %arg7: memref<1x256xf32, #tpu.memory_space<vmem>>, %arg8: memref<8x128xf32, #tpu.memory_space<vmem>>, %arg9: memref<8x128xf32, #tpu.memory_space<vmem>>) attributes {dimension_semantics = [#tpu.dimension_semantics<parallel>], iteration_bounds = array<i64: 2>, scalar_prefetch = 0 : i64, scratch_operands = 0 : i64, tpu.core_type = #tpu.core_type<tc>, window_params = [{transform_indices = @transform_0, window_bounds = array<i64: 8, 2048>}, {pipeline_mode = #tpu.pipeline_mode<synchronous>, transform_indices = @transform_1, window_bounds = array<i64: 2048, 128>}, {pipeline_mode = #tpu.pipeline_mode<synchronous>, transform_indices = @transform_2, window_bounds = array<i64: 1, 128>}, {pipeline_mode = #tpu.pipeline_mode<synchronous>, transform_indices = @transform_3, window_bounds = array<i64: 128, 128>}, {pipeline_mode = #tpu.pipeline_mode<synchronous>, transform_indices = @transform_4, window_bounds = array<i64: 1, 128>}, {pipeline_mode = #tpu.pipeline_mode<synchronous>, transform_indices = @transform_5, window_bounds = array<i64: 128, 256>}, {pipeline_mode = #tpu.pipeline_mode<synchronous>, transform_indices = @transform_6, window_bounds = array<i64: 1, 256>}, {transform_indices = @transform_7, window_bounds = array<i64: 8, 128>}, {transform_indices = @transform_8, window_bounds = array<i64: 8, 128>}]} {
    %c0 = arith.constant 0 : index
    %c0_0 = arith.constant 0 : index
    %0 = vector.load %arg1[%c0, %c0_0] : memref<8x2048xbf16, #tpu.memory_space<vmem>>, vector<8x2048xbf16>
    %c0_1 = arith.constant 0 : index
    %c0_2 = arith.constant 0 : index
    %1 = vector.load %arg2[%c0_1, %c0_2] : memref<2048x128xbf16, #tpu.memory_space<vmem>>, vector<2048x128xbf16>
    %cst = arith.constant dense<0.000000e+00> : vector<8x128xf32>
    %2 = tpu.matmul %0, %1, %cst {dimension_numbers = #tpu.dot_dimension_numbers<[1], [0], [0], [1], [0, 0, 1, 1], [], []>} : vector<8x2048xbf16>, vector<2048x128xbf16>, vector<8x128xf32> -> vector<8x128xf32>
    %c0_3 = arith.constant 0 : index
    %c0_4 = arith.constant 0 : index
    %3 = vector.load %arg3[%c0_3, %c0_4] : memref<1x128xf32, #tpu.memory_space<vmem>>, vector<1x128xf32>
    %4 = vector.broadcast %3 : vector<1x128xf32> to vector<8x128xf32>
    %5 = arith.addf %2, %4 : vector<8x128xf32>
    %cst_5 = arith.constant 0.000000e+00 : f32
    %6 = vector.broadcast %cst_5 : f32 to vector<8x128xf32>
    %7 = arith.maximumf %5, %6 : vector<8x128xf32>
    %8 = arith.truncf %7 : vector<8x128xf32> to vector<8x128xbf16>
    %c0_6 = arith.constant 0 : index
    %c0_7 = arith.constant 0 : index
    %9 = vector.load %arg4[%c0_6, %c0_7] : memref<128x128xbf16, #tpu.memory_space<vmem>>, vector<128x128xbf16>
    %cst_8 = arith.constant dense<0.000000e+00> : vector<8x128xf32>
    %10 = tpu.matmul %8, %9, %cst_8 {dimension_numbers = #tpu.dot_dimension_numbers<[1], [0], [0], [1], [0, 0, 1, 1], [], []>} : vector<8x128xbf16>, vector<128x128xbf16>, vector<8x128xf32> -> vector<8x128xf32>
    %c0_9 = arith.constant 0 : index
    %c0_10 = arith.constant 0 : index
    %11 = vector.load %arg5[%c0_9, %c0_10] : memref<1x128xf32, #tpu.memory_space<vmem>>, vector<1x128xf32>
    %12 = vector.broadcast %11 : vector<1x128xf32> to vector<8x128xf32>
    %13 = arith.addf %10, %12 : vector<8x128xf32>
    %cst_11 = arith.constant 0.000000e+00 : f32
    %14 = vector.broadcast %cst_11 : f32 to vector<8x128xf32>
    %15 = arith.maximumf %13, %14 : vector<8x128xf32>
    %16 = arith.truncf %15 : vector<8x128xf32> to vector<8x128xbf16>
    %c0_12 = arith.constant 0 : index
    %c0_13 = arith.constant 0 : index
    %17 = vector.load %arg6[%c0_12, %c0_13] : memref<128x256xbf16, #tpu.memory_space<vmem>>, vector<128x256xbf16>
    %cst_14 = arith.constant dense<0.000000e+00> : vector<8x256xf32>
    %18 = tpu.matmul %16, %17, %cst_14 {dimension_numbers = #tpu.dot_dimension_numbers<[1], [0], [0], [1], [0, 0, 1, 1], [], []>} : vector<8x128xbf16>, vector<128x256xbf16>, vector<8x256xf32> -> vector<8x256xf32>
    %c0_15 = arith.constant 0 : index
    %c0_16 = arith.constant 0 : index
    %19 = vector.load %arg7[%c0_15, %c0_16] : memref<1x256xf32, #tpu.memory_space<vmem>>, vector<1x256xf32>
    %20 = vector.broadcast %19 : vector<1x256xf32> to vector<8x256xf32>
    %21 = arith.addf %18, %20 : vector<8x256xf32>
    %22 = vector.extract_strided_slice %21 {offsets = [0, 0], sizes = [8, 128], strides = [1, 1]} : vector<8x256xf32> to vector<8x128xf32>
    %23 = vector.extract_strided_slice %21 {offsets = [0, 128], sizes = [8, 128], strides = [1, 1]} : vector<8x256xf32> to vector<8x128xf32>
    %24 = tpu.iota {dimensions = array<i32: 1>} : vector<8x128xi32>
    %c5_i32 = arith.constant 5 : i32
    %25 = vector.broadcast %c5_i32 : i32 to vector<8x128xi32>
    %26 = arith.cmpi slt, %24, %25 : vector<8x128xi32>
    %cst_17 = arith.constant -1.000000e+30 : f32
    %27 = vector.broadcast %cst_17 : f32 to vector<8x128xf32>
    %28 = arith.select %26, %22, %27 : vector<8x128xi1>, vector<8x128xf32>
    %cst_18 = arith.constant dense<0xFF800000> : vector<8xf32>
    %29 = vector.multi_reduction <maximumf>, %28, %cst_18 [1] : vector<8x128xf32> to vector<8xf32>
    %30 = vector.shape_cast %29 : vector<8xf32> to vector<8x1xf32>
    %31 = vector.broadcast %30 : vector<8x1xf32> to vector<8x128xf32>
    %32 = arith.subf %28, %31 : vector<8x128xf32>
    %33 = math.exp %32 : vector<8x128xf32>
    %cst_19 = arith.constant dense<0.000000e+00> : vector<8xf32>
    %34 = vector.multi_reduction <add>, %33, %cst_19 [1] : vector<8x128xf32> to vector<8xf32>
    %35 = vector.shape_cast %34 : vector<8xf32> to vector<8x1xf32>
    %36 = vector.broadcast %35 : vector<8x1xf32> to vector<8x128xf32>
    %37 = arith.divf %33, %36 : vector<8x128xf32>
    %c0_20 = arith.constant 0 : index
    %c0_21 = arith.constant 0 : index
    %38 = vector.load %arg8[%c0_20, %c0_21] : memref<8x128xf32, #tpu.memory_space<vmem>>, vector<8x128xf32>
    tpu.vector_store %arg8[%c0_20, %c0_21], %37 {strides = array<i32>} : memref<8x128xf32, #tpu.memory_space<vmem>>, vector<8x128xf32>,
    %c0_22 = arith.constant 0 : index
    %c0_23 = arith.constant 0 : index
    %39 = vector.load %arg9[%c0_22, %c0_23] : memref<8x128xf32, #tpu.memory_space<vmem>>, vector<8x128xf32>
    tpu.vector_store %arg9[%c0_22, %c0_23], %23 {strides = array<i32>} : memref<8x128xf32, #tpu.memory_space<vmem>>, vector<8x128xf32>,
    return
  }
  func.func @transform_0(%arg0: i32) -> (i32, i32) {
    %c0_i32 = arith.constant 0 : i32
    %c0_i32_0 = arith.constant 0 : i32
    return %arg0, %c0_i32 : i32, i32
  }
  func.func @transform_1(%arg0: i32) -> (i32, i32) {
    %c0_i32 = arith.constant 0 : i32
    %c0_i32_0 = arith.constant 0 : i32
    %c0_i32_1 = arith.constant 0 : i32
    return %c0_i32, %c0_i32_0 : i32, i32
  }
  func.func @transform_2(%arg0: i32) -> (i32, i32) {
    %c0_i32 = arith.constant 0 : i32
    %c0_i32_0 = arith.constant 0 : i32
    %c0_i32_1 = arith.constant 0 : i32
    return %c0_i32, %c0_i32_0 : i32, i32
  }
  func.func @transform_3(%arg0: i32) -> (i32, i32) {
    %c0_i32 = arith.constant 0 : i32
    %c0_i32_0 = arith.constant 0 : i32
    %c0_i32_1 = arith.constant 0 : i32
    return %c0_i32, %c0_i32_0 : i32, i32
  }
  func.func @transform_4(%arg0: i32) -> (i32, i32) {
    %c0_i32 = arith.constant 0 : i32
    %c0_i32_0 = arith.constant 0 : i32
    %c0_i32_1 = arith.constant 0 : i32
    return %c0_i32, %c0_i32_0 : i32, i32
  }
  func.func @transform_5(%arg0: i32) -> (i32, i32) {
    %c0_i32 = arith.constant 0 : i32
    %c0_i32_0 = arith.constant 0 : i32
    %c0_i32_1 = arith.constant 0 : i32
    return %c0_i32, %c0_i32_0 : i32, i32
  }
  func.func @transform_6(%arg0: i32) -> (i32, i32) {
    %c0_i32 = arith.constant 0 : i32
    %c0_i32_0 = arith.constant 0 : i32
    %c0_i32_1 = arith.constant 0 : i32
    return %c0_i32, %c0_i32_0 : i32, i32
  }
  func.func @transform_7(%arg0: i32) -> (i32, i32) {
    %c0_i32 = arith.constant 0 : i32
    %c0_i32_0 = arith.constant 0 : i32
    return %arg0, %c0_i32 : i32, i32
  }
  func.func @transform_8(%arg0: i32) -> (i32, i32) {
    %c0_i32 = arith.constant 0 : i32
    %c0_i32_0 = arith.constant 0 : i32
    return %arg0, %c0_i32 : i32, i32
  }
}

</mosaic_0001>

<llo_original>
// kernel: _forward_impl.3
$region0: #{_forward_impl.3}
  #allocation0 [shape = 'u32[]', space=smem, size = 0x4, offset = 0x4, fixed_abs, tag = 'smem constant byte address 0x4 - core index']
  #allocation1 [shape = 'u32[144,128]{1,0:T(1,128)}', space=vmem, size = 0x12000, scoped, tag = 'internal scratch']
  %s0 = inlined_call_operand.vmem [shape: f32[2,4,17,17,3], index: 0, kind: input, shape index: {}]
  %s1 = inlined_call_operand.vmem [shape: bf16[9,3,128], index: 1, kind: input, shape index: {}]
  %s2 = inlined_call_operand.vmem [shape: f32[1,128], index: 2, kind: input, shape index: {}]
  %s3 = inlined_call_operand.vmem [shape: f32[2,16,16,128], index: 3, kind: output, shape index: {}]
  %s4 = sld [smem:[#allocation0]]
  $region45: #{_forward_impl.3} parent=0
    _
  %s6 = ssub.s32 1, %s4
  %s7 = scalar_select 0, %s6, %s4
  loop: start=0, step=1, limit=4
  $region2: #{_forward_impl.3} parent=0 // loop_pre_header
    _
  $region3: #{_forward_impl.3} parent=0 // loop_header
    %s9 = sphi 0, %s13
    %p10 = scmp.ge.s32.totalorder %s9, 4
    %s19 = sphi 0, %s21
    %s22 = sphi 0, %s19
    %s23 = sphi 0, %s22
    %s39 = sphi 0, %s23
    %s43 = sphi 0, %s43
    %s45 = sphi 0, %s43
    %s46 = sphi 0, %s45
    %s60 = sphi 0, %s46
    %s64 = sphi 0, %s64
    %s66 = sphi 0, %s64
    %s67 = sphi 0, %s66
    %s81 = sphi 0, %s67
    %s87 = sphi 0, %s89
    %s90 = sphi 0, %s87
    %s91 = sphi 0, %s90
    %s107 = sphi 0, %s91
  $region4: #{_forward_impl.3} parent=0 // loop_header_branch
    %12 = sbr.rel (%p10) target = $region8
  $region5: #{_forward_impl.3} parent=0 // loop_body
    %s14 = ssub.s32 %s9, 1
    %s15 = ssub.s32 %s9, 2
    %s16 = sadd.s32 %s9, 1
    %s17 = ssub.s32 %s9, %s16
    %p18 = scmp.eq.s32.totalorder %s17, 0
    %s20 = sadd.s32 %s19, 1
    %s21 = scalar_select %p18, %s19, %s20
    %p24 = pneg %p18
    %p25 = scmp.eq.s32.totalorder %s9, 1
    %p26 = por %p24, %p25
    %p27 = scmp.ne.s32.totalorder %s19, %s22
    %p28 = scmp.eq.s32.totalorder %s9, 0
    %p29 = por %p27, %p28
    %p30 = scmp.ne.s32.totalorder %s19, %s22
    %p31 = scmp.eq.s32.totalorder %s14, 1
    %p32 = por %p30, %p31
    %p33 = scmp.ne.s32.totalorder %s22, %s23
    %p34 = scmp.eq.s32.totalorder %s14, 0
    %p35 = por %p33, %p34
    %p36 = scmp.ne.s32.totalorder %s22, %s23
    %p37 = scmp.eq.s32.totalorder %s15, 1
    %p38 = por %p36, %p37
    %p40 = scmp.ne.s32.totalorder %s23, %s39
    %p41 = scmp.eq.s32.totalorder %s15, 0
    %p42 = por %p40, %p41
    %s44 = sadd.s32 %s43, 1
    %p47 = scmp.eq.s32.totalorder %s9, 1
    %p48 = scmp.ne.s32.totalorder %s43, %s45
    %p49 = scmp.eq.s32.totalorder %s9, 0
    %p50 = por %p48, %p49
    %p51 = scmp.ne.s32.totalorder %s43, %s45
    %p52 = scmp.eq.s32.totalorder %s14, 1
    %p53 = por %p51, %p52
    %p54 = scmp.ne.s32.totalorder %s45, %s46
    %p55 = scmp.eq.s32.totalorder %s14, 0
    %p56 = por %p54, %p55
    %p57 = scmp.ne.s32.totalorder %s45, %s46
    %p58 = scmp.eq.s32.totalorder %s15, 1
    %p59 = por %p57, %p58
    %p61 = scmp.ne.s32.totalorder %s46, %s60
    %p62 = scmp.eq.s32.totalorder %s15, 0
    %p63 = por %p61, %p62
    %s65 = sadd.s32 %s64, 1
    %p68 = scmp.eq.s32.totalorder %s9, 1
    %p69 = scmp.ne.s32.totalorder %s64, %s66
    %p70 = scmp.eq.s32.totalorder %s9, 0
    %p71 = por %p69, %p70
    %p72 = scmp.ne.s32.totalorder %s64, %s66
    %p73 = scmp.eq.s32.totalorder %s14, 1
    %p74 = por %p72, %p73
    %p75 = scmp.ne.s32.totalorder %s66, %s67
    %p76 = scmp.eq.s32.totalorder %s14, 0
    %p77 = por %p75, %p76
    %p78 = scmp.ne.s32.totalorder %s66, %s67
    %p79 = scmp.eq.s32.totalorder %s15, 1
    %p80 = por %p78, %p79
    %p82 = scmp.ne.s32.totalorder %s67, %s81
    %p83 = scmp.eq.s32.totalorder %s15, 0
    %p84 = por %p82, %p83
    %s85 = ssub.s32 %s9, %s16
    %p86 = scmp.eq.s32.totalorder %s85, 0
    %s88 = sadd.s32 %s87, 1
    %s89 = scalar_select %p86, %s87, %s88
    %p92 = pneg %p86
    %p93 = scmp.eq.s32.totalorder %s9, 1
    %p94 = por %p92, %p93
    %p95 = scmp.ne.s32.totalorder %s87, %s90
    %p96 = scmp.eq.s32.totalorder %s9, 0
    %p97 = por %p95, %p96
    %p98 = scmp.ne.s32.totalorder %s87, %s90
    %p99 = scmp.eq.s32.totalorder %s14, 1
    %p100 = por %p98, %p99
    %p101 = scmp.ne.s32.totalorder %s90, %s91
    %p102 = scmp.eq.s32.totalorder %s14, 0
    %p103 = por %p101, %p102
    %p104 = scmp.ne.s32.totalorder %s90, %s91
    %p105 = scmp.eq.s32.totalorder %s15, 1
    %p106 = por %p104, %p105
    %p108 = scmp.ne.s32.totalorder %s91, %s107
    %p109 = scmp.eq.s32.totalorder %s15, 0
    %p110 = por %p108, %p109
    %p111 = scmp.le.s32.totalorder 1, %s9
    %p112 = scmp.lt.s32.totalorder %s9, 3
    %p113 = pnand %p111, %p112
    %p114 = pneg %p113
    // Predicated region
    $region9: #{_forward_impl.3} parent=5 // pred_check
      _
    $region10: #{_forward_impl.3} parent=5 // pred_check_branch
      %116 = sbr.rel (%p113) target = $region12
    $region11: #{_forward_impl.3} parent=5 // pred_region
      %s117 = ssub.s32 %s9, 1
      // Predicated region
      $region13: #{_forward_impl.3} parent=11 // pred_check
        %p118 = pneg %p56
      $region14: #{_forward_impl.3} parent=11 // pred_check_branch
        %120 = sbr.rel (%p118) target = $region16
      $region15: #{_forward_impl.3} parent=11 // pred_region
        _
      $region16: #{_forward_impl.3} parent=11 // pred_fallthru
        _
      // Predicated region
      $region17: #{_forward_impl.3} parent=11 // pred_check
        %p121 = pneg %p77
      $region18: #{_forward_impl.3} parent=11 // pred_check_branch
        %123 = sbr.rel (%p121) target = $region20
      $region19: #{_forward_impl.3} parent=11 // pred_region
        _
      $region20: #{_forward_impl.3} parent=11 // pred_fallthru
        _
    $region12: #{_forward_impl.3} parent=5 // pred_fallthru
      _
    %p124 = scmp.lt.s32.totalorder %s9, 2
    // Predicated region
    $region21: #{_forward_impl.3} parent=5 // pred_check
      %p125 = pneg %p124
    $region22: #{_forward_impl.3} parent=5 // pred_check_branch
      %127 = sbr.rel (%p125) target = $region24
    $region23: #{_forward_impl.3} parent=5 // pred_region
      // Predicated region
      $region25: #{_forward_impl.3} parent=23 // pred_check
        %p128 = pneg %p29
      $region26: #{_forward_impl.3} parent=23 // pred_check_branch
        %130 = sbr.rel (%p128) target = $region28
      $region27: #{_forward_impl.3} parent=23 // pred_region
        %p131 = scmp.lt.s32.totalorder %s9, 1
        %s132 = scalar_select %p131, %s9, 1
        %s133 = smul.addr %s132, 204
        %s134 = smul.addr %s133, 8
        %s135 = scalar_lea.vmem %s0, %s134
      $region28: #{_forward_impl.3} parent=23 // pred_fallthru
        _
    $region24: #{_forward_impl.3} parent=5 // pred_fallthru
      _
    %p136 = scmp.le.s32.totalorder 1, %s9
    %p137 = scmp.lt.s32.totalorder %s9, 3
    %p138 = pnand %p136, %p137
    %p139 = pneg %p138
    // Predicated region
    $region29: #{_forward_impl.3} parent=5 // pred_check
      _
    $region30: #{_forward_impl.3} parent=5 // pred_check_branch
      %141 = sbr.rel (%p138) target = $region32
    $region31: #{_forward_impl.3} parent=5 // pred_region
      %s142 = ssub.s32 %s9, 1
      %p143 = scmp.lt.s32.totalorder %s14, 1
      %s144 = scalar_select %p143, %s14, 1
      %s145 = smul.addr %s144, 204
      %s146 = smul.addr %s145, 8
      %s147 = scalar_lea.vmem %s0, %s146
      %p148 = pneg %p35
      %p149 = pneg %p32
      %p150 = pneg %p56
      %p151 = pneg %p53
      %p152 = pneg %p77
      %p153 = pneg %p74
      %p154 = pneg %p103
      %p155 = pneg %p100
      %p156 = scmp.lt.s32.totalorder %s14, 1
      %s157 = scalar_select %p156, %s14, 1
      %s158 = smul.addr %s157, 32
      %s159 = smul.addr %s158, 8
      %s160 = scalar_lea.vmem %s3, %s159
      %p161 = scmp.lt.s32.totalorder %s14, 1
      %s162 = scalar_select %p161, %s14, 1
      %s163 = smul.addr %s162, 204
      %s164 = smul.addr %s163, 8
      %s165 = scalar_lea.vmem %s0, %s164
      %p166 = scmp.lt.s32.totalorder %s14, 1
      %s167 = scalar_select %p166, %s14, 1
      %s168 = smul.addr %s167, 32
      %s169 = smul.addr %s168, 8
      %s170 = scalar_lea.vmem %s3, %s169
      %v172 = vld [vmem:[%s165] sm:$0xff]
      %v173 = vld [vmem:[%s165 + $0x8] sm:$0xff]
      %v174 = vld [vmem:[%s165 + $0x18] sm:$0xff]
      %v175 = vld [vmem:[%s165 + $0x20] sm:$0xff]
      %v176 = vld [vmem:[%s165 + $0x30] sm:$0xff]
      %v177 = vld [vmem:[%s165 + $0x38] sm:$0xff]
      %v178 = vld [vmem:[%s165 + $0x48] sm:$0xff]
      %v179 = vld [vmem:[%s165 + $0x50] sm:$0xff]
      %v180 = vld [vmem:[%s165 + $0x60] sm:$0xff]
      %v181 = vld [vmem:[%s165 + $0x68] sm:$0xff]
      %v182 = vld [vmem:[%s165 + $0x78] sm:$0xff]
      %v183 = vld [vmem:[%s165 + $0x80] sm:$0xff]
      %v184 = vld [vmem:[%s165 + $0x90] sm:$0xff]
      %v185 = vld [vmem:[%s165 + $0x98] sm:$0xff]
      %v186 = vld [vmem:[%s165 + $0xa8] sm:$0xff]
      %v187 = vld [vmem:[%s165 + $0xb0] sm:$0xff]
      %v188 = vld [vmem:[%s165 + $0xc0] sm:$0xff]
      %v189 = vld [vmem:[%s165 + $0xc8] sm:$0xff]
      %v190 = vld [vmem:[%s165 + $0xd8] sm:$0xff]
      %v191 = vld [vmem:[%s165 + $0xe0] sm:$0xff]
      %v192 = vld [vmem:[%s165 + $0xf0] sm:$0xff]
      %v193 = vld [vmem:[%s165 + $0xf8] sm:$0xff]
      %v194 = vld [vmem:[%s165 + $0x108] sm:$0xff]
      %v195 = vld [vmem:[%s165 + $0x110] sm:$0xff]
      %v196 = vld [vmem:[%s165 + $0x120] sm:$0xff]
      %v197 = vld [vmem:[%s165 + $0x128] sm:$0xff]
      %v198 = vld [vmem:[%s165 + $0x138] sm:$0xff]
      %v199 = vld [vmem:[%s165 + $0x140] sm:$0xff]
      %v200 = vld [vmem:[%s165 + $0x150] sm:$0xff]
      %v201 = vld [vmem:[%s165 + $0x158] sm:$0xff]
      %v202 = vld [vmem:[%s165 + $0x168] sm:$0xff]
      %v203 = vld [vmem:[%s165 + $0x170] sm:$0xff]
      %v204 = vpack.c.bf16 %v173, %v172
      %v205 = vpack.c.bf16 %v175, %v174
      %v206 = vpack.c.bf16 %v177, %v176
      %v207 = vpack.c.bf16 %v179, %v178
      %v208 = vpack.c.bf16 %v181, %v180
      %v209 = vpack.c.bf16 %v183, %v182
      %v210 = vpack.c.bf16 %v185, %v184
      %v211 = vpack.c.bf16 %v187, %v186
      %v212 = vpack.c.bf16 %v189, %v188
      %v213 = vpack.c.bf16 %v191, %v190
      %v214 = vpack.c.bf16 %v193, %v192
      %v215 = vpack.c.bf16 %v195, %v194
      %v216 = vpack.c.bf16 %v197, %v196
      %v217 = vpack.c.bf16 %v199, %v198
      %v218 = vpack.c.bf16 %v201, %v200
      %v219 = vpack.c.bf16 %v203, %v202
      %v220 = vld [vmem:[%s1] sm:$0x3]
      %s221 = scalar_lea.vmem %s165, 408
      %v222 = vld [vmem:[%s221] sm:$0xff]
      %v223 = vld [vmem:[%s221 + $0x8] sm:$0xff]
      %v224 = vld [vmem:[%s221 + $0x18] sm:$0xff]
      %v225 = vld [vmem:[%s221 + $0x20] sm:$0xff]
      %v226 = vld [vmem:[%s221 + $0x30] sm:$0xff]
      %v227 = vld [vmem:[%s221 + $0x38] sm:$0xff]
      %v228 = vld [vmem:[%s221 + $0x48] sm:$0xff]
      %v229 = vld [vmem:[%s221 + $0x50] sm:$0xff]
      %v230 = vld [vmem:[%s221 + $0x60] sm:$0xff]
      %v231 = vld [vmem:[%s221 + $0x68] sm:$0xff]
      %v232 = vld [vmem:[%s221 + $0x78] sm:$0xff]
      %v233 = vld [vmem:[%s221 + $0x80] sm:$0xff]
      %v234 = vld [vmem:[%s221 + $0x90] sm:$0xff]
      %v235 = vld [vmem:[%s221 + $0x98] sm:$0xff]
      %v236 = vld [vmem:[%s221 + $0xa8] sm:$0xff]
      %v237 = vld [vmem:[%s221 + $0xb0] sm:$0xff]
      %v238 = vld [vmem:[%s221 + $0xc0] sm:$0xff]
      %v239 = vld [vmem:[%s221 + $0xc8] sm:$0xff]
      %v240 = vld [vmem:[%s221 + $0xd8] sm:$0xff]
      %v241 = vld [vmem:[%s221 + $0xe0] sm:$0xff]
      %v242 = vld [vmem:[%s221 + $0xf0] sm:$0xff]
      %v243 = vld [vmem:[%s221 + $0xf8] sm:$0xff]
      %v244 = vld [vmem:[%s221 + $0x108] sm:$0xff]
      %v245 = vld [vmem:[%s221 + $0x110] sm:$0xff]
      %v246 = vld [vmem:[%s221 + $0x120] sm:$0xff]
      %v247 = vld [vmem:[%s221 + $0x128] sm:$0xff]
      %v248 = vld [vmem:[%s221 + $0x138] sm:$0xff]
      %v249 = vld [vmem:[%s221 + $0x140] sm:$0xff]
      %v250 = vld [vmem:[%s221 + $0x150] sm:$0xff]
      %v251 = vld [vmem:[%s221 + $0x158] sm:$0xff]
      %v252 = vld [vmem:[%s221 + $0x168] sm:$0xff]
      %v253 = vld [vmem:[%s221 + $0x170] sm:$0xff]
      %v254 = vpack.c.bf16 %v223, %v222
      %v255 = vpack.c.bf16 %v225, %v224
      %v256 = vpack.c.bf16 %v227, %v226
      %v257 = vpack.c.bf16 %v229, %v228
      %v258 = vpack.c.bf16 %v231, %v230
      %v259 = vpack.c.bf16 %v233, %v232
      %v260 = vpack.c.bf16 %v235, %v234
      %v261 = vpack.c.bf16 %v237, %v236
      %v262 = vpack.c.bf16 %v239, %v238
      %v263 = vpack.c.bf16 %v241, %v240
      %v264 = vpack.c.bf16 %v243, %v242
      %v265 = vpack.c.bf16 %v245, %v244
      %v266 = vpack.c.bf16 %v247, %v246
      %v267 = vpack.c.bf16 %v249, %v248
      %v268 = vpack.c.bf16 %v251, %v250
      %v269 = vpack.c.bf16 %v253, %v252
      %s270 = scalar_lea.vmem %s1, 2
      %v271 = vld [vmem:[%s270] sm:$0x3]
      %vm272 = vcmask 23552
      %v274 = vsel %vm272, %v254, 0
      %v277 = vsel %vm272, %v255, 0
      %v280 = vsel %vm272, %v256, 0
      %v283 = vsel %vm272, %v257, 0
      %v286 = vsel %vm272, %v258, 0
      %v289 = vsel %vm272, %v259, 0
      %v292 = vsel %vm272, %v260, 0
      %v295 = vsel %vm272, %v261, 0
      %v298 = vsel %vm272, %v262, 0
      %v301 = vsel %vm272, %v263, 0
      %v304 = vsel %vm272, %v264, 0
      %v307 = vsel %vm272, %v265, 0
      %v310 = vsel %vm272, %v266, 0
      %v313 = vsel %vm272, %v267, 0
      %v316 = vsel %vm272, %v268, 0
      %v319 = vsel %vm272, %v269, 0
      %vm321 = vcmask 1040384
      %vm322 = vcmask 1041408
      %v323 = vsel %vm321, 4294967295, 65535
      %v324 = vsel %vm322, %v323, 0
      %v326 = vand.u32 %v271, %v324
      %328 = vmatprep.subr.bf16.mxu0 0
      %329 = vmatpush1.bf16.msra.mxu0 %v326
      %330 = vmatprep.subr.bf16.mxu0 0
      %331 = vmatpush1.bf16.msra.mxu0 0
      %332 = vmatprep.subr.bf16.mxu0 0
      %333 = vmatpush1.bf16.msra.mxu0 0
      %334 = vmatprep.subr.bf16.mxu0 0
      %335 = vmatpush1.bf16.msra.mxu0 0
      %336 = vmatprep.subr.bf16.mxu0 0
      %337 = vmatpush1.bf16.msra.mxu0 0
      %338 = vmatprep.subr.bf16.mxu0 0
      %339 = vmatpush1.bf16.msra.mxu0 0
      %340 = vmatprep.subr.bf16.mxu0 0
      %341 = vmatpush1.bf16.msra.mxu0 0
      %342 = vmatprep.subr.bf16.mxu0 0
      %343 = vmatpush1.bf16.msra.mxu0 0
      %344 = vmatprep.subr.bf16.mxu0 0
      %345 = vmatpush1.bf16.msra.mxu0 0
      %346 = vmatprep.subr.bf16.mxu0 0
      %347 = vmatpush1.bf16.msra.mxu0 0
      %348 = vmatprep.subr.bf16.mxu0 0
      %349 = vmatpush1.bf16.msra.mxu0 0
      %350 = vmatprep.subr.bf16.mxu0 0
      %351 = vmatpush1.bf16.msra.mxu0 0
      %352 = vmatprep.subr.bf16.mxu0 0
      %353 = vmatpush1.bf16.msra.mxu0 0
      %354 = vmatprep.subr.bf16.mxu0 0
      %355 = vmatpush1.bf16.msra.mxu0 0
      %356 = vmatprep.subr.bf16.mxu0 0
      %357 = vmatpush1.bf16.msra.mxu0 0
      %358 = vmatprep.subr.bf16.mxu0 0
      %359 = vmatpush1.bf16.msra.mxu0 0
      %360 = vmatprep.mubr.bf16.mxu0 0
      %361 = vmatmul.mubr.bf16.gmra.mrb[0].mxu0 %v274
      %v362 = vpop.f32.mrb[0].mxu0
      %v363 = vadd.f32 0.0, %v362
      %v364 = vpop.f32.mrb[0].mxu0
      %v365 = vpop.f32.mrb[0].mxu0
      %v366 = vadd.f32 0.0, %v365
      %v367 = vpop.f32.mrb[0].mxu0
      %368 = vmatprep.mubr.bf16.mxu0 0
      %369 = vmatmul.mubr.bf16.gmra.mrb[0].mxu0 %v277
      %v370 = vpop.f32.mrb[0].mxu0
      %v371 = vadd.f32 0.0, %v370
      %v372 = vpop.f32.mrb[0].mxu0
      %v373 = vpop.f32.mrb[0].mxu0
      %v374 = vadd.f32 0.0, %v373
      %v375 = vpop.f32.mrb[0].mxu0
      %376 = vmatprep.mubr.bf16.mxu0 0
      %377 = vmatmul.mubr.bf16.gmra.mrb[0].mxu0 %v280
      %v378 = vpop.f32.mrb[0].mxu0
      %v379 = vadd.f32 0.0, %v378
      %v380 = vpop.f32.mrb[0].mxu0
      %v381 = vpop.f32.mrb[0].mxu0
      %v382 = vadd.f32 0.0, %v381
      %v383 = vpop.f32.mrb[0].mxu0
      %384 = vmatprep.mubr.bf16.mxu0 0
      %385 = vmatmul.mubr.bf16.gmra.mrb[0].mxu0 %v283
      %v386 = vpop.f32.mrb[0].mxu0
      %v387 = vadd.f32 0.0, %v386
      %v388 = vpop.f32.mrb[0].mxu0
      %v389 = vpop.f32.mrb[0].mxu0
      %v390 = vadd.f32 0.0, %v389
      %v391 = vpop.f32.mrb[0].mxu0
      %392 = vmatprep.mubr.bf16.mxu0 0
      %393 = vmatmul.mubr.bf16.gmra.mrb[0].mxu0 %v286
      %v394 = vpop.f32.mrb[0].mxu0
      %v395 = vadd.f32 0.0, %v394
      %v396 = vpop.f32.mrb[0].mxu0
      %v397 = vpop.f32.mrb[0].mxu0
      %v398 = vadd.f32 0.0, %v397
      %v399 = vpop.f32.mrb[0].mxu0
      %400 = vmatprep.mubr.bf16.mxu0 0
      %401 = vmatmul.mubr.bf16.gmra.mrb[0].mxu0 %v289
      %v402 = vpop.f32.mrb[0].mxu0
      %v403 = vadd.f32 0.0, %v402
      %v404 = vpop.f32.mrb[0].mxu0
      %v405 = vpop.f32.mrb[0].mxu0
      %v406 = vadd.f32 0.0, %v405
      %v407 = vpop.f32.mrb[0].mxu0
      %408 = vmatprep.mubr.bf16.mxu0 0
      %409 = vmatmul.mubr.bf16.gmra.mrb[0].mxu0 %v292
      %v410 = vpop.f32.mrb[0].mxu0
      %v411 = vadd.f32 0.0, %v410
      %v412 = vpop.f32.mrb[0].mxu0
      %v413 = vpop.f32.mrb[0].mxu0
      %v414 = vadd.f32 0.0, %v413
      %v415 = vpop.f32.mrb[0].mxu0
      %416 = vmatprep.mubr.bf16.mxu0 0
      %417 = vmatmul.mubr.bf16.gmra.mrb[0].mxu0 %v295
      %v418 = vpop.f32.mrb[0].mxu0
      %v419 = vadd.f32 0.0, %v418
      %v420 = vpop.f32.mrb[0].mxu0
      %v421 = vpop.f32.mrb[0].mxu0
      %v422 = vadd.f32 0.0, %v421
      %v423 = vpop.f32.mrb[0].mxu0
      %424 = vmatprep.mubr.bf16.mxu0 0
      %425 = vmatmul.mubr.bf16.gmra.mrb[0].mxu0 %v298
      %v426 = vpop.f32.mrb[0].mxu0
      %v427 = vadd.f32 0.0, %v426
      %v428 = vpop.f32.mrb[0].mxu0
      %v429 = vpop.f32.mrb[0].mxu0
      %v430 = vadd.f32 0.0, %v429
      %v431 = vpop.f32.mrb[0].mxu0
      %432 = vmatprep.mubr.bf16.mxu0 0
      %433 = vmatmul.mubr.bf16.gmra.mrb[0].mxu0 %v301
      %v434 = vpop.f32.mrb[0].mxu0
      %v435 = vadd.f32 0.0, %v434
      %v436 = vpop.f32.mrb[0].mxu0
      %v437 = vpop.f32.mrb[0].mxu0
      %v438 = vadd.f32 0.0, %v437
      %v439 = vpop.f32.mrb[0].mxu0
      %440 = vmatprep.mubr.bf16.mxu0 0
      %441 = vmatmul.mubr.bf16.gmra.mrb[0].mxu0 %v304
      %v442 = vpop.f32.mrb[0].mxu0
      %v443 = vadd.f32 0.0, %v442
      %v444 = vpop.f32.mrb[0].mxu0
      %v445 = vpop.f32.mrb[0].mxu0
      %v446 = vadd.f32 0.0, %v445
      %v447 = vpop.f32.mrb[0].mxu0
      %448 = vmatprep.mubr.bf16.mxu0 0
      %449 = vmatmul.mubr.bf16.gmra.mrb[0].mxu0 %v307
      %v450 = vpop.f32.mrb[0].mxu0
      %v451 = vadd.f32 0.0, %v450
      %v452 = vpop.f32.mrb[0].mxu0
      %v453 = vpop.f32.mrb[0].mxu0
      %v454 = vadd.f32 0.0, %v453
      %v455 = vpop.f32.mrb[0].mxu0
      %456 = vmatprep.mubr.bf16.mxu0 0
      %457 = vmatmul.mubr.bf16.gmra.mrb[0].mxu0 %v310
      %v458 = vpop.f32.mrb[0].mxu0
      %v459 = vadd.f32 0.0, %v458
      %v460 = vpop.f32.mrb[0].mxu0
      %v461 = vpop.f32.mrb[0].mxu0
      %v462 = vadd.f32 0.0, %v461
      %v463 = vpop.f32.mrb[0].mxu0
      %464 = vmatprep.mubr.bf16.mxu0 0
      %465 = vmatmul.mubr.bf16.gmra.mrb[0].mxu0 %v313
      %v466 = vpop.f32.mrb[0].mxu0
      %v467 = vadd.f32 0.0, %v466
      %v468 = vpop.f32.mrb[0].mxu0
      %v469 = vpop.f32.mrb[0].mxu0
      %v470 = vadd.f32 0.0, %v469
      %v471 = vpop.f32.mrb[0].mxu0
      %472 = vmatprep.mubr.bf16.mxu0 0
      %473 = vmatmul.mubr.bf16.gmra.mrb[0].mxu0 %v316
      %v474 = vpop.f32.mrb[0].mxu0
      %v475 = vadd.f32 0.0, %v474
      %v476 = vpop.f32.mrb[0].mxu0
      %v477 = vpop.f32.mrb[0].mxu0
      %v478 = vadd.f32 0.0, %v477
      %v479 = vpop.f32.mrb[0].mxu0
      %480 = vmatprep.mubr.bf16.mxu0 0
      %481 = vmatmul.mubr.bf16.gmra.mrb[0].mxu0 %v319
      %v482 = vpop.f32.mrb[0].mxu0
      %v483 = vadd.f32 0.0, %v482
      %v484 = vpop.f32.mrb[0].mxu0
      %v485 = vpop.f32.mrb[0].mxu0
      %v486 = vadd.f32 0.0, %v485
      %v487 = vpop.f32.mrb[0].mxu0
      %488 = vdwg.mxu0
      %v490 = vsel %vm272, %v204, 0
      %v493 = vsel %vm272, %v205, 0
      %v496 = vsel %vm272, %v206, 0
      %v499 = vsel %vm272, %v207, 0
      %v502 = vsel %vm272, %v208, 0
      %v505 = vsel %vm272, %v209, 0
      %v508 = vsel %vm272, %v210, 0
      %v511 = vsel %vm272, %v211, 0
      %v514 = vsel %vm272, %v212, 0
      %v517 = vsel %vm272, %v213, 0
      %v520 = vsel %vm272, %v214, 0
      %v523 = vsel %vm272, %v215, 0
      %v526 = vsel %vm272, %v216, 0
      %v529 = vsel %vm272, %v217, 0
      %v532 = vsel %vm272, %v218, 0
      %v535 = vsel %vm272, %v219, 0
      %v538 = vand.u32 %v220, %v324
      %540 = vmatprep.subr.bf16.mxu0 0
      %541 = vmatpush1.bf16.msra.mxu0 %v538
      %542 = vmatprep.subr.bf16.mxu0 0
      %543 = vmatpush1.bf16.msra.mxu0 0
      %544 = vmatprep.subr.bf16.mxu0 0
      %545 = vmatpush1.bf16.msra.mxu0 0
      %546 = vmatprep.subr.bf16.mxu0 0
      %547 = vmatpush1.bf16.msra.mxu0 0
      %548 = vmatprep.subr.bf16.mxu0 0
      %549 = vmatpush1.bf16.msra.mxu0 0
      %550 = vmatprep.subr.bf16.mxu0 0
      %551 = vmatpush1.bf16.msra.mxu0 0
      %552 = vmatprep.subr.bf16.mxu0 0
      %553 = vmatpush1.bf16.msra.mxu0 0
      %554 = vmatprep.subr.bf16.mxu0 0
      %555 = vmatpush1.bf16.msra.mxu0 0
      %556 = vmatprep.subr.bf16.mxu0 0
      %557 = vmatpush1.bf16.msra.mxu0 0
      %558 = vmatprep.subr.bf16.mxu0 0
      %559 = vmatpush1.bf16.msra.mxu0 0
      %560 = vmatprep.subr.bf16.mxu0 0
      %561 = vmatpush1.bf16.msra.mxu0 0
      %562 = vmatprep.subr.bf16.mxu0 0
      %563 = vmatpush1.bf16.msra.mxu0 0
      %564 = vmatprep.subr.bf16.mxu0 0
      %565 = vmatpush1.bf16.msra.mxu0 0
      %566 = vmatprep.subr.bf16.mxu0 0
      %567 = vmatpush1.bf16.msra.mxu0 0
      %568 = vmatprep.subr.bf16.mxu0 0
      %569 = vmatpush1.bf16.msra.mxu0 0
      %570 = vmatprep.subr.bf16.mxu0 0
      %571 = vmatpush1.bf16.msra.mxu0 0
      %572 = vmatprep.mubr.bf16.mxu0 0
      %573 = vmatmul.mubr.bf16.gmra.mrb[0].mxu0 %v490
      %v574 = vpop.f32.mrb[0].mxu0
      %v575 = vadd.f32 %v363, %v574
      %v576 = vpop.f32.mrb[0].mxu0
      %v577 = vpop.f32.mrb[0].mxu0
      %v578 = vadd.f32 %v366, %v577
      %v579 = vpop.f32.mrb[0].mxu0
      %580 = vmatprep.mubr.bf16.mxu0 0
      %581 = vmatmul.mubr.bf16.gmra.mrb[0].mxu0 %v493
      %v582 = vpop.f32.mrb[0].mxu0
      %v583 = vadd.f32 %v371, %v582
      %v584 = vpop.f32.mrb[0].mxu0
      %v585 = vpop.f32.mrb[0].mxu0
      %v586 = vadd.f32 %v374, %v585
      %v587 = vpop.f32.mrb[0].mxu0
      %588 = vmatprep.mubr.bf16.mxu0 0
      %589 = vmatmul.mubr.bf16.gmra.mrb[0].mxu0 %v496
      %v590 = vpop.f32.mrb[0].mxu0
      %v591 = vadd.f32 %v379, %v590
      %v592 = vpop.f32.mrb[0].mxu0
      %v593 = vpop.f32.mrb[0].mxu0
      %v594 = vadd.f32 %v382, %v593
      %v595 = vpop.f32.mrb[0].mxu0
      %596 = vmatprep.mubr.bf16.mxu0 0
      %597 = vmatmul.mubr.bf16.gmra.mrb[0].mxu0 %v499
      %v598 = vpop.f32.mrb[0].mxu0
      %v599 = vadd.f32 %v387, %v598
      %v600 = vpop.f32.mrb[0].mxu0
      %v601 = vpop.f32.mrb[0].mxu0
      %v602 = vadd.f32 %v390, %v601
      %v603 = vpop.f32.mrb[0].mxu0
      %604 = vmatprep.mubr.bf16.mxu0 0
      %605 = vmatmul.mubr.bf16.gmra.mrb[0].mxu0 %v502
      %v606 = vpop.f32.mrb[0].mxu0
      %v607 = vadd.f32 %v395, %v606
      %v608 = vpop.f32.mrb[0].mxu0
      %v609 = vpop.f32.mrb[0].mxu0
      %v610 = vadd.f32 %v398, %v609
      %v611 = vpop.f32.mrb[0].mxu0
      %612 = vmatprep.mubr.bf16.mxu0 0
      %613 = vmatmul.mubr.bf16.gmra.mrb[0].mxu0 %v505
      %v614 = vpop.f32.mrb[0].mxu0
      %v615 = vadd.f32 %v403, %v614
      %v616 = vpop.f32.mrb[0].mxu0
      %v617 = vpop.f32.mrb[0].mxu0
      %v618 = vadd.f32 %v406, %v617
      %v619 = vpop.f32.mrb[0].mxu0
      %620 = vmatprep.mubr.bf16.mxu0 0
      %621 = vmatmul.mubr.bf16.gmra.mrb[0].mxu0 %v508
      %v622 = vpop.f32.mrb[0].mxu0
      %v623 = vadd.f32 %v411, %v622
      %v624 = vpop.f32.mrb[0].mxu0
      %v625 = vpop.f32.mrb[0].mxu0
      %v626 = vadd.f32 %v414, %v625
      %v627 = vpop.f32.mrb[0].mxu0
      %628 = vmatprep.mubr.bf16.mxu0 0
      %629 = vmatmul.mubr.bf16.gmra.mrb[0].mxu0 %v511
      %v630 = vpop.f32.mrb[0].mxu0
      %v631 = vadd.f32 %v419, %v630
      %v632 = vpop.f32.mrb[0].mxu0
      %v633 = vpop.f32.mrb[0].mxu0
      %v634 = vadd.f32 %v422, %v633
      %v635 = vpop.f32.mrb[0].mxu0
      %636 = vmatprep.mubr.bf16.mxu0 0
      %637 = vmatmul.mubr.bf16.gmra.mrb[0].mxu0 %v514
      %v638 = vpop.f32.mrb[0].mxu0
      %v639 = vadd.f32 %v427, %v638
      %v640 = vpop.f32.mrb[0].mxu0
      %v641 = vpop.f32.mrb[0].mxu0
      %v642 = vadd.f32 %v430, %v641
      %v643 = vpop.f32.mrb[0].mxu0
      %644 = vmatprep.mubr.bf16.mxu0 0
      %645 = vmatmul.mubr.bf16.gmra.mrb[0].mxu0 %v517
      %v646 = vpop.f32.mrb[0].mxu0
      %v647 = vadd.f32 %v435, %v646
      %v648 = vpop.f32.mrb[0].mxu0
      %v649 = vpop.f32.mrb[0].mxu0
      %v650 = vadd.f32 %v438, %v649
      %v651 = vpop.f32.mrb[0].mxu0
      %652 = vmatprep.mubr.bf16.mxu0 0
      %653 = vmatmul.mubr.bf16.gmra.mrb[0].mxu0 %v520
      %v654 = vpop.f32.mrb[0].mxu0
      %v655 = vadd.f32 %v443, %v654
      %v656 = vpop.f32.mrb[0].mxu0
      %v657 = vpop.f32.mrb[0].mxu0
      %v658 = vadd.f32 %v446, %v657
      %v659 = vpop.f32.mrb[0].mxu0
      %660 = vmatprep.mubr.bf16.mxu0 0
      %661 = vmatmul.mubr.bf16.gmra.mrb[0].mxu0 %v523
      %v662 = vpop.f32.mrb[0].mxu0
      %v663 = vadd.f32 %v451, %v662
      %v664 = vpop.f32.mrb[0].mxu0
      %v665 = vpop.f32.mrb[0].mxu0
      %v666 = vadd.f32 %v454, %v665
      %v667 = vpop.f32.mrb[0].mxu0
      %668 = vmatprep.mubr.bf16.mxu0 0
      %669 = vmatmul.mubr.bf16.gmra.mrb[0].mxu0 %v526
      %v670 = vpop.f32.mrb[0].mxu0
      %v671 = vadd.f32 %v459, %v670
      %v672 = vpop.f32.mrb[0].mxu0
      %v673 = vpop.f32.mrb[0].mxu0
      %v674 = vadd.f32 %v462, %v673
      %v675 = vpop.f32.mrb[0].mxu0
      %676 = vmatprep.mubr.bf16.mxu0 0
      %677 = vmatmul.mubr.bf16.gmra.mrb[0].mxu0 %v529
      %v678 = vpop.f32.mrb[0].mxu0
      %v679 = vadd.f32 %v467, %v678
      %v680 = vpop.f32.mrb[0].mxu0
      %v681 = vpop.f32.mrb[0].mxu0
      %v682 = vadd.f32 %v470, %v681
      %v683 = vpop.f32.mrb[0].mxu0
      %684 = vmatprep.mubr.bf16.mxu0 0
      %685 = vmatmul.mubr.bf16.gmra.mrb[0].mxu0 %v532
      %v686 = vpop.f32.mrb[0].mxu0
      %v687 = vadd.f32 %v475, %v686
      %v688 = vpop.f32.mrb[0].mxu0
      %v689 = vpop.f32.mrb[0].mxu0
      %v690 = vadd.f32 %v478, %v689
      %v691 = vpop.f32.mrb[0].mxu0
      %692 = vmatprep.mubr.bf16.mxu0 0
      %693 = vmatmul.mubr.bf16.gmra.mrb[0].mxu0 %v535
      %v694 = vpop.f32.mrb[0].mxu0
      %v695 = vadd.f32 %v483, %v694
      %v696 = vpop.f32.mrb[0].mxu0
      %v697 = vpop.f32.mrb[0].mxu0
      %v698 = vadd.f32 %v486, %v697
      %v699 = vpop.f32.mrb[0].mxu0
      %700 = vdwg.mxu0
      %v701 = vld [vmem:[%s165 + $0x1] sm:$0xff]
      %v702 = vld [vmem:[%s165 + $0x9] sm:$0xff]
      %v703 = vld [vmem:[%s165 + $0x19] sm:$0xff]
      %v704 = vld [vmem:[%s165 + $0x21] sm:$0xff]
      %v705 = vld [vmem:[%s165 + $0x31] sm:$0xff]
      %v706 = vld [vmem:[%s165 + $0x39] sm:$0xff]
      %v707 = vld [vmem:[%s165 + $0x49] sm:$0xff]
      %v708 = vld [vmem:[%s165 + $0x51] sm:$0xff]
      %v709 = vld [vmem:[%s165 + $0x61] sm:$0xff]
      %v710 = vld [vmem:[%s165 + $0x69] sm:$0xff]
      %v711 = vld [vmem:[%s165 + $0x79] sm:$0xff]
      %v712 = vld [vmem:[%s165 + $0x81] sm:$0xff]
      %v713 = vld [vmem:[%s165 + $0x91] sm:$0xff]
      %v714 = vld [vmem:[%s165 + $0x99] sm:$0xff]
      %v715 = vld [vmem:[%s165 + $0xa9] sm:$0xff]
      %v716 = vld [vmem:[%s165 + $0xb1] sm:$0xff]
      %v717 = vld [vmem:[%s165 + $0xc1] sm:$0xff]
      %v718 = vld [vmem:[%s165 + $0xc9] sm:$0xff]
      %v719 = vld [vmem:[%s165 + $0xd9] sm:$0xff]
      %v720 = vld [vmem:[%s165 + $0xe1] sm:$0xff]
      %v721 = vld [vmem:[%s165 + $0xf1] sm:$0xff]
      %v722 = vld [vmem:[%s165 + $0xf9] sm:$0xff]
      %v723 = vld [vmem:[%s165 + $0x109] sm:$0xff]
      %v724 = vld [vmem:[%s165 + $0x111] sm:$0xff]
      %v725 = vld [vmem:[%s165 + $0x121] sm:$0xff]
      %v726 = vld [vmem:[%s165 + $0x129] sm:$0xff]
      %v727 = vld [vmem:[%s165 + $0x139] sm:$0xff]
      %v728 = vld [vmem:[%s165 + $0x141] sm:$0xff]
      %v729 = vld [vmem:[%s165 + $0x151] sm:$0xff]
      %v730 = vld [vmem:[%s165 + $0x159] sm:$0xff]
      %v731 = vld [vmem:[%s165 + $0x169] sm:$0xff]
      %v732 = vld [vmem:[%s165 + $0x171] sm:$0xff]
      %v733 = vpack.c.bf16 %v702, %v701
      %v734 = vpack.c.bf16 %v704, %v703
      %v735 = vpack.c.bf16 %v706, %v705
      %v736 = vpack.c.bf16 %v708, %v707
      %v737 = vpack.c.bf16 %v710, %v709
      %v738 = vpack.c.bf16 %v712, %v711
      %v739 = vpack.c.bf16 %v714, %v713
      %v740 = vpack.c.bf16 %v716, %v715
      %v741 = vpack.c.bf16 %v718, %v717
      %v742 = vpack.c.bf16 %v720, %v719
      %v743 = vpack.c.bf16 %v722, %v721
      %v744 = vpack.c.bf16 %v724, %v723
      %v745 = vpack.c.bf16 %v726, %v725
      %v746 = vpack.c.bf16 %v728, %v727
      %v747 = vpack.c.bf16 %v730, %v729
      %v748 = vpack.c.bf16 %v732, %v731
      %s749 = scalar_lea.vmem %s1, 4
      %v750 = vld [vmem:[%s749] sm:$0x3]
      %v752 = vsel %vm272, %v733, 0
      %v755 = vsel %vm272, %v734, 0
      %v758 = vsel %vm272, %v735, 0
      %v761 = vsel %vm272, %v736, 0
      %v764 = vsel %vm272, %v737, 0
      %v767 = vsel %vm272, %v738, 0
      %v770 = vsel %vm272, %v739, 0
      %v773 = vsel %vm272, %v740, 0
      %v776 = vsel %vm272, %v741, 0
      %v779 = vsel %vm272, %v742, 0
      %v782 = vsel %vm272, %v743, 0
      %v785 = vsel %vm272, %v744, 0
      %v788 = vsel %vm272, %v745, 0
      %v791 = vsel %vm272, %v746, 0
      %v794 = vsel %vm272, %v747, 0
      %v797 = vsel %vm272, %v748, 0
      %v800 = vand.u32 %v750, %v324
      %802 = vmatprep.subr.bf16.mxu0 0
      %803 = vmatpush1.bf16.msra.mxu0 %v800
      %804 = vmatprep.subr.bf16.mxu0 0
      %805 = vmatpush1.bf16.msra.mxu0 0
      %806 = vmatprep.subr.bf16.mxu0 0
      %807 = vmatpush1.bf16.msra.mxu0 0
      %808 = vmatprep.subr.bf16.mxu0 0
      %809 = vmatpush1.bf16.msra.mxu0 0
      %810 = vmatprep.subr.bf16.mxu0 0
      %811 = vmatpush1.bf16.msra.mxu0 0
      %812 = vmatprep.subr.bf16.mxu0 0
      %813 = vmatpush1.bf16.msra.mxu0 0
      %814 = vmatprep.subr.bf16.mxu0 0
      %815 = vmatpush1.bf16.msra.mxu0 0
      %816 = vmatprep.subr.bf16.mxu0 0
      %817 = vmatpush1.bf16.msra.mxu0 0
      %818 = vmatprep.subr.bf16.mxu0 0
      %819 = vmatpush1.bf16.msra.mxu0 0
      %820 = vmatprep.subr.bf16.mxu0 0
      %821 = vmatpush1.bf16.msra.mxu0 0
      %822 = vmatprep.subr.bf16.mxu0 0
      %823 = vmatpush1.bf16.msra.mxu0 0
      %824 = vmatprep.subr.bf16.mxu0 0
      %825 = vmatpush1.bf16.msra.mxu0 0
      %826 = vmatprep.subr.bf16.mxu0 0
      %827 = vmatpush1.bf16.msra.mxu0 0
      %828 = vmatprep.subr.bf16.mxu0 0
      %829 = vmatpush1.bf16.msra.mxu0 0
      %830 = vmatprep.subr.bf16.mxu0 0
      %831 = vmatpush1.bf16.msra.mxu0 0
      %832 = vmatprep.subr.bf16.mxu0 0
      %833 = vmatpush1.bf16.msra.mxu0 0
      %834 = vmatprep.mubr.bf16.mxu0 0
      %835 = vmatmul.mubr.bf16.gmra.mrb[0].mxu0 %v752
      %v836 = vpop.f32.mrb[0].mxu0
      %v837 = vadd.f32 0.0, %v836
      %v838 = vpop.f32.mrb[0].mxu0
      %v839 = vpop.f32.mrb[0].mxu0
      %v840 = vadd.f32 0.0, %v839
      %v841 = vpop.f32.mrb[0].mxu0
      %842 = vmatprep.mubr.bf16.mxu0 0
      %843 = vmatmul.mubr.bf16.gmra.mrb[0].mxu0 %v755
      %v844 = vpop.f32.mrb[0].mxu0
      %v845 = vadd.f32 0.0, %v844
      %v846 = vpop.f32.mrb[0].mxu0
      %v847 = vpop.f32.mrb[0].mxu0
      %v848 = vadd.f32 0.0, %v847
      %v849 = vpop.f32.mrb[0].mxu0
      %850 = vmatprep.mubr.bf16.mxu0 0
      %851 = vmatmul.mubr.bf16.gmra.mrb[0].mxu0 %v758
      %v852 = vpop.f32.mrb[0].mxu0
      %v853 = vadd.f32 0.0, %v852
      %v854 = vpop.f32.mrb[0].mxu0
      %v855 = vpop.f32.mrb[0].mxu0
      %v856 = vadd.f32 0.0, %v855
      %v857 = vpop.f32.mrb[0].mxu0
      %858 = vmatprep.mubr.bf16.mxu0 0
      %859 = vmatmul.mubr.bf16.gmra.mrb[0].mxu0 %v761
      %v860 = vpop.f32.mrb[0].mxu0
      %v861 = vadd.f32 0.0, %v860
      %v862 = vpop.f32.mrb[0].mxu0
      %v863 = vpop.f32.mrb[0].mxu0
      %v864 = vadd.f32 0.0, %v863
      %v865 = vpop.f32.mrb[0].mxu0
      %866 = vmatprep.mubr.bf16.mxu0 0
      %867 = vmatmul.mubr.bf16.gmra.mrb[0].mxu0 %v764
      %v868 = vpop.f32.mrb[0].mxu0
      %v869 = vadd.f32 0.0, %v868
      %v870 = vpop.f32.mrb[0].mxu0
      %v871 = vpop.f32.mrb[0].mxu0
      %v872 = vadd.f32 0.0, %v871
      %v873 = vpop.f32.mrb[0].mxu0
      %874 = vmatprep.mubr.bf16.mxu0 0
      %875 = vmatmul.mubr.bf16.gmra.mrb[0].mxu0 %v767
      %v876 = vpop.f32.mrb[0].mxu0
      %v877 = vadd.f32 0.0, %v876
      %v878 = vpop.f32.mrb[0].mxu0
      %v879 = vpop.f32.mrb[0].mxu0
      %v880 = vadd.f32 0.0, %v879
      %v881 = vpop.f32.mrb[0].mxu0
      %882 = vmatprep.mubr.bf16.mxu0 0
      %883 = vmatmul.mubr.bf16.gmra.mrb[0].mxu0 %v770
      %v884 = vpop.f32.mrb[0].mxu0
      %v885 = vadd.f32 0.0, %v884
      %v886 = vpop.f32.mrb[0].mxu0
      %v887 = vpop.f32.mrb[0].mxu0
      %v888 = vadd.f32 0.0, %v887
      %v889 = vpop.f32.mrb[0].mxu0
      %890 = vmatprep.mubr.bf16.mxu0 0
      %891 = vmatmul.mubr.bf16.gmra.mrb[0].mxu0 %v773
      %v892 = vpop.f32.mrb[0].mxu0
      %v893 = vadd.f32 0.0, %v892
      %v894 = vpop.f32.mrb[0].mxu0
      %v895 = vpop.f32.mrb[0].mxu0
      %v896 = vadd.f32 0.0, %v895
      %v897 = vpop.f32.mrb[0].mxu0
      %898 = vmatprep.mubr.bf16.mxu0 0
      %899 = vmatmul.mubr.bf16.gmra.mrb[0].mxu0 %v776
      %v900 = vpop.f32.mrb[0].mxu0
      %v901 = vadd.f32 0.0, %v900
      %v902 = vpop.f32.mrb[0].mxu0
      %v903 = vpop.f32.mrb[0].mxu0
      %v904 = vadd.f32 0.0, %v903
      %v905 = vpop.f32.mrb[0].mxu0
      %906 = vmatprep.mubr.bf16.mxu0 0
      %907 = vmatmul.mubr.bf16.gmra.mrb[0].mxu0 %v779
      %v908 = vpop.f32.mrb[0].mxu0
      %v909 = vadd.f32 0.0, %v908
      %v910 = vpop.f32.mrb[0].mxu0
      %v911 = vpop.f32.mrb[0].mxu0
      %v912 = vadd.f32 0.0, %v911
      %v913 = vpop.f32.mrb[0].mxu0
      %914 = vmatprep.mubr.bf16.mxu0 0
      %915 = vmatmul.mubr.bf16.gmra.mrb[0].mxu0 %v782
      %v916 = vpop.f32.mrb[0].mxu0
      %v917 = vadd.f32 0.0, %v916
      %v918 = vpop.f32.mrb[0].mxu0
      %v919 = vpop.f32.mrb[0].mxu0
      %v920 = vadd.f32 0.0, %v919
      %v921 = vpop.f32.mrb[0].mxu0
      %922 = vmatprep.mubr.bf16.mxu0 0
      %923 = vmatmul.mubr.bf16.gmra.mrb[0].mxu0 %v785
      %v924 = vpop.f32.mrb[0].mxu0
      %v925 = vadd.f32 0.0, %v924
      %v926 = vpop.f32.mrb[0].mxu0
      %v927 = vpop.f32.mrb[0].mxu0
      %v928 = vadd.f32 0.0, %v927
      %v929 = vpop.f32.mrb[0].mxu0
      %930 = vmatprep.mubr.bf16.mxu0 0
      %931 = vmatmul.mubr.bf16.gmra.mrb[0].mxu0 %v788
      %v932 = vpop.f32.mrb[0].mxu0
      %v933 = vadd.f32 0.0, %v932
      %v934 = vpop.f32.mrb[0].mxu0
      %v935 = vpop.f32.mrb[0].mxu0
      %v936 = vadd.f32 0.0, %v935
      %v937 = vpop.f32.mrb[0].mxu0
      %938 = vmatprep.mubr.bf16.mxu0 0
      %939 = vmatmul.mubr.bf16.gmra.mrb[0].mxu0 %v791
      %v940 = vpop.f32.mrb[0].mxu0
      %v941 = vadd.f32 0.0, %v940
      %v942 = vpop.f32.mrb[0].mxu0
      %v943 = vpop.f32.mrb[0].mxu0
      %v944 = vadd.f32 0.0, %v943
      %v945 = vpop.f32.mrb[0].mxu0
      %946 = vmatprep.mubr.bf16.mxu0 0
      %947 = vmatmul.mubr.bf16.gmra.mrb[0].mxu0 %v794
      %v948 = vpop.f32.mrb[0].mxu0
      %v949 = vadd.f32 0.0, %v948
      %v950 = vpop.f32.mrb[0].mxu0
      %v951 = vpop.f32.mrb[0].mxu0
      %v952 = vadd.f32 0.0, %v951
      %v953 = vpop.f32.mrb[0].mxu0
      %954 = vmatprep.mubr.bf16.mxu0 0
      %955 = vmatmul.mubr.bf16.gmra.mrb[0].mxu0 %v797
      %v956 = vpop.f32.mrb[0].mxu0
      %v957 = vadd.f32 0.0, %v956
      %v958 = vpop.f32.mrb[0].mxu0
      %v959 = vpop.f32.mrb[0].mxu0
      %v960 = vadd.f32 0.0, %v959
      %v961 = vpop.f32.mrb[0].mxu0
      %962 = vdwg.mxu0
      %v963 = vadd.f32 %v575, %v837
      %v964 = vadd.f32 %v578, %v840
      %v965 = vadd.f32 %v583, %v845
      %v966 = vadd.f32 %v586, %v848
      %v967 = vadd.f32 %v591, %v853
      %v968 = vadd.f32 %v594, %v856
      %v969 = vadd.f32 %v599, %v861
      %v970 = vadd.f32 %v602, %v864
      %v971 = vadd.f32 %v607, %v869
      %v972 = vadd.f32 %v610, %v872
      %v973 = vadd.f32 %v615, %v877
      %v974 = vadd.f32 %v618, %v880
      %v975 = vadd.f32 %v623, %v885
      %v976 = vadd.f32 %v626, %v888
      %v977 = vadd.f32 %v631, %v893
      %v978 = vadd.f32 %v634, %v896
      %v979 = vadd.f32 %v639, %v901
      %v980 = vadd.f32 %v642, %v904
      %v981 = vadd.f32 %v647, %v909
      %v982 = vadd.f32 %v650, %v912
      %v983 = vadd.f32 %v655, %v917
      %v984 = vadd.f32 %v658, %v920
      %v985 = vadd.f32 %v663, %v925
      %v986 = vadd.f32 %v666, %v928
      %v987 = vadd.f32 %v671, %v933
      %v988 = vadd.f32 %v674, %v936
      %v989 = vadd.f32 %v679, %v941
      %v990 = vadd.f32 %v682, %v944
      %v991 = vadd.f32 %v687, %v949
      %v992 = vadd.f32 %v690, %v952
      %v993 = vadd.f32 %v695, %v957
      %v994 = vadd.f32 %v698, %v960
      %s995 = scalar_lea.vmem %s165, 816
      %v996 = vld [vmem:[%s995] sm:$0xff]
      %v997 = vld [vmem:[%s995 + $0x8] sm:$0xff]
      %v998 = vld [vmem:[%s995 + $0x18] sm:$0xff]
      %v999 = vld [vmem:[%s995 + $0x20] sm:$0xff]
      %v1000 = vld [vmem:[%s995 + $0x30] sm:$0xff]
      %v1001 = vld [vmem:[%s995 + $0x38] sm:$0xff]
      %v1002 = vld [vmem:[%s995 + $0x48] sm:$0xff]
      %v1003 = vld [vmem:[%s995 + $0x50] sm:$0xff]
      %v1004 = vld [vmem:[%s995 + $0x60] sm:$0xff]
      %v1005 = vld [vmem:[%s995 + $0x68] sm:$0xff]
      %v1006 = vld [vmem:[%s995 + $0x78] sm:$0xff]
      %v1007 = vld [vmem:[%s995 + $0x80] sm:$0xff]
      %v1008 = vld [vmem:[%s995 + $0x90] sm:$0xff]
      %v1009 = vld [vmem:[%s995 + $0x98] sm:$0xff]
      %v1010 = vld [vmem:[%s995 + $0xa8] sm:$0xff]
      %v1011 = vld [vmem:[%s995 + $0xb0] sm:$0xff]
      %v1012 = vld [vmem:[%s995 + $0xc0] sm:$0xff]
      %v1013 = vld [vmem:[%s995 + $0xc8] sm:$0xff]
      %v1014 = vld [vmem:[%s995 + $0xd8] sm:$0xff]
      %v1015 = vld [vmem:[%s995 + $0xe0] sm:$0xff]
      %v1016 = vld [vmem:[%s995 + $0xf0] sm:$0xff]
      %v1017 = vld [vmem:[%s995 + $0xf8] sm:$0xff]
      %v1018 = vld [vmem:[%s995 + $0x108] sm:$0xff]
      %v1019 = vld [vmem:[%s995 + $0x110] sm:$0xff]
      %v1020 = vld [vmem:[%s995 + $0x120] sm:$0xff]
      %v1021 = vld [vmem:[%s995 + $0x128] sm:$0xff]
      %v1022 = vld [vmem:[%s995 + $0x138] sm:$0xff]
      %v1023 = vld [vmem:[%s995 + $0x140] sm:$0xff]
      %v1024 = vld [vmem:[%s995 + $0x150] sm:$0xff]
      %v1025 = vld [vmem:[%s995 + $0x158] sm:$0xff]
      %v1026 = vld [vmem:[%s995 + $0x168] sm:$0xff]
      %v1027 = vld [vmem:[%s995 + $0x170] sm:$0xff]
      %v1028 = vpack.c.bf16 %v997, %v996
      %v1029 = vpack.c.bf16 %v999, %v998
      %v1030 = vpack.c.bf16 %v1001, %v1000
      %v1031 = vpack.c.bf16 %v1003, %v1002
      %v1032 = vpack.c.bf16 %v1005, %v1004
      %v1033 = vpack.c.bf16 %v1007, %v1006
      %v1034 = vpack.c.bf16 %v1009, %v1008
      %v1035 = vpack.c.bf16 %v1011, %v1010
      %v1036 = vpack.c.bf16 %v1013, %v1012
      %v1037 = vpack.c.bf16 %v1015, %v1014
      %v1038 = vpack.c.bf16 %v1017, %v1016
      %v1039 = vpack.c.bf16 %v1019, %v1018
      %v1040 = vpack.c.bf16 %v1021, %v1020
      %v1041 = vpack.c.bf16 %v1023, %v1022
      %v1042 = vpack.c.bf16 %v1025, %v1024
      %v1043 = vpack.c.bf16 %v1027, %v1026
      %s1044 = scalar_lea.vmem %s1, 6
      %v1045 = vld [vmem:[%s1044] sm:$0x3]
      %v1047 = vsel %vm272, %v1028, 0
      %v1050 = vsel %vm272, %v1029, 0
      %v1053 = vsel %vm272, %v1030, 0
      %v1056 = vsel %vm272, %v1031, 0
      %v1059 = vsel %vm272, %v1032, 0
      %v1062 = vsel %vm272, %v1033, 0
      %v1065 = vsel %vm272, %v1034, 0
      %v1068 = vsel %vm272, %v1035, 0
      %v1071 = vsel %vm272, %v1036, 0
      %v1074 = vsel %vm272, %v1037, 0
      %v1077 = vsel %vm272, %v1038, 0
      %v1080 = vsel %vm272, %v1039, 0
      %v1083 = vsel %vm272, %v1040, 0
      %v1086 = vsel %vm272, %v1041, 0
      %v1089 = vsel %vm272, %v1042, 0
      %v1092 = vsel %vm272, %v1043, 0
      %v1095 = vand.u32 %v1045, %v324
      %1097 = vmatprep.subr.bf16.mxu0 0
      %1098 = vmatpush1.bf16.msra.mxu0 %v1095
      %1099 = vmatprep.subr.bf16.mxu0 0
      %1100 = vmatpush1.bf16.msra.mxu0 0
      %1101 = vmatprep.subr.bf16.mxu0 0
      %1102 = vmatpush1.bf16.msra.mxu0 0
      %1103 = vmatprep.subr.bf16.mxu0 0
      %1104 = vmatpush1.bf16.msra.mxu0 0
      %1105 = vmatprep.subr.bf16.mxu0 0
      %1106 = vmatpush1.bf16.msra.mxu0 0
      %1107 = vmatprep.subr.bf16.mxu0 0
      %1108 = vmatpush1.bf16.msra.mxu0 0
      %1109 = vmatprep.subr.bf16.mxu0 0
      %1110 = vmatpush1.bf16.msra.mxu0 0
      %1111 = vmatprep.subr.bf16.mxu0 0
      %1112 = vmatpush1.bf16.msra.mxu0 0
      %1113 = vmatprep.subr.bf16.mxu0 0
      %1114 = vmatpush1.bf16.msra.mxu0 0
      %1115 = vmatprep.subr.bf16.mxu0 0
      %1116 = vmatpush1.bf16.msra.mxu0 0
      %1117 = vmatprep.subr.bf16.mxu0 0
      %1118 = vmatpush1.bf16.msra.mxu0 0
      %1119 = vmatprep.subr.bf16.mxu0 0
      %1120 = vmatpush1.bf16.msra.mxu0 0
      %1121 = vmatprep.subr.bf16.mxu0 0
      %1122 = vmatpush1.bf16.msra.mxu0 0
      %1123 = vmatprep.subr.bf16.mxu0 0
      %1124 = vmatpush1.bf16.msra.mxu0 0
      %1125 = vmatprep.subr.bf16.mxu0 0
      %1126 = vmatpush1.bf16.msra.mxu0 0
      %1127 = vmatprep.subr.bf16.mxu0 0
      %1128 = vmatpush1.bf16.msra.mxu0 0
      %1129 = vmatprep.mubr.bf16.mxu0 0
      %1130 = vmatmul.mubr.bf16.gmra.mrb[0].mxu0 %v1047
      %v1131 = vpop.f32.mrb[0].mxu0
      %v1132 = vadd.f32 0.0, %v1131
      %v1133 = vpop.f32.mrb[0].mxu0
      %v1134 = vpop.f32.mrb[0].mxu0
      %v1135 = vadd.f32 0.0, %v1134
      %v1136 = vpop.f32.mrb[0].mxu0
      %1137 = vmatprep.mubr.bf16.mxu0 0
      %1138 = vmatmul.mubr.bf16.gmra.mrb[0].mxu0 %v1050
      %v1139 = vpop.f32.mrb[0].mxu0
      %v1140 = vadd.f32 0.0, %v1139
      %v1141 = vpop.f32.mrb[0].mxu0
      %v1142 = vpop.f32.mrb[0].mxu0
      %v1143 = vadd.f32 0.0, %v1142
      %v1144 = vpop.f32.mrb[0].mxu0
      %1145 = vmatprep.mubr.bf16.mxu0 0
      %1146 = vmatmul.mubr.bf16.gmra.mrb[0].mxu0 %v1053
      %v1147 = vpop.f32.mrb[0].mxu0
      %v1148 = vadd.f32 0.0, %v1147
      %v1149 = vpop.f32.mrb[0].mxu0
      %v1150 = vpop.f32.mrb[0].mxu0
      %v1151 = vadd.f32 0.0, %v1150
      %v1152 = vpop.f32.mrb[0].mxu0
      %1153 = vmatprep.mubr.bf16.mxu0 0
      %1154 = vmatmul.mubr.bf16.gmra.mrb[0].mxu0 %v1056
      %v1155 = vpop.f32.mrb[0].mxu0
      %v1156 = vadd.f32 0.0, %v1155
      %v1157 = vpop.f32.mrb[0].mxu0
      %v1158 = vpop.f32.mrb[0].mxu0
      %v1159 = vadd.f32 0.0, %v1158
      %v1160 = vpop.f32.mrb[0].mxu0
      %1161 = vmatprep.mubr.bf16.mxu0 0
      %1162 = vmatmul.mubr.bf16.gmra.mrb[0].mxu0 %v1059
      %v1163 = vpop.f32.mrb[0].mxu0
      %v1164 = vadd.f32 0.0, %v1163
      %v1165 = vpop.f32.mrb[0].mxu0
      %v1166 = vpop.f32.mrb[0].mxu0
      %v1167 = vadd.f32 0.0, %v1166
      %v1168 = vpop.f32.mrb[0].mxu0
      %1169 = vmatprep.mubr.bf16.mxu0 0
      %1170 = vmatmul.mubr.bf16.gmra.mrb[0].mxu0 %v1062
      %v1171 = vpop.f32.mrb[0].mxu0
      %v1172 = vadd.f32 0.0, %v1171
      %v1173 = vpop.f32.mrb[0].mxu0
      %v1174 = vpop.f32.mrb[0].mxu0
      %v1175 = vadd.f32 0.0, %v1174
      %v1176 = vpop.f32.mrb[0].mxu0
      %1177 = vmatprep.mubr.bf16.mxu0 0
      %1178 = vmatmul.mubr.bf16.gmra.mrb[0].mxu0 %v1065
      %v1179 = vpop.f32.mrb[0].mxu0
      %v1180 = vadd.f32 0.0, %v1179
      %v1181 = vpop.f32.mrb[0].mxu0
      %v1182 = vpop.f32.mrb[0].mxu0
      %v1183 = vadd.f32 0.0, %v1182
      %v1184 = vpop.f32.mrb[0].mxu0
      %1185 = vmatprep.mubr.bf16.mxu0 0
      %1186 = vmatmul.mubr.bf16.gmra.mrb[0].mxu0 %v1068
      %v1187 = vpop.f32.mrb[0].mxu0
      %v1188 = vadd.f32 0.0, %v1187
      %v1189 = vpop.f32.mrb[0].mxu0
      %v1190 = vpop.f32.mrb[0].mxu0
      %v1191 = vadd.f32 0.0, %v1190
      %v1192 = vpop.f32.mrb[0].mxu0
      %1193 = vmatprep.mubr.bf16.mxu0 0
      %1194 = vmatmul.mubr.bf16.gmra.mrb[0].mxu0 %v1071
      %v1195 = vpop.f32.mrb[0].mxu0
      %v1196 = vadd.f32 0.0, %v1195
      %v1197 = vpop.f32.mrb[0].mxu0
      %v1198 = vpop.f32.mrb[0].mxu0
      %v1199 = vadd.f32 0.0, %v1198
      %v1200 = vpop.f32.mrb[0].mxu0
      %1201 = vmatprep.mubr.bf16.mxu0 0
      %1202 = vmatmul.mubr.bf16.gmra.mrb[0].mxu0 %v1074
      %v1203 = vpop.f32.mrb[0].mxu0
      %v1204 = vadd.f32 0.0, %v1203
      %v1205 = vpop.f32.mrb[0].mxu0
      %v1206 = vpop.f32.mrb[0].mxu0
      %v1207 = vadd.f32 0.0, %v1206
      %v1208 = vpop.f32.mrb[0].mxu0
      %1209 = vmatprep.mubr.bf16.mxu0 0
      %1210 = vmatmul.mubr.bf16.gmra.mrb[0].mxu0 %v1077
      %v1211 = vpop.f32.mrb[0].mxu0
      %v1212 = vadd.f32 0.0, %v1211
      %v1213 = vpop.f32.mrb[0].mxu0
      %v1214 = vpop.f32.mrb[0].mxu0
      %v1215 = vadd.f32 0.0, %v1214
      %v1216 = vpop.f32.mrb[0].mxu0
      %1217 = vmatprep.mubr.bf16.mxu0 0
      %1218 = vmatmul.mubr.bf16.gmra.mrb[0].mxu0 %v1080
      %v1219 = vpop.f32.mrb[0].mxu0
      %v1220 = vadd.f32 0.0, %v1219
      %v1221 = vpop.f32.mrb[0].mxu0
      %v1222 = vpop.f32.mrb[0].mxu0
      %v1223 = vadd.f32 0.0, %v1222
      %v1224 = vpop.f32.mrb[0].mxu0
      %1225 = vmatprep.mubr.bf16.mxu0 0
      %1226 = vmatmul.mubr.bf16.gmra.mrb[0].mxu0 %v1083
      %v1227 = vpop.f32.mrb[0].mxu0
      %v1228 = vadd.f32 0.0, %v1227
      %v1229 = vpop.f32.mrb[0].mxu0
      %v1230 = vpop.f32.mrb[0].mxu0
      %v1231 = vadd.f32 0.0, %v1230
      %v1232 = vpop.f32.mrb[0].mxu0
      %1233 = vmatprep.mubr.bf16.mxu0 0
      %1234 = vmatmul.mubr.bf16.gmra.mrb[0].mxu0 %v1086
      %v1235 = vpop.f32.mrb[0].mxu0
      %v1236 = vadd.f32 0.0, %v1235
      %v1237 = vpop.f32.mrb[0].mxu0
      %v1238 = vpop.f32.mrb[0].mxu0
      %v1239 = vadd.f32 0.0, %v1238
      %v1240 = vpop.f32.mrb[0].mxu0
      %1241 = vmatprep.mubr.bf16.mxu0 0
      %1242 = vmatmul.mubr.bf16.gmra.mrb[0].mxu0 %v1089
      %v1243 = vpop.f32.mrb[0].mxu0
      %v1244 = vadd.f32 0.0, %v1243
      %v1245 = vpop.f32.mrb[0].mxu0
      %v1246 = vpop.f32.mrb[0].mxu0
      %v1247 = vadd.f32 0.0, %v1246
      %v1248 = vpop.f32.mrb[0].mxu0
      %1249 = vmatprep.mubr.bf16.mxu0 0
      %1250 = vmatmul.mubr.bf16.gmra.mrb[0].mxu0 %v1092
      %v1251 = vpop.f32.mrb[0].mxu0
      %v1252 = vadd.f32 0.0, %v1251
      %v1253 = vpop.f32.mrb[0].mxu0
      %v1254 = vpop.f32.mrb[0].mxu0
      %v1255 = vadd.f32 0.0, %v1254
      %v1256 = vpop.f32.mrb[0].mxu0
      %1257 = vdwg.mxu0
      %v1258 = vadd.f32 %v963, %v1132
      %v1259 = vadd.f32 %v964, %v1135
      %v1260 = vadd.f32 %v965, %v1140
      %v1261 = vadd.f32 %v966, %v1143
      %v1262 = vadd.f32 %v967, %v1148
      %v1263 = vadd.f32 %v968, %v1151
      %v1264 = vadd.f32 %v969, %v1156
      %v1265 = vadd.f32 %v970, %v1159
      %v1266 = vadd.f32 %v971, %v1164
      %v1267 = vadd.f32 %v972, %v1167
      %v1268 = vadd.f32 %v973, %v1172
      %v1269 = vadd.f32 %v974, %v1175
      %v1270 = vadd.f32 %v975, %v1180
      %v1271 = vadd.f32 %v976, %v1183
      %v1272 = vadd.f32 %v977, %v1188
      %v1273 = vadd.f32 %v978, %v1191
      %v1274 = vadd.f32 %v979, %v1196
      %v1275 = vadd.f32 %v980, %v1199
      %v1276 = vadd.f32 %v981, %v1204
      %v1277 = vadd.f32 %v982, %v1207
      %v1278 = vadd.f32 %v983, %v1212
      %v1279 = vadd.f32 %v984, %v1215
      %v1280 = vadd.f32 %v985, %v1220
      %v1281 = vadd.f32 %v986, %v1223
      %v1282 = vadd.f32 %v987, %v1228
      %v1283 = vadd.f32 %v988, %v1231
      %v1284 = vadd.f32 %v989, %v1236
      %v1285 = vadd.f32 %v990, %v1239
      %v1286 = vadd.f32 %v991, %v1244
      %v1287 = vadd.f32 %v992, %v1247
      %v1288 = vadd.f32 %v993, %v1252
      %v1289 = vadd.f32 %v994, %v1255
      %s1290 = scalar_lea.vmem %s165, 1224
      %v1291 = vld [vmem:[%s1290] sm:$0xff]
      %v1292 = vld [vmem:[%s1290 + $0x8] sm:$0xff]
      %v1293 = vld [vmem:[%s1290 + $0x18] sm:$0xff]
      %v1294 = vld [vmem:[%s1290 + $0x20] sm:$0xff]
      %v1295 = vld [vmem:[%s1290 + $0x30] sm:$0xff]
      %v1296 = vld [vmem:[%s1290 + $0x38] sm:$0xff]
      %v1297 = vld [vmem:[%s1290 + $0x48] sm:$0xff]
      %v1298 = vld [vmem:[%s1290 + $0x50] sm:$0xff]
      %v1299 = vld [vmem:[%s1290 + $0x60] sm:$0xff]
      %v1300 = vld [vmem:[%s1290 + $0x68] sm:$0xff]
      %v1301 = vld [vmem:[%s1290 + $0x78] sm:$0xff]
      %v1302 = vld [vmem:[%s1290 + $0x80] sm:$0xff]
      %v1303 = vld [vmem:[%s1290 + $0x90] sm:$0xff]
      %v1304 = vld [vmem:[%s1290 + $0x98] sm:$0xff]
      %v1305 = vld [vmem:[%s1290 + $0xa8] sm:$0xff]
      %v1306 = vld [vmem:[%s1290 + $0xb0] sm:$0xff]
      %v1307 = vld [vmem:[%s1290 + $0xc0] sm:$0xff]
      %v1308 = vld [vmem:[%s1290 + $0xc8] sm:$0xff]
      %v1309 = vld [vmem:[%s1290 + $0xd8] sm:$0xff]
      %v1310 = vld [vmem:[%s1290 + $0xe0] sm:$0xff]
      %v1311 = vld [vmem:[%s1290 + $0xf0] sm:$0xff]
      %v1312 = vld [vmem:[%s1290 + $0xf8] sm:$0xff]
      %v1313 = vld [vmem:[%s1290 + $0x108] sm:$0xff]
      %v1314 = vld [vmem:[%s1290 + $0x110] sm:$0xff]
      %v1315 = vld [vmem:[%s1290 + $0x120] sm:$0xff]
      %v1316 = vld [vmem:[%s1290 + $0x128] sm:$0xff]
      %v1317 = vld [vmem:[%s1290 + $0x138] sm:$0xff]
      %v1318 = vld [vmem:[%s1290 + $0x140] sm:$0xff]
      %v1319 = vld [vmem:[%s1290 + $0x150] sm:$0xff]
      %v1320 = vld [vmem:[%s1290 + $0x158] sm:$0xff]
      %v1321 = vld [vmem:[%s1290 + $0x168] sm:$0xff]
      %v1322 = vld [vmem:[%s1290 + $0x170] sm:$0xff]
      %v1323 = vpack.c.bf16 %v1292, %v1291
      %v1324 = vpack.c.bf16 %v1294, %v1293
      %v1325 = vpack.c.bf16 %v1296, %v1295
      %v1326 = vpack.c.bf16 %v1298, %v1297
      %v1327 = vpack.c.bf16 %v1300, %v1299
      %v1328 = vpack.c.bf16 %v1302, %v1301
      %v1329 = vpack.c.bf16 %v1304, %v1303
      %v1330 = vpack.c.bf16 %v1306, %v1305
      %v1331 = vpack.c.bf16 %v1308, %v1307
      %v1332 = vpack.c.bf16 %v1310, %v1309
      %v1333 = vpack.c.bf16 %v1312, %v1311
      %v1334 = vpack.c.bf16 %v1314, %v1313
      %v1335 = vpack.c.bf16 %v1316, %v1315
      %v1336 = vpack.c.bf16 %v1318, %v1317
      %v1337 = vpack.c.bf16 %v1320, %v1319
      %v1338 = vpack.c.bf16 %v1322, %v1321
      %s1339 = scalar_lea.vmem %s1, 8
      %v1340 = vld [vmem:[%s1339] sm:$0x3]
      %v1342 = vsel %vm272, %v1323, 0
      %v1345 = vsel %vm272, %v1324, 0
      %v1348 = vsel %vm272, %v1325, 0
      %v1351 = vsel %vm272, %v1326, 0
      %v1354 = vsel %vm272, %v1327, 0
      %v1357 = vsel %vm272, %v1328, 0
      %v1360 = vsel %vm272, %v1329, 0
      %v1363 = vsel %vm272, %v1330, 0
      %v1366 = vsel %vm272, %v1331, 0
      %v1369 = vsel %vm272, %v1332, 0
      %v1372 = vsel %vm272, %v1333, 0
      %v1375 = vsel %vm272, %v1334, 0
      %v1378 = vsel %vm272, %v1335, 0
      %v1381 = vsel %vm272, %v1336, 0
      %v1384 = vsel %vm272, %v1337, 0
      %v1387 = vsel %vm272, %v1338, 0
      %v1390 = vand.u32 %v1340, %v324
      %1392 = vmatprep.subr.bf16.mxu0 0
      %1393 = vmatpush1.bf16.msra.mxu0 %v1390
      %1394 = vmatprep.subr.bf16.mxu0 0
      %1395 = vmatpush1.bf16.msra.mxu0 0
      %1396 = vmatprep.subr.bf16.mxu0 0
      %1397 = vmatpush1.bf16.msra.mxu0 0
      %1398 = vmatprep.subr.bf16.mxu0 0
      %1399 = vmatpush1.bf16.msra.mxu0 0
      %1400 = vmatprep.subr.bf16.mxu0 0
      %1401 = vmatpush1.bf16.msra.mxu0 0
      %1402 = vmatprep.subr.bf16.mxu0 0
      %1403 = vmatpush1.bf16.msra.mxu0 0
      %1404 = vmatprep.subr.bf16.mxu0 0
      %1405 = vmatpush1.bf16.msra.mxu0 0
      %1406 = vmatprep.subr.bf16.mxu0 0
      %1407 = vmatpush1.bf16.msra.mxu0 0
      %1408 = vmatprep.subr.bf16.mxu0 0
      %1409 = vmatpush1.bf16.msra.mxu0 0
      %1410 = vmatprep.subr.bf16.mxu0 0
      %1411 = vmatpush1.bf16.msra.mxu0 0
      %1412 = vmatprep.subr.bf16.mxu0 0
      %1413 = vmatpush1.bf16.msra.mxu0 0
      %1414 = vmatprep.subr.bf16.mxu0 0
      %1415 = vmatpush1.bf16.msra.mxu0 0
      %1416 = vmatprep.subr.bf16.mxu0 0
      %1417 = vmatpush1.bf16.msra.mxu0 0
      %1418 = vmatprep.subr.bf16.mxu0 0
      %1419 = vmatpush1.bf16.msra.mxu0 0
      %1420 = vmatprep.subr.bf16.mxu0 0
      %1421 = vmatpush1.bf16.msra.mxu0 0
      %1422 = vmatprep.subr.bf16.mxu0 0
      %1423 = vmatpush1.bf16.msra.mxu0 0
      %1424 = vmatprep.mubr.bf16.mxu0 0
      %1425 = vmatmul.mubr.bf16.gmra.mrb[0].mxu0 %v1342
      %v1426 = vpop.f32.mrb[0].mxu0
      %v1427 = vadd.f32 0.0, %v1426
      %v1428 = vpop.f32.mrb[0].mxu0
      %v1429 = vpop.f32.mrb[0].mxu0
      %v1430 = vadd.f32 0.0, %v1429
      %v1431 = vpop.f32.mrb[0].mxu0
      %1432 = vmatprep.mubr.bf16.mxu0 0
      %1433 = vmatmul.mubr.bf16.gmra.mrb[0].mxu0 %v1345
      %v1434 = vpop.f32.mrb[0].mxu0
      %v1435 = vadd.f32 0.0, %v1434
      %v1436 = vpop.f32.mrb[0].mxu0
      %v1437 = vpop.f32.mrb[0].mxu0
      %v1438 = vadd.f32 0.0, %v1437
      %v1439 = vpop.f32.mrb[0].mxu0
      %1440 = vmatprep.mubr.bf16.mxu0 0
      %1441 = vmatmul.mubr.bf16.gmra.mrb[0].mxu0 %v1348
      %v1442 = vpop.f32.mrb[0].mxu0
      %v1443 = vadd.f32 0.0, %v1442
      %v1444 = vpop.f32.mrb[0].mxu0
      %v1445 = vpop.f32.mrb[0].mxu0
      %v1446 = vadd.f32 0.0, %v1445
      %v1447 = vpop.f32.mrb[0].mxu0
      %1448 = vmatprep.mubr.bf16.mxu0 0
      %1449 = vmatmul.mubr.bf16.gmra.mrb[0].mxu0 %v1351
      %v1450 = vpop.f32.mrb[0].mxu0
      %v1451 = vadd.f32 0.0, %v1450
      %v1452 = vpop.f32.mrb[0].mxu0
      %v1453 = vpop.f32.mrb[0].mxu0
      %v1454 = vadd.f32 0.0, %v1453
      %v1455 = vpop.f32.mrb[0].mxu0
      %1456 = vmatprep.mubr.bf16.mxu0 0
      %1457 = vmatmul.mubr.bf16.gmra.mrb[0].mxu0 %v1354
      %v1458 = vpop.f32.mrb[0].mxu0
      %v1459 = vadd.f32 0.0, %v1458
      %v1460 = vpop.f32.mrb[0].mxu0
      %v1461 = vpop.f32.mrb[0].mxu0
      %v1462 = vadd.f32 0.0, %v1461
      %v1463 = vpop.f32.mrb[0].mxu0
      %1464 = vmatprep.mubr.bf16.mxu0 0
      %1465 = vmatmul.mubr.bf16.gmra.mrb[0].mxu0 %v1357
      %v1466 = vpop.f32.mrb[0].mxu0
      %v1467 = vadd.f32 0.0, %v1466
      %v1468 = vpop.f32.mrb[0].mxu0
      %v1469 = vpop.f32.mrb[0].mxu0
      %v1470 = vadd.f32 0.0, %v1469
      %v1471 = vpop.f32.mrb[0].mxu0
      %1472 = vmatprep.mubr.bf16.mxu0 0
      %1473 = vmatmul.mubr.bf16.gmra.mrb[0].mxu0 %v1360
      %v1474 = vpop.f32.mrb[0].mxu0
      %v1475 = vadd.f32 0.0, %v1474
      %v1476 = vpop.f32.mrb[0].mxu0
      %v1477 = vpop.f32.mrb[0].mxu0
      %v1478 = vadd.f32 0.0, %v1477
      %v1479 = vpop.f32.mrb[0].mxu0
      %1480 = vmatprep.mubr.bf16.mxu0 0
      %1481 = vmatmul.mubr.bf16.gmra.mrb[0].mxu0 %v1363
      %v1482 = vpop.f32.mrb[0].mxu0
      %v1483 = vadd.f32 0.0, %v1482
      %v1484 = vpop.f32.mrb[0].mxu0
      %v1485 = vpop.f32.mrb[0].mxu0
      %v1486 = vadd.f32 0.0, %v1485
      %v1487 = vpop.f32.mrb[0].mxu0
      %1488 = vmatprep.mubr.bf16.mxu0 0
      %1489 = vmatmul.mubr.bf16.gmra.mrb[0].mxu0 %v1366
      %v1490 = vpop.f32.mrb[0].mxu0
      %v1491 = vadd.f32 0.0, %v1490
      %v1492 = vpop.f32.mrb[0].mxu0
      %v1493 = vpop.f32.mrb[0].mxu0
      %v1494 = vadd.f32 0.0, %v1493
      %v1495 = vpop.f32.mrb[0].mxu0
      %1496 = vmatprep.mubr.bf16.mxu0 0
      %1497 = vmatmul.mubr.bf16.gmra.mrb[0].mxu0 %v1369
      %v1498 = vpop.f32.mrb[0].mxu0
      %v1499 = vadd.f32 0.0, %v1498
      %v1500 = vpop.f32.mrb[0].mxu0
      %v1501 = vpop.f32.mrb[0].mxu0
      %v1502 = vadd.f32 0.0, %v1501
      %v1503 = vpop.f32.mrb[0].mxu0
      %1504 = vmatprep.mubr.bf16.mxu0 0
      %1505 = vmatmul.mubr.bf16.gmra.mrb[0].mxu0 %v1372
      %v1506 = vpop.f32.mrb[0].mxu0
      %v1507 = vadd.f32 0.0, %v1506
      %v1508 = vpop.f32.mrb[0].mxu0
      %v1509 = vpop.f32.mrb[0].mxu0
      %v1510 = vadd.f32 0.0, %v1509
      %v1511 = vpop.f32.mrb[0].mxu0
      %1512 = vmatprep.mubr.bf16.mxu0 0
      %1513 = vmatmul.mubr.bf16.gmra.mrb[0].mxu0 %v1375
      %v1514 = vpop.f32.mrb[0].mxu0
      %v1515 = vadd.f32 0.0, %v1514
      %v1516 = vpop.f32.mrb[0].mxu0
      %v1517 = vpop.f32.mrb[0].mxu0
      %v1518 = vadd.f32 0.0, %v1517
      %v1519 = vpop.f32.mrb[0].mxu0
      %1520 = vmatprep.mubr.bf16.mxu0 0
      %1521 = vmatmul.mubr.bf16.gmra.mrb[0].mxu0 %v1378
      %v1522 = vpop.f32.mrb[0].mxu0
      %v1523 = vadd.f32 0.0, %v1522
      %v1524 = vpop.f32.mrb[0].mxu0
      %v1525 = vpop.f32.mrb[0].mxu0
      %v1526 = vadd.f32 0.0, %v1525
      %v1527 = vpop.f32.mrb[0].mxu0
      %1528 = vmatprep.mubr.bf16.mxu0 0
      %1529 = vmatmul.mubr.bf16.gmra.mrb[0].mxu0 %v1381
      %v1530 = vpop.f32.mrb[0].mxu0
      %v1531 = vadd.f32 0.0, %v1530
      %v1532 = vpop.f32.mrb[0].mxu0
      %v1533 = vpop.f32.mrb[0].mxu0
      %v1534 = vadd.f32 0.0, %v1533
      %v1535 = vpop.f32.mrb[0].mxu0
      %1536 = vmatprep.mubr.bf16.mxu0 0
      %1537 = vmatmul.mubr.bf16.gmra.mrb[0].mxu0 %v1384
      %v1538 = vpop.f32.mrb[0].mxu0
      %v1539 = vadd.f32 0.0, %v1538
      %v1540 = vpop.f32.mrb[0].mxu0
      %v1541 = vpop.f32.mrb[0].mxu0
      %v1542 = vadd.f32 0.0, %v1541
      %v1543 = vpop.f32.mrb[0].mxu0
      %1544 = vmatprep.mubr.bf16.mxu0 0
      %1545 = vmatmul.mubr.bf16.gmra.mrb[0].mxu0 %v1387
      %v1546 = vpop.f32.mrb[0].mxu0
      %v1547 = vadd.f32 0.0, %v1546
      %v1548 = vpop.f32.mrb[0].mxu0
      %v1549 = vpop.f32.mrb[0].mxu0
      %v1550 = vadd.f32 0.0, %v1549
      %v1551 = vpop.f32.mrb[0].mxu0
      %1552 = vdwg.mxu0
      %v1553 = vadd.f32 %v1258, %v1427
      %v1554 = vadd.f32 %v1259, %v1430
      %v1555 = vadd.f32 %v1260, %v1435
      %v1556 = vadd.f32 %v1261, %v1438
      %v1557 = vadd.f32 %v1262, %v1443
      %v1558 = vadd.f32 %v1263, %v1446
      %v1559 = vadd.f32 %v1264, %v1451
      %v1560 = vadd.f32 %v1265, %v1454
      %v1561 = vadd.f32 %v1266, %v1459
      %v1562 = vadd.f32 %v1267, %v1462
      %v1563 = vadd.f32 %v1268, %v1467
      %v1564 = vadd.f32 %v1269, %v1470
      %v1565 = vadd.f32 %v1270, %v1475
      %v1566 = vadd.f32 %v1271, %v1478
      %v1567 = vadd.f32 %v1272, %v1483
      %v1568 = vadd.f32 %v1273, %v1486
      %v1569 = vadd.f32 %v1274, %v1491
      %v1570 = vadd.f32 %v1275, %v1494
      %v1571 = vadd.f32 %v1276, %v1499
      %v1572 = vadd.f32 %v1277, %v1502
      %v1573 = vadd.f32 %v1278, %v1507
      %v1574 = vadd.f32 %v1279, %v1510
      %v1575 = vadd.f32 %v1280, %v1515
      %v1576 = vadd.f32 %v1281, %v1518
      %v1577 = vadd.f32 %v1282, %v1523
      %v1578 = vadd.f32 %v1283, %v1526
      %v1579 = vadd.f32 %v1284, %v1531
      %v1580 = vadd.f32 %v1285, %v1534
      %v1581 = vadd.f32 %v1286, %v1539
      %v1582 = vadd.f32 %v1287, %v1542
      %v1583 = vadd.f32 %v1288, %v1547
      %v1584 = vadd.f32 %v1289, %v1550
      %v1585 = vld [vmem:[%s995 + $0x1] sm:$0xff]
      %v1586 = vld [vmem:[%s995 + $0x9] sm:$0xff]
      %v1587 = vld [vmem:[%s995 + $0x19] sm:$0xff]
      %v1588 = vld [vmem:[%s995 + $0x21] sm:$0xff]
      %v1589 = vld [vmem:[%s995 + $0x31] sm:$0xff]
      %v1590 = vld [vmem:[%s995 + $0x39] sm:$0xff]
      %v1591 = vld [vmem:[%s995 + $0x49] sm:$0xff]
      %v1592 = vld [vmem:[%s995 + $0x51] sm:$0xff]
      %v1593 = vld [vmem:[%s995 + $0x61] sm:$0xff]
      %v1594 = vld [vmem:[%s995 + $0x69] sm:$0xff]
      %v1595 = vld [vmem:[%s995 + $0x79] sm:$0xff]
      %v1596 = vld [vmem:[%s995 + $0x81] sm:$0xff]
      %v1597 = vld [vmem:[%s995 + $0x91] sm:$0xff]
      %v1598 = vld [vmem:[%s995 + $0x99] sm:$0xff]
      %v1599 = vld [vmem:[%s995 + $0xa9] sm:$0xff]
      %v1600 = vld [vmem:[%s995 + $0xb1] sm:$0xff]
      %v1601 = vld [vmem:[%s995 + $0xc1] sm:$0xff]
      %v1602 = vld [vmem:[%s995 + $0xc9] sm:$0xff]
      %v1603 = vld [vmem:[%s995 + $0xd9] sm:$0xff]
      %v1604 = vld [vmem:[%s995 + $0xe1] sm:$0xff]
      %v1605 = vld [vmem:[%s995 + $0xf1] sm:$0xff]
      %v1606 = vld [vmem:[%s995 + $0xf9] sm:$0xff]
      %v1607 = vld [vmem:[%s995 + $0x109] sm:$0xff]
      %v1608 = vld [vmem:[%s995 + $0x111] sm:$0xff]
      %v1609 = vld [vmem:[%s995 + $0x121] sm:$0xff]
      %v1610 = vld [vmem:[%s995 + $0x129] sm:$0xff]
      %v1611 = vld [vmem:[%s995 + $0x139] sm:$0xff]
      %v1612 = vld [vmem:[%s995 + $0x141] sm:$0xff]
      %v1613 = vld [vmem:[%s995 + $0x151] sm:$0xff]
      %v1614 = vld [vmem:[%s995 + $0x159] sm:$0xff]
      %v1615 = vld [vmem:[%s995 + $0x169] sm:$0xff]
      %v1616 = vld [vmem:[%s995 + $0x171] sm:$0xff]
      %v1617 = vpack.c.bf16 %v1586, %v1585
      %v1618 = vpack.c.bf16 %v1588, %v1587
      %v1619 = vpack.c.bf16 %v1590, %v1589
      %v1620 = vpack.c.bf16 %v1592, %v1591
      %v1621 = vpack.c.bf16 %v1594, %v1593
      %v1622 = vpack.c.bf16 %v1596, %v1595
      %v1623 = vpack.c.bf16 %v1598, %v1597
      %v1624 = vpack.c.bf16 %v1600, %v1599
      %v1625 = vpack.c.bf16 %v1602, %v1601
      %v1626 = vpack.c.bf16 %v1604, %v1603
      %v1627 = vpack.c.bf16 %v1606, %v1605
      %v1628 = vpack.c.bf16 %v1608, %v1607
      %v1629 = vpack.c.bf16 %v1610, %v1609
      %v1630 = vpack.c.bf16 %v1612, %v1611
      %v1631 = vpack.c.bf16 %v1614, %v1613
      %v1632 = vpack.c.bf16 %v1616, %v1615
      %s1633 = scalar_lea.vmem %s1, 10
      %v1634 = vld [vmem:[%s1633] sm:$0x3]
      %v1636 = vsel %vm272, %v1617, 0
      %v1639 = vsel %vm272, %v1618, 0
      %v1642 = vsel %vm272, %v1619, 0
      %v1645 = vsel %vm272, %v1620, 0
      %v1648 = vsel %vm272, %v1621, 0
      %v1651 = vsel %vm272, %v1622, 0
      %v1654 = vsel %vm272, %v1623, 0
      %v1657 = vsel %vm272, %v1624, 0
      %v1660 = vsel %vm272, %v1625, 0
      %v1663 = vsel %vm272, %v1626, 0
      %v1666 = vsel %vm272, %v1627, 0
      %v1669 = vsel %vm272, %v1628, 0
      %v1672 = vsel %vm272, %v1629, 0
      %v1675 = vsel %vm272, %v1630, 0
      %v1678 = vsel %vm272, %v1631, 0
      %v1681 = vsel %vm272, %v1632, 0
      %v1684 = vand.u32 %v1634, %v324
      %1686 = vmatprep.subr.bf16.mxu0 0
      %1687 = vmatpush1.bf16.msra.mxu0 %v1684
      %1688 = vmatprep.subr.bf16.mxu0 0
      %1689 = vmatpush1.bf16.msra.mxu0 0
      %1690 = vmatprep.subr.bf16.mxu0 0
      %1691 = vmatpush1.bf16.msra.mxu0 0
      %1692 = vmatprep.subr.bf16.mxu0 0
      %1693 = vmatpush1.bf16.msra.mxu0 0
      %1694 = vmatprep.subr.bf16.mxu0 0
      %1695 = vmatpush1.bf16.msra.mxu0 0
      %1696 = vmatprep.subr.bf16.mxu0 0
      %1697 = vmatpush1.bf16.msra.mxu0 0
      %1698 = vmatprep.subr.bf16.mxu0 0
      %1699 = vmatpush1.bf16.msra.mxu0 0
      %1700 = vmatprep.subr.bf16.mxu0 0
      %1701 = vmatpush1.bf16.msra.mxu0 0
      %1702 = vmatprep.subr.bf16.mxu0 0
      %1703 = vmatpush1.bf16.msra.mxu0 0
      %1704 = vmatprep.subr.bf16.mxu0 0
      %1705 = vmatpush1.bf16.msra.mxu0 0
      %1706 = vmatprep.subr.bf16.mxu0 0
      %1707 = vmatpush1.bf16.msra.mxu0 0
      %1708 = vmatprep.subr.bf16.mxu0 0
      %1709 = vmatpush1.bf16.msra.mxu0 0
      %1710 = vmatprep.subr.bf16.mxu0 0
      %1711 = vmatpush1.bf16.msra.mxu0 0
      %1712 = vmatprep.subr.bf16.mxu0 0
      %1713 = vmatpush1.bf16.msra.mxu0 0
      %1714 = vmatprep.subr.bf16.mxu0 0
      %1715 = vmatpush1.bf16.msra.mxu0 0
      %1716 = vmatprep.subr.bf16.mxu0 0
      %1717 = vmatpush1.bf16.msra.mxu0 0
      %1718 = vmatprep.mubr.bf16.mxu0 0
      %1719 = vmatmul.mubr.bf16.gmra.mrb[0].mxu0 %v1636
      %v1720 = vpop.f32.mrb[0].mxu0
      %v1721 = vadd.f32 0.0, %v1720
      %v1722 = vpop.f32.mrb[0].mxu0
      %v1723 = vpop.f32.mrb[0].mxu0
      %v1724 = vadd.f32 0.0, %v1723
      %v1725 = vpop.f32.mrb[0].mxu0
      %1726 = vmatprep.mubr.bf16.mxu0 0
      %1727 = vmatmul.mubr.bf16.gmra.mrb[0].mxu0 %v1639
      %v1728 = vpop.f32.mrb[0].mxu0
      %v1729 = vadd.f32 0.0, %v1728
      %v1730 = vpop.f32.mrb[0].mxu0
      %v1731 = vpop.f32.mrb[0].mxu0
      %v1732 = vadd.f32 0.0, %v1731
      %v1733 = vpop.f32.mrb[0].mxu0
      %1734 = vmatprep.mubr.bf16.mxu0 0
      %1735 = vmatmul.mubr.bf16.gmra.mrb[0].mxu0 %v1642
      %v1736 = vpop.f32.mrb[0].mxu0
      %v1737 = vadd.f32 0.0, %v1736
      %v1738 = vpop.f32.mrb[0].mxu0
      %v1739 = vpop.f32.mrb[0].mxu0
      %v1740 = vadd.f32 0.0, %v1739
      %v1741 = vpop.f32.mrb[0].mxu0
      %1742 = vmatprep.mubr.bf16.mxu0 0
      %1743 = vmatmul.mubr.bf16.gmra.mrb[0].mxu0 %v1645
      %v1744 = vpop.f32.mrb[0].mxu0
      %v1745 = vadd.f32 0.0, %v1744
      %v1746 = vpop.f32.mrb[0].mxu0
      %v1747 = vpop.f32.mrb[0].mxu0
      %v1748 = vadd.f32 0.0, %v1747
      %v1749 = vpop.f32.mrb[0].mxu0
      %1750 = vmatprep.mubr.bf16.mxu0 0
      %1751 = vmatmul.mubr.bf16.gmra.mrb[0].mxu0 %v1648
      %v1752 = vpop.f32.mrb[0].mxu0
      %v1753 = vadd.f32 0.0, %v1752
      %v1754 = vpop.f32.mrb[0].mxu0
      %v1755 = vpop.f32.mrb[0].mxu0
      %v1756 = vadd.f32 0.0, %v1755
      %v1757 = vpop.f32.mrb[0].mxu0
      %1758 = vmatprep.mubr.bf16.mxu0 0
      %1759 = vmatmul.mubr.bf16.gmra.mrb[0].mxu0 %v1651
      %v1760 = vpop.f32.mrb[0].mxu0
      %v1761 = vadd.f32 0.0, %v1760
      %v1762 = vpop.f32.mrb[0].mxu0
      %v1763 = vpop.f32.mrb[0].mxu0
      %v1764 = vadd.f32 0.0, %v1763
      %v1765 = vpop.f32.mrb[0].mxu0
      %1766 = vmatprep.mubr.bf16.mxu0 0
      %1767 = vmatmul.mubr.bf16.gmra.mrb[0].mxu0 %v1654
      %v1768 = vpop.f32.mrb[0].mxu0
      %v1769 = vadd.f32 0.0, %v1768
      %v1770 = vpop.f32.mrb[0].mxu0
      %v1771 = vpop.f32.mrb[0].mxu0
      %v1772 = vadd.f32 0.0, %v1771
      %v1773 = vpop.f32.mrb[0].mxu0
      %1774 = vmatprep.mubr.bf16.mxu0 0
      %1775 = vmatmul.mubr.bf16.gmra.mrb[0].mxu0 %v1657
      %v1776 = vpop.f32.mrb[0].mxu0
      %v1777 = vadd.f32 0.0, %v1776
      %v1778 = vpop.f32.mrb[0].mxu0
      %v1779 = vpop.f32.mrb[0].mxu0
      %v1780 = vadd.f32 0.0, %v1779
      %v1781 = vpop.f32.mrb[0].mxu0
      %1782 = vmatprep.mubr.bf16.mxu0 0
      %1783 = vmatmul.mubr.bf16.gmra.mrb[0].mxu0 %v1660
      %v1784 = vpop.f32.mrb[0].mxu0
      %v1785 = vadd.f32 0.0, %v1784
      %v1786 = vpop.f32.mrb[0].mxu0
      %v1787 = vpop.f32.mrb[0].mxu0
      %v1788 = vadd.f32 0.0, %v1787
      %v1789 = vpop.f32.mrb[0].mxu0
      %1790 = vmatprep.mubr.bf16.mxu0 0
      %1791 = vmatmul.mubr.bf16.gmra.mrb[0].mxu0 %v1663
      %v1792 = vpop.f32.mrb[0].mxu0
      %v1793 = vadd.f32 0.0, %v1792
      %v1794 = vpop.f32.mrb[0].mxu0
      %v1795 = vpop.f32.mrb[0].mxu0
      %v1796 = vadd.f32 0.0, %v1795
      %v1797 = vpop.f32.mrb[0].mxu0
      %1798 = vmatprep.mubr.bf16.mxu0 0
      %1799 = vmatmul.mubr.bf16.gmra.mrb[0].mxu0 %v1666
      %v1800 = vpop.f32.mrb[0].mxu0
      %v1801 = vadd.f32 0.0, %v1800
      %v1802 = vpop.f32.mrb[0].mxu0
      %v1803 = vpop.f32.mrb[0].mxu0
      %v1804 = vadd.f32 0.0, %v1803
      %v1805 = vpop.f32.mrb[0].mxu0
      %1806 = vmatprep.mubr.bf16.mxu0 0
      %1807 = vmatmul.mubr.bf16.gmra.mrb[0].mxu0 %v1669
      %v1808 = vpop.f32.mrb[0].mxu0
      %v1809 = vadd.f32 0.0, %v1808
      %v1810 = vpop.f32.mrb[0].mxu0
      %v1811 = vpop.f32.mrb[0].mxu0
      %v1812 = vadd.f32 0.0, %v1811
      %v1813 = vpop.f32.mrb[0].mxu0
      %1814 = vmatprep.mubr.bf16.mxu0 0
      %1815 = vmatmul.mubr.bf16.gmra.mrb[0].mxu0 %v1672
      %v1816 = vpop.f32.mrb[0].mxu0
      %v1817 = vadd.f32 0.0, %v1816
      %v1818 = vpop.f32.mrb[0].mxu0
      %v1819 = vpop.f32.mrb[0].mxu0
      %v1820 = vadd.f32 0.0, %v1819
      %v1821 = vpop.f32.mrb[0].mxu0
      %1822 = vmatprep.mubr.bf16.mxu0 0
      %1823 = vmatmul.mubr.bf16.gmra.mrb[0].mxu0 %v1675
      %v1824 = vpop.f32.mrb[0].mxu0
      %v1825 = vadd.f32 0.0, %v1824
      %v1826 = vpop.f32.mrb[0].mxu0
      %v1827 = vpop.f32.mrb[0].mxu0
      %v1828 = vadd.f32 0.0, %v1827
      %v1829 = vpop.f32.mrb[0].mxu0
      %1830 = vmatprep.mubr.bf16.mxu0 0
      %1831 = vmatmul.mubr.bf16.gmra.mrb[0].mxu0 %v1678
      %v1832 = vpop.f32.mrb[0].mxu0
      %v1833 = vadd.f32 0.0, %v1832
      %v1834 = vpop.f32.mrb[0].mxu0
      %v1835 = vpop.f32.mrb[0].mxu0
      %v1836 = vadd.f32 0.0, %v1835
      %v1837 = vpop.f32.mrb[0].mxu0
      %1838 = vmatprep.mubr.bf16.mxu0 0
      %1839 = vmatmul.mubr.bf16.gmra.mrb[0].mxu0 %v1681
      %v1840 = vpop.f32.mrb[0].mxu0
      %v1841 = vadd.f32 0.0, %v1840
      %v1842 = vpop.f32.mrb[0].mxu0
      %v1843 = vpop.f32.mrb[0].mxu0
      %v1844 = vadd.f32 0.0, %v1843
      %v1845 = vpop.f32.mrb[0].mxu0
      %1846 = vdwg.mxu0
      %v1847 = vadd.f32 %v1553, %v1721
      %v1848 = vadd.f32 %v1554, %v1724
      %v1849 = vadd.f32 %v1555, %v1729
      %v1850 = vadd.f32 %v1556, %v1732
      %v1851 = vadd.f32 %v1557, %v1737
      %v1852 = vadd.f32 %v1558, %v1740
      %v1853 = vadd.f32 %v1559, %v1745
      %v1854 = vadd.f32 %v1560, %v1748
      %v1855 = vadd.f32 %v1561, %v1753
      %v1856 = vadd.f32 %v1562, %v1756
      %v1857 = vadd.f32 %v1563, %v1761
      %v1858 = vadd.f32 %v1564, %v1764
      %v1859 = vadd.f32 %v1565, %v1769
      %v1860 = vadd.f32 %v1566, %v1772
      %v1861 = vadd.f32 %v1567, %v1777
      %v1862 = vadd.f32 %v1568, %v1780
      %v1863 = vadd.f32 %v1569, %v1785
      %v1864 = vadd.f32 %v1570, %v1788
      %v1865 = vadd.f32 %v1571, %v1793
      %v1866 = vadd.f32 %v1572, %v1796
      %v1867 = vadd.f32 %v1573, %v1801
      %v1868 = vadd.f32 %v1574, %v1804
      %v1869 = vadd.f32 %v1575, %v1809
      %v1870 = vadd.f32 %v1576, %v1812
      %v1871 = vadd.f32 %v1577, %v1817
      %v1872 = vadd.f32 %v1578, %v1820
      %v1873 = vadd.f32 %v1579, %v1825
      %v1874 = vadd.f32 %v1580, %v1828
      %v1875 = vadd.f32 %v1581, %v1833
      %v1876 = vadd.f32 %v1582, %v1836
      %v1877 = vadd.f32 %v1583, %v1841
      %v1878 = vadd.f32 %v1584, %v1844
      %s1879 = scalar_lea.vmem %s165, 24
      %v1880 = vld [vmem:[%s1879] sm:$0xff]
      %v1881 = vld [vmem:[%s1879 + $0x8] sm:$0xff]
      %v1882 = vld [vmem:[%s1879 + $0x18] sm:$0xff]
      %v1883 = vld [vmem:[%s1879 + $0x20] sm:$0xff]
      %v1884 = vld [vmem:[%s1879 + $0x30] sm:$0xff]
      %v1885 = vld [vmem:[%s1879 + $0x38] sm:$0xff]
      %v1886 = vld [vmem:[%s1879 + $0x48] sm:$0xff]
      %v1887 = vld [vmem:[%s1879 + $0x50] sm:$0xff]
      %v1888 = vld [vmem:[%s1879 + $0x60] sm:$0xff]
      %v1889 = vld [vmem:[%s1879 + $0x68] sm:$0xff]
      %v1890 = vld [vmem:[%s1879 + $0x78] sm:$0xff]
      %v1891 = vld [vmem:[%s1879 + $0x80] sm:$0xff]
      %v1892 = vld [vmem:[%s1879 + $0x90] sm:$0xff]
      %v1893 = vld [vmem:[%s1879 + $0x98] sm:$0xff]
      %v1894 = vld [vmem:[%s1879 + $0xa8] sm:$0xff]
      %v1895 = vld [vmem:[%s1879 + $0xb0] sm:$0xff]
      %v1896 = vld [vmem:[%s1879 + $0xc0] sm:$0xff]
      %v1897 = vld [vmem:[%s1879 + $0xc8] sm:$0xff]
      %v1898 = vld [vmem:[%s1879 + $0xd8] sm:$0xff]
      %v1899 = vld [vmem:[%s1879 + $0xe0] sm:$0xff]
      %v1900 = vld [vmem:[%s1879 + $0xf0] sm:$0xff]
      %v1901 = vld [vmem:[%s1879 + $0xf8] sm:$0xff]
      %v1902 = vld [vmem:[%s1879 + $0x108] sm:$0xff]
      %v1903 = vld [vmem:[%s1879 + $0x110] sm:$0xff]
      %v1904 = vld [vmem:[%s1879 + $0x120] sm:$0xff]
      %v1905 = vld [vmem:[%s1879 + $0x128] sm:$0xff]
      %v1906 = vld [vmem:[%s1879 + $0x138] sm:$0xff]
      %v1907 = vld [vmem:[%s1879 + $0x140] sm:$0xff]
      %v1908 = vld [vmem:[%s1879 + $0x150] sm:$0xff]
      %v1909 = vld [vmem:[%s1879 + $0x158] sm:$0xff]
      %v1910 = vld [vmem:[%s1879 + $0x168] sm:$0xff]
      %v1911 = vld [vmem:[%s1879 + $0x170] sm:$0xff]
      %v1912 = vpack.c.bf16 %v1881, %v1880
      %v1913 = vpack.c.bf16 %v1883, %v1882
      %v1914 = vpack.c.bf16 %v1885, %v1884
      %v1915 = vpack.c.bf16 %v1887, %v1886
      %v1916 = vpack.c.bf16 %v1889, %v1888
      %v1917 = vpack.c.bf16 %v1891, %v1890
      %v1918 = vpack.c.bf16 %v1893, %v1892
      %v1919 = vpack.c.bf16 %v1895, %v1894
      %v1920 = vpack.c.bf16 %v1897, %v1896
      %v1921 = vpack.c.bf16 %v1899, %v1898
      %v1922 = vpack.c.bf16 %v1901, %v1900
      %v1923 = vpack.c.bf16 %v1903, %v1902
      %v1924 = vpack.c.bf16 %v1905, %v1904
      %v1925 = vpack.c.bf16 %v1907, %v1906
      %v1926 = vpack.c.bf16 %v1909, %v1908
      %v1927 = vpack.c.bf16 %v1911, %v1910
      %s1928 = scalar_lea.vmem %s1, 12
      %v1929 = vld [vmem:[%s1928] sm:$0x3]
      %v1931 = vsel %vm272, %v1912, 0
      %v1934 = vsel %vm272, %v1913, 0
      %v1937 = vsel %vm272, %v1914, 0
      %v1940 = vsel %vm272, %v1915, 0
      %v1943 = vsel %vm272, %v1916, 0
      %v1946 = vsel %vm272, %v1917, 0
      %v1949 = vsel %vm272, %v1918, 0
      %v1952 = vsel %vm272, %v1919, 0
      %v1955 = vsel %vm272, %v1920, 0
      %v1958 = vsel %vm272, %v1921, 0
      %v1961 = vsel %vm272, %v1922, 0
      %v1964 = vsel %vm272, %v1923, 0
      %v1967 = vsel %vm272, %v1924, 0
      %v1970 = vsel %vm272, %v1925, 0
      %v1973 = vsel %vm272, %v1926, 0
      %v1976 = vsel %vm272, %v1927, 0
      %v1979 = vand.u32 %v1929, %v324
      %1981 = vmatprep.subr.bf16.mxu0 0
      %1982 = vmatpush1.bf16.msra.mxu0 %v1979
      %1983 = vmatprep.subr.bf16.mxu0 0
      %1984 = vmatpush1.bf16.msra.mxu0 0
      %1985 = vmatprep.subr.bf16.mxu0 0
      %1986 = vmatpush1.bf16.msra.mxu0 0
      %1987 = vmatprep.subr.bf16.mxu0 0
      %1988 = vmatpush1.bf16.msra.mxu0 0
      %1989 = vmatprep.subr.bf16.mxu0 0
      %1990 = vmatpush1.bf16.msra.mxu0 0
      %1991 = vmatprep.subr.bf16.mxu0 0
      %1992 = vmatpush1.bf16.msra.mxu0 0
      %1993 = vmatprep.subr.bf16.mxu0 0
      %1994 = vmatpush1.bf16.msra.mxu0 0
      %1995 = vmatprep.subr.bf16.mxu0 0
      %1996 = vmatpush1.bf16.msra.mxu0 0
      %1997 = vmatprep.subr.bf16.mxu0 0
      %1998 = vmatpush1.bf16.msra.mxu0 0
      %1999 = vmatprep.subr.bf16.mxu0 0
      %2000 = vmatpush1.bf16.msra.mxu0 0
      %2001 = vmatprep.subr.bf16.mxu0 0
      %2002 = vmatpush1.bf16.msra.mxu0 0
      %2003 = vmatprep.subr.bf16.mxu0 0
      %2004 = vmatpush1.bf16.msra.mxu0 0
      %2005 = vmatprep.subr.bf16.mxu0 0
      %2006 = vmatpush1.bf16.msra.mxu0 0
      %2007 = vmatprep.subr.bf16.mxu0 0
      %2008 = vmatpush1.bf16.msra.mxu0 0
      %2009 = vmatprep.subr.bf16.mxu0 0
      %2010 = vmatpush1.bf16.msra.mxu0 0
      %2011 = vmatprep.subr.bf16.mxu0 0
      %2012 = vmatpush1.bf16.msra.mxu0 0
      %2013 = vmatprep.mubr.bf16.mxu0 0
      %2014 = vmatmul.mubr.bf16.gmra.mrb[0].mxu0 %v1931
      %v2015 = vpop.f32.mrb[0].mxu0
      %v2016 = vadd.f32 0.0, %v2015
      %v2017 = vpop.f32.mrb[0].mxu0
      %v2018 = vpop.f32.mrb[0].mxu0
      %v2019 = vadd.f32 0.0, %v2018
      %v2020 = vpop.f32.mrb[0].mxu0
      %2021 = vmatprep.mubr.bf16.mxu0 0
      %2022 = vmatmul.mubr.bf16.gmra.mrb[0].mxu0 %v1934
      %v2023 = vpop.f32.mrb[0].mxu0
      %v2024 = vadd.f32 0.0, %v2023
      %v2025 = vpop.f32.mrb[0].mxu0
      %v2026 = vpop.f32.mrb[0].mxu0
      %v2027 = vadd.f32 0.0, %v2026
      %v2028 = vpop.f32.mrb[0].mxu0
      %2029 = vmatprep.mubr.bf16.mxu0 0
      %2030 = vmatmul.mubr.bf16.gmra.mrb[0].mxu0 %v1937
      %v2031 = vpop.f32.mrb[0].mxu0
      %v2032 = vadd.f32 0.0, %v2031
      %v2033 = vpop.f32.mrb[0].mxu0
      %v2034 = vpop.f32.mrb[0].mxu0
      %v2035 = vadd.f32 0.0, %v2034
      %v2036 = vpop.f32.mrb[0].mxu0
      %2037 = vmatprep.mubr.bf16.mxu0 0
      %2038 = vmatmul.mubr.bf16.gmra.mrb[0].mxu0 %v1940
      %v2039 = vpop.f32.mrb[0].mxu0
      %v2040 = vadd.f32 0.0, %v2039
      %v2041 = vpop.f32.mrb[0].mxu0
      %v2042 = vpop.f32.mrb[0].mxu0
      %v2043 = vadd.f32 0.0, %v2042
      %v2044 = vpop.f32.mrb[0].mxu0
      %2045 = vmatprep.mubr.bf16.mxu0 0
      %2046 = vmatmul.mubr.bf16.gmra.mrb[0].mxu0 %v1943
      %v2047 = vpop.f32.mrb[0].mxu0
      %v2048 = vadd.f32 0.0, %v2047
      %v2049 = vpop.f32.mrb[0].mxu0
      %v2050 = vpop.f32.mrb[0].mxu0
      %v2051 = vadd.f32 0.0, %v2050
      %v2052 = vpop.f32.mrb[0].mxu0
      %2053 = vmatprep.mubr.bf16.mxu0 0
      %2054 = vmatmul.mubr.bf16.gmra.mrb[0].mxu0 %v1946
      %v2055 = vpop.f32.mrb[0].mxu0
      %v2056 = vadd.f32 0.0, %v2055
      %v2057 = vpop.f32.mrb[0].mxu0
      %v2058 = vpop.f32.mrb[0].mxu0
      %v2059 = vadd.f32 0.0, %v2058
      %v2060 = vpop.f32.mrb[0].mxu0
      %2061 = vmatprep.mubr.bf16.mxu0 0
      %2062 = vmatmul.mubr.bf16.gmra.mrb[0].mxu0 %v1949
      %v2063 = vpop.f32.mrb[0].mxu0
      %v2064 = vadd.f32 0.0, %v2063
      %v2065 = vpop.f32.mrb[0].mxu0
      %v2066 = vpop.f32.mrb[0].mxu0
      %v2067 = vadd.f32 0.0, %v2066
      %v2068 = vpop.f32.mrb[0].mxu0
      %2069 = vmatprep.mubr.bf16.mxu0 0
      %2070 = vmatmul.mubr.bf16.gmra.mrb[0].mxu0 %v1952
      %v2071 = vpop.f32.mrb[0].mxu0
      %v2072 = vadd.f32 0.0, %v2071
      %v2073 = vpop.f32.mrb[0].mxu0
      %v2074 = vpop.f32.mrb[0].mxu0
      %v2075 = vadd.f32 0.0, %v2074
      %v2076 = vpop.f32.mrb[0].mxu0
      %2077 = vmatprep.mubr.bf16.mxu0 0
      %2078 = vmatmul.mubr.bf16.gmra.mrb[0].mxu0 %v1955
      %v2079 = vpop.f32.mrb[0].mxu0
      %v2080 = vadd.f32 0.0, %v2079
      %v2081 = vpop.f32.mrb[0].mxu0
      %v2082 = vpop.f32.mrb[0].mxu0
      %v2083 = vadd.f32 0.0, %v2082
      %v2084 = vpop.f32.mrb[0].mxu0
      %2085 = vmatprep.mubr.bf16.mxu0 0
      %2086 = vmatmul.mubr.bf16.gmra.mrb[0].mxu0 %v1958
      %v2087 = vpop.f32.mrb[0].mxu0
      %v2088 = vadd.f32 0.0, %v2087
      %v2089 = vpop.f32.mrb[0].mxu0
      %v2090 = vpop.f32.mrb[0].mxu0
      %v2091 = vadd.f32 0.0, %v2090
      %v2092 = vpop.f32.mrb[0].mxu0
      %2093 = vmatprep.mubr.bf16.mxu0 0
      %2094 = vmatmul.mubr.bf16.gmra.mrb[0].mxu0 %v1961
      %v2095 = vpop.f32.mrb[0].mxu0
      %v2096 = vadd.f32 0.0, %v2095
      %v2097 = vpop.f32.mrb[0].mxu0
      %v2098 = vpop.f32.mrb[0].mxu0
      %v2099 = vadd.f32 0.0, %v2098
      %v2100 = vpop.f32.mrb[0].mxu0
      %2101 = vmatprep.mubr.bf16.mxu0 0
      %2102 = vmatmul.mubr.bf16.gmra.mrb[0].mxu0 %v1964
      %v2103 = vpop.f32.mrb[0].mxu0
      %v2104 = vadd.f32 0.0, %v2103
      %v2105 = vpop.f32.mrb[0].mxu0
      %v2106 = vpop.f32.mrb[0].mxu0
      %v2107 = vadd.f32 0.0, %v2106
      %v2108 = vpop.f32.mrb[0].mxu0
      %2109 = vmatprep.mubr.bf16.mxu0 0
      %2110 = vmatmul.mubr.bf16.gmra.mrb[0].mxu0 %v1967
      %v2111 = vpop.f32.mrb[0].mxu0
      %v2112 = vadd.f32 0.0, %v2111
      %v2113 = vpop.f32.mrb[0].mxu0
      %v2114 = vpop.f32.mrb[0].mxu0
      %v2115 = vadd.f32 0.0, %v2114
      %v2116 = vpop.f32.mrb[0].mxu0
      %2117 = vmatprep.mubr.bf16.mxu0 0
      %2118 = vmatmul.mubr.bf16.gmra.mrb[0].mxu0 %v1970
      %v2119 = vpop.f32.mrb[0].mxu0
      %v2120 = vadd.f32 0.0, %v2119
      %v2121 = vpop.f32.mrb[0].mxu0
      %v2122 = vpop.f32.mrb[0].mxu0
      %v2123 = vadd.f32 0.0, %v2122
      %v2124 = vpop.f32.mrb[0].mxu0
      %2125 = vmatprep.mubr.bf16.mxu0 0
      %2126 = vmatmul.mubr.bf16.gmra.mrb[0].mxu0 %v1973
      %v2127 = vpop.f32.mrb[0].mxu0
      %v2128 = vadd.f32 0.0, %v2127
      %v2129 = vpop.f32.mrb[0].mxu0
      %v2130 = vpop.f32.mrb[0].mxu0
      %v2131 = vadd.f32 0.0, %v2130
      %v2132 = vpop.f32.mrb[0].mxu0
      %2133 = vmatprep.mubr.bf16.mxu0 0
      %2134 = vmatmul.mubr.bf16.gmra.mrb[0].mxu0 %v1976
      %v2135 = vpop.f32.mrb[0].mxu0
      %v2136 = vadd.f32 0.0, %v2135
      %v2137 = vpop.f32.mrb[0].mxu0
      %v2138 = vpop.f32.mrb[0].mxu0
      %v2139 = vadd.f32 0.0, %v2138
      %v2140 = vpop.f32.mrb[0].mxu0
      %2141 = vdwg.mxu0
      %v2142 = vadd.f32 %v1847, %v2016
      %v2143 = vadd.f32 %v1848, %v2019
      %v2144 = vadd.f32 %v1849, %v2024
      %v2145 = vadd.f32 %v1850, %v2027
      %v2146 = vadd.f32 %v1851, %v2032
      %v2147 = vadd.f32 %v1852, %v2035
      %v2148 = vadd.f32 %v1853, %v2040
      %v2149 = vadd.f32 %v1854, %v2043
      %v2150 = vadd.f32 %v1855, %v2048
      %v2151 = vadd.f32 %v1856, %v2051
      %v2152 = vadd.f32 %v1857, %v2056
      %v2153 = vadd.f32 %v1858, %v2059
      %v2154 = vadd.f32 %v1859, %v2064
      %v2155 = vadd.f32 %v1860, %v2067
      %v2156 = vadd.f32 %v1861, %v2072
      %v2157 = vadd.f32 %v1862, %v2075
      %v2158 = vadd.f32 %v1863, %v2080
      %v2159 = vadd.f32 %v1864, %v2083
      %v2160 = vadd.f32 %v1865, %v2088
      %v2161 = vadd.f32 %v1866, %v2091
      %v2162 = vadd.f32 %v1867, %v2096
      %v2163 = vadd.f32 %v1868, %v2099
      %v2164 = vadd.f32 %v1869, %v2104
      %v2165 = vadd.f32 %v1870, %v2107
      %v2166 = vadd.f32 %v1871, %v2112
      %v2167 = vadd.f32 %v1872, %v2115
      %v2168 = vadd.f32 %v1873, %v2120
      %v2169 = vadd.f32 %v1874, %v2123
      %v2170 = vadd.f32 %v1875, %v2128
      %v2171 = vadd.f32 %v1876, %v2131
      %v2172 = vadd.f32 %v1877, %v2136
      %v2173 = vadd.f32 %v1878, %v2139
      %s2174 = scalar_lea.vmem %s165, 432
      %v2175 = vld [vmem:[%s2174] sm:$0xff]
      %v2176 = vld [vmem:[%s2174 + $0x8] sm:$0xff]
      %v2177 = vld [vmem:[%s2174 + $0x18] sm:$0xff]
      %v2178 = vld [vmem:[%s2174 + $0x20] sm:$0xff]
      %v2179 = vld [vmem:[%s2174 + $0x30] sm:$0xff]
      %v2180 = vld [vmem:[%s2174 + $0x38] sm:$0xff]
      %v2181 = vld [vmem:[%s2174 + $0x48] sm:$0xff]
      %v2182 = vld [vmem:[%s2174 + $0x50] sm:$0xff]
      %v2183 = vld [vmem:[%s2174 + $0x60] sm:$0xff]
      %v2184 = vld [vmem:[%s2174 + $0x68] sm:$0xff]
      %v2185 = vld [vmem:[%s2174 + $0x78] sm:$0xff]
      %v2186 = vld [vmem:[%s2174 + $0x80] sm:$0xff]
      %v2187 = vld [vmem:[%s2174 + $0x90] sm:$0xff]
      %v2188 = vld [vmem:[%s2174 + $0x98] sm:$0xff]
      %v2189 = vld [vmem:[%s2174 + $0xa8] sm:$0xff]
      %v2190 = vld [vmem:[%s2174 + $0xb0] sm:$0xff]
      %v2191 = vld [vmem:[%s2174 + $0xc0] sm:$0xff]
      %v2192 = vld [vmem:[%s2174 + $0xc8] sm:$0xff]
      %v2193 = vld [vmem:[%s2174 + $0xd8] sm:$0xff]
      %v2194 = vld [vmem:[%s2174 + $0xe0] sm:$0xff]
      %v2195 = vld [vmem:[%s2174 + $0xf0] sm:$0xff]
      %v2196 = vld [vmem:[%s2174 + $0xf8] sm:$0xff]
      %v2197 = vld [vmem:[%s2174 + $0x108] sm:$0xff]
      %v2198 = vld [vmem:[%s2174 + $0x110] sm:$0xff]
      %v2199 = vld [vmem:[%s2174 + $0x120] sm:$0xff]
      %v2200 = vld [vmem:[%s2174 + $0x128] sm:$0xff]
      %v2201 = vld [vmem:[%s2174 + $0x138] sm:$0xff]
      %v2202 = vld [vmem:[%s2174 + $0x140] sm:$0xff]
      %v2203 = vld [vmem:[%s2174 + $0x150] sm:$0xff]
      %v2204 = vld [vmem:[%s2174 + $0x158] sm:$0xff]
      %v2205 = vld [vmem:[%s2174 + $0x168] sm:$0xff]
      %v2206 = vld [vmem:[%s2174 + $0x170] sm:$0xff]
      %v2207 = vpack.c.bf16 %v2176, %v2175
      %v2208 = vpack.c.bf16 %v2178, %v2177
      %v2209 = vpack.c.bf16 %v2180, %v2179
      %v2210 = vpack.c.bf16 %v2182, %v2181
      %v2211 = vpack.c.bf16 %v2184, %v2183
      %v2212 = vpack.c.bf16 %v2186, %v2185
      %v2213 = vpack.c.bf16 %v2188, %v2187
      %v2214 = vpack.c.bf16 %v2190, %v2189
      %v2215 = vpack.c.bf16 %v2192, %v2191
      %v2216 = vpack.c.bf16 %v2194, %v2193
      %v2217 = vpack.c.bf16 %v2196, %v2195
      %v2218 = vpack.c.bf16 %v2198, %v2197
      %v2219 = vpack.c.bf16 %v2200, %v2199
      %v2220 = vpack.c.bf16 %v2202, %v2201
      %v2221 = vpack.c.bf16 %v2204, %v2203
      %v2222 = vpack.c.bf16 %v2206, %v2205
      %s2223 = scalar_lea.vmem %s1, 14
      %v2224 = vld [vmem:[%s2223] sm:$0x3]
      %v2226 = vsel %vm272, %v2207, 0
      %v2229 = vsel %vm272, %v2208, 0
      %v2232 = vsel %vm272, %v2209, 0
      %v2235 = vsel %vm272, %v2210, 0
      %v2238 = vsel %vm272, %v2211, 0
      %v2241 = vsel %vm272, %v2212, 0
      %v2244 = vsel %vm272, %v2213, 0
      %v2247 = vsel %vm272, %v2214, 0
      %v2250 = vsel %vm272, %v2215, 0
      %v2253 = vsel %vm272, %v2216, 0
      %v2256 = vsel %vm272, %v2217, 0
      %v2259 = vsel %vm272, %v2218, 0
      %v2262 = vsel %vm272, %v2219, 0
      %v2265 = vsel %vm272, %v2220, 0
      %v2268 = vsel %vm272, %v2221, 0
      %v2271 = vsel %vm272, %v2222, 0
      %v2274 = vand.u32 %v2224, %v324
      %2276 = vmatprep.subr.bf16.mxu0 0
      %2277 = vmatpush1.bf16.msra.mxu0 %v2274
      %2278 = vmatprep.subr.bf16.mxu0 0
      %2279 = vmatpush1.bf16.msra.mxu0 0
      %2280 = vmatprep.subr.bf16.mxu0 0
      %2281 = vmatpush1.bf16.msra.mxu0 0
      %2282 = vmatprep.subr.bf16.mxu0 0
      %2283 = vmatpush1.bf16.msra.mxu0 0
      %2284 = vmatprep.subr.bf16.mxu0 0
      %2285 = vmatpush1.bf16.msra.mxu0 0
      %2286 = vmatprep.subr.bf16.mxu0 0
      %2287 = vmatpush1.bf16.msra.mxu0 0
      %2288 = vmatprep.subr.bf16.mxu0 0
      %2289 = vmatpush1.bf16.msra.mxu0 0
      %2290 = vmatprep.subr.bf16.mxu0 0
      %2291 = vmatpush1.bf16.msra.mxu0 0
      %2292 = vmatprep.subr.bf16.mxu0 0
      %2293 = vmatpush1.bf16.msra.mxu0 0
      %2294 = vmatprep.subr.bf16.mxu0 0
      %2295 = vmatpush1.bf16.msra.mxu0 0
      %2296 = vmatprep.subr.bf16.mxu0 0
      %2297 = vmatpush1.bf16.msra.mxu0 0
      %2298 = vmatprep.subr.bf16.mxu0 0
      %2299 = vmatpush1.bf16.msra.mxu0 0
      %2300 = vmatprep.subr.bf16.mxu0 0
      %2301 = vmatpush1.bf16.msra.mxu0 0
      %2302 = vmatprep.subr.bf16.mxu0 0
      %2303 = vmatpush1.bf16.msra.mxu0 0
      %2304 = vmatprep.subr.bf16.mxu0 0
      %2305 = vmatpush1.bf16.msra.mxu0 0
      %2306 = vmatprep.subr.bf16.mxu0 0
      %2307 = vmatpush1.bf16.msra.mxu0 0
      %2308 = vmatprep.mubr.bf16.mxu0 0
      %2309 = vmatmul.mubr.bf16.gmra.mrb[0].mxu0 %v2226
      %v2310 = vpop.f32.mrb[0].mxu0
      %v2311 = vadd.f32 0.0, %v2310
      %v2312 = vpop.f32.mrb[0].mxu0
      %v2313 = vpop.f32.mrb[0].mxu0
      %v2314 = vadd.f32 0.0, %v2313
      %v2315 = vpop.f32.mrb[0].mxu0
      %2316 = vmatprep.mubr.bf16.mxu0 0
      %2317 = vmatmul.mubr.bf16.gmra.mrb[0].mxu0 %v2229
      %v2318 = vpop.f32.mrb[0].mxu0
      %v2319 = vadd.f32 0.0, %v2318
      %v2320 = vpop.f32.mrb[0].mxu0
      %v2321 = vpop.f32.mrb[0].mxu0
      %v2322 = vadd.f32 0.0, %v2321
      %v2323 = vpop.f32.mrb[0].mxu0
      %2324 = vmatprep.mubr.bf16.mxu0 0
      %2325 = vmatmul.mubr.bf16.gmra.mrb[0].mxu0 %v2232
      %v2326 = vpop.f32.mrb[0].mxu0
      %v2327 = vadd.f32 0.0, %v2326
      %v2328 = vpop.f32.mrb[0].mxu0
      %v2329 = vpop.f32.mrb[0].mxu0
      %v2330 = vadd.f32 0.0, %v2329
      %v2331 = vpop.f32.mrb[0].mxu0
      %2332 = vmatprep.mubr.bf16.mxu0 0
      %2333 = vmatmul.mubr.bf16.gmra.mrb[0].mxu0 %v2235
      %v2334 = vpop.f32.mrb[0].mxu0
      %v2335 = vadd.f32 0.0, %v2334
      %v2336 = vpop.f32.mrb[0].mxu0
      %v2337 = vpop.f32.mrb[0].mxu0
      %v2338 = vadd.f32 0.0, %v2337
      %v2339 = vpop.f32.mrb[0].mxu0
      %2340 = vmatprep.mubr.bf16.mxu0 0
      %2341 = vmatmul.mubr.bf16.gmra.mrb[0].mxu0 %v2238
      %v2342 = vpop.f32.mrb[0].mxu0
      %v2343 = vadd.f32 0.0, %v2342
      %v2344 = vpop.f32.mrb[0].mxu0
      %v2345 = vpop.f32.mrb[0].mxu0
      %v2346 = vadd.f32 0.0, %v2345
      %v2347 = vpop.f32.mrb[0].mxu0
      %2348 = vmatprep.mubr.bf16.mxu0 0
      %2349 = vmatmul.mubr.bf16.gmra.mrb[0].mxu0 %v2241
      %v2350 = vpop.f32.mrb[0].mxu0
      %v2351 = vadd.f32 0.0, %v2350
      %v2352 = vpop.f32.mrb[0].mxu0
      %v2353 = vpop.f32.mrb[0].mxu0
      %v2354 = vadd.f32 0.0, %v2353
      %v2355 = vpop.f32.mrb[0].mxu0
      %2356 = vmatprep.mubr.bf16.mxu0 0
      %2357 = vmatmul.mubr.bf16.gmra.mrb[0].mxu0 %v2244
      %v2358 = vpop.f32.mrb[0].mxu0
      %v2359 = vadd.f32 0.0, %v2358
      %v2360 = vpop.f32.mrb[0].mxu0
      %v2361 = vpop.f32.mrb[0].mxu0
      %v2362 = vadd.f32 0.0, %v2361
      %v2363 = vpop.f32.mrb[0].mxu0
      %2364 = vmatprep.mubr.bf16.mxu0 0
      %2365 = vmatmul.mubr.bf16.gmra.mrb[0].mxu0 %v2247
      %v2366 = vpop.f32.mrb[0].mxu0
      %v2367 = vadd.f32 0.0, %v2366
      %v2368 = vpop.f32.mrb[0].mxu0
      %v2369 = vpop.f32.mrb[0].mxu0
      %v2370 = vadd.f32 0.0, %v2369
      %v2371 = vpop.f32.mrb[0].mxu0
      %2372 = vmatprep.mubr.bf16.mxu0 0
      %2373 = vmatmul.mubr.bf16.gmra.mrb[0].mxu0 %v2250
      %v2374 = vpop.f32.mrb[0].mxu0
      %v2375 = vadd.f32 0.0, %v2374
      %v2376 = vpop.f32.mrb[0].mxu0
      %v2377 = vpop.f32.mrb[0].mxu0
      %v2378 = vadd.f32 0.0, %v2377
      %v2379 = vpop.f32.mrb[0].mxu0
      %2380 = vmatprep.mubr.bf16.mxu0 0
      %2381 = vmatmul.mubr.bf16.gmra.mrb[0].mxu0 %v2253
      %v2382 = vpop.f32.mrb[0].mxu0
      %v2383 = vadd.f32 0.0, %v2382
      %v2384 = vpop.f32.mrb[0].mxu0
      %v2385 = vpop.f32.mrb[0].mxu0
      %v2386 = vadd.f32 0.0, %v2385
      %v2387 = vpop.f32.mrb[0].mxu0
      %2388 = vmatprep.mubr.bf16.mxu0 0
      %2389 = vmatmul.mubr.bf16.gmra.mrb[0].mxu0 %v2256
      %v2390 = vpop.f32.mrb[0].mxu0
      %v2391 = vadd.f32 0.0, %v2390
      %v2392 = vpop.f32.mrb[0].mxu0
      %v2393 = vpop.f32.mrb[0].mxu0
      %v2394 = vadd.f32 0.0, %v2393
      %v2395 = vpop.f32.mrb[0].mxu0
      %2396 = vmatprep.mubr.bf16.mxu0 0
      %2397 = vmatmul.mubr.bf16.gmra.mrb[0].mxu0 %v2259
      %v2398 = vpop.f32.mrb[0].mxu0
      %v2399 = vadd.f32 0.0, %v2398
      %v2400 = vpop.f32.mrb[0].mxu0
      %v2401 = vpop.f32.mrb[0].mxu0
      %v2402 = vadd.f32 0.0, %v2401
      %v2403 = vpop.f32.mrb[0].mxu0
      %2404 = vmatprep.mubr.bf16.mxu0 0
      %2405 = vmatmul.mubr.bf16.gmra.mrb[0].mxu0 %v2262
      %v2406 = vpop.f32.mrb[0].mxu0
      %v2407 = vadd.f32 0.0, %v2406
      %v2408 = vpop.f32.mrb[0].mxu0
      %v2409 = vpop.f32.mrb[0].mxu0
      %v2410 = vadd.f32 0.0, %v2409
      %v2411 = vpop.f32.mrb[0].mxu0
      %2412 = vmatprep.mubr.bf16.mxu0 0
      %2413 = vmatmul.mubr.bf16.gmra.mrb[0].mxu0 %v2265
      %v2414 = vpop.f32.mrb[0].mxu0
      %v2415 = vadd.f32 0.0, %v2414
      %v2416 = vpop.f32.mrb[0].mxu0
      %v2417 = vpop.f32.mrb[0].mxu0
      %v2418 = vadd.f32 0.0, %v2417
      %v2419 = vpop.f32.mrb[0].mxu0
      %2420 = vmatprep.mubr.bf16.mxu0 0
      %2421 = vmatmul.mubr.bf16.gmra.mrb[0].mxu0 %v2268
      %v2422 = vpop.f32.mrb[0].mxu0
      %v2423 = vadd.f32 0.0, %v2422
      %v2424 = vpop.f32.mrb[0].mxu0
      %v2425 = vpop.f32.mrb[0].mxu0
      %v2426 = vadd.f32 0.0, %v2425
      %v2427 = vpop.f32.mrb[0].mxu0
      %2428 = vmatprep.mubr.bf16.mxu0 0
      %2429 = vmatmul.mubr.bf16.gmra.mrb[0].mxu0 %v2271
      %v2430 = vpop.f32.mrb[0].mxu0
      %v2431 = vadd.f32 0.0, %v2430
      %v2432 = vpop.f32.mrb[0].mxu0
      %v2433 = vpop.f32.mrb[0].mxu0
      %v2434 = vadd.f32 0.0, %v2433
      %v2435 = vpop.f32.mrb[0].mxu0
      %2436 = vdwg.mxu0
      %v2437 = vadd.f32 %v2142, %v2311
      %v2438 = vadd.f32 %v2143, %v2314
      %v2439 = vadd.f32 %v2144, %v2319
      %v2440 = vadd.f32 %v2145, %v2322
      %v2441 = vadd.f32 %v2146, %v2327
      %v2442 = vadd.f32 %v2147, %v2330
      %v2443 = vadd.f32 %v2148, %v2335
      %v2444 = vadd.f32 %v2149, %v2338
      %v2445 = vadd.f32 %v2150, %v2343
      %v2446 = vadd.f32 %v2151, %v2346
      %v2447 = vadd.f32 %v2152, %v2351
      %v2448 = vadd.f32 %v2153, %v2354
      %v2449 = vadd.f32 %v2154, %v2359
      %v2450 = vadd.f32 %v2155, %v2362
      %v2451 = vadd.f32 %v2156, %v2367
      %v2452 = vadd.f32 %v2157, %v2370
      %v2453 = vadd.f32 %v2158, %v2375
      %v2454 = vadd.f32 %v2159, %v2378
      %v2455 = vadd.f32 %v2160, %v2383
      %v2456 = vadd.f32 %v2161, %v2386
      %v2457 = vadd.f32 %v2162, %v2391
      %v2458 = vadd.f32 %v2163, %v2394
      %v2459 = vadd.f32 %v2164, %v2399
      %v2460 = vadd.f32 %v2165, %v2402
      %v2461 = vadd.f32 %v2166, %v2407
      %v2462 = vadd.f32 %v2167, %v2410
      %v2463 = vadd.f32 %v2168, %v2415
      %v2464 = vadd.f32 %v2169, %v2418
      %v2465 = vadd.f32 %v2170, %v2423
      %v2466 = vadd.f32 %v2171, %v2426
      %v2467 = vadd.f32 %v2172, %v2431
      %v2468 = vadd.f32 %v2173, %v2434
      %v2469 = vld [vmem:[%s1879 + $0x1] sm:$0xff]
      %v2470 = vld [vmem:[%s1879 + $0x9] sm:$0xff]
      %v2471 = vld [vmem:[%s1879 + $0x19] sm:$0xff]
      %v2472 = vld [vmem:[%s1879 + $0x21] sm:$0xff]
      %v2473 = vld [vmem:[%s1879 + $0x31] sm:$0xff]
      %v2474 = vld [vmem:[%s1879 + $0x39] sm:$0xff]
      %v2475 = vld [vmem:[%s1879 + $0x49] sm:$0xff]
      %v2476 = vld [vmem:[%s1879 + $0x51] sm:$0xff]
      %v2477 = vld [vmem:[%s1879 + $0x61] sm:$0xff]
      %v2478 = vld [vmem:[%s1879 + $0x69] sm:$0xff]
      %v2479 = vld [vmem:[%s1879 + $0x79] sm:$0xff]
      %v2480 = vld [vmem:[%s1879 + $0x81] sm:$0xff]
      %v2481 = vld [vmem:[%s1879 + $0x91] sm:$0xff]
      %v2482 = vld [vmem:[%s1879 + $0x99] sm:$0xff]
      %v2483 = vld [vmem:[%s1879 + $0xa9] sm:$0xff]
      %v2484 = vld [vmem:[%s1879 + $0xb1] sm:$0xff]
      %v2485 = vld [vmem:[%s1879 + $0xc1] sm:$0xff]
      %v2486 = vld [vmem:[%s1879 + $0xc9] sm:$0xff]
      %v2487 = vld [vmem:[%s1879 + $0xd9] sm:$0xff]
      %v2488 = vld [vmem:[%s1879 + $0xe1] sm:$0xff]
      %v2489 = vld [vmem:[%s1879 + $0xf1] sm:$0xff]
      %v2490 = vld [vmem:[%s1879 + $0xf9] sm:$0xff]
      %v2491 = vld [vmem:[%s1879 + $0x109] sm:$0xff]
      %v2492 = vld [vmem:[%s1879 + $0x111] sm:$0xff]
      %v2493 = vld [vmem:[%s1879 + $0x121] sm:$0xff]
      %v2494 = vld [vmem:[%s1879 + $0x129] sm:$0xff]
      %v2495 = vld [vmem:[%s1879 + $0x139] sm:$0xff]
      %v2496 = vld [vmem:[%s1879 + $0x141] sm:$0xff]
      %v2497 = vld [vmem:[%s1879 + $0x151] sm:$0xff]
      %v2498 = vld [vmem:[%s1879 + $0x159] sm:$0xff]
      %v2499 = vld [vmem:[%s1879 + $0x169] sm:$0xff]
      %v2500 = vld [vmem:[%s1879 + $0x171] sm:$0xff]
      %v2501 = vpack.c.bf16 %v2470, %v2469
      %v2502 = vpack.c.bf16 %v2472, %v2471
      %v2503 = vpack.c.bf16 %v2474, %v2473
      %v2504 = vpack.c.bf16 %v2476, %v2475
      %v2505 = vpack.c.bf16 %v2478, %v2477
      %v2506 = vpack.c.bf16 %v2480, %v2479
      %v2507 = vpack.c.bf16 %v2482, %v2481
      %v2508 = vpack.c.bf16 %v2484, %v2483
      %v2509 = vpack.c.bf16 %v2486, %v2485
      %v2510 = vpack.c.bf16 %v2488, %v2487
      %v2511 = vpack.c.bf16 %v2490, %v2489
      %v2512 = vpack.c.bf16 %v2492, %v2491
      %v2513 = vpack.c.bf16 %v2494, %v2493
      %v2514 = vpack.c.bf16 %v2496, %v2495
      %v2515 = vpack.c.bf16 %v2498, %v2497
      %v2516 = vpack.c.bf16 %v2500, %v2499
      %s2517 = scalar_lea.vmem %s1, 16
      %v2518 = vld [vmem:[%s2517] sm:$0x3]
      %v2520 = vsel %vm272, %v2501, 0
      %v2523 = vsel %vm272, %v2502, 0
      %v2526 = vsel %vm272, %v2503, 0
      %v2529 = vsel %vm272, %v2504, 0
      %v2532 = vsel %vm272, %v2505, 0
      %v2535 = vsel %vm272, %v2506, 0
      %v2538 = vsel %vm272, %v2507, 0
      %v2541 = vsel %vm272, %v2508, 0
      %v2544 = vsel %vm272, %v2509, 0
      %v2547 = vsel %vm272, %v2510, 0
      %v2550 = vsel %vm272, %v2511, 0
      %v2553 = vsel %vm272, %v2512, 0
      %v2556 = vsel %vm272, %v2513, 0
      %v2559 = vsel %vm272, %v2514, 0
      %v2562 = vsel %vm272, %v2515, 0
      %v2565 = vsel %vm272, %v2516, 0
      %v2568 = vand.u32 %v2518, %v324
      %2570 = vmatprep.subr.bf16.mxu0 0
      %2571 = vmatpush1.bf16.msra.mxu0 %v2568
      %2572 = vmatprep.subr.bf16.mxu0 0
      %2573 = vmatpush1.bf16.msra.mxu0 0
      %2574 = vmatprep.subr.bf16.mxu0 0
      %2575 = vmatpush1.bf16.msra.mxu0 0
      %2576 = vmatprep.subr.bf16.mxu0 0
      %2577 = vmatpush1.bf16.msra.mxu0 0
      %2578 = vmatprep.subr.bf16.mxu0 0
      %2579 = vmatpush1.bf16.msra.mxu0 0
      %2580 = vmatprep.subr.bf16.mxu0 0
      %2581 = vmatpush1.bf16.msra.mxu0 0
      %2582 = vmatprep.subr.bf16.mxu0 0
      %2583 = vmatpush1.bf16.msra.mxu0 0
      %2584 = vmatprep.subr.bf16.mxu0 0
      %2585 = vmatpush1.bf16.msra.mxu0 0
      %2586 = vmatprep.subr.bf16.mxu0 0
      %2587 = vmatpush1.bf16.msra.mxu0 0
      %2588 = vmatprep.subr.bf16.mxu0 0
      %2589 = vmatpush1.bf16.msra.mxu0 0
      %2590 = vmatprep.subr.bf16.mxu0 0
      %2591 = vmatpush1.bf16.msra.mxu0 0
      %2592 = vmatprep.subr.bf16.mxu0 0
      %2593 = vmatpush1.bf16.msra.mxu0 0
      %2594 = vmatprep.subr.bf16.mxu0 0
      %2595 = vmatpush1.bf16.msra.mxu0 0
      %2596 = vmatprep.subr.bf16.mxu0 0
      %2597 = vmatpush1.bf16.msra.mxu0 0
      %2598 = vmatprep.subr.bf16.mxu0 0
      %2599 = vmatpush1.bf16.msra.mxu0 0
      %2600 = vmatprep.subr.bf16.mxu0 0
      %2601 = vmatpush1.bf16.msra.mxu0 0
      %2602 = vmatprep.mubr.bf16.mxu0 0
      %2603 = vmatmul.mubr.bf16.gmra.mrb[0].mxu0 %v2520
      %v2604 = vpop.f32.mrb[0].mxu0
      %v2605 = vadd.f32 0.0, %v2604
      %v2606 = vpop.f32.mrb[0].mxu0
      %v2607 = vpop.f32.mrb[0].mxu0
      %v2608 = vadd.f32 0.0, %v2607
      %v2609 = vpop.f32.mrb[0].mxu0
      %2610 = vmatprep.mubr.bf16.mxu0 0
      %2611 = vmatmul.mubr.bf16.gmra.mrb[0].mxu0 %v2523
      %v2612 = vpop.f32.mrb[0].mxu0
      %v2613 = vadd.f32 0.0, %v2612
      %v2614 = vpop.f32.mrb[0].mxu0
      %v2615 = vpop.f32.mrb[0].mxu0
      %v2616 = vadd.f32 0.0, %v2615
      %v2617 = vpop.f32.mrb[0].mxu0
      %2618 = vmatprep.mubr.bf16.mxu0 0
      %2619 = vmatmul.mubr.bf16.gmra.mrb[0].mxu0 %v2526
      %v2620 = vpop.f32.mrb[0].mxu0
      %v2621 = vadd.f32 0.0, %v2620
      %v2622 = vpop.f32.mrb[0].mxu0
      %v2623 = vpop.f32.mrb[0].mxu0
      %v2624 = vadd.f32 0.0, %v2623
      %v2625 = vpop.f32.mrb[0].mxu0
      %2626 = vmatprep.mubr.bf16.mxu0 0
      %2627 = vmatmul.mubr.bf16.gmra.mrb[0].mxu0 %v2529
      %v2628 = vpop.f32.mrb[0].mxu0
      %v2629 = vadd.f32 0.0, %v2628
      %v2630 = vpop.f32.mrb[0].mxu0
      %v2631 = vpop.f32.mrb[0].mxu0
      %v2632 = vadd.f32 0.0, %v2631
      %v2633 = vpop.f32.mrb[0].mxu0
      %2634 = vmatprep.mubr.bf16.mxu0 0
      %2635 = vmatmul.mubr.bf16.gmra.mrb[0].mxu0 %v2532
      %v2636 = vpop.f32.mrb[0].mxu0
      %v2637 = vadd.f32 0.0, %v2636
      %v2638 = vpop.f32.mrb[0].mxu0
      %v2639 = vpop.f32.mrb[0].mxu0
      %v2640 = vadd.f32 0.0, %v2639
      %v2641 = vpop.f32.mrb[0].mxu0
      %2642 = vmatprep.mubr.bf16.mxu0 0
      %2643 = vmatmul.mubr.bf16.gmra.mrb[0].mxu0 %v2535
      %v2644 = vpop.f32.mrb[0].mxu0
      %v2645 = vadd.f32 0.0, %v2644
      %v2646 = vpop.f32.mrb[0].mxu0
      %v2647 = vpop.f32.mrb[0].mxu0
      %v2648 = vadd.f32 0.0, %v2647
      %v2649 = vpop.f32.mrb[0].mxu0
      %2650 = vmatprep.mubr.bf16.mxu0 0
      %2651 = vmatmul.mubr.bf16.gmra.mrb[0].mxu0 %v2538
      %v2652 = vpop.f32.mrb[0].mxu0
      %v2653 = vadd.f32 0.0, %v2652
      %v2654 = vpop.f32.mrb[0].mxu0
      %v2655 = vpop.f32.mrb[0].mxu0
      %v2656 = vadd.f32 0.0, %v2655
      %v2657 = vpop.f32.mrb[0].mxu0
      %2658 = vmatprep.mubr.bf16.mxu0 0
      %2659 = vmatmul.mubr.bf16.gmra.mrb[0].mxu0 %v2541
      %v2660 = vpop.f32.mrb[0].mxu0
      %v2661 = vadd.f32 0.0, %v2660
      %v2662 = vpop.f32.mrb[0].mxu0
      %v2663 = vpop.f32.mrb[0].mxu0
      %v2664 = vadd.f32 0.0, %v2663
      %v2665 = vpop.f32.mrb[0].mxu0
      %2666 = vmatprep.mubr.bf16.mxu0 0
      %2667 = vmatmul.mubr.bf16.gmra.mrb[0].mxu0 %v2544
      %v2668 = vpop.f32.mrb[0].mxu0
      %v2669 = vadd.f32 0.0, %v2668
      %v2670 = vpop.f32.mrb[0].mxu0
      %v2671 = vpop.f32.mrb[0].mxu0
      %v2672 = vadd.f32 0.0, %v2671
      %v2673 = vpop.f32.mrb[0].mxu0
      %2674 = vmatprep.mubr.bf16.mxu0 0
      %2675 = vmatmul.mubr.bf16.gmra.mrb[0].mxu0 %v2547
      %v2676 = vpop.f32.mrb[0].mxu0
      %v2677 = vadd.f32 0.0, %v2676
      %v2678 = vpop.f32.mrb[0].mxu0
      %v2679 = vpop.f32.mrb[0].mxu0
      %v2680 = vadd.f32 0.0, %v2679
      %v2681 = vpop.f32.mrb[0].mxu0
      %2682 = vmatprep.mubr.bf16.mxu0 0
      %2683 = vmatmul.mubr.bf16.gmra.mrb[0].mxu0 %v2550
      %v2684 = vpop.f32.mrb[0].mxu0
      %v2685 = vadd.f32 0.0, %v2684
      %v2686 = vpop.f32.mrb[0].mxu0
      %v2687 = vpop.f32.mrb[0].mxu0
      %v2688 = vadd.f32 0.0, %v2687
      %v2689 = vpop.f32.mrb[0].mxu0
      %2690 = vmatprep.mubr.bf16.mxu0 0
      %2691 = vmatmul.mubr.bf16.gmra.mrb[0].mxu0 %v2553
      %v2692 = vpop.f32.mrb[0].mxu0
      %v2693 = vadd.f32 0.0, %v2692
      %v2694 = vpop.f32.mrb[0].mxu0
      %v2695 = vpop.f32.mrb[0].mxu0
      %v2696 = vadd.f32 0.0, %v2695
      %v2697 = vpop.f32.mrb[0].mxu0
      %2698 = vmatprep.mubr.bf16.mxu0 0
      %2699 = vmatmul.mubr.bf16.gmra.mrb[0].mxu0 %v2556
      %v2700 = vpop.f32.mrb[0].mxu0
      %v2701 = vadd.f32 0.0, %v2700
      %v2702 = vpop.f32.mrb[0].mxu0
      %v2703 = vpop.f32.mrb[0].mxu0
      %v2704 = vadd.f32 0.0, %v2703
      %v2705 = vpop.f32.mrb[0].mxu0
      %2706 = vmatprep.mubr.bf16.mxu0 0
      %2707 = vmatmul.mubr.bf16.gmra.mrb[0].mxu0 %v2559
      %v2708 = vpop.f32.mrb[0].mxu0
      %v2709 = vadd.f32 0.0, %v2708
      %v2710 = vpop.f32.mrb[0].mxu0
      %v2711 = vpop.f32.mrb[0].mxu0
      %v2712 = vadd.f32 0.0, %v2711
      %v2713 = vpop.f32.mrb[0].mxu0
      %2714 = vmatprep.mubr.bf16.mxu0 0
      %2715 = vmatmul.mubr.bf16.gmra.mrb[0].mxu0 %v2562
      %v2716 = vpop.f32.mrb[0].mxu0
      %v2717 = vadd.f32 0.0, %v2716
      %v2718 = vpop.f32.mrb[0].mxu0
      %v2719 = vpop.f32.mrb[0].mxu0
      %v2720 = vadd.f32 0.0, %v2719
      %v2721 = vpop.f32.mrb[0].mxu0
      %2722 = vmatprep.mubr.bf16.mxu0 0
      %2723 = vmatmul.mubr.bf16.gmra.mrb[0].mxu0 %v2565
      %v2724 = vpop.f32.mrb[0].mxu0
      %v2725 = vadd.f32 0.0, %v2724
      %v2726 = vpop.f32.mrb[0].mxu0
      %v2727 = vpop.f32.mrb[0].mxu0
      %v2728 = vadd.f32 0.0, %v2727
      %v2729 = vpop.f32.mrb[0].mxu0
      %2730 = vdwg.mxu0
      %v2731 = vadd.f32 %v2437, %v2605
      %v2732 = vadd.f32 %v2438, %v2608
      %v2733 = vadd.f32 %v2439, %v2613
      %v2734 = vadd.f32 %v2440, %v2616
      %v2735 = vadd.f32 %v2441, %v2621
      %v2736 = vadd.f32 %v2442, %v2624
      %v2737 = vadd.f32 %v2443, %v2629
      %v2738 = vadd.f32 %v2444, %v2632
      %v2739 = vadd.f32 %v2445, %v2637
      %v2740 = vadd.f32 %v2446, %v2640
      %v2741 = vadd.f32 %v2447, %v2645
      %v2742 = vadd.f32 %v2448, %v2648
      %v2743 = vadd.f32 %v2449, %v2653
      %v2744 = vadd.f32 %v2450, %v2656
      %v2745 = vadd.f32 %v2451, %v2661
      %v2746 = vadd.f32 %v2452, %v2664
      %v2747 = vadd.f32 %v2453, %v2669
      %v2748 = vadd.f32 %v2454, %v2672
      %v2749 = vadd.f32 %v2455, %v2677
      %v2750 = vadd.f32 %v2456, %v2680
      %v2751 = vadd.f32 %v2457, %v2685
      %v2752 = vadd.f32 %v2458, %v2688
      %v2753 = vadd.f32 %v2459, %v2693
      %v2754 = vadd.f32 %v2460, %v2696
      %v2755 = vadd.f32 %v2461, %v2701
      %v2756 = vadd.f32 %v2462, %v2704
      %v2757 = vadd.f32 %v2463, %v2709
      %v2758 = vadd.f32 %v2464, %v2712
      %v2759 = vadd.f32 %v2465, %v2717
      %v2760 = vadd.f32 %v2466, %v2720
      %v2761 = vadd.f32 %v2467, %v2725
      %v2762 = vadd.f32 %v2468, %v2728
      %v2763 = vld [vmem:[%s2] sm:$0x1]
      %v2765 = vlaneseq
      %v2766 = vshrl.u32 %v2765, 7
      %v2767 = vsub.s32 0, %v2766
      %v2768 = vrot.slane %v2763, %v2767
      %v2770 = vadd.f32 %v2731, %v2768
      %v2771 = vadd.f32 %v2732, %v2768
      %v2772 = vadd.f32 %v2733, %v2768
      %v2773 = vadd.f32 %v2734, %v2768
      %v2774 = vadd.f32 %v2735, %v2768
      %v2775 = vadd.f32 %v2736, %v2768
      %v2776 = vadd.f32 %v2737, %v2768
      %v2777 = vadd.f32 %v2738, %v2768
      %v2778 = vadd.f32 %v2739, %v2768
      %v2779 = vadd.f32 %v2740, %v2768
      %v2780 = vadd.f32 %v2741, %v2768
      %v2781 = vadd.f32 %v2742, %v2768
      %v2782 = vadd.f32 %v2743, %v2768
      %v2783 = vadd.f32 %v2744, %v2768
      %v2784 = vadd.f32 %v2745, %v2768
      %v2785 = vadd.f32 %v2746, %v2768
      %v2786 = vadd.f32 %v2747, %v2768
      %v2787 = vadd.f32 %v2748, %v2768
      %v2788 = vadd.f32 %v2749, %v2768
      %v2789 = vadd.f32 %v2750, %v2768
      %v2790 = vadd.f32 %v2751, %v2768
      %v2791 = vadd.f32 %v2752, %v2768
      %v2792 = vadd.f32 %v2753, %v2768
      %v2793 = vadd.f32 %v2754, %v2768
      %v2794 = vadd.f32 %v2755, %v2768
      %v2795 = vadd.f32 %v2756, %v2768
      %v2796 = vadd.f32 %v2757, %v2768
      %v2797 = vadd.f32 %v2758, %v2768
      %v2798 = vadd.f32 %v2759, %v2768
      %v2799 = vadd.f32 %v2760, %v2768
      %v2800 = vadd.f32 %v2761, %v2768
      %v2801 = vadd.f32 %v2762, %v2768
      %v2802 = vmax.f32 %v2770, 0.0
      %v2803 = vmax.f32 %v2771, 0.0
      %v2804 = vmax.f32 %v2772, 0.0
      %v2805 = vmax.f32 %v2773, 0.0
      %v2806 = vmax.f32 %v2774, 0.0
      %v2807 = vmax.f32 %v2775, 0.0
      %v2808 = vmax.f32 %v2776, 0.0
      %v2809 = vmax.f32 %v2777, 0.0
      %v2810 = vmax.f32 %v2778, 0.0
      %v2811 = vmax.f32 %v2779, 0.0
      %v2812 = vmax.f32 %v2780, 0.0
      %v2813 = vmax.f32 %v2781, 0.0
      %v2814 = vmax.f32 %v2782, 0.0
      %v2815 = vmax.f32 %v2783, 0.0
      %v2816 = vmax.f32 %v2784, 0.0
      %v2817 = vmax.f32 %v2785, 0.0
      %v2818 = vmax.f32 %v2786, 0.0
      %v2819 = vmax.f32 %v2787, 0.0
      %v2820 = vmax.f32 %v2788, 0.0
      %v2821 = vmax.f32 %v2789, 0.0
      %v2822 = vmax.f32 %v2790, 0.0
      %v2823 = vmax.f32 %v2791, 0.0
      %v2824 = vmax.f32 %v2792, 0.0
      %v2825 = vmax.f32 %v2793, 0.0
      %v2826 = vmax.f32 %v2794, 0.0
      %v2827 = vmax.f32 %v2795, 0.0
      %v2828 = vmax.f32 %v2796, 0.0
      %v2829 = vmax.f32 %v2797, 0.0
      %v2830 = vmax.f32 %v2798, 0.0
      %v2831 = vmax.f32 %v2799, 0.0
      %v2832 = vmax.f32 %v2800, 0.0
      %v2833 = vmax.f32 %v2801, 0.0
      %2834 = vst [vmem:[%s170] sm:$0xff] %v2802
      %2835 = vst [vmem:[%s170 + $0x8] sm:$0xff] %v2803
      %2836 = vst [vmem:[%s170 + $0x10] sm:$0xff] %v2804
      %2837 = vst [vmem:[%s170 + $0x18] sm:$0xff] %v2805
      %2838 = vst [vmem:[%s170 + $0x20] sm:$0xff] %v2806
      %2839 = vst [vmem:[%s170 + $0x28] sm:$0xff] %v2807
      %2840 = vst [vmem:[%s170 + $0x30] sm:$0xff] %v2808
      %2841 = vst [vmem:[%s170 + $0x38] sm:$0xff] %v2809
      %2842 = vst [vmem:[%s170 + $0x40] sm:$0xff] %v2810
      %2843 = vst [vmem:[%s170 + $0x48] sm:$0xff] %v2811
      %2844 = vst [vmem:[%s170 + $0x50] sm:$0xff] %v2812
      %2845 = vst [vmem:[%s170 + $0x58] sm:$0xff] %v2813
      %2846 = vst [vmem:[%s170 + $0x60] sm:$0xff] %v2814
      %2847 = vst [vmem:[%s170 + $0x68] sm:$0xff] %v2815
      %2848 = vst [vmem:[%s170 + $0x70] sm:$0xff] %v2816
      %2849 = vst [vmem:[%s170 + $0x78] sm:$0xff] %v2817
      %2850 = vst [vmem:[%s170 + $0x80] sm:$0xff] %v2818
      %2851 = vst [vmem:[%s170 + $0x88] sm:$0xff] %v2819
      %2852 = vst [vmem:[%s170 + $0x90] sm:$0xff] %v2820
      %2853 = vst [vmem:[%s170 + $0x98] sm:$0xff] %v2821
      %2854 = vst [vmem:[%s170 + $0xa0] sm:$0xff] %v2822
      %2855 = vst [vmem:[%s170 + $0xa8] sm:$0xff] %v2823
      %2856 = vst [vmem:[%s170 + $0xb0] sm:$0xff] %v2824
      %2857 = vst [vmem:[%s170 + $0xb8] sm:$0xff] %v2825
      %2858 = vst [vmem:[%s170 + $0xc0] sm:$0xff] %v2826
      %2859 = vst [vmem:[%s170 + $0xc8] sm:$0xff] %v2827
      %2860 = vst [vmem:[%s170 + $0xd0] sm:$0xff] %v2828
      %2861 = vst [vmem:[%s170 + $0xd8] sm:$0xff] %v2829
      %2862 = vst [vmem:[%s170 + $0xe0] sm:$0xff] %v2830
      %2863 = vst [vmem:[%s170 + $0xe8] sm:$0xff] %v2831
      %2864 = vst [vmem:[%s170 + $0xf0] sm:$0xff] %v2832
      %2865 = vst [vmem:[%s170 + $0xf8] sm:$0xff] %v2833
      %p2866 = scmp.lt.s32.totalorder %s14, 1
      %s2867 = scalar_select %p2866, %s14, 1
      %s2868 = smul.addr %s2867, 32
      %s2869 = smul.addr %s2868, 8
      %s2870 = scalar_lea.vmem %s3, %s2869
      // Predicated region
      $region33: #{_forward_impl.3} parent=31 // pred_check
        %p2871 = pneg %p100
      $region34: #{_forward_impl.3} parent=31 // pred_check_branch
        %2873 = sbr.rel (%p2871) target = $region36
      $region35: #{_forward_impl.3} parent=31 // pred_region
        _
      $region36: #{_forward_impl.3} parent=31 // pred_fallthru
        _
    $region32: #{_forward_impl.3} parent=5 // pred_fallthru
      _
    %p2874 = scmp.le.s32.totalorder 2, %s9
    // Predicated region
    $region37: #{_forward_impl.3} parent=5 // pred_check
      %p2875 = pneg %p2874
    $region38: #{_forward_impl.3} parent=5 // pred_check_branch
      %2877 = sbr.rel (%p2875) target = $region40
    $region39: #{_forward_impl.3} parent=5 // pred_region
      %s2878 = ssub.s32 %s9, 2
      // Predicated region
      $region41: #{_forward_impl.3} parent=39 // pred_check
        %p2879 = pneg %p106
      $region42: #{_forward_impl.3} parent=39 // pred_check_branch
        %2881 = sbr.rel (%p2879) target = $region44
      $region43: #{_forward_impl.3} parent=39 // pred_region
        %p2882 = scmp.lt.s32.totalorder %s15, 1
        %s2883 = scalar_select %p2882, %s15, 1
        %s2884 = smul.addr %s2883, 32
        %s2885 = smul.addr %s2884, 8
        %s2886 = scalar_lea.vmem %s3, %s2885
      $region44: #{_forward_impl.3} parent=39 // pred_fallthru
        _
    $region40: #{_forward_impl.3} parent=5 // pred_fallthru
      _
  $region6: #{_forward_impl.3} parent=0 // loop_footer
    %s13 = sadd.s32 1, %s9
  $region7: #{_forward_impl.3} parent=0 // loop_footer_branch
    %8 = sbr.rel target = $region3
  $region8: #{_forward_impl.3} parent=0 // loop_exit
    _

// kernel: _forward_impl.4
$region0: #{_forward_impl.4}
  #allocation0 [shape = 'u32[]', space=smem, size = 0x4, offset = 0x4, fixed_abs, tag = 'smem constant byte address 0x4 - core index']
  #allocation1 [shape = 'u32[144,128]{1,0:T(1,128)}', space=vmem, size = 0x12000, scoped, tag = 'internal scratch']
  #allocation2 [shape = 'f32[10,10,128]{2,1,0:T(8,128)}', space=vmem, size = 0x14000, scoped, tag = 'scratch operand']
  %s0 = inlined_call_operand.vmem [shape: f32[2,4,9,9,128], index: 0, kind: input, shape index: {}]
  %s1 = inlined_call_operand.vmem [shape: bf16[9,128,128], index: 1, kind: input, shape index: {}]
  %s2 = inlined_call_operand.vmem [shape: f32[1,128], index: 2, kind: input, shape index: {}]
  %s3 = inlined_call_operand.vmem [shape: bf16[9,128,128], index: 3, kind: input, shape index: {}]
  %s4 = inlined_call_operand.vmem [shape: f32[1,128], index: 4, kind: input, shape index: {}]
  %s5 = inlined_call_operand.vmem [shape: bf16[128,128], index: 5, kind: input, shape index: {}]
  %s6 = inlined_call_operand.vmem [shape: f32[1,128], index: 6, kind: input, shape index: {}]
  %s7 = inlined_call_operand.vmem [shape: f32[2,8,8,128], index: 7, kind: output, shape index: {0}]
  %s8 = inlined_call_operand.vmem [shape: f32[2,8,8,128], index: 8, kind: output, shape index: {1}]
  %9 = xla_tuple %s7, %s8
  %s10 = sld [smem:[#allocation0]]
  $region69: #{_forward_impl.4} parent=0
    _
  %s12 = ssub.s32 1, %s10
  %s13 = scalar_select 0, %s12, %s10
  loop: start=0, step=1, limit=4
  $region2: #{_forward_impl.4} parent=0 // loop_pre_header
    _
  $region3: #{_forward_impl.4} parent=0 // loop_header
    %s15 = sphi 0, %s19
    %p16 = scmp.ge.s32.totalorder %s15, 4
    %s25 = sphi 0, %s27
    %s28 = sphi 0, %s25
    %s29 = sphi 0, %s28
    %s45 = sphi 0, %s29
    %s49 = sphi 0, %s49
    %s51 = sphi 0, %s49
    %s52 = sphi 0, %s51
    %s66 = sphi 0, %s52
    %s70 = sphi 0, %s70
    %s72 = sphi 0, %s70
    %s73 = sphi 0, %s72
    %s87 = sphi 0, %s73
    %s91 = sphi 0, %s91
    %s93 = sphi 0, %s91
    %s94 = sphi 0, %s93
    %s108 = sphi 0, %s94
    %s112 = sphi 0, %s112
    %s114 = sphi 0, %s112
    %s115 = sphi 0, %s114
    %s129 = sphi 0, %s115
    %s133 = sphi 0, %s133
    %s135 = sphi 0, %s133
    %s136 = sphi 0, %s135
    %s150 = sphi 0, %s136
    %s154 = sphi 0, %s154
    %s156 = sphi 0, %s154
    %s157 = sphi 0, %s156
    %s171 = sphi 0, %s157
    %s177 = sphi 0, %s179
    %s180 = sphi 0, %s177
    %s181 = sphi 0, %s180
    %s197 = sphi 0, %s181
    %s203 = sphi 0, %s205
    %s206 = sphi 0, %s203
    %s207 = sphi 0, %s206
    %s223 = sphi 0, %s207
  $region4: #{_forward_impl.4} parent=0 // loop_header_branch
    %18 = sbr.rel (%p16) target = $region8
  $region5: #{_forward_impl.4} parent=0 // loop_body
    %s20 = ssub.s32 %s15, 1
    %s21 = ssub.s32 %s15, 2
    %s22 = sadd.s32 %s15, 1
    %s23 = ssub.s32 %s15, %s22
    %p24 = scmp.eq.s32.totalorder %s23, 0
    %s26 = sadd.s32 %s25, 1
    %s27 = scalar_select %p24, %s25, %s26
    %p30 = pneg %p24
    %p31 = scmp.eq.s32.totalorder %s15, 1
    %p32 = por %p30, %p31
    %p33 = scmp.ne.s32.totalorder %s25, %s28
    %p34 = scmp.eq.s32.totalorder %s15, 0
    %p35 = por %p33, %p34
    %p36 = scmp.ne.s32.totalorder %s25, %s28
    %p37 = scmp.eq.s32.totalorder %s20, 1
    %p38 = por %p36, %p37
    %p39 = scmp.ne.s32.totalorder %s28, %s29
    %p40 = scmp.eq.s32.totalorder %s20, 0
    %p41 = por %p39, %p40
    %p42 = scmp.ne.s32.totalorder %s28, %s29
    %p43 = scmp.eq.s32.totalorder %s21, 1
    %p44 = por %p42, %p43
    %p46 = scmp.ne.s32.totalorder %s29, %s45
    %p47 = scmp.eq.s32.totalorder %s21, 0
    %p48 = por %p46, %p47
    %s50 = sadd.s32 %s49, 1
    %p53 = scmp.eq.s32.totalorder %s15, 1
    %p54 = scmp.ne.s32.totalorder %s49, %s51
    %p55 = scmp.eq.s32.totalorder %s15, 0
    %p56 = por %p54, %p55
    %p57 = scmp.ne.s32.totalorder %s49, %s51
    %p58 = scmp.eq.s32.totalorder %s20, 1
    %p59 = por %p57, %p58
    %p60 = scmp.ne.s32.totalorder %s51, %s52
    %p61 = scmp.eq.s32.totalorder %s20, 0
    %p62 = por %p60, %p61
    %p63 = scmp.ne.s32.totalorder %s51, %s52
    %p64 = scmp.eq.s32.totalorder %s21, 1
    %p65 = por %p63, %p64
    %p67 = scmp.ne.s32.totalorder %s52, %s66
    %p68 = scmp.eq.s32.totalorder %s21, 0
    %p69 = por %p67, %p68
    %s71 = sadd.s32 %s70, 1
    %p74 = scmp.eq.s32.totalorder %s15, 1
    %p75 = scmp.ne.s32.totalorder %s70, %s72
    %p76 = scmp.eq.s32.totalorder %s15, 0
    %p77 = por %p75, %p76
    %p78 = scmp.ne.s32.totalorder %s70, %s72
    %p79 = scmp.eq.s32.totalorder %s20, 1
    %p80 = por %p78, %p79
    %p81 = scmp.ne.s32.totalorder %s72, %s73
    %p82 = scmp.eq.s32.totalorder %s20, 0
    %p83 = por %p81, %p82
    %p84 = scmp.ne.s32.totalorder %s72, %s73
    %p85 = scmp.eq.s32.totalorder %s21, 1
    %p86 = por %p84, %p85
    %p88 = scmp.ne.s32.totalorder %s73, %s87
    %p89 = scmp.eq.s32.totalorder %s21, 0
    %p90 = por %p88, %p89
    %s92 = sadd.s32 %s91, 1
    %p95 = scmp.eq.s32.totalorder %s15, 1
    %p96 = scmp.ne.s32.totalorder %s91, %s93
    %p97 = scmp.eq.s32.totalorder %s15, 0
    %p98 = por %p96, %p97
    %p99 = scmp.ne.s32.totalorder %s91, %s93
    %p100 = scmp.eq.s32.totalorder %s20, 1
    %p101 = por %p99, %p100
    %p102 = scmp.ne.s32.totalorder %s93, %s94
    %p103 = scmp.eq.s32.totalorder %s20, 0
    %p104 = por %p102, %p103
    %p105 = scmp.ne.s32.totalorder %s93, %s94
    %p106 = scmp.eq.s32.totalorder %s21, 1
    %p107 = por %p105, %p106
    %p109 = scmp.ne.s32.totalorder %s94, %s108
    %p110 = scmp.eq.s32.totalorder %s21, 0
    %p111 = por %p109, %p110
    %s113 = sadd.s32 %s112, 1
    %p116 = scmp.eq.s32.totalorder %s15, 1
    %p117 = scmp.ne.s32.totalorder %s112, %s114
    %p118 = scmp.eq.s32.totalorder %s15, 0
    %p119 = por %p117, %p118
    %p120 = scmp.ne.s32.totalorder %s112, %s114
    %p121 = scmp.eq.s32.totalorder %s20, 1
    %p122 = por %p120, %p121
    %p123 = scmp.ne.s32.totalorder %s114, %s115
    %p124 = scmp.eq.s32.totalorder %s20, 0
    %p125 = por %p123, %p124
    %p126 = scmp.ne.s32.totalorder %s114, %s115
    %p127 = scmp.eq.s32.totalorder %s21, 1
    %p128 = por %p126, %p127
    %p130 = scmp.ne.s32.totalorder %s115, %s129
    %p131 = scmp.eq.s32.totalorder %s21, 0
    %p132 = por %p130, %p131
    %s134 = sadd.s32 %s133, 1
    %p137 = scmp.eq.s32.totalorder %s15, 1
    %p138 = scmp.ne.s32.totalorder %s133, %s135
    %p139 = scmp.eq.s32.totalorder %s15, 0
    %p140 = por %p138, %p139
    %p141 = scmp.ne.s32.totalorder %s133, %s135
    %p142 = scmp.eq.s32.totalorder %s20, 1
    %p143 = por %p141, %p142
    %p144 = scmp.ne.s32.totalorder %s135, %s136
    %p145 = scmp.eq.s32.totalorder %s20, 0
    %p146 = por %p144, %p145
    %p147 = scmp.ne.s32.totalorder %s135, %s136
    %p148 = scmp.eq.s32.totalorder %s21, 1
    %p149 = por %p147, %p148
    %p151 = scmp.ne.s32.totalorder %s136, %s150
    %p152 = scmp.eq.s32.totalorder %s21, 0
    %p153 = por %p151, %p152
    %s155 = sadd.s32 %s154, 1
    %p158 = scmp.eq.s32.totalorder %s15, 1
    %p159 = scmp.ne.s32.totalorder %s154, %s156
    %p160 = scmp.eq.s32.totalorder %s15, 0
    %p161 = por %p159, %p160
    %p162 = scmp.ne.s32.totalorder %s154, %s156
    %p163 = scmp.eq.s32.totalorder %s20, 1
    %p164 = por %p162, %p163
    %p165 = scmp.ne.s32.totalorder %s156, %s157
    %p166 = scmp.eq.s32.totalorder %s20, 0
    %p167 = por %p165, %p166
    %p168 = scmp.ne.s32.totalorder %s156, %s157
    %p169 = scmp.eq.s32.totalorder %s21, 1
    %p170 = por %p168, %p169
    %p172 = scmp.ne.s32.totalorder %s157, %s171
    %p173 = scmp.eq.s32.totalorder %s21, 0
    %p174 = por %p172, %p173
    %s175 = ssub.s32 %s15, %s22
    %p176 = scmp.eq.s32.totalorder %s175, 0
    %s178 = sadd.s32 %s177, 1
    %s179 = scalar_select %p176, %s177, %s178
    %p182 = pneg %p176
    %p183 = scmp.eq.s32.totalorder %s15, 1
    %p184 = por %p182, %p183
    %p185 = scmp.ne.s32.totalorder %s177, %s180
    %p186 = scmp.eq.s32.totalorder %s15, 0
    %p187 = por %p185, %p186
    %p188 = scmp.ne.s32.totalorder %s177, %s180
    %p189 = scmp.eq.s32.totalorder %s20, 1
    %p190 = por %p188, %p189
    %p191 = scmp.ne.s32.totalorder %s180, %s181
    %p192 = scmp.eq.s32.totalorder %s20, 0
    %p193 = por %p191, %p192
    %p194 = scmp.ne.s32.totalorder %s180, %s181
    %p195 = scmp.eq.s32.totalorder %s21, 1
    %p196 = por %p194, %p195
    %p198 = scmp.ne.s32.totalorder %s181, %s197
    %p199 = scmp.eq.s32.totalorder %s21, 0
    %p200 = por %p198, %p199
    %s201 = ssub.s32 %s15, %s22
    %p202 = scmp.eq.s32.totalorder %s201, 0
    %s204 = sadd.s32 %s203, 1
    %s205 = scalar_select %p202, %s203, %s204
    %p208 = pneg %p202
    %p209 = scmp.eq.s32.totalorder %s15, 1
    %p210 = por %p208, %p209
    %p211 = scmp.ne.s32.totalorder %s203, %s206
    %p212 = scmp.eq.s32.totalorder %s15, 0
    %p213 = por %p211, %p212
    %p214 = scmp.ne.s32.totalorder %s203, %s206
    %p215 = scmp.eq.s32.totalorder %s20, 1
    %p216 = por %p214, %p215
    %p217 = scmp.ne.s32.totalorder %s206, %s207
    %p218 = scmp.eq.s32.totalorder %s20, 0
    %p219 = por %p217, %p218
    %p220 = scmp.ne.s32.totalorder %s206, %s207
    %p221 = scmp.eq.s32.totalorder %s21, 1
    %p222 = por %p220, %p221
    %p224 = scmp.ne.s32.totalorder %s207, %s223
    %p225 = scmp.eq.s32.totalorder %s21, 0
    %p226 = por %p224, %p225
    %p227 = scmp.le.s32.totalorder 1, %s15
    %p228 = scmp.lt.s32.totalorder %s15, 3
    %p229 = pnand %p227, %p228
    %p230 = pneg %p229
    // Predicated region
    $region9: #{_forward_impl.4} parent=5 // pred_check
      _
    $region10: #{_forward_impl.4} parent=5 // pred_check_branch
      %232 = sbr.rel (%p229) target = $region12
    $region11: #{_forward_impl.4} parent=5 // pred_region
      %s233 = ssub.s32 %s15, 1
      // Predicated region
      $region13: #{_forward_impl.4} parent=11 // pred_check
        %p234 = pneg %p62
      $region14: #{_forward_impl.4} parent=11 // pred_check_branch
        %236 = sbr.rel (%p234) target = $region16
      $region15: #{_forward_impl.4} parent=11 // pred_region
        _
      $region16: #{_forward_impl.4} parent=11 // pred_fallthru
        _
      // Predicated region
      $region17: #{_forward_impl.4} parent=11 // pred_check
        %p237 = pneg %p83
      $region18: #{_forward_impl.4} parent=11 // pred_check_branch
        %239 = sbr.rel (%p237) target = $region20
      $region19: #{_forward_impl.4} parent=11 // pred_region
        _
      $region20: #{_forward_impl.4} parent=11 // pred_fallthru
        _
      // Predicated region
      $region21: #{_forward_impl.4} parent=11 // pred_check
        %p240 = pneg %p104
      $region22: #{_forward_impl.4} parent=11 // pred_check_branch
        %242 = sbr.rel (%p240) target = $region24
      $region23: #{_forward_impl.4} parent=11 // pred_region
        _
      $region24: #{_forward_impl.4} parent=11 // pred_fallthru
        _
      // Predicated region
      $region25: #{_forward_impl.4} parent=11 // pred_check
        %p243 = pneg %p125
      $region26: #{_forward_impl.4} parent=11 // pred_check_branch
        %245 = sbr.rel (%p243) target = $region28
      $region27: #{_forward_impl.4} parent=11 // pred_region
        _
      $region28: #{_forward_impl.4} parent=11 // pred_fallthru
        _
      // Predicated region
      $region29: #{_forward_impl.4} parent=11 // pred_check
        %p246 = pneg %p146
      $region30: #{_forward_impl.4} parent=11 // pred_check_branch
        %248 = sbr.rel (%p246) target = $region32
      $region31: #{_forward_impl.4} parent=11 // pred_region
        _
      $region32: #{_forward_impl.4} parent=11 // pred_fallthru
        _
      // Predicated region
      $region33: #{_forward_impl.4} parent=11 // pred_check
        %p249 = pneg %p167
      $region34: #{_forward_impl.4} parent=11 // pred_check_branch
        %251 = sbr.rel (%p249) target = $region36
      $region35: #{_forward_impl.4} parent=11 // pred_region
        _
      $region36: #{_forward_impl.4} parent=11 // pred_fallthru
        _
    $region12: #{_forward_impl.4} parent=5 // pred_fallthru
      _
    %p252 = scmp.lt.s32.totalorder %s15, 2
    // Predicated region
    $region37: #{_forward_impl.4} parent=5 // pred_check
      %p253 = pneg %p252
    $region38: #{_forward_impl.4} parent=5 // pred_check_branch
      %255 = sbr.rel (%p253) target = $region40
    $region39: #{_forward_impl.4} parent=5 // pred_region
      // Predicated region
      $region41: #{_forward_impl.4} parent=39 // pred_check
        %p256 = pneg %p35
      $region42: #{_forward_impl.4} parent=39 // pred_check_branch
        %258 = sbr.rel (%p256) target = $region44
      $region43: #{_forward_impl.4} parent=39 // pred_region
        %p259 = scmp.lt.s32.totalorder %s15, 1
        %s260 = scalar_select %p259, %s15, 1
        %s261 = smul.addr %s260, 72
        %s262 = smul.addr %s261, 8
        %s263 = scalar_lea.vmem %s0, %s262
      $region44: #{_forward_impl.4} parent=39 // pred_fallthru
        _
    $region40: #{_forward_impl.4} parent=5 // pred_fallthru
      _
    %p264 = scmp.le.s32.totalorder 1, %s15
    %p265 = scmp.lt.s32.totalorder %s15, 3
    %p266 = pnand %p264, %p265
    %p267 = pneg %p266
    // Predicated region
    $region45: #{_forward_impl.4} parent=5 // pred_check
      _
    $region46: #{_forward_impl.4} parent=5 // pred_check_branch
      %269 = sbr.rel (%p266) target = $region48
    $region47: #{_forward_impl.4} parent=5 // pred_region
      %s270 = ssub.s32 %s15, 1
      %p271 = scmp.lt.s32.totalorder %s20, 1
      %s272 = scalar_select %p271, %s20, 1
      %s273 = smul.addr %s272, 72
      %s274 = smul.addr %s273, 8
      %s275 = scalar_lea.vmem %s0, %s274
      %p276 = pneg %p41
      %p277 = pneg %p38
      %p278 = pneg %p62
      %p279 = pneg %p59
      %p280 = pneg %p83
      %p281 = pneg %p80
      %p282 = pneg %p104
      %p283 = pneg %p101
      %p284 = pneg %p125
      %p285 = pneg %p122
      %p286 = pneg %p146
      %p287 = pneg %p143
      %p288 = pneg %p167
      %p289 = pneg %p164
      %p290 = pneg %p193
      %p291 = pneg %p190
      %p292 = scmp.lt.s32.totalorder %s20, 1
      %s293 = scalar_select %p292, %s20, 1
      %s294 = smul.addr %s293, 8
      %s295 = smul.addr %s294, 8
      %s296 = scalar_lea.vmem %s7, %s295
      %p297 = pneg %p219
      %p298 = pneg %p216
      %p299 = scmp.lt.s32.totalorder %s20, 1
      %s300 = scalar_select %p299, %s20, 1
      %s301 = smul.addr %s300, 8
      %s302 = smul.addr %s301, 8
      %s303 = scalar_lea.vmem %s8, %s302
      %p304 = scmp.lt.s32.totalorder %s20, 1
      %s305 = scalar_select %p304, %s20, 1
      %s306 = smul.addr %s305, 72
      %s307 = smul.addr %s306, 8
      %s308 = scalar_lea.vmem %s0, %s307
      %p309 = scmp.lt.s32.totalorder %s20, 1
      %s310 = scalar_select %p309, %s20, 1
      %s311 = smul.addr %s310, 8
      %s312 = smul.addr %s311, 8
      %s313 = scalar_lea.vmem %s7, %s312
      %p314 = scmp.lt.s32.totalorder %s20, 1
      %s315 = scalar_select %p314, %s20, 1
      %s316 = smul.addr %s315, 8
      %s317 = smul.addr %s316, 8
      %s318 = scalar_lea.vmem %s8, %s317
      %v320 = vld [vmem:[%s308] sm:$0xff]
      %v321 = vld [vmem:[%s308 + $0x10] sm:$0xff]
      %v322 = vld [vmem:[%s308 + $0x20] sm:$0xff]
      %v323 = vld [vmem:[%s308 + $0x30] sm:$0xff]
      %v324 = vld [vmem:[%s308 + $0x40] sm:$0xff]
      %v325 = vld [vmem:[%s308 + $0x50] sm:$0xff]
      %v326 = vld [vmem:[%s308 + $0x60] sm:$0xff]
      %v327 = vld [vmem:[%s308 + $0x70] sm:$0xff]
      %v328 = vpack.c.bf16 %v321, %v320
      %v329 = vpack.c.bf16 %v323, %v322
      %v330 = vpack.c.bf16 %v325, %v324
      %v331 = vpack.c.bf16 %v327, %v326
      %v332 = vld [vmem:[%s1] sm:$0xf]
      %v333 = vld [vmem:[%s1 + $0x4] sm:$0xf]
      %v334 = vld [vmem:[%s1 + $0x8] sm:$0xf]
      %v335 = vld [vmem:[%s1 + $0xc] sm:$0xf]
      %v336 = vld [vmem:[%s1 + $0x10] sm:$0xf]
      %v337 = vld [vmem:[%s1 + $0x14] sm:$0xf]
      %v338 = vld [vmem:[%s1 + $0x18] sm:$0xf]
      %v339 = vld [vmem:[%s1 + $0x1c] sm:$0xf]
      %v340 = vld [vmem:[%s1 + $0x20] sm:$0xf]
      %v341 = vld [vmem:[%s1 + $0x24] sm:$0xf]
      %v342 = vld [vmem:[%s1 + $0x28] sm:$0xf]
      %v343 = vld [vmem:[%s1 + $0x2c] sm:$0xf]
      %v344 = vld [vmem:[%s1 + $0x30] sm:$0xf]
      %v345 = vld [vmem:[%s1 + $0x34] sm:$0xf]
      %v346 = vld [vmem:[%s1 + $0x38] sm:$0xf]
      %v347 = vld [vmem:[%s1 + $0x3c] sm:$0xf]
      %s348 = scalar_lea.vmem %s308, 144
      %v349 = vld [vmem:[%s348] sm:$0xff]
      %v350 = vld [vmem:[%s348 + $0x10] sm:$0xff]
      %v351 = vld [vmem:[%s348 + $0x20] sm:$0xff]
      %v352 = vld [vmem:[%s348 + $0x30] sm:$0xff]
      %v353 = vld [vmem:[%s348 + $0x40] sm:$0xff]
      %v354 = vld [vmem:[%s348 + $0x50] sm:$0xff]
      %v355 = vld [vmem:[%s348 + $0x60] sm:$0xff]
      %v356 = vld [vmem:[%s348 + $0x70] sm:$0xff]
      %v357 = vpack.c.bf16 %v350, %v349
      %v358 = vpack.c.bf16 %v352, %v351
      %v359 = vpack.c.bf16 %v354, %v353
      %v360 = vpack.c.bf16 %v356, %v355
      %s361 = scalar_lea.vmem %s1, 64
      %v362 = vld [vmem:[%s361] sm:$0xf]
      %v363 = vld [vmem:[%s361 + $0x4] sm:$0xf]
      %v364 = vld [vmem:[%s361 + $0x8] sm:$0xf]
      %v365 = vld [vmem:[%s361 + $0xc] sm:$0xf]
      %v366 = vld [vmem:[%s361 + $0x10] sm:$0xf]
      %v367 = vld [vmem:[%s361 + $0x14] sm:$0xf]
      %v368 = vld [vmem:[%s361 + $0x18] sm:$0xf]
      %v369 = vld [vmem:[%s361 + $0x1c] sm:$0xf]
      %v370 = vld [vmem:[%s361 + $0x20] sm:$0xf]
      %v371 = vld [vmem:[%s361 + $0x24] sm:$0xf]
      %v372 = vld [vmem:[%s361 + $0x28] sm:$0xf]
      %v373 = vld [vmem:[%s361 + $0x2c] sm:$0xf]
      %v374 = vld [vmem:[%s361 + $0x30] sm:$0xf]
      %v375 = vld [vmem:[%s361 + $0x34] sm:$0xf]
      %v376 = vld [vmem:[%s361 + $0x38] sm:$0xf]
      %v377 = vld [vmem:[%s361 + $0x3c] sm:$0xf]
      %v394 = vunpack.c.l.b16 %v362
      %v395 = vunpack.c.l.b16 %v363
      %v396 = vunpack.c.l.b16 %v364
      %v397 = vunpack.c.l.b16 %v365
      %v398 = vunpack.c.l.b16 %v366
      %v399 = vunpack.c.l.b16 %v367
      %v400 = vunpack.c.l.b16 %v368
      %v401 = vunpack.c.l.b16 %v369
      %v402 = vunpack.c.l.b16 %v370
      %v403 = vunpack.c.l.b16 %v371
      %v404 = vunpack.c.l.b16 %v372
      %v405 = vunpack.c.l.b16 %v373
      %v406 = vunpack.c.l.b16 %v374
      %v407 = vunpack.c.l.b16 %v375
      %v408 = vunpack.c.l.b16 %v376
      %v409 = vunpack.c.l.b16 %v377
      %v410 = vpack.c.b16 %v395, %v394
      %v411 = vpack.c.b16 %v397, %v396
      %v412 = vpack.c.b16 %v399, %v398
      %v413 = vpack.c.b16 %v401, %v400
      %v414 = vpack.c.b16 %v403, %v402
      %v415 = vpack.c.b16 %v405, %v404
      %v416 = vpack.c.b16 %v407, %v406
      %v417 = vpack.c.b16 %v409, %v408
      %426 = vmatprep.subr.bf16.mxu0 0
      %427 = vmatpush1.bf16.msra.mxu0 %v410
      %428 = vmatprep.subr.bf16.mxu0 0
      %429 = vmatpush1.bf16.msra.mxu0 %v411
      %430 = vmatprep.subr.bf16.mxu0 0
      %431 = vmatpush1.bf16.msra.mxu0 %v412
      %432 = vmatprep.subr.bf16.mxu0 0
      %433 = vmatpush1.bf16.msra.mxu0 %v413
      %434 = vmatprep.subr.bf16.mxu0 0
      %435 = vmatpush1.bf16.msra.mxu0 %v414
      %436 = vmatprep.subr.bf16.mxu0 0
      %437 = vmatpush1.bf16.msra.mxu0 %v415
      %438 = vmatprep.subr.bf16.mxu0 0
      %439 = vmatpush1.bf16.msra.mxu0 %v416
      %440 = vmatprep.subr.bf16.mxu0 0
      %441 = vmatpush1.bf16.msra.mxu0 %v417
      %442 = vmatprep.subr.bf16.mxu0 0
      %443 = vmatpush1.bf16.msra.mxu0 0
      %444 = vmatprep.subr.bf16.mxu0 0
      %445 = vmatpush1.bf16.msra.mxu0 0
      %446 = vmatprep.subr.bf16.mxu0 0
      %447 = vmatpush1.bf16.msra.mxu0 0
      %448 = vmatprep.subr.bf16.mxu0 0
      %449 = vmatpush1.bf16.msra.mxu0 0
      %450 = vmatprep.subr.bf16.mxu0 0
      %451 = vmatpush1.bf16.msra.mxu0 0
      %452 = vmatprep.subr.bf16.mxu0 0
      %453 = vmatpush1.bf16.msra.mxu0 0
      %454 = vmatprep.subr.bf16.mxu0 0
      %455 = vmatpush1.bf16.msra.mxu0 0
      %456 = vmatprep.subr.bf16.mxu0 0
      %457 = vmatpush1.bf16.msra.mxu0 0
      %458 = vmatprep.mubr.bf16.mxu0 0
      %459 = vmatmul.mubr.bf16.gmra.mrb[0].mxu0 %v357
      %v460 = vpop.f32.mrb[0].mxu0
      %v461 = vadd.f32 0.0, %v460
      %v462 = vpop.f32.mrb[0].mxu0
      %v463 = vpop.f32.mrb[0].mxu0
      %v464 = vadd.f32 0.0, %v463
      %v465 = vpop.f32.mrb[0].mxu0
      %466 = vmatprep.mubr.bf16.mxu0 0
      %467 = vmatmul.mubr.bf16.gmra.mrb[0].mxu0 %v358
      %v468 = vpop.f32.mrb[0].mxu0
      %v469 = vadd.f32 0.0, %v468
      %v470 = vpop.f32.mrb[0].mxu0
      %v471 = vpop.f32.mrb[0].mxu0
      %v472 = vadd.f32 0.0, %v471
      %v473 = vpop.f32.mrb[0].mxu0
      %474 = vmatprep.mubr.bf16.mxu0 0
      %475 = vmatmul.mubr.bf16.gmra.mrb[0].mxu0 %v359
      %v476 = vpop.f32.mrb[0].mxu0
      %v477 = vadd.f32 0.0, %v476
      %v478 = vpop.f32.mrb[0].mxu0
      %v479 = vpop.f32.mrb[0].mxu0
      %v480 = vadd.f32 0.0, %v479
      %v481 = vpop.f32.mrb[0].mxu0
      %482 = vmatprep.mubr.bf16.mxu0 0
      %483 = vmatmul.mubr.bf16.gmra.mrb[0].mxu0 %v360
      %v484 = vpop.f32.mrb[0].mxu0
      %v485 = vadd.f32 0.0, %v484
      %v486 = vpop.f32.mrb[0].mxu0
      %v487 = vpop.f32.mrb[0].mxu0
      %v488 = vadd.f32 0.0, %v487
      %v489 = vpop.f32.mrb[0].mxu0
      %490 = vdwg.mxu0
      %v507 = vunpack.c.l.b16 %v332
      %v508 = vunpack.c.l.b16 %v333
      %v509 = vunpack.c.l.b16 %v334
      %v510 = vunpack.c.l.b16 %v335
      %v511 = vunpack.c.l.b16 %v336
      %v512 = vunpack.c.l.b16 %v337
      %v513 = vunpack.c.l.b16 %v338
      %v514 = vunpack.c.l.b16 %v339
      %v515 = vunpack.c.l.b16 %v340
      %v516 = vunpack.c.l.b16 %v341
      %v517 = vunpack.c.l.b16 %v342
      %v518 = vunpack.c.l.b16 %v343
      %v519 = vunpack.c.l.b16 %v344
      %v520 = vunpack.c.l.b16 %v345
      %v521 = vunpack.c.l.b16 %v346
      %v522 = vunpack.c.l.b16 %v347
      %v523 = vpack.c.b16 %v508, %v507
      %v524 = vpack.c.b16 %v510, %v509
      %v525 = vpack.c.b16 %v512, %v511
      %v526 = vpack.c.b16 %v514, %v513
      %v527 = vpack.c.b16 %v516, %v515
      %v528 = vpack.c.b16 %v518, %v517
      %v529 = vpack.c.b16 %v520, %v519
      %v530 = vpack.c.b16 %v522, %v521
      %539 = vmatprep.subr.bf16.mxu0 0
      %540 = vmatpush1.bf16.msra.mxu0 %v523
      %541 = vmatprep.subr.bf16.mxu0 0
      %542 = vmatpush1.bf16.msra.mxu0 %v524
      %543 = vmatprep.subr.bf16.mxu0 0
      %544 = vmatpush1.bf16.msra.mxu0 %v525
      %545 = vmatprep.subr.bf16.mxu0 0
      %546 = vmatpush1.bf16.msra.mxu0 %v526
      %547 = vmatprep.subr.bf16.mxu0 0
      %548 = vmatpush1.bf16.msra.mxu0 %v527
      %549 = vmatprep.subr.bf16.mxu0 0
      %550 = vmatpush1.bf16.msra.mxu0 %v528
      %551 = vmatprep.subr.bf16.mxu0 0
      %552 = vmatpush1.bf16.msra.mxu0 %v529
      %553 = vmatprep.subr.bf16.mxu0 0
      %554 = vmatpush1.bf16.msra.mxu0 %v530
      %555 = vmatprep.subr.bf16.mxu0 0
      %556 = vmatpush1.bf16.msra.mxu0 0
      %557 = vmatprep.subr.bf16.mxu0 0
      %558 = vmatpush1.bf16.msra.mxu0 0
      %559 = vmatprep.subr.bf16.mxu0 0
      %560 = vmatpush1.bf16.msra.mxu0 0
      %561 = vmatprep.subr.bf16.mxu0 0
      %562 = vmatpush1.bf16.msra.mxu0 0
      %563 = vmatprep.subr.bf16.mxu0 0
      %564 = vmatpush1.bf16.msra.mxu0 0
      %565 = vmatprep.subr.bf16.mxu0 0
      %566 = vmatpush1.bf16.msra.mxu0 0
      %567 = vmatprep.subr.bf16.mxu0 0
      %568 = vmatpush1.bf16.msra.mxu0 0
      %569 = vmatprep.subr.bf16.mxu0 0
      %570 = vmatpush1.bf16.msra.mxu0 0
      %571 = vmatprep.mubr.bf16.mxu0 0
      %572 = vmatmul.mubr.bf16.gmra.mrb[0].mxu0 %v328
      %v573 = vpop.f32.mrb[0].mxu0
      %v574 = vadd.f32 %v461, %v573
      %v575 = vpop.f32.mrb[0].mxu0
      %v576 = vpop.f32.mrb[0].mxu0
      %v577 = vadd.f32 %v464, %v576
      %v578 = vpop.f32.mrb[0].mxu0
      %579 = vmatprep.mubr.bf16.mxu0 0
      %580 = vmatmul.mubr.bf16.gmra.mrb[0].mxu0 %v329
      %v581 = vpop.f32.mrb[0].mxu0
      %v582 = vadd.f32 %v469, %v581
      %v583 = vpop.f32.mrb[0].mxu0
      %v584 = vpop.f32.mrb[0].mxu0
      %v585 = vadd.f32 %v472, %v584
      %v586 = vpop.f32.mrb[0].mxu0
      %587 = vmatprep.mubr.bf16.mxu0 0
      %588 = vmatmul.mubr.bf16.gmra.mrb[0].mxu0 %v330
      %v589 = vpop.f32.mrb[0].mxu0
      %v590 = vadd.f32 %v477, %v589
      %v591 = vpop.f32.mrb[0].mxu0
      %v592 = vpop.f32.mrb[0].mxu0
      %v593 = vadd.f32 %v480, %v592
      %v594 = vpop.f32.mrb[0].mxu0
      %595 = vmatprep.mubr.bf16.mxu0 0
      %596 = vmatmul.mubr.bf16.gmra.mrb[0].mxu0 %v331
      %v597 = vpop.f32.mrb[0].mxu0
      %v598 = vadd.f32 %v485, %v597
      %v599 = vpop.f32.mrb[0].mxu0
      %v600 = vpop.f32.mrb[0].mxu0
      %v601 = vadd.f32 %v488, %v600
      %v602 = vpop.f32.mrb[0].mxu0
      %603 = vdwg.mxu0
      %v604 = vld [vmem:[%s308 + $0x1] sm:$0xff]
      %v605 = vld [vmem:[%s308 + $0x11] sm:$0xff]
      %v606 = vld [vmem:[%s308 + $0x21] sm:$0xff]
      %v607 = vld [vmem:[%s308 + $0x31] sm:$0xff]
      %v608 = vld [vmem:[%s308 + $0x41] sm:$0xff]
      %v609 = vld [vmem:[%s308 + $0x51] sm:$0xff]
      %v610 = vld [vmem:[%s308 + $0x61] sm:$0xff]
      %v611 = vld [vmem:[%s308 + $0x71] sm:$0xff]
      %v612 = vpack.c.bf16 %v605, %v604
      %v613 = vpack.c.bf16 %v607, %v606
      %v614 = vpack.c.bf16 %v609, %v608
      %v615 = vpack.c.bf16 %v611, %v610
      %s616 = scalar_lea.vmem %s1, 128
      %v617 = vld [vmem:[%s616] sm:$0xf]
      %v618 = vld [vmem:[%s616 + $0x4] sm:$0xf]
      %v619 = vld [vmem:[%s616 + $0x8] sm:$0xf]
      %v620 = vld [vmem:[%s616 + $0xc] sm:$0xf]
      %v621 = vld [vmem:[%s616 + $0x10] sm:$0xf]
      %v622 = vld [vmem:[%s616 + $0x14] sm:$0xf]
      %v623 = vld [vmem:[%s616 + $0x18] sm:$0xf]
      %v624 = vld [vmem:[%s616 + $0x1c] sm:$0xf]
      %v625 = vld [vmem:[%s616 + $0x20] sm:$0xf]
      %v626 = vld [vmem:[%s616 + $0x24] sm:$0xf]
      %v627 = vld [vmem:[%s616 + $0x28] sm:$0xf]
      %v628 = vld [vmem:[%s616 + $0x2c] sm:$0xf]
      %v629 = vld [vmem:[%s616 + $0x30] sm:$0xf]
      %v630 = vld [vmem:[%s616 + $0x34] sm:$0xf]
      %v631 = vld [vmem:[%s616 + $0x38] sm:$0xf]
      %v632 = vld [vmem:[%s616 + $0x3c] sm:$0xf]
      %v649 = vunpack.c.l.b16 %v617
      %v650 = vunpack.c.l.b16 %v618
      %v651 = vunpack.c.l.b16 %v619
      %v652 = vunpack.c.l.b16 %v620
      %v653 = vunpack.c.l.b16 %v621
      %v654 = vunpack.c.l.b16 %v622
      %v655 = vunpack.c.l.b16 %v623
      %v656 = vunpack.c.l.b16 %v624
      %v657 = vunpack.c.l.b16 %v625
      %v658 = vunpack.c.l.b16 %v626
      %v659 = vunpack.c.l.b16 %v627
      %v660 = vunpack.c.l.b16 %v628
      %v661 = vunpack.c.l.b16 %v629
      %v662 = vunpack.c.l.b16 %v630
      %v663 = vunpack.c.l.b16 %v631
      %v664 = vunpack.c.l.b16 %v632
      %v665 = vpack.c.b16 %v650, %v649
      %v666 = vpack.c.b16 %v652, %v651
      %v667 = vpack.c.b16 %v654, %v653
      %v668 = vpack.c.b16 %v656, %v655
      %v669 = vpack.c.b16 %v658, %v657
      %v670 = vpack.c.b16 %v660, %v659
      %v671 = vpack.c.b16 %v662, %v661
      %v672 = vpack.c.b16 %v664, %v663
      %681 = vmatprep.subr.bf16.mxu0 0
      %682 = vmatpush1.bf16.msra.mxu0 %v665
      %683 = vmatprep.subr.bf16.mxu0 0
      %684 = vmatpush1.bf16.msra.mxu0 %v666
      %685 = vmatprep.subr.bf16.mxu0 0
      %686 = vmatpush1.bf16.msra.mxu0 %v667
      %687 = vmatprep.subr.bf16.mxu0 0
      %688 = vmatpush1.bf16.msra.mxu0 %v668
      %689 = vmatprep.subr.bf16.mxu0 0
      %690 = vmatpush1.bf16.msra.mxu0 %v669
      %691 = vmatprep.subr.bf16.mxu0 0
      %692 = vmatpush1.bf16.msra.mxu0 %v670
      %693 = vmatprep.subr.bf16.mxu0 0
      %694 = vmatpush1.bf16.msra.mxu0 %v671
      %695 = vmatprep.subr.bf16.mxu0 0
      %696 = vmatpush1.bf16.msra.mxu0 %v672
      %697 = vmatprep.subr.bf16.mxu0 0
      %698 = vmatpush1.bf16.msra.mxu0 0
      %699 = vmatprep.subr.bf16.mxu0 0
      %700 = vmatpush1.bf16.msra.mxu0 0
      %701 = vmatprep.subr.bf16.mxu0 0
      %702 = vmatpush1.bf16.msra.mxu0 0
      %703 = vmatprep.subr.bf16.mxu0 0
      %704 = vmatpush1.bf16.msra.mxu0 0
      %705 = vmatprep.subr.bf16.mxu0 0
      %706 = vmatpush1.bf16.msra.mxu0 0
      %707 = vmatprep.subr.bf16.mxu0 0
      %708 = vmatpush1.bf16.msra.mxu0 0
      %709 = vmatprep.subr.bf16.mxu0 0
      %710 = vmatpush1.bf16.msra.mxu0 0
      %711 = vmatprep.subr.bf16.mxu0 0
      %712 = vmatpush1.bf16.msra.mxu0 0
      %713 = vmatprep.mubr.bf16.mxu0 0
      %714 = vmatmul.mubr.bf16.gmra.mrb[0].mxu0 %v612
      %v715 = vpop.f32.mrb[0].mxu0
      %v716 = vadd.f32 0.0, %v715
      %v717 = vpop.f32.mrb[0].mxu0
      %v718 = vpop.f32.mrb[0].mxu0
      %v719 = vadd.f32 0.0, %v718
      %v720 = vpop.f32.mrb[0].mxu0
      %721 = vmatprep.mubr.bf16.mxu0 0
      %722 = vmatmul.mubr.bf16.gmra.mrb[0].mxu0 %v613
      %v723 = vpop.f32.mrb[0].mxu0
      %v724 = vadd.f32 0.0, %v723
      %v725 = vpop.f32.mrb[0].mxu0
      %v726 = vpop.f32.mrb[0].mxu0
      %v727 = vadd.f32 0.0, %v726
      %v728 = vpop.f32.mrb[0].mxu0
      %729 = vmatprep.mubr.bf16.mxu0 0
      %730 = vmatmul.mubr.bf16.gmra.mrb[0].mxu0 %v614
      %v731 = vpop.f32.mrb[0].mxu0
      %v732 = vadd.f32 0.0, %v731
      %v733 = vpop.f32.mrb[0].mxu0
      %v734 = vpop.f32.mrb[0].mxu0
      %v735 = vadd.f32 0.0, %v734
      %v736 = vpop.f32.mrb[0].mxu0
      %737 = vmatprep.mubr.bf16.mxu0 0
      %738 = vmatmul.mubr.bf16.gmra.mrb[0].mxu0 %v615
      %v739 = vpop.f32.mrb[0].mxu0
      %v740 = vadd.f32 0.0, %v739
      %v741 = vpop.f32.mrb[0].mxu0
      %v742 = vpop.f32.mrb[0].mxu0
      %v743 = vadd.f32 0.0, %v742
      %v744 = vpop.f32.mrb[0].mxu0
      %745 = vdwg.mxu0
      %v746 = vadd.f32 %v574, %v716
      %v747 = vadd.f32 %v577, %v719
      %v748 = vadd.f32 %v582, %v724
      %v749 = vadd.f32 %v585, %v727
      %v750 = vadd.f32 %v590, %v732
      %v751 = vadd.f32 %v593, %v735
      %v752 = vadd.f32 %v598, %v740
      %v753 = vadd.f32 %v601, %v743
      %s754 = scalar_lea.vmem %s308, 288
      %v755 = vld [vmem:[%s754] sm:$0xff]
      %v756 = vld [vmem:[%s754 + $0x10] sm:$0xff]
      %v757 = vld [vmem:[%s754 + $0x20] sm:$0xff]
      %v758 = vld [vmem:[%s754 + $0x30] sm:$0xff]
      %v759 = vld [vmem:[%s754 + $0x40] sm:$0xff]
      %v760 = vld [vmem:[%s754 + $0x50] sm:$0xff]
      %v761 = vld [vmem:[%s754 + $0x60] sm:$0xff]
      %v762 = vld [vmem:[%s754 + $0x70] sm:$0xff]
      %v763 = vpack.c.bf16 %v756, %v755
      %v764 = vpack.c.bf16 %v758, %v757
      %v765 = vpack.c.bf16 %v760, %v759
      %v766 = vpack.c.bf16 %v762, %v761
      %s767 = scalar_lea.vmem %s1, 192
      %v768 = vld [vmem:[%s767] sm:$0xf]
      %v769 = vld [vmem:[%s767 + $0x4] sm:$0xf]
      %v770 = vld [vmem:[%s767 + $0x8] sm:$0xf]
      %v771 = vld [vmem:[%s767 + $0xc] sm:$0xf]
      %v772 = vld [vmem:[%s767 + $0x10] sm:$0xf]
      %v773 = vld [vmem:[%s767 + $0x14] sm:$0xf]
      %v774 = vld [vmem:[%s767 + $0x18] sm:$0xf]
      %v775 = vld [vmem:[%s767 + $0x1c] sm:$0xf]
      %v776 = vld [vmem:[%s767 + $0x20] sm:$0xf]
      %v777 = vld [vmem:[%s767 + $0x24] sm:$0xf]
      %v778 = vld [vmem:[%s767 + $0x28] sm:$0xf]
      %v779 = vld [vmem:[%s767 + $0x2c] sm:$0xf]
      %v780 = vld [vmem:[%s767 + $0x30] sm:$0xf]
      %v781 = vld [vmem:[%s767 + $0x34] sm:$0xf]
      %v782 = vld [vmem:[%s767 + $0x38] sm:$0xf]
      %v783 = vld [vmem:[%s767 + $0x3c] sm:$0xf]
      %v800 = vunpack.c.l.b16 %v768
      %v801 = vunpack.c.l.b16 %v769
      %v802 = vunpack.c.l.b16 %v770
      %v803 = vunpack.c.l.b16 %v771
      %v804 = vunpack.c.l.b16 %v772
      %v805 = vunpack.c.l.b16 %v773
      %v806 = vunpack.c.l.b16 %v774
      %v807 = vunpack.c.l.b16 %v775
      %v808 = vunpack.c.l.b16 %v776
      %v809 = vunpack.c.l.b16 %v777
      %v810 = vunpack.c.l.b16 %v778
      %v811 = vunpack.c.l.b16 %v779
      %v812 = vunpack.c.l.b16 %v780
      %v813 = vunpack.c.l.b16 %v781
      %v814 = vunpack.c.l.b16 %v782
      %v815 = vunpack.c.l.b16 %v783
      %v816 = vpack.c.b16 %v801, %v800
      %v817 = vpack.c.b16 %v803, %v802
      %v818 = vpack.c.b16 %v805, %v804
      %v819 = vpack.c.b16 %v807, %v806
      %v820 = vpack.c.b16 %v809, %v808
      %v821 = vpack.c.b16 %v811, %v810
      %v822 = vpack.c.b16 %v813, %v812
      %v823 = vpack.c.b16 %v815, %v814
      %832 = vmatprep.subr.bf16.mxu0 0
      %833 = vmatpush1.bf16.msra.mxu0 %v816
      %834 = vmatprep.subr.bf16.mxu0 0
      %835 = vmatpush1.bf16.msra.mxu0 %v817
      %836 = vmatprep.subr.bf16.mxu0 0
      %837 = vmatpush1.bf16.msra.mxu0 %v818
      %838 = vmatprep.subr.bf16.mxu0 0
      %839 = vmatpush1.bf16.msra.mxu0 %v819
      %840 = vmatprep.subr.bf16.mxu0 0
      %841 = vmatpush1.bf16.msra.mxu0 %v820
      %842 = vmatprep.subr.bf16.mxu0 0
      %843 = vmatpush1.bf16.msra.mxu0 %v821
      %844 = vmatprep.subr.bf16.mxu0 0
      %845 = vmatpush1.bf16.msra.mxu0 %v822
      %846 = vmatprep.subr.bf16.mxu0 0
      %847 = vmatpush1.bf16.msra.mxu0 %v823
      %848 = vmatprep.subr.bf16.mxu0 0
      %849 = vmatpush1.bf16.msra.mxu0 0
      %850 = vmatprep.subr.bf16.mxu0 0
      %851 = vmatpush1.bf16.msra.mxu0 0
      %852 = vmatprep.subr.bf16.mxu0 0
      %853 = vmatpush1.bf16.msra.mxu0 0
      %854 = vmatprep.subr.bf16.mxu0 0
      %855 = vmatpush1.bf16.msra.mxu0 0
      %856 = vmatprep.subr.bf16.mxu0 0
      %857 = vmatpush1.bf16.msra.mxu0 0
      %858 = vmatprep.subr.bf16.mxu0 0
      %859 = vmatpush1.bf16.msra.mxu0 0
      %860 = vmatprep.subr.bf16.mxu0 0
      %861 = vmatpush1.bf16.msra.mxu0 0
      %862 = vmatprep.subr.bf16.mxu0 0
      %863 = vmatpush1.bf16.msra.mxu0 0
      %864 = vmatprep.mubr.bf16.mxu0 0
      %865 = vmatmul.mubr.bf16.gmra.mrb[0].mxu0 %v763
      %v866 = vpop.f32.mrb[0].mxu0
      %v867 = vadd.f32 0.0, %v866
      %v868 = vpop.f32.mrb[0].mxu0
      %v869 = vpop.f32.mrb[0].mxu0
      %v870 = vadd.f32 0.0, %v869
      %v871 = vpop.f32.mrb[0].mxu0
      %872 = vmatprep.mubr.bf16.mxu0 0
      %873 = vmatmul.mubr.bf16.gmra.mrb[0].mxu0 %v764
      %v874 = vpop.f32.mrb[0].mxu0
      %v875 = vadd.f32 0.0, %v874
      %v876 = vpop.f32.mrb[0].mxu0
      %v877 = vpop.f32.mrb[0].mxu0
      %v878 = vadd.f32 0.0, %v877
      %v879 = vpop.f32.mrb[0].mxu0
      %880 = vmatprep.mubr.bf16.mxu0 0
      %881 = vmatmul.mubr.bf16.gmra.mrb[0].mxu0 %v765
      %v882 = vpop.f32.mrb[0].mxu0
      %v883 = vadd.f32 0.0, %v882
      %v884 = vpop.f32.mrb[0].mxu0
      %v885 = vpop.f32.mrb[0].mxu0
      %v886 = vadd.f32 0.0, %v885
      %v887 = vpop.f32.mrb[0].mxu0
      %888 = vmatprep.mubr.bf16.mxu0 0
      %889 = vmatmul.mubr.bf16.gmra.mrb[0].mxu0 %v766
      %v890 = vpop.f32.mrb[0].mxu0
      %v891 = vadd.f32 0.0, %v890
      %v892 = vpop.f32.mrb[0].mxu0
      %v893 = vpop.f32.mrb[0].mxu0
      %v894 = vadd.f32 0.0, %v893
      %v895 = vpop.f32.mrb[0].mxu0
      %896 = vdwg.mxu0
      %v897 = vadd.f32 %v746, %v867
      %v898 = vadd.f32 %v747, %v870
      %v899 = vadd.f32 %v748, %v875
      %v900 = vadd.f32 %v749, %v878
      %v901 = vadd.f32 %v750, %v883
      %v902 = vadd.f32 %v751, %v886
      %v903 = vadd.f32 %v752, %v891
      %v904 = vadd.f32 %v753, %v894
      %s905 = scalar_lea.vmem %s308, 432
      %v906 = vld [vmem:[%s905] sm:$0xff]
      %v907 = vld [vmem:[%s905 + $0x10] sm:$0xff]
      %v908 = vld [vmem:[%s905 + $0x20] sm:$0xff]
      %v909 = vld [vmem:[%s905 + $0x30] sm:$0xff]
      %v910 = vld [vmem:[%s905 + $0x40] sm:$0xff]
      %v911 = vld [vmem:[%s905 + $0x50] sm:$0xff]
      %v912 = vld [vmem:[%s905 + $0x60] sm:$0xff]
      %v913 = vld [vmem:[%s905 + $0x70] sm:$0xff]
      %v914 = vpack.c.bf16 %v907, %v906
      %v915 = vpack.c.bf16 %v909, %v908
      %v916 = vpack.c.bf16 %v911, %v910
      %v917 = vpack.c.bf16 %v913, %v912
      %s918 = scalar_lea.vmem %s1, 256
      %v919 = vld [vmem:[%s918] sm:$0xf]
      %v920 = vld [vmem:[%s918 + $0x4] sm:$0xf]
      %v921 = vld [vmem:[%s918 + $0x8] sm:$0xf]
      %v922 = vld [vmem:[%s918 + $0xc] sm:$0xf]
      %v923 = vld [vmem:[%s918 + $0x10] sm:$0xf]
      %v924 = vld [vmem:[%s918 + $0x14] sm:$0xf]
      %v925 = vld [vmem:[%s918 + $0x18] sm:$0xf]
      %v926 = vld [vmem:[%s918 + $0x1c] sm:$0xf]
      %v927 = vld [vmem:[%s918 + $0x20] sm:$0xf]
      %v928 = vld [vmem:[%s918 + $0x24] sm:$0xf]
      %v929 = vld [vmem:[%s918 + $0x28] sm:$0xf]
      %v930 = vld [vmem:[%s918 + $0x2c] sm:$0xf]
      %v931 = vld [vmem:[%s918 + $0x30] sm:$0xf]
      %v932 = vld [vmem:[%s918 + $0x34] sm:$0xf]
      %v933 = vld [vmem:[%s918 + $0x38] sm:$0xf]
      %v934 = vld [vmem:[%s918 + $0x3c] sm:$0xf]
      %v951 = vunpack.c.l.b16 %v919
      %v952 = vunpack.c.l.b16 %v920
      %v953 = vunpack.c.l.b16 %v921
      %v954 = vunpack.c.l.b16 %v922
      %v955 = vunpack.c.l.b16 %v923
      %v956 = vunpack.c.l.b16 %v924
      %v957 = vunpack.c.l.b16 %v925
      %v958 = vunpack.c.l.b16 %v926
      %v959 = vunpack.c.l.b16 %v927
      %v960 = vunpack.c.l.b16 %v928
      %v961 = vunpack.c.l.b16 %v929
      %v962 = vunpack.c.l.b16 %v930
      %v963 = vunpack.c.l.b16 %v931
      %v964 = vunpack.c.l.b16 %v932
      %v965 = vunpack.c.l.b16 %v933
      %v966 = vunpack.c.l.b16 %v934
      %v967 = vpack.c.b16 %v952, %v951
      %v968 = vpack.c.b16 %v954, %v953
      %v969 = vpack.c.b16 %v956, %v955
      %v970 = vpack.c.b16 %v958, %v957
      %v971 = vpack.c.b16 %v960, %v959
      %v972 = vpack.c.b16 %v962, %v961
      %v973 = vpack.c.b16 %v964, %v963
      %v974 = vpack.c.b16 %v966, %v965
      %983 = vmatprep.subr.bf16.mxu0 0
      %984 = vmatpush1.bf16.msra.mxu0 %v967
      %985 = vmatprep.subr.bf16.mxu0 0
      %986 = vmatpush1.bf16.msra.mxu0 %v968
      %987 = vmatprep.subr.bf16.mxu0 0
      %988 = vmatpush1.bf16.msra.mxu0 %v969
      %989 = vmatprep.subr.bf16.mxu0 0
      %990 = vmatpush1.bf16.msra.mxu0 %v970
      %991 = vmatprep.subr.bf16.mxu0 0
      %992 = vmatpush1.bf16.msra.mxu0 %v971
      %993 = vmatprep.subr.bf16.mxu0 0
      %994 = vmatpush1.bf16.msra.mxu0 %v972
      %995 = vmatprep.subr.bf16.mxu0 0
      %996 = vmatpush1.bf16.msra.mxu0 %v973
      %997 = vmatprep.subr.bf16.mxu0 0
      %998 = vmatpush1.bf16.msra.mxu0 %v974
      %999 = vmatprep.subr.bf16.mxu0 0
      %1000 = vmatpush1.bf16.msra.mxu0 0
      %1001 = vmatprep.subr.bf16.mxu0 0
      %1002 = vmatpush1.bf16.msra.mxu0 0
      %1003 = vmatprep.subr.bf16.mxu0 0
      %1004 = vmatpush1.bf16.msra.mxu0 0
      %1005 = vmatprep.subr.bf16.mxu0 0
      %1006 = vmatpush1.bf16.msra.mxu0 0
      %1007 = vmatprep.subr.bf16.mxu0 0
      %1008 = vmatpush1.bf16.msra.mxu0 0
      %1009 = vmatprep.subr.bf16.mxu0 0
      %1010 = vmatpush1.bf16.msra.mxu0 0
      %1011 = vmatprep.subr.bf16.mxu0 0
      %1012 = vmatpush1.bf16.msra.mxu0 0
      %1013 = vmatprep.subr.bf16.mxu0 0
      %1014 = vmatpush1.bf16.msra.mxu0 0
      %1015 = vmatprep.mubr.bf16.mxu0 0
      %1016 = vmatmul.mubr.bf16.gmra.mrb[0].mxu0 %v914
      %v1017 = vpop.f32.mrb[0].mxu0
      %v1018 = vadd.f32 0.0, %v1017
      %v1019 = vpop.f32.mrb[0].mxu0
      %v1020 = vpop.f32.mrb[0].mxu0
      %v1021 = vadd.f32 0.0, %v1020
      %v1022 = vpop.f32.mrb[0].mxu0
      %1023 = vmatprep.mubr.bf16.mxu0 0
      %1024 = vmatmul.mubr.bf16.gmra.mrb[0].mxu0 %v915
      %v1025 = vpop.f32.mrb[0].mxu0
      %v1026 = vadd.f32 0.0, %v1025
      %v1027 = vpop.f32.mrb[0].mxu0
      %v1028 = vpop.f32.mrb[0].mxu0
      %v1029 = vadd.f32 0.0, %v1028
      %v1030 = vpop.f32.mrb[0].mxu0
      %1031 = vmatprep.mubr.bf16.mxu0 0
      %1032 = vmatmul.mubr.bf16.gmra.mrb[0].mxu0 %v916
      %v1033 = vpop.f32.mrb[0].mxu0
      %v1034 = vadd.f32 0.0, %v1033
      %v1035 = vpop.f32.mrb[0].mxu0
      %v1036 = vpop.f32.mrb[0].mxu0
      %v1037 = vadd.f32 0.0, %v1036
      %v1038 = vpop.f32.mrb[0].mxu0
      %1039 = vmatprep.mubr.bf16.mxu0 0
      %1040 = vmatmul.mubr.bf16.gmra.mrb[0].mxu0 %v917
      %v1041 = vpop.f32.mrb[0].mxu0
      %v1042 = vadd.f32 0.0, %v1041
      %v1043 = vpop.f32.mrb[0].mxu0
      %v1044 = vpop.f32.mrb[0].mxu0
      %v1045 = vadd.f32 0.0, %v1044
      %v1046 = vpop.f32.mrb[0].mxu0
      %1047 = vdwg.mxu0
      %v1048 = vadd.f32 %v897, %v1018
      %v1049 = vadd.f32 %v898, %v1021
      %v1050 = vadd.f32 %v899, %v1026
      %v1051 = vadd.f32 %v900, %v1029
      %v1052 = vadd.f32 %v901, %v1034
      %v1053 = vadd.f32 %v902, %v1037
      %v1054 = vadd.f32 %v903, %v1042
      %v1055 = vadd.f32 %v904, %v1045
      %v1056 = vld [vmem:[%s754 + $0x1] sm:$0xff]
      %v1057 = vld [vmem:[%s754 + $0x11] sm:$0xff]
      %v1058 = vld [vmem:[%s754 + $0x21] sm:$0xff]
      %v1059 = vld [vmem:[%s754 + $0x31] sm:$0xff]
      %v1060 = vld [vmem:[%s754 + $0x41] sm:$0xff]
      %v1061 = vld [vmem:[%s754 + $0x51] sm:$0xff]
      %v1062 = vld [vmem:[%s754 + $0x61] sm:$0xff]
      %v1063 = vld [vmem:[%s754 + $0x71] sm:$0xff]
      %v1064 = vpack.c.bf16 %v1057, %v1056
      %v1065 = vpack.c.bf16 %v1059, %v1058
      %v1066 = vpack.c.bf16 %v1061, %v1060
      %v1067 = vpack.c.bf16 %v1063, %v1062
      %s1068 = scalar_lea.vmem %s1, 320
      %v1069 = vld [vmem:[%s1068] sm:$0xf]
      %v1070 = vld [vmem:[%s1068 + $0x4] sm:$0xf]
      %v1071 = vld [vmem:[%s1068 + $0x8] sm:$0xf]
      %v1072 = vld [vmem:[%s1068 + $0xc] sm:$0xf]
      %v1073 = vld [vmem:[%s1068 + $0x10] sm:$0xf]
      %v1074 = vld [vmem:[%s1068 + $0x14] sm:$0xf]
      %v1075 = vld [vmem:[%s1068 + $0x18] sm:$0xf]
      %v1076 = vld [vmem:[%s1068 + $0x1c] sm:$0xf]
      %v1077 = vld [vmem:[%s1068 + $0x20] sm:$0xf]
      %v1078 = vld [vmem:[%s1068 + $0x24] sm:$0xf]
      %v1079 = vld [vmem:[%s1068 + $0x28] sm:$0xf]
      %v1080 = vld [vmem:[%s1068 + $0x2c] sm:$0xf]
      %v1081 = vld [vmem:[%s1068 + $0x30] sm:$0xf]
      %v1082 = vld [vmem:[%s1068 + $0x34] sm:$0xf]
      %v1083 = vld [vmem:[%s1068 + $0x38] sm:$0xf]
      %v1084 = vld [vmem:[%s1068 + $0x3c] sm:$0xf]
      %v1101 = vunpack.c.l.b16 %v1069
      %v1102 = vunpack.c.l.b16 %v1070
      %v1103 = vunpack.c.l.b16 %v1071
      %v1104 = vunpack.c.l.b16 %v1072
      %v1105 = vunpack.c.l.b16 %v1073
      %v1106 = vunpack.c.l.b16 %v1074
      %v1107 = vunpack.c.l.b16 %v1075
      %v1108 = vunpack.c.l.b16 %v1076
      %v1109 = vunpack.c.l.b16 %v1077
      %v1110 = vunpack.c.l.b16 %v1078
      %v1111 = vunpack.c.l.b16 %v1079
      %v1112 = vunpack.c.l.b16 %v1080
      %v1113 = vunpack.c.l.b16 %v1081
      %v1114 = vunpack.c.l.b16 %v1082
      %v1115 = vunpack.c.l.b16 %v1083
      %v1116 = vunpack.c.l.b16 %v1084
      %v1117 = vpack.c.b16 %v1102, %v1101
      %v1118 = vpack.c.b16 %v1104, %v1103
      %v1119 = vpack.c.b16 %v1106, %v1105
      %v1120 = vpack.c.b16 %v1108, %v1107
      %v1121 = vpack.c.b16 %v1110, %v1109
      %v1122 = vpack.c.b16 %v1112, %v1111
      %v1123 = vpack.c.b16 %v1114, %v1113
      %v1124 = vpack.c.b16 %v1116, %v1115
      %1133 = vmatprep.subr.bf16.mxu0 0
      %1134 = vmatpush1.bf16.msra.mxu0 %v1117
      %1135 = vmatprep.subr.bf16.mxu0 0
      %1136 = vmatpush1.bf16.msra.mxu0 %v1118
      %1137 = vmatprep.subr.bf16.mxu0 0
      %1138 = vmatpush1.bf16.msra.mxu0 %v1119
      %1139 = vmatprep.subr.bf16.mxu0 0
      %1140 = vmatpush1.bf16.msra.mxu0 %v1120
      %1141 = vmatprep.subr.bf16.mxu0 0
      %1142 = vmatpush1.bf16.msra.mxu0 %v1121
      %1143 = vmatprep.subr.bf16.mxu0 0
      %1144 = vmatpush1.bf16.msra.mxu0 %v1122
      %1145 = vmatprep.subr.bf16.mxu0 0
      %1146 = vmatpush1.bf16.msra.mxu0 %v1123
      %1147 = vmatprep.subr.bf16.mxu0 0
      %1148 = vmatpush1.bf16.msra.mxu0 %v1124
      %1149 = vmatprep.subr.bf16.mxu0 0
      %1150 = vmatpush1.bf16.msra.mxu0 0
      %1151 = vmatprep.subr.bf16.mxu0 0
      %1152 = vmatpush1.bf16.msra.mxu0 0
      %1153 = vmatprep.subr.bf16.mxu0 0
      %1154 = vmatpush1.bf16.msra.mxu0 0
      %1155 = vmatprep.subr.bf16.mxu0 0
      %1156 = vmatpush1.bf16.msra.mxu0 0
      %1157 = vmatprep.subr.bf16.mxu0 0
      %1158 = vmatpush1.bf16.msra.mxu0 0
      %1159 = vmatprep.subr.bf16.mxu0 0
      %1160 = vmatpush1.bf16.msra.mxu0 0
      %1161 = vmatprep.subr.bf16.mxu0 0
      %1162 = vmatpush1.bf16.msra.mxu0 0
      %1163 = vmatprep.subr.bf16.mxu0 0
      %1164 = vmatpush1.bf16.msra.mxu0 0
      %1165 = vmatprep.mubr.bf16.mxu0 0
      %1166 = vmatmul.mubr.bf16.gmra.mrb[0].mxu0 %v1064
      %v1167 = vpop.f32.mrb[0].mxu0
      %v1168 = vadd.f32 0.0, %v1167
      %v1169 = vpop.f32.mrb[0].mxu0
      %v1170 = vpop.f32.mrb[0].mxu0
      %v1171 = vadd.f32 0.0, %v1170
      %v1172 = vpop.f32.mrb[0].mxu0
      %1173 = vmatprep.mubr.bf16.mxu0 0
      %1174 = vmatmul.mubr.bf16.gmra.mrb[0].mxu0 %v1065
      %v1175 = vpop.f32.mrb[0].mxu0
      %v1176 = vadd.f32 0.0, %v1175
      %v1177 = vpop.f32.mrb[0].mxu0
      %v1178 = vpop.f32.mrb[0].mxu0
      %v1179 = vadd.f32 0.0, %v1178
      %v1180 = vpop.f32.mrb[0].mxu0
      %1181 = vmatprep.mubr.bf16.mxu0 0
      %1182 = vmatmul.mubr.bf16.gmra.mrb[0].mxu0 %v1066
      %v1183 = vpop.f32.mrb[0].mxu0
      %v1184 = vadd.f32 0.0, %v1183
      %v1185 = vpop.f32.mrb[0].mxu0
      %v1186 = vpop.f32.mrb[0].mxu0
      %v1187 = vadd.f32 0.0, %v1186
      %v1188 = vpop.f32.mrb[0].mxu0
      %1189 = vmatprep.mubr.bf16.mxu0 0
      %1190 = vmatmul.mubr.bf16.gmra.mrb[0].mxu0 %v1067
      %v1191 = vpop.f32.mrb[0].mxu0
      %v1192 = vadd.f32 0.0, %v1191
      %v1193 = vpop.f32.mrb[0].mxu0
      %v1194 = vpop.f32.mrb[0].mxu0
      %v1195 = vadd.f32 0.0, %v1194
      %v1196 = vpop.f32.mrb[0].mxu0
      %1197 = vdwg.mxu0
      %v1198 = vadd.f32 %v1048, %v1168
      %v1199 = vadd.f32 %v1049, %v1171
      %v1200 = vadd.f32 %v1050, %v1176
      %v1201 = vadd.f32 %v1051, %v1179
      %v1202 = vadd.f32 %v1052, %v1184
      %v1203 = vadd.f32 %v1053, %v1187
      %v1204 = vadd.f32 %v1054, %v1192
      %v1205 = vadd.f32 %v1055, %v1195
      %s1206 = scalar_lea.vmem %s308, 16
      %v1207 = vld [vmem:[%s1206] sm:$0xff]
      %v1208 = vld [vmem:[%s1206 + $0x10] sm:$0xff]
      %v1209 = vld [vmem:[%s1206 + $0x20] sm:$0xff]
      %v1210 = vld [vmem:[%s1206 + $0x30] sm:$0xff]
      %v1211 = vld [vmem:[%s1206 + $0x40] sm:$0xff]
      %v1212 = vld [vmem:[%s1206 + $0x50] sm:$0xff]
      %v1213 = vld [vmem:[%s1206 + $0x60] sm:$0xff]
      %v1214 = vld [vmem:[%s1206 + $0x70] sm:$0xff]
      %v1215 = vpack.c.bf16 %v1208, %v1207
      %v1216 = vpack.c.bf16 %v1210, %v1209
      %v1217 = vpack.c.bf16 %v1212, %v1211
      %v1218 = vpack.c.bf16 %v1214, %v1213
      %s1219 = scalar_lea.vmem %s1, 384
      %v1220 = vld [vmem:[%s1219] sm:$0xf]
      %v1221 = vld [vmem:[%s1219 + $0x4] sm:$0xf]
      %v1222 = vld [vmem:[%s1219 + $0x8] sm:$0xf]
      %v1223 = vld [vmem:[%s1219 + $0xc] sm:$0xf]
      %v1224 = vld [vmem:[%s1219 + $0x10] sm:$0xf]
      %v1225 = vld [vmem:[%s1219 + $0x14] sm:$0xf]
      %v1226 = vld [vmem:[%s1219 + $0x18] sm:$0xf]
      %v1227 = vld [vmem:[%s1219 + $0x1c] sm:$0xf]
      %v1228 = vld [vmem:[%s1219 + $0x20] sm:$0xf]
      %v1229 = vld [vmem:[%s1219 + $0x24] sm:$0xf]
      %v1230 = vld [vmem:[%s1219 + $0x28] sm:$0xf]
      %v1231 = vld [vmem:[%s1219 + $0x2c] sm:$0xf]
      %v1232 = vld [vmem:[%s1219 + $0x30] sm:$0xf]
      %v1233 = vld [vmem:[%s1219 + $0x34] sm:$0xf]
      %v1234 = vld [vmem:[%s1219 + $0x38] sm:$0xf]
      %v1235 = vld [vmem:[%s1219 + $0x3c] sm:$0xf]
      %v1252 = vunpack.c.l.b16 %v1220
      %v1253 = vunpack.c.l.b16 %v1221
      %v1254 = vunpack.c.l.b16 %v1222
      %v1255 = vunpack.c.l.b16 %v1223
      %v1256 = vunpack.c.l.b16 %v1224
      %v1257 = vunpack.c.l.b16 %v1225
      %v1258 = vunpack.c.l.b16 %v1226
      %v1259 = vunpack.c.l.b16 %v1227
      %v1260 = vunpack.c.l.b16 %v1228
      %v1261 = vunpack.c.l.b16 %v1229
      %v1262 = vunpack.c.l.b16 %v1230
      %v1263 = vunpack.c.l.b16 %v1231
      %v1264 = vunpack.c.l.b16 %v1232
      %v1265 = vunpack.c.l.b16 %v1233
      %v1266 = vunpack.c.l.b16 %v1234
      %v1267 = vunpack.c.l.b16 %v1235
      %v1268 = vpack.c.b16 %v1253, %v1252
      %v1269 = vpack.c.b16 %v1255, %v1254
      %v1270 = vpack.c.b16 %v1257, %v1256
      %v1271 = vpack.c.b16 %v1259, %v1258
      %v1272 = vpack.c.b16 %v1261, %v1260
      %v1273 = vpack.c.b16 %v1263, %v1262
      %v1274 = vpack.c.b16 %v1265, %v1264
      %v1275 = vpack.c.b16 %v1267, %v1266
      %1284 = vmatprep.subr.bf16.mxu0 0
      %1285 = vmatpush1.bf16.msra.mxu0 %v1268
      %1286 = vmatprep.subr.bf16.mxu0 0
      %1287 = vmatpush1.bf16.msra.mxu0 %v1269
      %1288 = vmatprep.subr.bf16.mxu0 0
      %1289 = vmatpush1.bf16.msra.mxu0 %v1270
      %1290 = vmatprep.subr.bf16.mxu0 0
      %1291 = vmatpush1.bf16.msra.mxu0 %v1271
      %1292 = vmatprep.subr.bf16.mxu0 0
      %1293 = vmatpush1.bf16.msra.mxu0 %v1272
      %1294 = vmatprep.subr.bf16.mxu0 0
      %1295 = vmatpush1.bf16.msra.mxu0 %v1273
      %1296 = vmatprep.subr.bf16.mxu0 0
      %1297 = vmatpush1.bf16.msra.mxu0 %v1274
      %1298 = vmatprep.subr.bf16.mxu0 0
      %1299 = vmatpush1.bf16.msra.mxu0 %v1275
      %1300 = vmatprep.subr.bf16.mxu0 0
      %1301 = vmatpush1.bf16.msra.mxu0 0
      %1302 = vmatprep.subr.bf16.mxu0 0
      %1303 = vmatpush1.bf16.msra.mxu0 0
      %1304 = vmatprep.subr.bf16.mxu0 0
      %1305 = vmatpush1.bf16.msra.mxu0 0
      %1306 = vmatprep.subr.bf16.mxu0 0
      %1307 = vmatpush1.bf16.msra.mxu0 0
      %1308 = vmatprep.subr.bf16.mxu0 0
      %1309 = vmatpush1.bf16.msra.mxu0 0
      %1310 = vmatprep.subr.bf16.mxu0 0
      %1311 = vmatpush1.bf16.msra.mxu0 0
      %1312 = vmatprep.subr.bf16.mxu0 0
      %1313 = vmatpush1.bf16.msra.mxu0 0
      %1314 = vmatprep.subr.bf16.mxu0 0
      %1315 = vmatpush1.bf16.msra.mxu0 0
      %1316 = vmatprep.mubr.bf16.mxu0 0
      %1317 = vmatmul.mubr.bf16.gmra.mrb[0].mxu0 %v1215
      %v1318 = vpop.f32.mrb[0].mxu0
      %v1319 = vadd.f32 0.0, %v1318
      %v1320 = vpop.f32.mrb[0].mxu0
      %v1321 = vpop.f32.mrb[0].mxu0
      %v1322 = vadd.f32 0.0, %v1321
      %v1323 = vpop.f32.mrb[0].mxu0
      %1324 = vmatprep.mubr.bf16.mxu0 0
      %1325 = vmatmul.mubr.bf16.gmra.mrb[0].mxu0 %v1216
      %v1326 = vpop.f32.mrb[0].mxu0
      %v1327 = vadd.f32 0.0, %v1326
      %v1328 = vpop.f32.mrb[0].mxu0
      %v1329 = vpop.f32.mrb[0].mxu0
      %v1330 = vadd.f32 0.0, %v1329
      %v1331 = vpop.f32.mrb[0].mxu0
      %1332 = vmatprep.mubr.bf16.mxu0 0
      %1333 = vmatmul.mubr.bf16.gmra.mrb[0].mxu0 %v1217
      %v1334 = vpop.f32.mrb[0].mxu0
      %v1335 = vadd.f32 0.0, %v1334
      %v1336 = vpop.f32.mrb[0].mxu0
      %v1337 = vpop.f32.mrb[0].mxu0
      %v1338 = vadd.f32 0.0, %v1337
      %v1339 = vpop.f32.mrb[0].mxu0
      %1340 = vmatprep.mubr.bf16.mxu0 0
      %1341 = vmatmul.mubr.bf16.gmra.mrb[0].mxu0 %v1218
      %v1342 = vpop.f32.mrb[0].mxu0
      %v1343 = vadd.f32 0.0, %v1342
      %v1344 = vpop.f32.mrb[0].mxu0
      %v1345 = vpop.f32.mrb[0].mxu0
      %v1346 = vadd.f32 0.0, %v1345
      %v1347 = vpop.f32.mrb[0].mxu0
      %1348 = vdwg.mxu0
      %v1349 = vadd.f32 %v1198, %v1319
      %v1350 = vadd.f32 %v1199, %v1322
      %v1351 = vadd.f32 %v1200, %v1327
      %v1352 = vadd.f32 %v1201, %v1330
      %v1353 = vadd.f32 %v1202, %v1335
      %v1354 = vadd.f32 %v1203, %v1338
      %v1355 = vadd.f32 %v1204, %v1343
      %v1356 = vadd.f32 %v1205, %v1346
      %s1357 = scalar_lea.vmem %s308, 160
      %v1358 = vld [vmem:[%s1357] sm:$0xff]
      %v1359 = vld [vmem:[%s1357 + $0x10] sm:$0xff]
      %v1360 = vld [vmem:[%s1357 + $0x20] sm:$0xff]
      %v1361 = vld [vmem:[%s1357 + $0x30] sm:$0xff]
      %v1362 = vld [vmem:[%s1357 + $0x40] sm:$0xff]
      %v1363 = vld [vmem:[%s1357 + $0x50] sm:$0xff]
      %v1364 = vld [vmem:[%s1357 + $0x60] sm:$0xff]
      %v1365 = vld [vmem:[%s1357 + $0x70] sm:$0xff]
      %v1366 = vpack.c.bf16 %v1359, %v1358
      %v1367 = vpack.c.bf16 %v1361, %v1360
      %v1368 = vpack.c.bf16 %v1363, %v1362
      %v1369 = vpack.c.bf16 %v1365, %v1364
      %s1370 = scalar_lea.vmem %s1, 448
      %v1371 = vld [vmem:[%s1370] sm:$0xf]
      %v1372 = vld [vmem:[%s1370 + $0x4] sm:$0xf]
      %v1373 = vld [vmem:[%s1370 + $0x8] sm:$0xf]
      %v1374 = vld [vmem:[%s1370 + $0xc] sm:$0xf]
      %v1375 = vld [vmem:[%s1370 + $0x10] sm:$0xf]
      %v1376 = vld [vmem:[%s1370 + $0x14] sm:$0xf]
      %v1377 = vld [vmem:[%s1370 + $0x18] sm:$0xf]
      %v1378 = vld [vmem:[%s1370 + $0x1c] sm:$0xf]
      %v1379 = vld [vmem:[%s1370 + $0x20] sm:$0xf]
      %v1380 = vld [vmem:[%s1370 + $0x24] sm:$0xf]
      %v1381 = vld [vmem:[%s1370 + $0x28] sm:$0xf]
      %v1382 = vld [vmem:[%s1370 + $0x2c] sm:$0xf]
      %v1383 = vld [vmem:[%s1370 + $0x30] sm:$0xf]
      %v1384 = vld [vmem:[%s1370 + $0x34] sm:$0xf]
      %v1385 = vld [vmem:[%s1370 + $0x38] sm:$0xf]
      %v1386 = vld [vmem:[%s1370 + $0x3c] sm:$0xf]
      %v1403 = vunpack.c.l.b16 %v1371
      %v1404 = vunpack.c.l.b16 %v1372
      %v1405 = vunpack.c.l.b16 %v1373
      %v1406 = vunpack.c.l.b16 %v1374
      %v1407 = vunpack.c.l.b16 %v1375
      %v1408 = vunpack.c.l.b16 %v1376
      %v1409 = vunpack.c.l.b16 %v1377
      %v1410 = vunpack.c.l.b16 %v1378
      %v1411 = vunpack.c.l.b16 %v1379
      %v1412 = vunpack.c.l.b16 %v1380
      %v1413 = vunpack.c.l.b16 %v1381
      %v1414 = vunpack.c.l.b16 %v1382
      %v1415 = vunpack.c.l.b16 %v1383
      %v1416 = vunpack.c.l.b16 %v1384
      %v1417 = vunpack.c.l.b16 %v1385
      %v1418 = vunpack.c.l.b16 %v1386
      %v1419 = vpack.c.b16 %v1404, %v1403
      %v1420 = vpack.c.b16 %v1406, %v1405
      %v1421 = vpack.c.b16 %v1408, %v1407
      %v1422 = vpack.c.b16 %v1410, %v1409
      %v1423 = vpack.c.b16 %v1412, %v1411
      %v1424 = vpack.c.b16 %v1414, %v1413
      %v1425 = vpack.c.b16 %v1416, %v1415
      %v1426 = vpack.c.b16 %v1418, %v1417
      %1435 = vmatprep.subr.bf16.mxu0 0
      %1436 = vmatpush1.bf16.msra.mxu0 %v1419
      %1437 = vmatprep.subr.bf16.mxu0 0
      %1438 = vmatpush1.bf16.msra.mxu0 %v1420
      %1439 = vmatprep.subr.bf16.mxu0 0
      %1440 = vmatpush1.bf16.msra.mxu0 %v1421
      %1441 = vmatprep.subr.bf16.mxu0 0
      %1442 = vmatpush1.bf16.msra.mxu0 %v1422
      %1443 = vmatprep.subr.bf16.mxu0 0
      %1444 = vmatpush1.bf16.msra.mxu0 %v1423
      %1445 = vmatprep.subr.bf16.mxu0 0
      %1446 = vmatpush1.bf16.msra.mxu0 %v1424
      %1447 = vmatprep.subr.bf16.mxu0 0
      %1448 = vmatpush1.bf16.msra.mxu0 %v1425
      %1449 = vmatprep.subr.bf16.mxu0 0
      %1450 = vmatpush1.bf16.msra.mxu0 %v1426
      %1451 = vmatprep.subr.bf16.mxu0 0
      %1452 = vmatpush1.bf16.msra.mxu0 0
      %1453 = vmatprep.subr.bf16.mxu0 0
      %1454 = vmatpush1.bf16.msra.mxu0 0
      %1455 = vmatprep.subr.bf16.mxu0 0
      %1456 = vmatpush1.bf16.msra.mxu0 0
      %1457 = vmatprep.subr.bf16.mxu0 0
      %1458 = vmatpush1.bf16.msra.mxu0 0
      %1459 = vmatprep.subr.bf16.mxu0 0
      %1460 = vmatpush1.bf16.msra.mxu0 0
      %1461 = vmatprep.subr.bf16.mxu0 0
      %1462 = vmatpush1.bf16.msra.mxu0 0
      %1463 = vmatprep.subr.bf16.mxu0 0
      %1464 = vmatpush1.bf16.msra.mxu0 0
      %1465 = vmatprep.subr.bf16.mxu0 0
      %1466 = vmatpush1.bf16.msra.mxu0 0
      %1467 = vmatprep.mubr.bf16.mxu0 0
      %1468 = vmatmul.mubr.bf16.gmra.mrb[0].mxu0 %v1366
      %v1469 = vpop.f32.mrb[0].mxu0
      %v1470 = vadd.f32 0.0, %v1469
      %v1471 = vpop.f32.mrb[0].mxu0
      %v1472 = vpop.f32.mrb[0].mxu0
      %v1473 = vadd.f32 0.0, %v1472
      %v1474 = vpop.f32.mrb[0].mxu0
      %1475 = vmatprep.mubr.bf16.mxu0 0
      %1476 = vmatmul.mubr.bf16.gmra.mrb[0].mxu0 %v1367
      %v1477 = vpop.f32.mrb[0].mxu0
      %v1478 = vadd.f32 0.0, %v1477
      %v1479 = vpop.f32.mrb[0].mxu0
      %v1480 = vpop.f32.mrb[0].mxu0
      %v1481 = vadd.f32 0.0, %v1480
      %v1482 = vpop.f32.mrb[0].mxu0
      %1483 = vmatprep.mubr.bf16.mxu0 0
      %1484 = vmatmul.mubr.bf16.gmra.mrb[0].mxu0 %v1368
      %v1485 = vpop.f32.mrb[0].mxu0
      %v1486 = vadd.f32 0.0, %v1485
      %v1487 = vpop.f32.mrb[0].mxu0
      %v1488 = vpop.f32.mrb[0].mxu0
      %v1489 = vadd.f32 0.0, %v1488
      %v1490 = vpop.f32.mrb[0].mxu0
      %1491 = vmatprep.mubr.bf16.mxu0 0
      %1492 = vmatmul.mubr.bf16.gmra.mrb[0].mxu0 %v1369
      %v1493 = vpop.f32.mrb[0].mxu0
      %v1494 = vadd.f32 0.0, %v1493
      %v1495 = vpop.f32.mrb[0].mxu0
      %v1496 = vpop.f32.mrb[0].mxu0
      %v1497 = vadd.f32 0.0, %v1496
      %v1498 = vpop.f32.mrb[0].mxu0
      %1499 = vdwg.mxu0
      %v1500 = vadd.f32 %v1349, %v1470
      %v1501 = vadd.f32 %v1350, %v1473
      %v1502 = vadd.f32 %v1351, %v1478
      %v1503 = vadd.f32 %v1352, %v1481
      %v1504 = vadd.f32 %v1353, %v1486
      %v1505 = vadd.f32 %v1354, %v1489
      %v1506 = vadd.f32 %v1355, %v1494
      %v1507 = vadd.f32 %v1356, %v1497
      %v1508 = vld [vmem:[%s1206 + $0x1] sm:$0xff]
      %v1509 = vld [vmem:[%s1206 + $0x11] sm:$0xff]
      %v1510 = vld [vmem:[%s1206 + $0x21] sm:$0xff]
      %v1511 = vld [vmem:[%s1206 + $0x31] sm:$0xff]
      %v1512 = vld [vmem:[%s1206 + $0x41] sm:$0xff]
      %v1513 = vld [vmem:[%s1206 + $0x51] sm:$0xff]
      %v1514 = vld [vmem:[%s1206 + $0x61] sm:$0xff]
      %v1515 = vld [vmem:[%s1206 + $0x71] sm:$0xff]
      %v1516 = vpack.c.bf16 %v1509, %v1508
      %v1517 = vpack.c.bf16 %v1511, %v1510
      %v1518 = vpack.c.bf16 %v1513, %v1512
      %v1519 = vpack.c.bf16 %v1515, %v1514
      %s1520 = scalar_lea.vmem %s1, 512
      %v1521 = vld [vmem:[%s1520] sm:$0xf]
      %v1522 = vld [vmem:[%s1520 + $0x4] sm:$0xf]
      %v1523 = vld [vmem:[%s1520 + $0x8] sm:$0xf]
      %v1524 = vld [vmem:[%s1520 + $0xc] sm:$0xf]
      %v1525 = vld [vmem:[%s1520 + $0x10] sm:$0xf]
      %v1526 = vld [vmem:[%s1520 + $0x14] sm:$0xf]
      %v1527 = vld [vmem:[%s1520 + $0x18] sm:$0xf]
      %v1528 = vld [vmem:[%s1520 + $0x1c] sm:$0xf]
      %v1529 = vld [vmem:[%s1520 + $0x20] sm:$0xf]
      %v1530 = vld [vmem:[%s1520 + $0x24] sm:$0xf]
      %v1531 = vld [vmem:[%s1520 + $0x28] sm:$0xf]
      %v1532 = vld [vmem:[%s1520 + $0x2c] sm:$0xf]
      %v1533 = vld [vmem:[%s1520 + $0x30] sm:$0xf]
      %v1534 = vld [vmem:[%s1520 + $0x34] sm:$0xf]
      %v1535 = vld [vmem:[%s1520 + $0x38] sm:$0xf]
      %v1536 = vld [vmem:[%s1520 + $0x3c] sm:$0xf]
      %v1553 = vunpack.c.l.b16 %v1521
      %v1554 = vunpack.c.l.b16 %v1522
      %v1555 = vunpack.c.l.b16 %v1523
      %v1556 = vunpack.c.l.b16 %v1524
      %v1557 = vunpack.c.l.b16 %v1525
      %v1558 = vunpack.c.l.b16 %v1526
      %v1559 = vunpack.c.l.b16 %v1527
      %v1560 = vunpack.c.l.b16 %v1528
      %v1561 = vunpack.c.l.b16 %v1529
      %v1562 = vunpack.c.l.b16 %v1530
      %v1563 = vunpack.c.l.b16 %v1531
      %v1564 = vunpack.c.l.b16 %v1532
      %v1565 = vunpack.c.l.b16 %v1533
      %v1566 = vunpack.c.l.b16 %v1534
      %v1567 = vunpack.c.l.b16 %v1535
      %v1568 = vunpack.c.l.b16 %v1536
      %v1569 = vpack.c.b16 %v1554, %v1553
      %v1570 = vpack.c.b16 %v1556, %v1555
      %v1571 = vpack.c.b16 %v1558, %v1557
      %v1572 = vpack.c.b16 %v1560, %v1559
      %v1573 = vpack.c.b16 %v1562, %v1561
      %v1574 = vpack.c.b16 %v1564, %v1563
      %v1575 = vpack.c.b16 %v1566, %v1565
      %v1576 = vpack.c.b16 %v1568, %v1567
      %1585 = vmatprep.subr.bf16.mxu0 0
      %1586 = vmatpush1.bf16.msra.mxu0 %v1569
      %1587 = vmatprep.subr.bf16.mxu0 0
      %1588 = vmatpush1.bf16.msra.mxu0 %v1570
      %1589 = vmatprep.subr.bf16.mxu0 0
      %1590 = vmatpush1.bf16.msra.mxu0 %v1571
      %1591 = vmatprep.subr.bf16.mxu0 0
      %1592 = vmatpush1.bf16.msra.mxu0 %v1572
      %1593 = vmatprep.subr.bf16.mxu0 0
      %1594 = vmatpush1.bf16.msra.mxu0 %v1573
      %1595 = vmatprep.subr.bf16.mxu0 0
      %1596 = vmatpush1.bf16.msra.mxu0 %v1574
      %1597 = vmatprep.subr.bf16.mxu0 0
      %1598 = vmatpush1.bf16.msra.mxu0 %v1575
      %1599 = vmatprep.subr.bf16.mxu0 0
      %1600 = vmatpush1.bf16.msra.mxu0 %v1576
      %1601 = vmatprep.subr.bf16.mxu0 0
      %1602 = vmatpush1.bf16.msra.mxu0 0
      %1603 = vmatprep.subr.bf16.mxu0 0
      %1604 = vmatpush1.bf16.msra.mxu0 0
      %1605 = vmatprep.subr.bf16.mxu0 0
      %1606 = vmatpush1.bf16.msra.mxu0 0
      %1607 = vmatprep.subr.bf16.mxu0 0
      %1608 = vmatpush1.bf16.msra.mxu0 0
      %1609 = vmatprep.subr.bf16.mxu0 0
      %1610 = vmatpush1.bf16.msra.mxu0 0
      %1611 = vmatprep.subr.bf16.mxu0 0
      %1612 = vmatpush1.bf16.msra.mxu0 0
      %1613 = vmatprep.subr.bf16.mxu0 0
      %1614 = vmatpush1.bf16.msra.mxu0 0
      %1615 = vmatprep.subr.bf16.mxu0 0
      %1616 = vmatpush1.bf16.msra.mxu0 0
      %1617 = vmatprep.mubr.bf16.mxu0 0
      %1618 = vmatmul.mubr.bf16.gmra.mrb[0].mxu0 %v1516
      %v1619 = vpop.f32.mrb[0].mxu0
      %v1620 = vadd.f32 0.0, %v1619
      %v1621 = vpop.f32.mrb[0].mxu0
      %v1622 = vpop.f32.mrb[0].mxu0
      %v1623 = vadd.f32 0.0, %v1622
      %v1624 = vpop.f32.mrb[0].mxu0
      %1625 = vmatprep.mubr.bf16.mxu0 0
      %1626 = vmatmul.mubr.bf16.gmra.mrb[0].mxu0 %v1517
      %v1627 = vpop.f32.mrb[0].mxu0
      %v1628 = vadd.f32 0.0, %v1627
      %v1629 = vpop.f32.mrb[0].mxu0
      %v1630 = vpop.f32.mrb[0].mxu0
      %v1631 = vadd.f32 0.0, %v1630
      %v1632 = vpop.f32.mrb[0].mxu0
      %1633 = vmatprep.mubr.bf16.mxu0 0
      %1634 = vmatmul.mubr.bf16.gmra.mrb[0].mxu0 %v1518
      %v1635 = vpop.f32.mrb[0].mxu0
      %v1636 = vadd.f32 0.0, %v1635
      %v1637 = vpop.f32.mrb[0].mxu0
      %v1638 = vpop.f32.mrb[0].mxu0
      %v1639 = vadd.f32 0.0, %v1638
      %v1640 = vpop.f32.mrb[0].mxu0
      %1641 = vmatprep.mubr.bf16.mxu0 0
      %1642 = vmatmul.mubr.bf16.gmra.mrb[0].mxu0 %v1519
      %v1643 = vpop.f32.mrb[0].mxu0
      %v1644 = vadd.f32 0.0, %v1643
      %v1645 = vpop.f32.mrb[0].mxu0
      %v1646 = vpop.f32.mrb[0].mxu0
      %v1647 = vadd.f32 0.0, %v1646
      %v1648 = vpop.f32.mrb[0].mxu0
      %1649 = vdwg.mxu0
      %v1650 = vadd.f32 %v1500, %v1620
      %v1651 = vadd.f32 %v1501, %v1623
      %v1652 = vadd.f32 %v1502, %v1628
      %v1653 = vadd.f32 %v1503, %v1631
      %v1654 = vadd.f32 %v1504, %v1636
      %v1655 = vadd.f32 %v1505, %v1639
      %v1656 = vadd.f32 %v1506, %v1644
      %v1657 = vadd.f32 %v1507, %v1647
      %v1658 = vld [vmem:[%s2] sm:$0x1]
      %v1660 = vlaneseq
      %v1661 = vshrl.u32 %v1660, 7
      %v1662 = vsub.s32 0, %v1661
      %v1663 = vrot.slane %v1658, %v1662
      %v1665 = vadd.f32 %v1650, %v1663
      %v1666 = vadd.f32 %v1651, %v1663
      %v1667 = vadd.f32 %v1652, %v1663
      %v1668 = vadd.f32 %v1653, %v1663
      %v1669 = vadd.f32 %v1654, %v1663
      %v1670 = vadd.f32 %v1655, %v1663
      %v1671 = vadd.f32 %v1656, %v1663
      %v1672 = vadd.f32 %v1657, %v1663
      %v1673 = vmax.f32 %v1665, 0.0
      %v1674 = vmax.f32 %v1666, 0.0
      %v1675 = vmax.f32 %v1667, 0.0
      %v1676 = vmax.f32 %v1668, 0.0
      %v1677 = vmax.f32 %v1669, 0.0
      %v1678 = vmax.f32 %v1670, 0.0
      %v1679 = vmax.f32 %v1671, 0.0
      %v1680 = vmax.f32 %v1672, 0.0
      %1681 = vst [vmem:[%s313] sm:$0xff] %v1673
      %1682 = vst [vmem:[%s313 + $0x8] sm:$0xff] %v1674
      %1683 = vst [vmem:[%s313 + $0x10] sm:$0xff] %v1675
      %1684 = vst [vmem:[%s313 + $0x18] sm:$0xff] %v1676
      %1685 = vst [vmem:[%s313 + $0x20] sm:$0xff] %v1677
      %1686 = vst [vmem:[%s313 + $0x28] sm:$0xff] %v1678
      %1687 = vst [vmem:[%s313 + $0x30] sm:$0xff] %v1679
      %1688 = vst [vmem:[%s313 + $0x38] sm:$0xff] %v1680
      %1689 = vst [vmem:[#allocation2] sm:$0xff] 0.0
      %1690 = vst [vmem:[#allocation2 + $0x8] sm:$0x3] 0.0
      %1691 = vst [vmem:[#allocation2 + $0x10] sm:$0xff] 0.0
      %1692 = vst [vmem:[#allocation2 + $0x18] sm:$0x3] 0.0
      %1693 = vst [vmem:[#allocation2 + $0x20] sm:$0xff] 0.0
      %1694 = vst [vmem:[#allocation2 + $0x28] sm:$0x3] 0.0
      %1695 = vst [vmem:[#allocation2 + $0x30] sm:$0xff] 0.0
      %1696 = vst [vmem:[#allocation2 + $0x38] sm:$0x3] 0.0
      %1697 = vst [vmem:[#allocation2 + $0x40] sm:$0xff] 0.0
      %1698 = vst [vmem:[#allocation2 + $0x48] sm:$0x3] 0.0
      %1699 = vst [vmem:[#allocation2 + $0x50] sm:$0xff] 0.0
      %1700 = vst [vmem:[#allocation2 + $0x58] sm:$0x3] 0.0
      %1701 = vst [vmem:[#allocation2 + $0x60] sm:$0xff] 0.0
      %1702 = vst [vmem:[#allocation2 + $0x68] sm:$0x3] 0.0
      %1703 = vst [vmem:[#allocation2 + $0x70] sm:$0xff] 0.0
      %1704 = vst [vmem:[#allocation2 + $0x78] sm:$0x3] 0.0
      %1705 = vst [vmem:[#allocation2 + $0x80] sm:$0xff] 0.0
      %1706 = vst [vmem:[#allocation2 + $0x88] sm:$0x3] 0.0
      %1707 = vst [vmem:[#allocation2 + $0x90] sm:$0xff] 0.0
      %1708 = vst [vmem:[#allocation2 + $0x98] sm:$0x3] 0.0
      %s1709 = scalar_lea.vmem [#allocation2], 16
      %1710 = vst [vmem:[%s1709 + $0x1] sm:$0xff] %v1673
      %1711 = vst [vmem:[%s1709 + $0x11] sm:$0xff] %v1674
      %1712 = vst [vmem:[%s1709 + $0x21] sm:$0xff] %v1675
      %1713 = vst [vmem:[%s1709 + $0x31] sm:$0xff] %v1676
      %1714 = vst [vmem:[%s1709 + $0x41] sm:$0xff] %v1677
      %1715 = vst [vmem:[%s1709 + $0x51] sm:$0xff] %v1678
      %1716 = vst [vmem:[%s1709 + $0x61] sm:$0xff] %v1679
      %1717 = vst [vmem:[%s1709 + $0x71] sm:$0xff] %v1680
      %v1718 = vld [vmem:[#allocation2] sm:$0xff]
      %v1719 = vld [vmem:[#allocation2 + $0x10] sm:$0xff]
      %v1720 = vld [vmem:[#allocation2 + $0x20] sm:$0xff]
      %v1721 = vld [vmem:[#allocation2 + $0x30] sm:$0xff]
      %v1722 = vld [vmem:[#allocation2 + $0x40] sm:$0xff]
      %v1723 = vld [vmem:[#allocation2 + $0x50] sm:$0xff]
      %v1724 = vld [vmem:[#allocation2 + $0x60] sm:$0xff]
      %v1725 = vld [vmem:[#allocation2 + $0x70] sm:$0xff]
      %v1726 = vpack.c.bf16 %v1719, %v1718
      %v1727 = vpack.c.bf16 %v1721, %v1720
      %v1728 = vpack.c.bf16 %v1723, %v1722
      %v1729 = vpack.c.bf16 %v1725, %v1724
      %v1730 = vld [vmem:[%s3] sm:$0xf]
      %v1731 = vld [vmem:[%s3 + $0x4] sm:$0xf]
      %v1732 = vld [vmem:[%s3 + $0x8] sm:$0xf]
      %v1733 = vld [vmem:[%s3 + $0xc] sm:$0xf]
      %v1734 = vld [vmem:[%s3 + $0x10] sm:$0xf]
      %v1735 = vld [vmem:[%s3 + $0x14] sm:$0xf]
      %v1736 = vld [vmem:[%s3 + $0x18] sm:$0xf]
      %v1737 = vld [vmem:[%s3 + $0x1c] sm:$0xf]
      %v1738 = vld [vmem:[%s3 + $0x20] sm:$0xf]
      %v1739 = vld [vmem:[%s3 + $0x24] sm:$0xf]
      %v1740 = vld [vmem:[%s3 + $0x28] sm:$0xf]
      %v1741 = vld [vmem:[%s3 + $0x2c] sm:$0xf]
      %v1742 = vld [vmem:[%s3 + $0x30] sm:$0xf]
      %v1743 = vld [vmem:[%s3 + $0x34] sm:$0xf]
      %v1744 = vld [vmem:[%s3 + $0x38] sm:$0xf]
      %v1745 = vld [vmem:[%s3 + $0x3c] sm:$0xf]
      %v1746 = vld [vmem:[#allocation2 + $0x1] sm:$0xff]
      %v1747 = vld [vmem:[#allocation2 + $0x11] sm:$0xff]
      %v1748 = vld [vmem:[#allocation2 + $0x21] sm:$0xff]
      %v1749 = vld [vmem:[#allocation2 + $0x31] sm:$0xff]
      %v1750 = vld [vmem:[#allocation2 + $0x41] sm:$0xff]
      %v1751 = vld [vmem:[#allocation2 + $0x51] sm:$0xff]
      %v1752 = vld [vmem:[#allocation2 + $0x61] sm:$0xff]
      %v1753 = vld [vmem:[#allocation2 + $0x71] sm:$0xff]
      %v1754 = vpack.c.bf16 %v1747, %v1746
      %v1755 = vpack.c.bf16 %v1749, %v1748
      %v1756 = vpack.c.bf16 %v1751, %v1750
      %v1757 = vpack.c.bf16 %v1753, %v1752
      %s1758 = scalar_lea.vmem %s3, 64
      %v1759 = vld [vmem:[%s1758] sm:$0xf]
      %v1760 = vld [vmem:[%s1758 + $0x4] sm:$0xf]
      %v1761 = vld [vmem:[%s1758 + $0x8] sm:$0xf]
      %v1762 = vld [vmem:[%s1758 + $0xc] sm:$0xf]
      %v1763 = vld [vmem:[%s1758 + $0x10] sm:$0xf]
      %v1764 = vld [vmem:[%s1758 + $0x14] sm:$0xf]
      %v1765 = vld [vmem:[%s1758 + $0x18] sm:$0xf]
      %v1766 = vld [vmem:[%s1758 + $0x1c] sm:$0xf]
      %v1767 = vld [vmem:[%s1758 + $0x20] sm:$0xf]
      %v1768 = vld [vmem:[%s1758 + $0x24] sm:$0xf]
      %v1769 = vld [vmem:[%s1758 + $0x28] sm:$0xf]
      %v1770 = vld [vmem:[%s1758 + $0x2c] sm:$0xf]
      %v1771 = vld [vmem:[%s1758 + $0x30] sm:$0xf]
      %v1772 = vld [vmem:[%s1758 + $0x34] sm:$0xf]
      %v1773 = vld [vmem:[%s1758 + $0x38] sm:$0xf]
      %v1774 = vld [vmem:[%s1758 + $0x3c] sm:$0xf]
      %v1791 = vunpack.c.l.b16 %v1759
      %v1792 = vunpack.c.l.b16 %v1760
      %v1793 = vunpack.c.l.b16 %v1761
      %v1794 = vunpack.c.l.b16 %v1762
      %v1795 = vunpack.c.l.b16 %v1763
      %v1796 = vunpack.c.l.b16 %v1764
      %v1797 = vunpack.c.l.b16 %v1765
      %v1798 = vunpack.c.l.b16 %v1766
      %v1799 = vunpack.c.l.b16 %v1767
      %v1800 = vunpack.c.l.b16 %v1768
      %v1801 = vunpack.c.l.b16 %v1769
      %v1802 = vunpack.c.l.b16 %v1770
      %v1803 = vunpack.c.l.b16 %v1771
      %v1804 = vunpack.c.l.b16 %v1772
      %v1805 = vunpack.c.l.b16 %v1773
      %v1806 = vunpack.c.l.b16 %v1774
      %v1807 = vpack.c.b16 %v1792, %v1791
      %v1808 = vpack.c.b16 %v1794, %v1793
      %v1809 = vpack.c.b16 %v1796, %v1795
      %v1810 = vpack.c.b16 %v1798, %v1797
      %v1811 = vpack.c.b16 %v1800, %v1799
      %v1812 = vpack.c.b16 %v1802, %v1801
      %v1813 = vpack.c.b16 %v1804, %v1803
      %v1814 = vpack.c.b16 %v1806, %v1805
      %1823 = vmatprep.subr.bf16.mxu0 0
      %1824 = vmatpush1.bf16.msra.mxu0 %v1807
      %1825 = vmatprep.subr.bf16.mxu0 0
      %1826 = vmatpush1.bf16.msra.mxu0 %v1808
      %1827 = vmatprep.subr.bf16.mxu0 0
      %1828 = vmatpush1.bf16.msra.mxu0 %v1809
      %1829 = vmatprep.subr.bf16.mxu0 0
      %1830 = vmatpush1.bf16.msra.mxu0 %v1810
      %1831 = vmatprep.subr.bf16.mxu0 0
      %1832 = vmatpush1.bf16.msra.mxu0 %v1811
      %1833 = vmatprep.subr.bf16.mxu0 0
      %1834 = vmatpush1.bf16.msra.mxu0 %v1812
      %1835 = vmatprep.subr.bf16.mxu0 0
      %1836 = vmatpush1.bf16.msra.mxu0 %v1813
      %1837 = vmatprep.subr.bf16.mxu0 0
      %1838 = vmatpush1.bf16.msra.mxu0 %v1814
      %1839 = vmatprep.subr.bf16.mxu0 0
      %1840 = vmatpush1.bf16.msra.mxu0 0
      %1841 = vmatprep.subr.bf16.mxu0 0
      %1842 = vmatpush1.bf16.msra.mxu0 0
      %1843 = vmatprep.subr.bf16.mxu0 0
      %1844 = vmatpush1.bf16.msra.mxu0 0
      %1845 = vmatprep.subr.bf16.mxu0 0
      %1846 = vmatpush1.bf16.msra.mxu0 0
      %1847 = vmatprep.subr.bf16.mxu0 0
      %1848 = vmatpush1.bf16.msra.mxu0 0
      %1849 = vmatprep.subr.bf16.mxu0 0
      %1850 = vmatpush1.bf16.msra.mxu0 0
      %1851 = vmatprep.subr.bf16.mxu0 0
      %1852 = vmatpush1.bf16.msra.mxu0 0
      %1853 = vmatprep.subr.bf16.mxu0 0
      %1854 = vmatpush1.bf16.msra.mxu0 0
      %1855 = vmatprep.mubr.bf16.mxu0 0
      %1856 = vmatmul.mubr.bf16.gmra.mrb[0].mxu0 %v1754
      %v1857 = vpop.f32.mrb[0].mxu0
      %v1858 = vadd.f32 0.0, %v1857
      %v1859 = vpop.f32.mrb[0].mxu0
      %v1860 = vpop.f32.mrb[0].mxu0
      %v1861 = vadd.f32 0.0, %v1860
      %v1862 = vpop.f32.mrb[0].mxu0
      %1863 = vmatprep.mubr.bf16.mxu0 0
      %1864 = vmatmul.mubr.bf16.gmra.mrb[0].mxu0 %v1755
      %v1865 = vpop.f32.mrb[0].mxu0
      %v1866 = vadd.f32 0.0, %v1865
      %v1867 = vpop.f32.mrb[0].mxu0
      %v1868 = vpop.f32.mrb[0].mxu0
      %v1869 = vadd.f32 0.0, %v1868
      %v1870 = vpop.f32.mrb[0].mxu0
      %1871 = vmatprep.mubr.bf16.mxu0 0
      %1872 = vmatmul.mubr.bf16.gmra.mrb[0].mxu0 %v1756
      %v1873 = vpop.f32.mrb[0].mxu0
      %v1874 = vadd.f32 0.0, %v1873
      %v1875 = vpop.f32.mrb[0].mxu0
      %v1876 = vpop.f32.mrb[0].mxu0
      %v1877 = vadd.f32 0.0, %v1876
      %v1878 = vpop.f32.mrb[0].mxu0
      %1879 = vmatprep.mubr.bf16.mxu0 0
      %1880 = vmatmul.mubr.bf16.gmra.mrb[0].mxu0 %v1757
      %v1881 = vpop.f32.mrb[0].mxu0
      %v1882 = vadd.f32 0.0, %v1881
      %v1883 = vpop.f32.mrb[0].mxu0
      %v1884 = vpop.f32.mrb[0].mxu0
      %v1885 = vadd.f32 0.0, %v1884
      %v1886 = vpop.f32.mrb[0].mxu0
      %1887 = vdwg.mxu0
      %v1904 = vunpack.c.l.b16 %v1730
      %v1905 = vunpack.c.l.b16 %v1731
      %v1906 = vunpack.c.l.b16 %v1732
      %v1907 = vunpack.c.l.b16 %v1733
      %v1908 = vunpack.c.l.b16 %v1734
      %v1909 = vunpack.c.l.b16 %v1735
      %v1910 = vunpack.c.l.b16 %v1736
      %v1911 = vunpack.c.l.b16 %v1737
      %v1912 = vunpack.c.l.b16 %v1738
      %v1913 = vunpack.c.l.b16 %v1739
      %v1914 = vunpack.c.l.b16 %v1740
      %v1915 = vunpack.c.l.b16 %v1741
      %v1916 = vunpack.c.l.b16 %v1742
      %v1917 = vunpack.c.l.b16 %v1743
      %v1918 = vunpack.c.l.b16 %v1744
      %v1919 = vunpack.c.l.b16 %v1745
      %v1920 = vpack.c.b16 %v1905, %v1904
      %v1921 = vpack.c.b16 %v1907, %v1906
      %v1922 = vpack.c.b16 %v1909, %v1908
      %v1923 = vpack.c.b16 %v1911, %v1910
      %v1924 = vpack.c.b16 %v1913, %v1912
      %v1925 = vpack.c.b16 %v1915, %v1914
      %v1926 = vpack.c.b16 %v1917, %v1916
      %v1927 = vpack.c.b16 %v1919, %v1918
      %1936 = vmatprep.subr.bf16.mxu0 0
      %1937 = vmatpush1.bf16.msra.mxu0 %v1920
      %1938 = vmatprep.subr.bf16.mxu0 0
      %1939 = vmatpush1.bf16.msra.mxu0 %v1921
      %1940 = vmatprep.subr.bf16.mxu0 0
      %1941 = vmatpush1.bf16.msra.mxu0 %v1922
      %1942 = vmatprep.subr.bf16.mxu0 0
      %1943 = vmatpush1.bf16.msra.mxu0 %v1923
      %1944 = vmatprep.subr.bf16.mxu0 0
      %1945 = vmatpush1.bf16.msra.mxu0 %v1924
      %1946 = vmatprep.subr.bf16.mxu0 0
      %1947 = vmatpush1.bf16.msra.mxu0 %v1925
      %1948 = vmatprep.subr.bf16.mxu0 0
      %1949 = vmatpush1.bf16.msra.mxu0 %v1926
      %1950 = vmatprep.subr.bf16.mxu0 0
      %1951 = vmatpush1.bf16.msra.mxu0 %v1927
      %1952 = vmatprep.subr.bf16.mxu0 0
      %1953 = vmatpush1.bf16.msra.mxu0 0
      %1954 = vmatprep.subr.bf16.mxu0 0
      %1955 = vmatpush1.bf16.msra.mxu0 0
      %1956 = vmatprep.subr.bf16.mxu0 0
      %1957 = vmatpush1.bf16.msra.mxu0 0
      %1958 = vmatprep.subr.bf16.mxu0 0
      %1959 = vmatpush1.bf16.msra.mxu0 0
      %1960 = vmatprep.subr.bf16.mxu0 0
      %1961 = vmatpush1.bf16.msra.mxu0 0
      %1962 = vmatprep.subr.bf16.mxu0 0
      %1963 = vmatpush1.bf16.msra.mxu0 0
      %1964 = vmatprep.subr.bf16.mxu0 0
      %1965 = vmatpush1.bf16.msra.mxu0 0
      %1966 = vmatprep.subr.bf16.mxu0 0
      %1967 = vmatpush1.bf16.msra.mxu0 0
      %1968 = vmatprep.mubr.bf16.mxu0 0
      %1969 = vmatmul.mubr.bf16.gmra.mrb[0].mxu0 %v1726
      %v1970 = vpop.f32.mrb[0].mxu0
      %v1971 = vadd.f32 %v1858, %v1970
      %v1972 = vpop.f32.mrb[0].mxu0
      %v1973 = vpop.f32.mrb[0].mxu0
      %v1974 = vadd.f32 %v1861, %v1973
      %v1975 = vpop.f32.mrb[0].mxu0
      %1976 = vmatprep.mubr.bf16.mxu0 0
      %1977 = vmatmul.mubr.bf16.gmra.mrb[0].mxu0 %v1727
      %v1978 = vpop.f32.mrb[0].mxu0
      %v1979 = vadd.f32 %v1866, %v1978
      %v1980 = vpop.f32.mrb[0].mxu0
      %v1981 = vpop.f32.mrb[0].mxu0
      %v1982 = vadd.f32 %v1869, %v1981
      %v1983 = vpop.f32.mrb[0].mxu0
      %1984 = vmatprep.mubr.bf16.mxu0 0
      %1985 = vmatmul.mubr.bf16.gmra.mrb[0].mxu0 %v1728
      %v1986 = vpop.f32.mrb[0].mxu0
      %v1987 = vadd.f32 %v1874, %v1986
      %v1988 = vpop.f32.mrb[0].mxu0
      %v1989 = vpop.f32.mrb[0].mxu0
      %v1990 = vadd.f32 %v1877, %v1989
      %v1991 = vpop.f32.mrb[0].mxu0
      %1992 = vmatprep.mubr.bf16.mxu0 0
      %1993 = vmatmul.mubr.bf16.gmra.mrb[0].mxu0 %v1729
      %v1994 = vpop.f32.mrb[0].mxu0
      %v1995 = vadd.f32 %v1882, %v1994
      %v1996 = vpop.f32.mrb[0].mxu0
      %v1997 = vpop.f32.mrb[0].mxu0
      %v1998 = vadd.f32 %v1885, %v1997
      %v1999 = vpop.f32.mrb[0].mxu0
      %2000 = vdwg.mxu0
      %v2001 = vld [vmem:[#allocation2 + $0x2] sm:$0xff]
      %v2002 = vld [vmem:[#allocation2 + $0x12] sm:$0xff]
      %v2003 = vld [vmem:[#allocation2 + $0x22] sm:$0xff]
      %v2004 = vld [vmem:[#allocation2 + $0x32] sm:$0xff]
      %v2005 = vld [vmem:[#allocation2 + $0x42] sm:$0xff]
      %v2006 = vld [vmem:[#allocation2 + $0x52] sm:$0xff]
      %v2007 = vld [vmem:[#allocation2 + $0x62] sm:$0xff]
      %v2008 = vld [vmem:[#allocation2 + $0x72] sm:$0xff]
      %v2009 = vpack.c.bf16 %v2002, %v2001
      %v2010 = vpack.c.bf16 %v2004, %v2003
      %v2011 = vpack.c.bf16 %v2006, %v2005
      %v2012 = vpack.c.bf16 %v2008, %v2007
      %s2013 = scalar_lea.vmem %s3, 128
      %v2014 = vld [vmem:[%s2013] sm:$0xf]
      %v2015 = vld [vmem:[%s2013 + $0x4] sm:$0xf]
      %v2016 = vld [vmem:[%s2013 + $0x8] sm:$0xf]
      %v2017 = vld [vmem:[%s2013 + $0xc] sm:$0xf]
      %v2018 = vld [vmem:[%s2013 + $0x10] sm:$0xf]
      %v2019 = vld [vmem:[%s2013 + $0x14] sm:$0xf]
      %v2020 = vld [vmem:[%s2013 + $0x18] sm:$0xf]
      %v2021 = vld [vmem:[%s2013 + $0x1c] sm:$0xf]
      %v2022 = vld [vmem:[%s2013 + $0x20] sm:$0xf]
      %v2023 = vld [vmem:[%s2013 + $0x24] sm:$0xf]
      %v2024 = vld [vmem:[%s2013 + $0x28] sm:$0xf]
      %v2025 = vld [vmem:[%s2013 + $0x2c] sm:$0xf]
      %v2026 = vld [vmem:[%s2013 + $0x30] sm:$0xf]
      %v2027 = vld [vmem:[%s2013 + $0x34] sm:$0xf]
      %v2028 = vld [vmem:[%s2013 + $0x38] sm:$0xf]
      %v2029 = vld [vmem:[%s2013 + $0x3c] sm:$0xf]
      %v2046 = vunpack.c.l.b16 %v2014
      %v2047 = vunpack.c.l.b16 %v2015
      %v2048 = vunpack.c.l.b16 %v2016
      %v2049 = vunpack.c.l.b16 %v2017
      %v2050 = vunpack.c.l.b16 %v2018
      %v2051 = vunpack.c.l.b16 %v2019
      %v2052 = vunpack.c.l.b16 %v2020
      %v2053 = vunpack.c.l.b16 %v2021
      %v2054 = vunpack.c.l.b16 %v2022
      %v2055 = vunpack.c.l.b16 %v2023
      %v2056 = vunpack.c.l.b16 %v2024
      %v2057 = vunpack.c.l.b16 %v2025
      %v2058 = vunpack.c.l.b16 %v2026
      %v2059 = vunpack.c.l.b16 %v2027
      %v2060 = vunpack.c.l.b16 %v2028
      %v2061 = vunpack.c.l.b16 %v2029
      %v2062 = vpack.c.b16 %v2047, %v2046
      %v2063 = vpack.c.b16 %v2049, %v2048
      %v2064 = vpack.c.b16 %v2051, %v2050
      %v2065 = vpack.c.b16 %v2053, %v2052
      %v2066 = vpack.c.b16 %v2055, %v2054
      %v2067 = vpack.c.b16 %v2057, %v2056
      %v2068 = vpack.c.b16 %v2059, %v2058
      %v2069 = vpack.c.b16 %v2061, %v2060
      %2078 = vmatprep.subr.bf16.mxu0 0
      %2079 = vmatpush1.bf16.msra.mxu0 %v2062
      %2080 = vmatprep.subr.bf16.mxu0 0
      %2081 = vmatpush1.bf16.msra.mxu0 %v2063
      %2082 = vmatprep.subr.bf16.mxu0 0
      %2083 = vmatpush1.bf16.msra.mxu0 %v2064
      %2084 = vmatprep.subr.bf16.mxu0 0
      %2085 = vmatpush1.bf16.msra.mxu0 %v2065
      %2086 = vmatprep.subr.bf16.mxu0 0
      %2087 = vmatpush1.bf16.msra.mxu0 %v2066
      %2088 = vmatprep.subr.bf16.mxu0 0
      %2089 = vmatpush1.bf16.msra.mxu0 %v2067
      %2090 = vmatprep.subr.bf16.mxu0 0
      %2091 = vmatpush1.bf16.msra.mxu0 %v2068
      %2092 = vmatprep.subr.bf16.mxu0 0
      %2093 = vmatpush1.bf16.msra.mxu0 %v2069
      %2094 = vmatprep.subr.bf16.mxu0 0
      %2095 = vmatpush1.bf16.msra.mxu0 0
      %2096 = vmatprep.subr.bf16.mxu0 0
      %2097 = vmatpush1.bf16.msra.mxu0 0
      %2098 = vmatprep.subr.bf16.mxu0 0
      %2099 = vmatpush1.bf16.msra.mxu0 0
      %2100 = vmatprep.subr.bf16.mxu0 0
      %2101 = vmatpush1.bf16.msra.mxu0 0
      %2102 = vmatprep.subr.bf16.mxu0 0
      %2103 = vmatpush1.bf16.msra.mxu0 0
      %2104 = vmatprep.subr.bf16.mxu0 0
      %2105 = vmatpush1.bf16.msra.mxu0 0
      %2106 = vmatprep.subr.bf16.mxu0 0
      %2107 = vmatpush1.bf16.msra.mxu0 0
      %2108 = vmatprep.subr.bf16.mxu0 0
      %2109 = vmatpush1.bf16.msra.mxu0 0
      %2110 = vmatprep.mubr.bf16.mxu0 0
      %2111 = vmatmul.mubr.bf16.gmra.mrb[0].mxu0 %v2009
      %v2112 = vpop.f32.mrb[0].mxu0
      %v2113 = vadd.f32 0.0, %v2112
      %v2114 = vpop.f32.mrb[0].mxu0
      %v2115 = vpop.f32.mrb[0].mxu0
      %v2116 = vadd.f32 0.0, %v2115
      %v2117 = vpop.f32.mrb[0].mxu0
      %2118 = vmatprep.mubr.bf16.mxu0 0
      %2119 = vmatmul.mubr.bf16.gmra.mrb[0].mxu0 %v2010
      %v2120 = vpop.f32.mrb[0].mxu0
      %v2121 = vadd.f32 0.0, %v2120
      %v2122 = vpop.f32.mrb[0].mxu0
      %v2123 = vpop.f32.mrb[0].mxu0
      %v2124 = vadd.f32 0.0, %v2123
      %v2125 = vpop.f32.mrb[0].mxu0
      %2126 = vmatprep.mubr.bf16.mxu0 0
      %2127 = vmatmul.mubr.bf16.gmra.mrb[0].mxu0 %v2011
      %v2128 = vpop.f32.mrb[0].mxu0
      %v2129 = vadd.f32 0.0, %v2128
      %v2130 = vpop.f32.mrb[0].mxu0
      %v2131 = vpop.f32.mrb[0].mxu0
      %v2132 = vadd.f32 0.0, %v2131
      %v2133 = vpop.f32.mrb[0].mxu0
      %2134 = vmatprep.mubr.bf16.mxu0 0
      %2135 = vmatmul.mubr.bf16.gmra.mrb[0].mxu0 %v2012
      %v2136 = vpop.f32.mrb[0].mxu0
      %v2137 = vadd.f32 0.0, %v2136
      %v2138 = vpop.f32.mrb[0].mxu0
      %v2139 = vpop.f32.mrb[0].mxu0
      %v2140 = vadd.f32 0.0, %v2139
      %v2141 = vpop.f32.mrb[0].mxu0
      %2142 = vdwg.mxu0
      %v2143 = vadd.f32 %v1971, %v2113
      %v2144 = vadd.f32 %v1974, %v2116
      %v2145 = vadd.f32 %v1979, %v2121
      %v2146 = vadd.f32 %v1982, %v2124
      %v2147 = vadd.f32 %v1987, %v2129
      %v2148 = vadd.f32 %v1990, %v2132
      %v2149 = vadd.f32 %v1995, %v2137
      %v2150 = vadd.f32 %v1998, %v2140
      %v2151 = vld [vmem:[%s1709] sm:$0xff]
      %v2152 = vld [vmem:[%s1709 + $0x10] sm:$0xff]
      %v2153 = vld [vmem:[%s1709 + $0x20] sm:$0xff]
      %v2154 = vld [vmem:[%s1709 + $0x30] sm:$0xff]
      %v2155 = vld [vmem:[%s1709 + $0x40] sm:$0xff]
      %v2156 = vld [vmem:[%s1709 + $0x50] sm:$0xff]
      %v2157 = vld [vmem:[%s1709 + $0x60] sm:$0xff]
      %v2158 = vld [vmem:[%s1709 + $0x70] sm:$0xff]
      %v2159 = vpack.c.bf16 %v2152, %v2151
      %v2160 = vpack.c.bf16 %v2154, %v2153
      %v2161 = vpack.c.bf16 %v2156, %v2155
      %v2162 = vpack.c.bf16 %v2158, %v2157
      %s2163 = scalar_lea.vmem %s3, 192
      %v2164 = vld [vmem:[%s2163] sm:$0xf]
      %v2165 = vld [vmem:[%s2163 + $0x4] sm:$0xf]
      %v2166 = vld [vmem:[%s2163 + $0x8] sm:$0xf]
      %v2167 = vld [vmem:[%s2163 + $0xc] sm:$0xf]
      %v2168 = vld [vmem:[%s2163 + $0x10] sm:$0xf]
      %v2169 = vld [vmem:[%s2163 + $0x14] sm:$0xf]
      %v2170 = vld [vmem:[%s2163 + $0x18] sm:$0xf]
      %v2171 = vld [vmem:[%s2163 + $0x1c] sm:$0xf]
      %v2172 = vld [vmem:[%s2163 + $0x20] sm:$0xf]
      %v2173 = vld [vmem:[%s2163 + $0x24] sm:$0xf]
      %v2174 = vld [vmem:[%s2163 + $0x28] sm:$0xf]
      %v2175 = vld [vmem:[%s2163 + $0x2c] sm:$0xf]
      %v2176 = vld [vmem:[%s2163 + $0x30] sm:$0xf]
      %v2177 = vld [vmem:[%s2163 + $0x34] sm:$0xf]
      %v2178 = vld [vmem:[%s2163 + $0x38] sm:$0xf]
      %v2179 = vld [vmem:[%s2163 + $0x3c] sm:$0xf]
      %v2196 = vunpack.c.l.b16 %v2164
      %v2197 = vunpack.c.l.b16 %v2165
      %v2198 = vunpack.c.l.b16 %v2166
      %v2199 = vunpack.c.l.b16 %v2167
      %v2200 = vunpack.c.l.b16 %v2168
      %v2201 = vunpack.c.l.b16 %v2169
      %v2202 = vunpack.c.l.b16 %v2170
      %v2203 = vunpack.c.l.b16 %v2171
      %v2204 = vunpack.c.l.b16 %v2172
      %v2205 = vunpack.c.l.b16 %v2173
      %v2206 = vunpack.c.l.b16 %v2174
      %v2207 = vunpack.c.l.b16 %v2175
      %v2208 = vunpack.c.l.b16 %v2176
      %v2209 = vunpack.c.l.b16 %v2177
      %v2210 = vunpack.c.l.b16 %v2178
      %v2211 = vunpack.c.l.b16 %v2179
      %v2212 = vpack.c.b16 %v2197, %v2196
      %v2213 = vpack.c.b16 %v2199, %v2198
      %v2214 = vpack.c.b16 %v2201, %v2200
      %v2215 = vpack.c.b16 %v2203, %v2202
      %v2216 = vpack.c.b16 %v2205, %v2204
      %v2217 = vpack.c.b16 %v2207, %v2206
      %v2218 = vpack.c.b16 %v2209, %v2208
      %v2219 = vpack.c.b16 %v2211, %v2210
      %2228 = vmatprep.subr.bf16.mxu0 0
      %2229 = vmatpush1.bf16.msra.mxu0 %v2212
      %2230 = vmatprep.subr.bf16.mxu0 0
      %2231 = vmatpush1.bf16.msra.mxu0 %v2213
      %2232 = vmatprep.subr.bf16.mxu0 0
      %2233 = vmatpush1.bf16.msra.mxu0 %v2214
      %2234 = vmatprep.subr.bf16.mxu0 0
      %2235 = vmatpush1.bf16.msra.mxu0 %v2215
      %2236 = vmatprep.subr.bf16.mxu0 0
      %2237 = vmatpush1.bf16.msra.mxu0 %v2216
      %2238 = vmatprep.subr.bf16.mxu0 0
      %2239 = vmatpush1.bf16.msra.mxu0 %v2217
      %2240 = vmatprep.subr.bf16.mxu0 0
      %2241 = vmatpush1.bf16.msra.mxu0 %v2218
      %2242 = vmatprep.subr.bf16.mxu0 0
      %2243 = vmatpush1.bf16.msra.mxu0 %v2219
      %2244 = vmatprep.subr.bf16.mxu0 0
      %2245 = vmatpush1.bf16.msra.mxu0 0
      %2246 = vmatprep.subr.bf16.mxu0 0
      %2247 = vmatpush1.bf16.msra.mxu0 0
      %2248 = vmatprep.subr.bf16.mxu0 0
      %2249 = vmatpush1.bf16.msra.mxu0 0
      %2250 = vmatprep.subr.bf16.mxu0 0
      %2251 = vmatpush1.bf16.msra.mxu0 0
      %2252 = vmatprep.subr.bf16.mxu0 0
      %2253 = vmatpush1.bf16.msra.mxu0 0
      %2254 = vmatprep.subr.bf16.mxu0 0
      %2255 = vmatpush1.bf16.msra.mxu0 0
      %2256 = vmatprep.subr.bf16.mxu0 0
      %2257 = vmatpush1.bf16.msra.mxu0 0
      %2258 = vmatprep.subr.bf16.mxu0 0
      %2259 = vmatpush1.bf16.msra.mxu0 0
      %2260 = vmatprep.mubr.bf16.mxu0 0
      %2261 = vmatmul.mubr.bf16.gmra.mrb[0].mxu0 %v2159
      %v2262 = vpop.f32.mrb[0].mxu0
      %v2263 = vadd.f32 0.0, %v2262
      %v2264 = vpop.f32.mrb[0].mxu0
      %v2265 = vpop.f32.mrb[0].mxu0
      %v2266 = vadd.f32 0.0, %v2265
      %v2267 = vpop.f32.mrb[0].mxu0
      %2268 = vmatprep.mubr.bf16.mxu0 0
      %2269 = vmatmul.mubr.bf16.gmra.mrb[0].mxu0 %v2160
      %v2270 = vpop.f32.mrb[0].mxu0
      %v2271 = vadd.f32 0.0, %v2270
      %v2272 = vpop.f32.mrb[0].mxu0
      %v2273 = vpop.f32.mrb[0].mxu0
      %v2274 = vadd.f32 0.0, %v2273
      %v2275 = vpop.f32.mrb[0].mxu0
      %2276 = vmatprep.mubr.bf16.mxu0 0
      %2277 = vmatmul.mubr.bf16.gmra.mrb[0].mxu0 %v2161
      %v2278 = vpop.f32.mrb[0].mxu0
      %v2279 = vadd.f32 0.0, %v2278
      %v2280 = vpop.f32.mrb[0].mxu0
      %v2281 = vpop.f32.mrb[0].mxu0
      %v2282 = vadd.f32 0.0, %v2281
      %v2283 = vpop.f32.mrb[0].mxu0
      %2284 = vmatprep.mubr.bf16.mxu0 0
      %2285 = vmatmul.mubr.bf16.gmra.mrb[0].mxu0 %v2162
      %v2286 = vpop.f32.mrb[0].mxu0
      %v2287 = vadd.f32 0.0, %v2286
      %v2288 = vpop.f32.mrb[0].mxu0
      %v2289 = vpop.f32.mrb[0].mxu0
      %v2290 = vadd.f32 0.0, %v2289
      %v2291 = vpop.f32.mrb[0].mxu0
      %2292 = vdwg.mxu0
      %v2293 = vadd.f32 %v2143, %v2263
      %v2294 = vadd.f32 %v2144, %v2266
      %v2295 = vadd.f32 %v2145, %v2271
      %v2296 = vadd.f32 %v2146, %v2274
      %v2297 = vadd.f32 %v2147, %v2279
      %v2298 = vadd.f32 %v2148, %v2282
      %v2299 = vadd.f32 %v2149, %v2287
      %v2300 = vadd.f32 %v2150, %v2290
      %v2301 = vld [vmem:[%s1709 + $0x1] sm:$0xff]
      %v2302 = vld [vmem:[%s1709 + $0x11] sm:$0xff]
      %v2303 = vld [vmem:[%s1709 + $0x21] sm:$0xff]
      %v2304 = vld [vmem:[%s1709 + $0x31] sm:$0xff]
      %v2305 = vld [vmem:[%s1709 + $0x41] sm:$0xff]
      %v2306 = vld [vmem:[%s1709 + $0x51] sm:$0xff]
      %v2307 = vld [vmem:[%s1709 + $0x61] sm:$0xff]
      %v2308 = vld [vmem:[%s1709 + $0x71] sm:$0xff]
      %v2309 = vpack.c.bf16 %v2302, %v2301
      %v2310 = vpack.c.bf16 %v2304, %v2303
      %v2311 = vpack.c.bf16 %v2306, %v2305
      %v2312 = vpack.c.bf16 %v2308, %v2307
      %s2313 = scalar_lea.vmem %s3, 256
      %v2314 = vld [vmem:[%s2313] sm:$0xf]
      %v2315 = vld [vmem:[%s2313 + $0x4] sm:$0xf]
      %v2316 = vld [vmem:[%s2313 + $0x8] sm:$0xf]
      %v2317 = vld [vmem:[%s2313 + $0xc] sm:$0xf]
      %v2318 = vld [vmem:[%s2313 + $0x10] sm:$0xf]
      %v2319 = vld [vmem:[%s2313 + $0x14] sm:$0xf]
      %v2320 = vld [vmem:[%s2313 + $0x18] sm:$0xf]
      %v2321 = vld [vmem:[%s2313 + $0x1c] sm:$0xf]
      %v2322 = vld [vmem:[%s2313 + $0x20] sm:$0xf]
      %v2323 = vld [vmem:[%s2313 + $0x24] sm:$0xf]
      %v2324 = vld [vmem:[%s2313 + $0x28] sm:$0xf]
      %v2325 = vld [vmem:[%s2313 + $0x2c] sm:$0xf]
      %v2326 = vld [vmem:[%s2313 + $0x30] sm:$0xf]
      %v2327 = vld [vmem:[%s2313 + $0x34] sm:$0xf]
      %v2328 = vld [vmem:[%s2313 + $0x38] sm:$0xf]
      %v2329 = vld [vmem:[%s2313 + $0x3c] sm:$0xf]
      %v2346 = vunpack.c.l.b16 %v2314
      %v2347 = vunpack.c.l.b16 %v2315
      %v2348 = vunpack.c.l.b16 %v2316
      %v2349 = vunpack.c.l.b16 %v2317
      %v2350 = vunpack.c.l.b16 %v2318
      %v2351 = vunpack.c.l.b16 %v2319
      %v2352 = vunpack.c.l.b16 %v2320
      %v2353 = vunpack.c.l.b16 %v2321
      %v2354 = vunpack.c.l.b16 %v2322
      %v2355 = vunpack.c.l.b16 %v2323
      %v2356 = vunpack.c.l.b16 %v2324
      %v2357 = vunpack.c.l.b16 %v2325
      %v2358 = vunpack.c.l.b16 %v2326
      %v2359 = vunpack.c.l.b16 %v2327
      %v2360 = vunpack.c.l.b16 %v2328
      %v2361 = vunpack.c.l.b16 %v2329
      %v2362 = vpack.c.b16 %v2347, %v2346
      %v2363 = vpack.c.b16 %v2349, %v2348
      %v2364 = vpack.c.b16 %v2351, %v2350
      %v2365 = vpack.c.b16 %v2353, %v2352
      %v2366 = vpack.c.b16 %v2355, %v2354
      %v2367 = vpack.c.b16 %v2357, %v2356
      %v2368 = vpack.c.b16 %v2359, %v2358
      %v2369 = vpack.c.b16 %v2361, %v2360
      %2378 = vmatprep.subr.bf16.mxu0 0
      %2379 = vmatpush1.bf16.msra.mxu0 %v2362
      %2380 = vmatprep.subr.bf16.mxu0 0
      %2381 = vmatpush1.bf16.msra.mxu0 %v2363
      %2382 = vmatprep.subr.bf16.mxu0 0
      %2383 = vmatpush1.bf16.msra.mxu0 %v2364
      %2384 = vmatprep.subr.bf16.mxu0 0
      %2385 = vmatpush1.bf16.msra.mxu0 %v2365
      %2386 = vmatprep.subr.bf16.mxu0 0
      %2387 = vmatpush1.bf16.msra.mxu0 %v2366
      %2388 = vmatprep.subr.bf16.mxu0 0
      %2389 = vmatpush1.bf16.msra.mxu0 %v2367
      %2390 = vmatprep.subr.bf16.mxu0 0
      %2391 = vmatpush1.bf16.msra.mxu0 %v2368
      %2392 = vmatprep.subr.bf16.mxu0 0
      %2393 = vmatpush1.bf16.msra.mxu0 %v2369
      %2394 = vmatprep.subr.bf16.mxu0 0
      %2395 = vmatpush1.bf16.msra.mxu0 0
      %2396 = vmatprep.subr.bf16.mxu0 0
      %2397 = vmatpush1.bf16.msra.mxu0 0
      %2398 = vmatprep.subr.bf16.mxu0 0
      %2399 = vmatpush1.bf16.msra.mxu0 0
      %2400 = vmatprep.subr.bf16.mxu0 0
      %2401 = vmatpush1.bf16.msra.mxu0 0
      %2402 = vmatprep.subr.bf16.mxu0 0
      %2403 = vmatpush1.bf16.msra.mxu0 0
      %2404 = vmatprep.subr.bf16.mxu0 0
      %2405 = vmatpush1.bf16.msra.mxu0 0
      %2406 = vmatprep.subr.bf16.mxu0 0
      %2407 = vmatpush1.bf16.msra.mxu0 0
      %2408 = vmatprep.subr.bf16.mxu0 0
      %2409 = vmatpush1.bf16.msra.mxu0 0
      %2410 = vmatprep.mubr.bf16.mxu0 0
      %2411 = vmatmul.mubr.bf16.gmra.mrb[0].mxu0 %v2309
      %v2412 = vpop.f32.mrb[0].mxu0
      %v2413 = vadd.f32 0.0, %v2412
      %v2414 = vpop.f32.mrb[0].mxu0
      %v2415 = vpop.f32.mrb[0].mxu0
      %v2416 = vadd.f32 0.0, %v2415
      %v2417 = vpop.f32.mrb[0].mxu0
      %2418 = vmatprep.mubr.bf16.mxu0 0
      %2419 = vmatmul.mubr.bf16.gmra.mrb[0].mxu0 %v2310
      %v2420 = vpop.f32.mrb[0].mxu0
      %v2421 = vadd.f32 0.0, %v2420
      %v2422 = vpop.f32.mrb[0].mxu0
      %v2423 = vpop.f32.mrb[0].mxu0
      %v2424 = vadd.f32 0.0, %v2423
      %v2425 = vpop.f32.mrb[0].mxu0
      %2426 = vmatprep.mubr.bf16.mxu0 0
      %2427 = vmatmul.mubr.bf16.gmra.mrb[0].mxu0 %v2311
      %v2428 = vpop.f32.mrb[0].mxu0
      %v2429 = vadd.f32 0.0, %v2428
      %v2430 = vpop.f32.mrb[0].mxu0
      %v2431 = vpop.f32.mrb[0].mxu0
      %v2432 = vadd.f32 0.0, %v2431
      %v2433 = vpop.f32.mrb[0].mxu0
      %2434 = vmatprep.mubr.bf16.mxu0 0
      %2435 = vmatmul.mubr.bf16.gmra.mrb[0].mxu0 %v2312
      %v2436 = vpop.f32.mrb[0].mxu0
      %v2437 = vadd.f32 0.0, %v2436
      %v2438 = vpop.f32.mrb[0].mxu0
      %v2439 = vpop.f32.mrb[0].mxu0
      %v2440 = vadd.f32 0.0, %v2439
      %v2441 = vpop.f32.mrb[0].mxu0
      %2442 = vdwg.mxu0
      %v2443 = vadd.f32 %v2293, %v2413
      %v2444 = vadd.f32 %v2294, %v2416
      %v2445 = vadd.f32 %v2295, %v2421
      %v2446 = vadd.f32 %v2296, %v2424
      %v2447 = vadd.f32 %v2297, %v2429
      %v2448 = vadd.f32 %v2298, %v2432
      %v2449 = vadd.f32 %v2299, %v2437
      %v2450 = vadd.f32 %v2300, %v2440
      %v2451 = vld [vmem:[%s1709 + $0x2] sm:$0xff]
      %v2452 = vld [vmem:[%s1709 + $0x12] sm:$0xff]
      %v2453 = vld [vmem:[%s1709 + $0x22] sm:$0xff]
      %v2454 = vld [vmem:[%s1709 + $0x32] sm:$0xff]
      %v2455 = vld [vmem:[%s1709 + $0x42] sm:$0xff]
      %v2456 = vld [vmem:[%s1709 + $0x52] sm:$0xff]
      %v2457 = vld [vmem:[%s1709 + $0x62] sm:$0xff]
      %v2458 = vld [vmem:[%s1709 + $0x72] sm:$0xff]
      %v2459 = vpack.c.bf16 %v2452, %v2451
      %v2460 = vpack.c.bf16 %v2454, %v2453
      %v2461 = vpack.c.bf16 %v2456, %v2455
      %v2462 = vpack.c.bf16 %v2458, %v2457
      %s2463 = scalar_lea.vmem %s3, 320
      %v2464 = vld [vmem:[%s2463] sm:$0xf]
      %v2465 = vld [vmem:[%s2463 + $0x4] sm:$0xf]
      %v2466 = vld [vmem:[%s2463 + $0x8] sm:$0xf]
      %v2467 = vld [vmem:[%s2463 + $0xc] sm:$0xf]
      %v2468 = vld [vmem:[%s2463 + $0x10] sm:$0xf]
      %v2469 = vld [vmem:[%s2463 + $0x14] sm:$0xf]
      %v2470 = vld [vmem:[%s2463 + $0x18] sm:$0xf]
      %v2471 = vld [vmem:[%s2463 + $0x1c] sm:$0xf]
      %v2472 = vld [vmem:[%s2463 + $0x20] sm:$0xf]
      %v2473 = vld [vmem:[%s2463 + $0x24] sm:$0xf]
      %v2474 = vld [vmem:[%s2463 + $0x28] sm:$0xf]
      %v2475 = vld [vmem:[%s2463 + $0x2c] sm:$0xf]
      %v2476 = vld [vmem:[%s2463 + $0x30] sm:$0xf]
      %v2477 = vld [vmem:[%s2463 + $0x34] sm:$0xf]
      %v2478 = vld [vmem:[%s2463 + $0x38] sm:$0xf]
      %v2479 = vld [vmem:[%s2463 + $0x3c] sm:$0xf]
      %v2496 = vunpack.c.l.b16 %v2464
      %v2497 = vunpack.c.l.b16 %v2465
      %v2498 = vunpack.c.l.b16 %v2466
      %v2499 = vunpack.c.l.b16 %v2467
      %v2500 = vunpack.c.l.b16 %v2468
      %v2501 = vunpack.c.l.b16 %v2469
      %v2502 = vunpack.c.l.b16 %v2470
      %v2503 = vunpack.c.l.b16 %v2471
      %v2504 = vunpack.c.l.b16 %v2472
      %v2505 = vunpack.c.l.b16 %v2473
      %v2506 = vunpack.c.l.b16 %v2474
      %v2507 = vunpack.c.l.b16 %v2475
      %v2508 = vunpack.c.l.b16 %v2476
      %v2509 = vunpack.c.l.b16 %v2477
      %v2510 = vunpack.c.l.b16 %v2478
      %v2511 = vunpack.c.l.b16 %v2479
      %v2512 = vpack.c.b16 %v2497, %v2496
      %v2513 = vpack.c.b16 %v2499, %v2498
      %v2514 = vpack.c.b16 %v2501, %v2500
      %v2515 = vpack.c.b16 %v2503, %v2502
      %v2516 = vpack.c.b16 %v2505, %v2504
      %v2517 = vpack.c.b16 %v2507, %v2506
      %v2518 = vpack.c.b16 %v2509, %v2508
      %v2519 = vpack.c.b16 %v2511, %v2510
      %2528 = vmatprep.subr.bf16.mxu0 0
      %2529 = vmatpush1.bf16.msra.mxu0 %v2512
      %2530 = vmatprep.subr.bf16.mxu0 0
      %2531 = vmatpush1.bf16.msra.mxu0 %v2513
      %2532 = vmatprep.subr.bf16.mxu0 0
      %2533 = vmatpush1.bf16.msra.mxu0 %v2514
      %2534 = vmatprep.subr.bf16.mxu0 0
      %2535 = vmatpush1.bf16.msra.mxu0 %v2515
      %2536 = vmatprep.subr.bf16.mxu0 0
      %2537 = vmatpush1.bf16.msra.mxu0 %v2516
      %2538 = vmatprep.subr.bf16.mxu0 0
      %2539 = vmatpush1.bf16.msra.mxu0 %v2517
      %2540 = vmatprep.subr.bf16.mxu0 0
      %2541 = vmatpush1.bf16.msra.mxu0 %v2518
      %2542 = vmatprep.subr.bf16.mxu0 0
      %2543 = vmatpush1.bf16.msra.mxu0 %v2519
      %2544 = vmatprep.subr.bf16.mxu0 0
      %2545 = vmatpush1.bf16.msra.mxu0 0
      %2546 = vmatprep.subr.bf16.mxu0 0
      %2547 = vmatpush1.bf16.msra.mxu0 0
      %2548 = vmatprep.subr.bf16.mxu0 0
      %2549 = vmatpush1.bf16.msra.mxu0 0
      %2550 = vmatprep.subr.bf16.mxu0 0
      %2551 = vmatpush1.bf16.msra.mxu0 0
      %2552 = vmatprep.subr.bf16.mxu0 0
      %2553 = vmatpush1.bf16.msra.mxu0 0
      %2554 = vmatprep.subr.bf16.mxu0 0
      %2555 = vmatpush1.bf16.msra.mxu0 0
      %2556 = vmatprep.subr.bf16.mxu0 0
      %2557 = vmatpush1.bf16.msra.mxu0 0
      %2558 = vmatprep.subr.bf16.mxu0 0
      %2559 = vmatpush1.bf16.msra.mxu0 0
      %2560 = vmatprep.mubr.bf16.mxu0 0
      %2561 = vmatmul.mubr.bf16.gmra.mrb[0].mxu0 %v2459
      %v2562 = vpop.f32.mrb[0].mxu0
      %v2563 = vadd.f32 0.0, %v2562
      %v2564 = vpop.f32.mrb[0].mxu0
      %v2565 = vpop.f32.mrb[0].mxu0
      %v2566 = vadd.f32 0.0, %v2565
      %v2567 = vpop.f32.mrb[0].mxu0
      %2568 = vmatprep.mubr.bf16.mxu0 0
      %2569 = vmatmul.mubr.bf16.gmra.mrb[0].mxu0 %v2460
      %v2570 = vpop.f32.mrb[0].mxu0
      %v2571 = vadd.f32 0.0, %v2570
      %v2572 = vpop.f32.mrb[0].mxu0
      %v2573 = vpop.f32.mrb[0].mxu0
      %v2574 = vadd.f32 0.0, %v2573
      %v2575 = vpop.f32.mrb[0].mxu0
      %2576 = vmatprep.mubr.bf16.mxu0 0
      %2577 = vmatmul.mubr.bf16.gmra.mrb[0].mxu0 %v2461
      %v2578 = vpop.f32.mrb[0].mxu0
      %v2579 = vadd.f32 0.0, %v2578
      %v2580 = vpop.f32.mrb[0].mxu0
      %v2581 = vpop.f32.mrb[0].mxu0
      %v2582 = vadd.f32 0.0, %v2581
      %v2583 = vpop.f32.mrb[0].mxu0
      %2584 = vmatprep.mubr.bf16.mxu0 0
      %2585 = vmatmul.mubr.bf16.gmra.mrb[0].mxu0 %v2462
      %v2586 = vpop.f32.mrb[0].mxu0
      %v2587 = vadd.f32 0.0, %v2586
      %v2588 = vpop.f32.mrb[0].mxu0
      %v2589 = vpop.f32.mrb[0].mxu0
      %v2590 = vadd.f32 0.0, %v2589
      %v2591 = vpop.f32.mrb[0].mxu0
      %2592 = vdwg.mxu0
      %v2593 = vadd.f32 %v2443, %v2563
      %v2594 = vadd.f32 %v2444, %v2566
      %v2595 = vadd.f32 %v2445, %v2571
      %v2596 = vadd.f32 %v2446, %v2574
      %v2597 = vadd.f32 %v2447, %v2579
      %v2598 = vadd.f32 %v2448, %v2582
      %v2599 = vadd.f32 %v2449, %v2587
      %v2600 = vadd.f32 %v2450, %v2590
      %s2601 = scalar_lea.vmem [#allocation2], 32
      %v2602 = vld [vmem:[%s2601] sm:$0xff]
      %v2603 = vld [vmem:[%s2601 + $0x10] sm:$0xff]
      %v2604 = vld [vmem:[%s2601 + $0x20] sm:$0xff]
      %v2605 = vld [vmem:[%s2601 + $0x30] sm:$0xff]
      %v2606 = vld [vmem:[%s2601 + $0x40] sm:$0xff]
      %v2607 = vld [vmem:[%s2601 + $0x50] sm:$0xff]
      %v2608 = vld [vmem:[%s2601 + $0x60] sm:$0xff]
      %v2609 = vld [vmem:[%s2601 + $0x70] sm:$0xff]
      %v2610 = vpack.c.bf16 %v2603, %v2602
      %v2611 = vpack.c.bf16 %v2605, %v2604
      %v2612 = vpack.c.bf16 %v2607, %v2606
      %v2613 = vpack.c.bf16 %v2609, %v2608
      %s2614 = scalar_lea.vmem %s3, 384
      %v2615 = vld [vmem:[%s2614] sm:$0xf]
      %v2616 = vld [vmem:[%s2614 + $0x4] sm:$0xf]
      %v2617 = vld [vmem:[%s2614 + $0x8] sm:$0xf]
      %v2618 = vld [vmem:[%s2614 + $0xc] sm:$0xf]
      %v2619 = vld [vmem:[%s2614 + $0x10] sm:$0xf]
      %v2620 = vld [vmem:[%s2614 + $0x14] sm:$0xf]
      %v2621 = vld [vmem:[%s2614 + $0x18] sm:$0xf]
      %v2622 = vld [vmem:[%s2614 + $0x1c] sm:$0xf]
      %v2623 = vld [vmem:[%s2614 + $0x20] sm:$0xf]
      %v2624 = vld [vmem:[%s2614 + $0x24] sm:$0xf]
      %v2625 = vld [vmem:[%s2614 + $0x28] sm:$0xf]
      %v2626 = vld [vmem:[%s2614 + $0x2c] sm:$0xf]
      %v2627 = vld [vmem:[%s2614 + $0x30] sm:$0xf]
      %v2628 = vld [vmem:[%s2614 + $0x34] sm:$0xf]
      %v2629 = vld [vmem:[%s2614 + $0x38] sm:$0xf]
      %v2630 = vld [vmem:[%s2614 + $0x3c] sm:$0xf]
      %v2647 = vunpack.c.l.b16 %v2615
      %v2648 = vunpack.c.l.b16 %v2616
      %v2649 = vunpack.c.l.b16 %v2617
      %v2650 = vunpack.c.l.b16 %v2618
      %v2651 = vunpack.c.l.b16 %v2619
      %v2652 = vunpack.c.l.b16 %v2620
      %v2653 = vunpack.c.l.b16 %v2621
      %v2654 = vunpack.c.l.b16 %v2622
      %v2655 = vunpack.c.l.b16 %v2623
      %v2656 = vunpack.c.l.b16 %v2624
      %v2657 = vunpack.c.l.b16 %v2625
      %v2658 = vunpack.c.l.b16 %v2626
      %v2659 = vunpack.c.l.b16 %v2627
      %v2660 = vunpack.c.l.b16 %v2628
      %v2661 = vunpack.c.l.b16 %v2629
      %v2662 = vunpack.c.l.b16 %v2630
      %v2663 = vpack.c.b16 %v2648, %v2647
      %v2664 = vpack.c.b16 %v2650, %v2649
      %v2665 = vpack.c.b16 %v2652, %v2651
      %v2666 = vpack.c.b16 %v2654, %v2653
      %v2667 = vpack.c.b16 %v2656, %v2655
      %v2668 = vpack.c.b16 %v2658, %v2657
      %v2669 = vpack.c.b16 %v2660, %v2659
      %v2670 = vpack.c.b16 %v2662, %v2661
      %2679 = vmatprep.subr.bf16.mxu0 0
      %2680 = vmatpush1.bf16.msra.mxu0 %v2663
      %2681 = vmatprep.subr.bf16.mxu0 0
      %2682 = vmatpush1.bf16.msra.mxu0 %v2664
      %2683 = vmatprep.subr.bf16.mxu0 0
      %2684 = vmatpush1.bf16.msra.mxu0 %v2665
      %2685 = vmatprep.subr.bf16.mxu0 0
      %2686 = vmatpush1.bf16.msra.mxu0 %v2666
      %2687 = vmatprep.subr.bf16.mxu0 0
      %2688 = vmatpush1.bf16.msra.mxu0 %v2667
      %2689 = vmatprep.subr.bf16.mxu0 0
      %2690 = vmatpush1.bf16.msra.mxu0 %v2668
      %2691 = vmatprep.subr.bf16.mxu0 0
      %2692 = vmatpush1.bf16.msra.mxu0 %v2669
      %2693 = vmatprep.subr.bf16.mxu0 0
      %2694 = vmatpush1.bf16.msra.mxu0 %v2670
      %2695 = vmatprep.subr.bf16.mxu0 0
      %2696 = vmatpush1.bf16.msra.mxu0 0
      %2697 = vmatprep.subr.bf16.mxu0 0
      %2698 = vmatpush1.bf16.msra.mxu0 0
      %2699 = vmatprep.subr.bf16.mxu0 0
      %2700 = vmatpush1.bf16.msra.mxu0 0
      %2701 = vmatprep.subr.bf16.mxu0 0
      %2702 = vmatpush1.bf16.msra.mxu0 0
      %2703 = vmatprep.subr.bf16.mxu0 0
      %2704 = vmatpush1.bf16.msra.mxu0 0
      %2705 = vmatprep.subr.bf16.mxu0 0
      %2706 = vmatpush1.bf16.msra.mxu0 0
      %2707 = vmatprep.subr.bf16.mxu0 0
      %2708 = vmatpush1.bf16.msra.mxu0 0
      %2709 = vmatprep.subr.bf16.mxu0 0
      %2710 = vmatpush1.bf16.msra.mxu0 0
      %2711 = vmatprep.mubr.bf16.mxu0 0
      %2712 = vmatmul.mubr.bf16.gmra.mrb[0].mxu0 %v2610
      %v2713 = vpop.f32.mrb[0].mxu0
      %v2714 = vadd.f32 0.0, %v2713
      %v2715 = vpop.f32.mrb[0].mxu0
      %v2716 = vpop.f32.mrb[0].mxu0
      %v2717 = vadd.f32 0.0, %v2716
      %v2718 = vpop.f32.mrb[0].mxu0
      %2719 = vmatprep.mubr.bf16.mxu0 0
      %2720 = vmatmul.mubr.bf16.gmra.mrb[0].mxu0 %v2611
      %v2721 = vpop.f32.mrb[0].mxu0
      %v2722 = vadd.f32 0.0, %v2721
      %v2723 = vpop.f32.mrb[0].mxu0
      %v2724 = vpop.f32.mrb[0].mxu0
      %v2725 = vadd.f32 0.0, %v2724
      %v2726 = vpop.f32.mrb[0].mxu0
      %2727 = vmatprep.mubr.bf16.mxu0 0
      %2728 = vmatmul.mubr.bf16.gmra.mrb[0].mxu0 %v2612
      %v2729 = vpop.f32.mrb[0].mxu0
      %v2730 = vadd.f32 0.0, %v2729
      %v2731 = vpop.f32.mrb[0].mxu0
      %v2732 = vpop.f32.mrb[0].mxu0
      %v2733 = vadd.f32 0.0, %v2732
      %v2734 = vpop.f32.mrb[0].mxu0
      %2735 = vmatprep.mubr.bf16.mxu0 0
      %2736 = vmatmul.mubr.bf16.gmra.mrb[0].mxu0 %v2613
      %v2737 = vpop.f32.mrb[0].mxu0
      %v2738 = vadd.f32 0.0, %v2737
      %v2739 = vpop.f32.mrb[0].mxu0
      %v2740 = vpop.f32.mrb[0].mxu0
      %v2741 = vadd.f32 0.0, %v2740
      %v2742 = vpop.f32.mrb[0].mxu0
      %2743 = vdwg.mxu0
      %v2744 = vadd.f32 %v2593, %v2714
      %v2745 = vadd.f32 %v2594, %v2717
      %v2746 = vadd.f32 %v2595, %v2722
      %v2747 = vadd.f32 %v2596, %v2725
      %v2748 = vadd.f32 %v2597, %v2730
      %v2749 = vadd.f32 %v2598, %v2733
      %v2750 = vadd.f32 %v2599, %v2738
      %v2751 = vadd.f32 %v2600, %v2741
      %v2752 = vld [vmem:[%s2601 + $0x1] sm:$0xff]
      %v2753 = vld [vmem:[%s2601 + $0x11] sm:$0xff]
      %v2754 = vld [vmem:[%s2601 + $0x21] sm:$0xff]
      %v2755 = vld [vmem:[%s2601 + $0x31] sm:$0xff]
      %v2756 = vld [vmem:[%s2601 + $0x41] sm:$0xff]
      %v2757 = vld [vmem:[%s2601 + $0x51] sm:$0xff]
      %v2758 = vld [vmem:[%s2601 + $0x61] sm:$0xff]
      %v2759 = vld [vmem:[%s2601 + $0x71] sm:$0xff]
      %v2760 = vpack.c.bf16 %v2753, %v2752
      %v2761 = vpack.c.bf16 %v2755, %v2754
      %v2762 = vpack.c.bf16 %v2757, %v2756
      %v2763 = vpack.c.bf16 %v2759, %v2758
      %s2764 = scalar_lea.vmem %s3, 448
      %v2765 = vld [vmem:[%s2764] sm:$0xf]
      %v2766 = vld [vmem:[%s2764 + $0x4] sm:$0xf]
      %v2767 = vld [vmem:[%s2764 + $0x8] sm:$0xf]
      %v2768 = vld [vmem:[%s2764 + $0xc] sm:$0xf]
      %v2769 = vld [vmem:[%s2764 + $0x10] sm:$0xf]
      %v2770 = vld [vmem:[%s2764 + $0x14] sm:$0xf]
      %v2771 = vld [vmem:[%s2764 + $0x18] sm:$0xf]
      %v2772 = vld [vmem:[%s2764 + $0x1c] sm:$0xf]
      %v2773 = vld [vmem:[%s2764 + $0x20] sm:$0xf]
      %v2774 = vld [vmem:[%s2764 + $0x24] sm:$0xf]
      %v2775 = vld [vmem:[%s2764 + $0x28] sm:$0xf]
      %v2776 = vld [vmem:[%s2764 + $0x2c] sm:$0xf]
      %v2777 = vld [vmem:[%s2764 + $0x30] sm:$0xf]
      %v2778 = vld [vmem:[%s2764 + $0x34] sm:$0xf]
      %v2779 = vld [vmem:[%s2764 + $0x38] sm:$0xf]
      %v2780 = vld [vmem:[%s2764 + $0x3c] sm:$0xf]
      %v2797 = vunpack.c.l.b16 %v2765
      %v2798 = vunpack.c.l.b16 %v2766
      %v2799 = vunpack.c.l.b16 %v2767
      %v2800 = vunpack.c.l.b16 %v2768
      %v2801 = vunpack.c.l.b16 %v2769
      %v2802 = vunpack.c.l.b16 %v2770
      %v2803 = vunpack.c.l.b16 %v2771
      %v2804 = vunpack.c.l.b16 %v2772
      %v2805 = vunpack.c.l.b16 %v2773
      %v2806 = vunpack.c.l.b16 %v2774
      %v2807 = vunpack.c.l.b16 %v2775
      %v2808 = vunpack.c.l.b16 %v2776
      %v2809 = vunpack.c.l.b16 %v2777
      %v2810 = vunpack.c.l.b16 %v2778
      %v2811 = vunpack.c.l.b16 %v2779
      %v2812 = vunpack.c.l.b16 %v2780
      %v2813 = vpack.c.b16 %v2798, %v2797
      %v2814 = vpack.c.b16 %v2800, %v2799
      %v2815 = vpack.c.b16 %v2802, %v2801
      %v2816 = vpack.c.b16 %v2804, %v2803
      %v2817 = vpack.c.b16 %v2806, %v2805
      %v2818 = vpack.c.b16 %v2808, %v2807
      %v2819 = vpack.c.b16 %v2810, %v2809
      %v2820 = vpack.c.b16 %v2812, %v2811
      %2829 = vmatprep.subr.bf16.mxu0 0
      %2830 = vmatpush1.bf16.msra.mxu0 %v2813
      %2831 = vmatprep.subr.bf16.mxu0 0
      %2832 = vmatpush1.bf16.msra.mxu0 %v2814
      %2833 = vmatprep.subr.bf16.mxu0 0
      %2834 = vmatpush1.bf16.msra.mxu0 %v2815
      %2835 = vmatprep.subr.bf16.mxu0 0
      %2836 = vmatpush1.bf16.msra.mxu0 %v2816
      %2837 = vmatprep.subr.bf16.mxu0 0
      %2838 = vmatpush1.bf16.msra.mxu0 %v2817
      %2839 = vmatprep.subr.bf16.mxu0 0
      %2840 = vmatpush1.bf16.msra.mxu0 %v2818
      %2841 = vmatprep.subr.bf16.mxu0 0
      %2842 = vmatpush1.bf16.msra.mxu0 %v2819
      %2843 = vmatprep.subr.bf16.mxu0 0
      %2844 = vmatpush1.bf16.msra.mxu0 %v2820
      %2845 = vmatprep.subr.bf16.mxu0 0
      %2846 = vmatpush1.bf16.msra.mxu0 0
      %2847 = vmatprep.subr.bf16.mxu0 0
      %2848 = vmatpush1.bf16.msra.mxu0 0
      %2849 = vmatprep.subr.bf16.mxu0 0
      %2850 = vmatpush1.bf16.msra.mxu0 0
      %2851 = vmatprep.subr.bf16.mxu0 0
      %2852 = vmatpush1.bf16.msra.mxu0 0
      %2853 = vmatprep.subr.bf16.mxu0 0
      %2854 = vmatpush1.bf16.msra.mxu0 0
      %2855 = vmatprep.subr.bf16.mxu0 0
      %2856 = vmatpush1.bf16.msra.mxu0 0
      %2857 = vmatprep.subr.bf16.mxu0 0
      %2858 = vmatpush1.bf16.msra.mxu0 0
      %2859 = vmatprep.subr.bf16.mxu0 0
      %2860 = vmatpush1.bf16.msra.mxu0 0
      %2861 = vmatprep.mubr.bf16.mxu0 0
      %2862 = vmatmul.mubr.bf16.gmra.mrb[0].mxu0 %v2760
      %v2863 = vpop.f32.mrb[0].mxu0
      %v2864 = vadd.f32 0.0, %v2863
      %v2865 = vpop.f32.mrb[0].mxu0
      %v2866 = vpop.f32.mrb[0].mxu0
      %v2867 = vadd.f32 0.0, %v2866
      %v2868 = vpop.f32.mrb[0].mxu0
      %2869 = vmatprep.mubr.bf16.mxu0 0
      %2870 = vmatmul.mubr.bf16.gmra.mrb[0].mxu0 %v2761
      %v2871 = vpop.f32.mrb[0].mxu0
      %v2872 = vadd.f32 0.0, %v2871
      %v2873 = vpop.f32.mrb[0].mxu0
      %v2874 = vpop.f32.mrb[0].mxu0
      %v2875 = vadd.f32 0.0, %v2874
      %v2876 = vpop.f32.mrb[0].mxu0
      %2877 = vmatprep.mubr.bf16.mxu0 0
      %2878 = vmatmul.mubr.bf16.gmra.mrb[0].mxu0 %v2762
      %v2879 = vpop.f32.mrb[0].mxu0
      %v2880 = vadd.f32 0.0, %v2879
      %v2881 = vpop.f32.mrb[0].mxu0
      %v2882 = vpop.f32.mrb[0].mxu0
      %v2883 = vadd.f32 0.0, %v2882
      %v2884 = vpop.f32.mrb[0].mxu0
      %2885 = vmatprep.mubr.bf16.mxu0 0
      %2886 = vmatmul.mubr.bf16.gmra.mrb[0].mxu0 %v2763
      %v2887 = vpop.f32.mrb[0].mxu0
      %v2888 = vadd.f32 0.0, %v2887
      %v2889 = vpop.f32.mrb[0].mxu0
      %v2890 = vpop.f32.mrb[0].mxu0
      %v2891 = vadd.f32 0.0, %v2890
      %v2892 = vpop.f32.mrb[0].mxu0
      %2893 = vdwg.mxu0
      %v2894 = vadd.f32 %v2744, %v2864
      %v2895 = vadd.f32 %v2745, %v2867
      %v2896 = vadd.f32 %v2746, %v2872
      %v2897 = vadd.f32 %v2747, %v2875
      %v2898 = vadd.f32 %v2748, %v2880
      %v2899 = vadd.f32 %v2749, %v2883
      %v2900 = vadd.f32 %v2750, %v2888
      %v2901 = vadd.f32 %v2751, %v2891
      %v2902 = vld [vmem:[%s2601 + $0x2] sm:$0xff]
      %v2903 = vld [vmem:[%s2601 + $0x12] sm:$0xff]
      %v2904 = vld [vmem:[%s2601 + $0x22] sm:$0xff]
      %v2905 = vld [vmem:[%s2601 + $0x32] sm:$0xff]
      %v2906 = vld [vmem:[%s2601 + $0x42] sm:$0xff]
      %v2907 = vld [vmem:[%s2601 + $0x52] sm:$0xff]
      %v2908 = vld [vmem:[%s2601 + $0x62] sm:$0xff]
      %v2909 = vld [vmem:[%s2601 + $0x72] sm:$0xff]
      %v2910 = vpack.c.bf16 %v2903, %v2902
      %v2911 = vpack.c.bf16 %v2905, %v2904
      %v2912 = vpack.c.bf16 %v2907, %v2906
      %v2913 = vpack.c.bf16 %v2909, %v2908
      %s2914 = scalar_lea.vmem %s3, 512
      %v2915 = vld [vmem:[%s2914] sm:$0xf]
      %v2916 = vld [vmem:[%s2914 + $0x4] sm:$0xf]
      %v2917 = vld [vmem:[%s2914 + $0x8] sm:$0xf]
      %v2918 = vld [vmem:[%s2914 + $0xc] sm:$0xf]
      %v2919 = vld [vmem:[%s2914 + $0x10] sm:$0xf]
      %v2920 = vld [vmem:[%s2914 + $0x14] sm:$0xf]
      %v2921 = vld [vmem:[%s2914 + $0x18] sm:$0xf]
      %v2922 = vld [vmem:[%s2914 + $0x1c] sm:$0xf]
      %v2923 = vld [vmem:[%s2914 + $0x20] sm:$0xf]
      %v2924 = vld [vmem:[%s2914 + $0x24] sm:$0xf]
      %v2925 = vld [vmem:[%s2914 + $0x28] sm:$0xf]
      %v2926 = vld [vmem:[%s2914 + $0x2c] sm:$0xf]
      %v2927 = vld [vmem:[%s2914 + $0x30] sm:$0xf]
      %v2928 = vld [vmem:[%s2914 + $0x34] sm:$0xf]
      %v2929 = vld [vmem:[%s2914 + $0x38] sm:$0xf]
      %v2930 = vld [vmem:[%s2914 + $0x3c] sm:$0xf]
      %v2947 = vunpack.c.l.b16 %v2915
      %v2948 = vunpack.c.l.b16 %v2916
      %v2949 = vunpack.c.l.b16 %v2917
      %v2950 = vunpack.c.l.b16 %v2918
      %v2951 = vunpack.c.l.b16 %v2919
      %v2952 = vunpack.c.l.b16 %v2920
      %v2953 = vunpack.c.l.b16 %v2921
      %v2954 = vunpack.c.l.b16 %v2922
      %v2955 = vunpack.c.l.b16 %v2923
      %v2956 = vunpack.c.l.b16 %v2924
      %v2957 = vunpack.c.l.b16 %v2925
      %v2958 = vunpack.c.l.b16 %v2926
      %v2959 = vunpack.c.l.b16 %v2927
      %v2960 = vunpack.c.l.b16 %v2928
      %v2961 = vunpack.c.l.b16 %v2929
      %v2962 = vunpack.c.l.b16 %v2930
      %v2963 = vpack.c.b16 %v2948, %v2947
      %v2964 = vpack.c.b16 %v2950, %v2949
      %v2965 = vpack.c.b16 %v2952, %v2951
      %v2966 = vpack.c.b16 %v2954, %v2953
      %v2967 = vpack.c.b16 %v2956, %v2955
      %v2968 = vpack.c.b16 %v2958, %v2957
      %v2969 = vpack.c.b16 %v2960, %v2959
      %v2970 = vpack.c.b16 %v2962, %v2961
      %2979 = vmatprep.subr.bf16.mxu0 0
      %2980 = vmatpush1.bf16.msra.mxu0 %v2963
      %2981 = vmatprep.subr.bf16.mxu0 0
      %2982 = vmatpush1.bf16.msra.mxu0 %v2964
      %2983 = vmatprep.subr.bf16.mxu0 0
      %2984 = vmatpush1.bf16.msra.mxu0 %v2965
      %2985 = vmatprep.subr.bf16.mxu0 0
      %2986 = vmatpush1.bf16.msra.mxu0 %v2966
      %2987 = vmatprep.subr.bf16.mxu0 0
      %2988 = vmatpush1.bf16.msra.mxu0 %v2967
      %2989 = vmatprep.subr.bf16.mxu0 0
      %2990 = vmatpush1.bf16.msra.mxu0 %v2968
      %2991 = vmatprep.subr.bf16.mxu0 0
      %2992 = vmatpush1.bf16.msra.mxu0 %v2969
      %2993 = vmatprep.subr.bf16.mxu0 0
      %2994 = vmatpush1.bf16.msra.mxu0 %v2970
      %2995 = vmatprep.subr.bf16.mxu0 0
      %2996 = vmatpush1.bf16.msra.mxu0 0
      %2997 = vmatprep.subr.bf16.mxu0 0
      %2998 = vmatpush1.bf16.msra.mxu0 0
      %2999 = vmatprep.subr.bf16.mxu0 0
      %3000 = vmatpush1.bf16.msra.mxu0 0
      %3001 = vmatprep.subr.bf16.mxu0 0
      %3002 = vmatpush1.bf16.msra.mxu0 0
      %3003 = vmatprep.subr.bf16.mxu0 0
      %3004 = vmatpush1.bf16.msra.mxu0 0
      %3005 = vmatprep.subr.bf16.mxu0 0
      %3006 = vmatpush1.bf16.msra.mxu0 0
      %3007 = vmatprep.subr.bf16.mxu0 0
      %3008 = vmatpush1.bf16.msra.mxu0 0
      %3009 = vmatprep.subr.bf16.mxu0 0
      %3010 = vmatpush1.bf16.msra.mxu0 0
      %3011 = vmatprep.mubr.bf16.mxu0 0
      %3012 = vmatmul.mubr.bf16.gmra.mrb[0].mxu0 %v2910
      %v3013 = vpop.f32.mrb[0].mxu0
      %v3014 = vadd.f32 0.0, %v3013
      %v3015 = vpop.f32.mrb[0].mxu0
      %v3016 = vpop.f32.mrb[0].mxu0
      %v3017 = vadd.f32 0.0, %v3016
      %v3018 = vpop.f32.mrb[0].mxu0
      %3019 = vmatprep.mubr.bf16.mxu0 0
      %3020 = vmatmul.mubr.bf16.gmra.mrb[0].mxu0 %v2911
      %v3021 = vpop.f32.mrb[0].mxu0
      %v3022 = vadd.f32 0.0, %v3021
      %v3023 = vpop.f32.mrb[0].mxu0
      %v3024 = vpop.f32.mrb[0].mxu0
      %v3025 = vadd.f32 0.0, %v3024
      %v3026 = vpop.f32.mrb[0].mxu0
      %3027 = vmatprep.mubr.bf16.mxu0 0
      %3028 = vmatmul.mubr.bf16.gmra.mrb[0].mxu0 %v2912
      %v3029 = vpop.f32.mrb[0].mxu0
      %v3030 = vadd.f32 0.0, %v3029
      %v3031 = vpop.f32.mrb[0].mxu0
      %v3032 = vpop.f32.mrb[0].mxu0
      %v3033 = vadd.f32 0.0, %v3032
      %v3034 = vpop.f32.mrb[0].mxu0
      %3035 = vmatprep.mubr.bf16.mxu0 0
      %3036 = vmatmul.mubr.bf16.gmra.mrb[0].mxu0 %v2913
      %v3037 = vpop.f32.mrb[0].mxu0
      %v3038 = vadd.f32 0.0, %v3037
      %v3039 = vpop.f32.mrb[0].mxu0
      %v3040 = vpop.f32.mrb[0].mxu0
      %v3041 = vadd.f32 0.0, %v3040
      %v3042 = vpop.f32.mrb[0].mxu0
      %3043 = vdwg.mxu0
      %v3044 = vadd.f32 %v2894, %v3014
      %v3045 = vadd.f32 %v2895, %v3017
      %v3046 = vadd.f32 %v2896, %v3022
      %v3047 = vadd.f32 %v2897, %v3025
      %v3048 = vadd.f32 %v2898, %v3030
      %v3049 = vadd.f32 %v2899, %v3033
      %v3050 = vadd.f32 %v2900, %v3038
      %v3051 = vadd.f32 %v2901, %v3041
      %v3052 = vld [vmem:[%s4] sm:$0x1]
      %v3054 = vlaneseq
      %v3055 = vshrl.u32 %v3054, 7
      %v3056 = vsub.s32 0, %v3055
      %v3057 = vrot.slane %v3052, %v3056
      %v3059 = vadd.f32 %v3044, %v3057
      %v3060 = vadd.f32 %v3045, %v3057
      %v3061 = vadd.f32 %v3046, %v3057
      %v3062 = vadd.f32 %v3047, %v3057
      %v3063 = vadd.f32 %v3048, %v3057
      %v3064 = vadd.f32 %v3049, %v3057
      %v3065 = vadd.f32 %v3050, %v3057
      %v3066 = vadd.f32 %v3051, %v3057
      %v3067 = vmax.f32 %v3059, 0.0
      %v3068 = vmax.f32 %v3060, 0.0
      %v3069 = vmax.f32 %v3061, 0.0
      %v3070 = vmax.f32 %v3062, 0.0
      %v3071 = vmax.f32 %v3063, 0.0
      %v3072 = vmax.f32 %v3064, 0.0
      %v3073 = vmax.f32 %v3065, 0.0
      %v3074 = vmax.f32 %v3066, 0.0
      %v3075 = vpack.c.bf16 %v3068, %v3067
      %v3076 = vpack.c.bf16 %v3070, %v3069
      %v3077 = vpack.c.bf16 %v3072, %v3071
      %v3078 = vpack.c.bf16 %v3074, %v3073
      %v3079 = vld [vmem:[%s5] sm:$0xf]
      %v3080 = vld [vmem:[%s5 + $0x4] sm:$0xf]
      %v3081 = vld [vmem:[%s5 + $0x8] sm:$0xf]
      %v3082 = vld [vmem:[%s5 + $0xc] sm:$0xf]
      %v3083 = vld [vmem:[%s5 + $0x10] sm:$0xf]
      %v3084 = vld [vmem:[%s5 + $0x14] sm:$0xf]
      %v3085 = vld [vmem:[%s5 + $0x18] sm:$0xf]
      %v3086 = vld [vmem:[%s5 + $0x1c] sm:$0xf]
      %v3087 = vld [vmem:[%s5 + $0x20] sm:$0xf]
      %v3088 = vld [vmem:[%s5 + $0x24] sm:$0xf]
      %v3089 = vld [vmem:[%s5 + $0x28] sm:$0xf]
      %v3090 = vld [vmem:[%s5 + $0x2c] sm:$0xf]
      %v3091 = vld [vmem:[%s5 + $0x30] sm:$0xf]
      %v3092 = vld [vmem:[%s5 + $0x34] sm:$0xf]
      %v3093 = vld [vmem:[%s5 + $0x38] sm:$0xf]
      %v3094 = vld [vmem:[%s5 + $0x3c] sm:$0xf]
      %v3095 = vld [vmem:[%s6] sm:$0x1]
      %v3097 = vlaneseq
      %v3098 = vshrl.u32 %v3097, 7
      %v3099 = vsub.s32 0, %v3098
      %v3100 = vrot.slane %v3095, %v3099
      %v3118 = vunpack.c.l.b16 %v3079
      %v3119 = vunpack.c.l.b16 %v3080
      %v3120 = vunpack.c.l.b16 %v3081
      %v3121 = vunpack.c.l.b16 %v3082
      %v3122 = vunpack.c.l.b16 %v3083
      %v3123 = vunpack.c.l.b16 %v3084
      %v3124 = vunpack.c.l.b16 %v3085
      %v3125 = vunpack.c.l.b16 %v3086
      %v3126 = vunpack.c.l.b16 %v3087
      %v3127 = vunpack.c.l.b16 %v3088
      %v3128 = vunpack.c.l.b16 %v3089
      %v3129 = vunpack.c.l.b16 %v3090
      %v3130 = vunpack.c.l.b16 %v3091
      %v3131 = vunpack.c.l.b16 %v3092
      %v3132 = vunpack.c.l.b16 %v3093
      %v3133 = vunpack.c.l.b16 %v3094
      %v3134 = vpack.c.b16 %v3119, %v3118
      %v3135 = vpack.c.b16 %v3121, %v3120
      %v3136 = vpack.c.b16 %v3123, %v3122
      %v3137 = vpack.c.b16 %v3125, %v3124
      %v3138 = vpack.c.b16 %v3127, %v3126
      %v3139 = vpack.c.b16 %v3129, %v3128
      %v3140 = vpack.c.b16 %v3131, %v3130
      %v3141 = vpack.c.b16 %v3133, %v3132
      %3150 = vmatprep.subr.bf16.mxu0 0
      %3151 = vmatpush1.bf16.msra.mxu0 %v3134
      %3152 = vmatprep.subr.bf16.mxu0 0
      %3153 = vmatpush1.bf16.msra.mxu0 %v3135
      %3154 = vmatprep.subr.bf16.mxu0 0
      %3155 = vmatpush1.bf16.msra.mxu0 %v3136
      %3156 = vmatprep.subr.bf16.mxu0 0
      %3157 = vmatpush1.bf16.msra.mxu0 %v3137
      %3158 = vmatprep.subr.bf16.mxu0 0
      %3159 = vmatpush1.bf16.msra.mxu0 %v3138
      %3160 = vmatprep.subr.bf16.mxu0 0
      %3161 = vmatpush1.bf16.msra.mxu0 %v3139
      %3162 = vmatprep.subr.bf16.mxu0 0
      %3163 = vmatpush1.bf16.msra.mxu0 %v3140
      %3164 = vmatprep.subr.bf16.mxu0 0
      %3165 = vmatpush1.bf16.msra.mxu0 %v3141
      %3166 = vmatprep.subr.bf16.mxu0 0
      %3167 = vmatpush1.bf16.msra.mxu0 0
      %3168 = vmatprep.subr.bf16.mxu0 0
      %3169 = vmatpush1.bf16.msra.mxu0 0
      %3170 = vmatprep.subr.bf16.mxu0 0
      %3171 = vmatpush1.bf16.msra.mxu0 0
      %3172 = vmatprep.subr.bf16.mxu0 0
      %3173 = vmatpush1.bf16.msra.mxu0 0
      %3174 = vmatprep.subr.bf16.mxu0 0
      %3175 = vmatpush1.bf16.msra.mxu0 0
      %3176 = vmatprep.subr.bf16.mxu0 0
      %3177 = vmatpush1.bf16.msra.mxu0 0
      %3178 = vmatprep.subr.bf16.mxu0 0
      %3179 = vmatpush1.bf16.msra.mxu0 0
      %3180 = vmatprep.subr.bf16.mxu0 0
      %3181 = vmatpush1.bf16.msra.mxu0 0
      %3182 = vmatprep.mubr.bf16.mxu0 0
      %3183 = vmatmul.mubr.bf16.gmra.mrb[0].mxu0 %v3075
      %v3184 = vpop.f32.mrb[0].mxu0
      %v3185 = vadd.f32 %v3100, %v3184
      %v3186 = vpop.f32.mrb[0].mxu0
      %v3187 = vpop.f32.mrb[0].mxu0
      %v3188 = vadd.f32 %v3100, %v3187
      %v3189 = vpop.f32.mrb[0].mxu0
      %3190 = vmatprep.mubr.bf16.mxu0 0
      %3191 = vmatmul.mubr.bf16.gmra.mrb[0].mxu0 %v3076
      %v3192 = vpop.f32.mrb[0].mxu0
      %v3193 = vadd.f32 %v3100, %v3192
      %v3194 = vpop.f32.mrb[0].mxu0
      %v3195 = vpop.f32.mrb[0].mxu0
      %v3196 = vadd.f32 %v3100, %v3195
      %v3197 = vpop.f32.mrb[0].mxu0
      %3198 = vmatprep.mubr.bf16.mxu0 0
      %3199 = vmatmul.mubr.bf16.gmra.mrb[0].mxu0 %v3077
      %v3200 = vpop.f32.mrb[0].mxu0
      %v3201 = vadd.f32 %v3100, %v3200
      %v3202 = vpop.f32.mrb[0].mxu0
      %v3203 = vpop.f32.mrb[0].mxu0
      %v3204 = vadd.f32 %v3100, %v3203
      %v3205 = vpop.f32.mrb[0].mxu0
      %3206 = vmatprep.mubr.bf16.mxu0 0
      %3207 = vmatmul.mubr.bf16.gmra.mrb[0].mxu0 %v3078
      %v3208 = vpop.f32.mrb[0].mxu0
      %v3209 = vadd.f32 %v3100, %v3208
      %v3210 = vpop.f32.mrb[0].mxu0
      %v3211 = vpop.f32.mrb[0].mxu0
      %v3212 = vadd.f32 %v3100, %v3211
      %v3213 = vpop.f32.mrb[0].mxu0
      %3214 = vdwg.mxu0
      %3215 = vst [vmem:[%s318] sm:$0xff] %v3185
      %3216 = vst [vmem:[%s318 + $0x8] sm:$0xff] %v3188
      %3217 = vst [vmem:[%s318 + $0x10] sm:$0xff] %v3193
      %3218 = vst [vmem:[%s318 + $0x18] sm:$0xff] %v3196
      %3219 = vst [vmem:[%s318 + $0x20] sm:$0xff] %v3201
      %3220 = vst [vmem:[%s318 + $0x28] sm:$0xff] %v3204
      %3221 = vst [vmem:[%s318 + $0x30] sm:$0xff] %v3209
      %3222 = vst [vmem:[%s318 + $0x38] sm:$0xff] %v3212
      %p3223 = scmp.lt.s32.totalorder %s20, 1
      %s3224 = scalar_select %p3223, %s20, 1
      %s3225 = smul.addr %s3224, 8
      %s3226 = smul.addr %s3225, 8
      %s3227 = scalar_lea.vmem %s7, %s3226
      %p3228 = scmp.lt.s32.totalorder %s20, 1
      %s3229 = scalar_select %p3228, %s20, 1
      %s3230 = smul.addr %s3229, 8
      %s3231 = smul.addr %s3230, 8
      %s3232 = scalar_lea.vmem %s8, %s3231
      // Predicated region
      $region49: #{_forward_impl.4} parent=47 // pred_check
        %p3233 = pneg %p190
      $region50: #{_forward_impl.4} parent=47 // pred_check_branch
        %3235 = sbr.rel (%p3233) target = $region52
      $region51: #{_forward_impl.4} parent=47 // pred_region
        _
      $region52: #{_forward_impl.4} parent=47 // pred_fallthru
        _
      // Predicated region
      $region53: #{_forward_impl.4} parent=47 // pred_check
        %p3236 = pneg %p216
      $region54: #{_forward_impl.4} parent=47 // pred_check_branch
        %3238 = sbr.rel (%p3236) target = $region56
      $region55: #{_forward_impl.4} parent=47 // pred_region
        _
      $region56: #{_forward_impl.4} parent=47 // pred_fallthru
        _
    $region48: #{_forward_impl.4} parent=5 // pred_fallthru
      _
    %p3239 = scmp.le.s32.totalorder 2, %s15
    // Predicated region
    $region57: #{_forward_impl.4} parent=5 // pred_check
      %p3240 = pneg %p3239
    $region58: #{_forward_impl.4} parent=5 // pred_check_branch
      %3242 = sbr.rel (%p3240) target = $region60
    $region59: #{_forward_impl.4} parent=5 // pred_region
      %s3243 = ssub.s32 %s15, 2
      // Predicated region
      $region61: #{_forward_impl.4} parent=59 // pred_check
        %p3244 = pneg %p196
      $region62: #{_forward_impl.4} parent=59 // pred_check_branch
        %3246 = sbr.rel (%p3244) target = $region64
      $region63: #{_forward_impl.4} parent=59 // pred_region
        %p3247 = scmp.lt.s32.totalorder %s21, 1
        %s3248 = scalar_select %p3247, %s21, 1
        %s3249 = smul.addr %s3248, 8
        %s3250 = smul.addr %s3249, 8
        %s3251 = scalar_lea.vmem %s7, %s3250
      $region64: #{_forward_impl.4} parent=59 // pred_fallthru
        _
      // Predicated region
      $region65: #{_forward_impl.4} parent=59 // pred_check
        %p3252 = pneg %p222
      $region66: #{_forward_impl.4} parent=59 // pred_check_branch
        %3254 = sbr.rel (%p3252) target = $region68
      $region67: #{_forward_impl.4} parent=59 // pred_region
        %p3255 = scmp.lt.s32.totalorder %s21, 1
        %s3256 = scalar_select %p3255, %s21, 1
        %s3257 = smul.addr %s3256, 8
        %s3258 = smul.addr %s3257, 8
        %s3259 = scalar_lea.vmem %s8, %s3258
      $region68: #{_forward_impl.4} parent=59 // pred_fallthru
        _
    $region60: #{_forward_impl.4} parent=5 // pred_fallthru
      _
  $region6: #{_forward_impl.4} parent=0 // loop_footer
    %s19 = sadd.s32 1, %s15
  $region7: #{_forward_impl.4} parent=0 // loop_footer_branch
    %14 = sbr.rel target = $region3
  $region8: #{_forward_impl.4} parent=0 // loop_exit
    _

// kernel: _forward_impl.5
$region0: #{_forward_impl.5}
  #allocation0 [shape = 'u32[]', space=smem, size = 0x4, offset = 0x4, fixed_abs, tag = 'smem constant byte address 0x4 - core index']
  #allocation1 [shape = 'u32[144,128]{1,0:T(1,128)}', space=vmem, size = 0x12000, scoped, tag = 'internal scratch']
  %s0 = inlined_call_operand.vmem [shape: bf16[16,2048], index: 0, kind: input, shape index: {}]
  %s1 = inlined_call_operand.vmem [shape: bf16[2048,128], index: 1, kind: input, shape index: {}]
  %s2 = inlined_call_operand.vmem [shape: f32[1,128], index: 2, kind: input, shape index: {}]
  %s3 = inlined_call_operand.vmem [shape: bf16[128,128], index: 3, kind: input, shape index: {}]
  %s4 = inlined_call_operand.vmem [shape: f32[1,128], index: 4, kind: input, shape index: {}]
  %s5 = inlined_call_operand.vmem [shape: bf16[128,256], index: 5, kind: input, shape index: {}]
  %s6 = inlined_call_operand.vmem [shape: f32[1,256], index: 6, kind: input, shape index: {}]
  %s7 = inlined_call_operand.vmem [shape: f32[16,128], index: 7, kind: output, shape index: {0}]
  %s8 = inlined_call_operand.vmem [shape: f32[16,128], index: 8, kind: output, shape index: {1}]
  %9 = xla_tuple %s7, %s8
  %s10 = sld [smem:[#allocation0]]
  $region69: #{_forward_impl.5} parent=0
    _
  %s12 = ssub.s32 1, %s10
  %s13 = scalar_select 0, %s12, %s10
  loop: start=0, step=1, limit=4
  $region2: #{_forward_impl.5} parent=0 // loop_pre_header
    _
  $region3: #{_forward_impl.5} parent=0 // loop_header
    %s15 = sphi 0, %s19
    %p16 = scmp.ge.s32.totalorder %s15, 4
    %s25 = sphi 0, %s27
    %s28 = sphi 0, %s25
    %s29 = sphi 0, %s28
    %s45 = sphi 0, %s29
    %s49 = sphi 0, %s49
    %s51 = sphi 0, %s49
    %s52 = sphi 0, %s51
    %s66 = sphi 0, %s52
    %s70 = sphi 0, %s70
    %s72 = sphi 0, %s70
    %s73 = sphi 0, %s72
    %s87 = sphi 0, %s73
    %s91 = sphi 0, %s91
    %s93 = sphi 0, %s91
    %s94 = sphi 0, %s93
    %s108 = sphi 0, %s94
    %s112 = sphi 0, %s112
    %s114 = sphi 0, %s112
    %s115 = sphi 0, %s114
    %s129 = sphi 0, %s115
    %s133 = sphi 0, %s133
    %s135 = sphi 0, %s133
    %s136 = sphi 0, %s135
    %s150 = sphi 0, %s136
    %s154 = sphi 0, %s154
    %s156 = sphi 0, %s154
    %s157 = sphi 0, %s156
    %s171 = sphi 0, %s157
    %s177 = sphi 0, %s179
    %s180 = sphi 0, %s177
    %s181 = sphi 0, %s180
    %s197 = sphi 0, %s181
    %s203 = sphi 0, %s205
    %s206 = sphi 0, %s203
    %s207 = sphi 0, %s206
    %s223 = sphi 0, %s207
  $region4: #{_forward_impl.5} parent=0 // loop_header_branch
    %18 = sbr.rel (%p16) target = $region8
  $region5: #{_forward_impl.5} parent=0 // loop_body
    %s20 = ssub.s32 %s15, 1
    %s21 = ssub.s32 %s15, 2
    %s22 = sadd.s32 %s15, 1
    %s23 = ssub.s32 %s15, %s22
    %p24 = scmp.eq.s32.totalorder %s23, 0
    %s26 = sadd.s32 %s25, 1
    %s27 = scalar_select %p24, %s25, %s26
    %p30 = pneg %p24
    %p31 = scmp.eq.s32.totalorder %s15, 1
    %p32 = por %p30, %p31
    %p33 = scmp.ne.s32.totalorder %s25, %s28
    %p34 = scmp.eq.s32.totalorder %s15, 0
    %p35 = por %p33, %p34
    %p36 = scmp.ne.s32.totalorder %s25, %s28
    %p37 = scmp.eq.s32.totalorder %s20, 1
    %p38 = por %p36, %p37
    %p39 = scmp.ne.s32.totalorder %s28, %s29
    %p40 = scmp.eq.s32.totalorder %s20, 0
    %p41 = por %p39, %p40
    %p42 = scmp.ne.s32.totalorder %s28, %s29
    %p43 = scmp.eq.s32.totalorder %s21, 1
    %p44 = por %p42, %p43
    %p46 = scmp.ne.s32.totalorder %s29, %s45
    %p47 = scmp.eq.s32.totalorder %s21, 0
    %p48 = por %p46, %p47
    %s50 = sadd.s32 %s49, 1
    %p53 = scmp.eq.s32.totalorder %s15, 1
    %p54 = scmp.ne.s32.totalorder %s49, %s51
    %p55 = scmp.eq.s32.totalorder %s15, 0
    %p56 = por %p54, %p55
    %p57 = scmp.ne.s32.totalorder %s49, %s51
    %p58 = scmp.eq.s32.totalorder %s20, 1
    %p59 = por %p57, %p58
    %p60 = scmp.ne.s32.totalorder %s51, %s52
    %p61 = scmp.eq.s32.totalorder %s20, 0
    %p62 = por %p60, %p61
    %p63 = scmp.ne.s32.totalorder %s51, %s52
    %p64 = scmp.eq.s32.totalorder %s21, 1
    %p65 = por %p63, %p64
    %p67 = scmp.ne.s32.totalorder %s52, %s66
    %p68 = scmp.eq.s32.totalorder %s21, 0
    %p69 = por %p67, %p68
    %s71 = sadd.s32 %s70, 1
    %p74 = scmp.eq.s32.totalorder %s15, 1
    %p75 = scmp.ne.s32.totalorder %s70, %s72
    %p76 = scmp.eq.s32.totalorder %s15, 0
    %p77 = por %p75, %p76
    %p78 = scmp.ne.s32.totalorder %s70, %s72
    %p79 = scmp.eq.s32.totalorder %s20, 1
    %p80 = por %p78, %p79
    %p81 = scmp.ne.s32.totalorder %s72, %s73
    %p82 = scmp.eq.s32.totalorder %s20, 0
    %p83 = por %p81, %p82
    %p84 = scmp.ne.s32.totalorder %s72, %s73
    %p85 = scmp.eq.s32.totalorder %s21, 1
    %p86 = por %p84, %p85
    %p88 = scmp.ne.s32.totalorder %s73, %s87
    %p89 = scmp.eq.s32.totalorder %s21, 0
    %p90 = por %p88, %p89
    %s92 = sadd.s32 %s91, 1
    %p95 = scmp.eq.s32.totalorder %s15, 1
    %p96 = scmp.ne.s32.totalorder %s91, %s93
    %p97 = scmp.eq.s32.totalorder %s15, 0
    %p98 = por %p96, %p97
    %p99 = scmp.ne.s32.totalorder %s91, %s93
    %p100 = scmp.eq.s32.totalorder %s20, 1
    %p101 = por %p99, %p100
    %p102 = scmp.ne.s32.totalorder %s93, %s94
    %p103 = scmp.eq.s32.totalorder %s20, 0
    %p104 = por %p102, %p103
    %p105 = scmp.ne.s32.totalorder %s93, %s94
    %p106 = scmp.eq.s32.totalorder %s21, 1
    %p107 = por %p105, %p106
    %p109 = scmp.ne.s32.totalorder %s94, %s108
    %p110 = scmp.eq.s32.totalorder %s21, 0
    %p111 = por %p109, %p110
    %s113 = sadd.s32 %s112, 1
    %p116 = scmp.eq.s32.totalorder %s15, 1
    %p117 = scmp.ne.s32.totalorder %s112, %s114
    %p118 = scmp.eq.s32.totalorder %s15, 0
    %p119 = por %p117, %p118
    %p120 = scmp.ne.s32.totalorder %s112, %s114
    %p121 = scmp.eq.s32.totalorder %s20, 1
    %p122 = por %p120, %p121
    %p123 = scmp.ne.s32.totalorder %s114, %s115
    %p124 = scmp.eq.s32.totalorder %s20, 0
    %p125 = por %p123, %p124
    %p126 = scmp.ne.s32.totalorder %s114, %s115
    %p127 = scmp.eq.s32.totalorder %s21, 1
    %p128 = por %p126, %p127
    %p130 = scmp.ne.s32.totalorder %s115, %s129
    %p131 = scmp.eq.s32.totalorder %s21, 0
    %p132 = por %p130, %p131
    %s134 = sadd.s32 %s133, 1
    %p137 = scmp.eq.s32.totalorder %s15, 1
    %p138 = scmp.ne.s32.totalorder %s133, %s135
    %p139 = scmp.eq.s32.totalorder %s15, 0
    %p140 = por %p138, %p139
    %p141 = scmp.ne.s32.totalorder %s133, %s135
    %p142 = scmp.eq.s32.totalorder %s20, 1
    %p143 = por %p141, %p142
    %p144 = scmp.ne.s32.totalorder %s135, %s136
    %p145 = scmp.eq.s32.totalorder %s20, 0
    %p146 = por %p144, %p145
    %p147 = scmp.ne.s32.totalorder %s135, %s136
    %p148 = scmp.eq.s32.totalorder %s21, 1
    %p149 = por %p147, %p148
    %p151 = scmp.ne.s32.totalorder %s136, %s150
    %p152 = scmp.eq.s32.totalorder %s21, 0
    %p153 = por %p151, %p152
    %s155 = sadd.s32 %s154, 1
    %p158 = scmp.eq.s32.totalorder %s15, 1
    %p159 = scmp.ne.s32.totalorder %s154, %s156
    %p160 = scmp.eq.s32.totalorder %s15, 0
    %p161 = por %p159, %p160
    %p162 = scmp.ne.s32.totalorder %s154, %s156
    %p163 = scmp.eq.s32.totalorder %s20, 1
    %p164 = por %p162, %p163
    %p165 = scmp.ne.s32.totalorder %s156, %s157
    %p166 = scmp.eq.s32.totalorder %s20, 0
    %p167 = por %p165, %p166
    %p168 = scmp.ne.s32.totalorder %s156, %s157
    %p169 = scmp.eq.s32.totalorder %s21, 1
    %p170 = por %p168, %p169
    %p172 = scmp.ne.s32.totalorder %s157, %s171
    %p173 = scmp.eq.s32.totalorder %s21, 0
    %p174 = por %p172, %p173
    %s175 = ssub.s32 %s15, %s22
    %p176 = scmp.eq.s32.totalorder %s175, 0
    %s178 = sadd.s32 %s177, 1
    %s179 = scalar_select %p176, %s177, %s178
    %p182 = pneg %p176
    %p183 = scmp.eq.s32.totalorder %s15, 1
    %p184 = por %p182, %p183
    %p185 = scmp.ne.s32.totalorder %s177, %s180
    %p186 = scmp.eq.s32.totalorder %s15, 0
    %p187 = por %p185, %p186
    %p188 = scmp.ne.s32.totalorder %s177, %s180
    %p189 = scmp.eq.s32.totalorder %s20, 1
    %p190 = por %p188, %p189
    %p191 = scmp.ne.s32.totalorder %s180, %s181
    %p192 = scmp.eq.s32.totalorder %s20, 0
    %p193 = por %p191, %p192
    %p194 = scmp.ne.s32.totalorder %s180, %s181
    %p195 = scmp.eq.s32.totalorder %s21, 1
    %p196 = por %p194, %p195
    %p198 = scmp.ne.s32.totalorder %s181, %s197
    %p199 = scmp.eq.s32.totalorder %s21, 0
    %p200 = por %p198, %p199
    %s201 = ssub.s32 %s15, %s22
    %p202 = scmp.eq.s32.totalorder %s201, 0
    %s204 = sadd.s32 %s203, 1
    %s205 = scalar_select %p202, %s203, %s204
    %p208 = pneg %p202
    %p209 = scmp.eq.s32.totalorder %s15, 1
    %p210 = por %p208, %p209
    %p211 = scmp.ne.s32.totalorder %s203, %s206
    %p212 = scmp.eq.s32.totalorder %s15, 0
    %p213 = por %p211, %p212
    %p214 = scmp.ne.s32.totalorder %s203, %s206
    %p215 = scmp.eq.s32.totalorder %s20, 1
    %p216 = por %p214, %p215
    %p217 = scmp.ne.s32.totalorder %s206, %s207
    %p218 = scmp.eq.s32.totalorder %s20, 0
    %p219 = por %p217, %p218
    %p220 = scmp.ne.s32.totalorder %s206, %s207
    %p221 = scmp.eq.s32.totalorder %s21, 1
    %p222 = por %p220, %p221
    %p224 = scmp.ne.s32.totalorder %s207, %s223
    %p225 = scmp.eq.s32.totalorder %s21, 0
    %p226 = por %p224, %p225
    %p227 = scmp.le.s32.totalorder 1, %s15
    %p228 = scmp.lt.s32.totalorder %s15, 3
    %p229 = pnand %p227, %p228
    %p230 = pneg %p229
    // Predicated region
    $region9: #{_forward_impl.5} parent=5 // pred_check
      _
    $region10: #{_forward_impl.5} parent=5 // pred_check_branch
      %232 = sbr.rel (%p229) target = $region12
    $region11: #{_forward_impl.5} parent=5 // pred_region
      %s233 = ssub.s32 %s15, 1
      // Predicated region
      $region13: #{_forward_impl.5} parent=11 // pred_check
        %p234 = pneg %p62
      $region14: #{_forward_impl.5} parent=11 // pred_check_branch
        %236 = sbr.rel (%p234) target = $region16
      $region15: #{_forward_impl.5} parent=11 // pred_region
        _
      $region16: #{_forward_impl.5} parent=11 // pred_fallthru
        _
      // Predicated region
      $region17: #{_forward_impl.5} parent=11 // pred_check
        %p237 = pneg %p83
      $region18: #{_forward_impl.5} parent=11 // pred_check_branch
        %239 = sbr.rel (%p237) target = $region20
      $region19: #{_forward_impl.5} parent=11 // pred_region
        _
      $region20: #{_forward_impl.5} parent=11 // pred_fallthru
        _
      // Predicated region
      $region21: #{_forward_impl.5} parent=11 // pred_check
        %p240 = pneg %p104
      $region22: #{_forward_impl.5} parent=11 // pred_check_branch
        %242 = sbr.rel (%p240) target = $region24
      $region23: #{_forward_impl.5} parent=11 // pred_region
        _
      $region24: #{_forward_impl.5} parent=11 // pred_fallthru
        _
      // Predicated region
      $region25: #{_forward_impl.5} parent=11 // pred_check
        %p243 = pneg %p125
      $region26: #{_forward_impl.5} parent=11 // pred_check_branch
        %245 = sbr.rel (%p243) target = $region28
      $region27: #{_forward_impl.5} parent=11 // pred_region
        _
      $region28: #{_forward_impl.5} parent=11 // pred_fallthru
        _
      // Predicated region
      $region29: #{_forward_impl.5} parent=11 // pred_check
        %p246 = pneg %p146
      $region30: #{_forward_impl.5} parent=11 // pred_check_branch
        %248 = sbr.rel (%p246) target = $region32
      $region31: #{_forward_impl.5} parent=11 // pred_region
        _
      $region32: #{_forward_impl.5} parent=11 // pred_fallthru
        _
      // Predicated region
      $region33: #{_forward_impl.5} parent=11 // pred_check
        %p249 = pneg %p167
      $region34: #{_forward_impl.5} parent=11 // pred_check_branch
        %251 = sbr.rel (%p249) target = $region36
      $region35: #{_forward_impl.5} parent=11 // pred_region
        _
      $region36: #{_forward_impl.5} parent=11 // pred_fallthru
        _
    $region12: #{_forward_impl.5} parent=5 // pred_fallthru
      _
    %p252 = scmp.lt.s32.totalorder %s15, 2
    // Predicated region
    $region37: #{_forward_impl.5} parent=5 // pred_check
      %p253 = pneg %p252
    $region38: #{_forward_impl.5} parent=5 // pred_check_branch
      %255 = sbr.rel (%p253) target = $region40
    $region39: #{_forward_impl.5} parent=5 // pred_region
      // Predicated region
      $region41: #{_forward_impl.5} parent=39 // pred_check
        %p256 = pneg %p35
      $region42: #{_forward_impl.5} parent=39 // pred_check_branch
        %258 = sbr.rel (%p256) target = $region44
      $region43: #{_forward_impl.5} parent=39 // pred_region
        %p259 = scmp.lt.s32.totalorder %s15, 1
        %s260 = scalar_select %p259, %s15, 1
        %s261 = smul.addr %s260, 16
        %s262 = smul.addr %s261, 4
        %s263 = scalar_lea.vmem %s0, %s262
      $region44: #{_forward_impl.5} parent=39 // pred_fallthru
        _
    $region40: #{_forward_impl.5} parent=5 // pred_fallthru
      _
    %p264 = scmp.le.s32.totalorder 1, %s15
    %p265 = scmp.lt.s32.totalorder %s15, 3
    %p266 = pnand %p264, %p265
    %p267 = pneg %p266
    // Predicated region
    $region45: #{_forward_impl.5} parent=5 // pred_check
      _
    $region46: #{_forward_impl.5} parent=5 // pred_check_branch
      %269 = sbr.rel (%p266) target = $region48
    $region47: #{_forward_impl.5} parent=5 // pred_region
      %s270 = ssub.s32 %s15, 1
      %p271 = scmp.lt.s32.totalorder %s20, 1
      %s272 = scalar_select %p271, %s20, 1
      %s273 = smul.addr %s272, 16
      %s274 = smul.addr %s273, 4
      %s275 = scalar_lea.vmem %s0, %s274
      %p276 = pneg %p41
      %p277 = pneg %p38
      %p278 = pneg %p62
      %p279 = pneg %p59
      %p280 = pneg %p83
      %p281 = pneg %p80
      %p282 = pneg %p104
      %p283 = pneg %p101
      %p284 = pneg %p125
      %p285 = pneg %p122
      %p286 = pneg %p146
      %p287 = pneg %p143
      %p288 = pneg %p167
      %p289 = pneg %p164
      %p290 = pneg %p193
      %p291 = pneg %p190
      %p292 = scmp.lt.s32.totalorder %s20, 1
      %s293 = scalar_select %p292, %s20, 1
      %s294 = smul.addr %s293, 8
      %s295 = scalar_lea.vmem %s7, %s294
      %p296 = pneg %p219
      %p297 = pneg %p216
      %p298 = scmp.lt.s32.totalorder %s20, 1
      %s299 = scalar_select %p298, %s20, 1
      %s300 = smul.addr %s299, 8
      %s301 = scalar_lea.vmem %s8, %s300
      %p302 = scmp.lt.s32.totalorder %s20, 1
      %s303 = scalar_select %p302, %s20, 1
      %s304 = smul.addr %s303, 16
      %s305 = smul.addr %s304, 4
      %s306 = scalar_lea.vmem %s0, %s305
      %p307 = scmp.lt.s32.totalorder %s20, 1
      %s308 = scalar_select %p307, %s20, 1
      %s309 = smul.addr %s308, 8
      %s310 = scalar_lea.vmem %s7, %s309
      %p311 = scmp.lt.s32.totalorder %s20, 1
      %s312 = scalar_select %p311, %s20, 1
      %s313 = smul.addr %s312, 8
      %s314 = scalar_lea.vmem %s8, %s313
      %v316 = vld [vmem:[%s306] sm:$0xff]
      %v317 = vld [vmem:[%s306 + $0x8] sm:$0xff]
      %v318 = vld [vmem:[%s306 + $0x10] sm:$0xff]
      %v319 = vld [vmem:[%s306 + $0x18] sm:$0xff]
      %v320 = vld [vmem:[%s306 + $0x20] sm:$0xff]
      %v321 = vld [vmem:[%s306 + $0x28] sm:$0xff]
      %v322 = vld [vmem:[%s306 + $0x30] sm:$0xff]
      %v323 = vld [vmem:[%s306 + $0x38] sm:$0xff]
      %v324 = vld [vmem:[%s1] sm:$0xf]
      %v325 = vld [vmem:[%s1 + $0x4] sm:$0xf]
      %v326 = vld [vmem:[%s1 + $0x8] sm:$0xf]
      %v327 = vld [vmem:[%s1 + $0xc] sm:$0xf]
      %v328 = vld [vmem:[%s1 + $0x10] sm:$0xf]
      %v329 = vld [vmem:[%s1 + $0x14] sm:$0xf]
      %v330 = vld [vmem:[%s1 + $0x18] sm:$0xf]
      %v331 = vld [vmem:[%s1 + $0x1c] sm:$0xf]
      %v332 = vld [vmem:[%s1 + $0x20] sm:$0xf]
      %v333 = vld [vmem:[%s1 + $0x24] sm:$0xf]
      %v334 = vld [vmem:[%s1 + $0x28] sm:$0xf]
      %v335 = vld [vmem:[%s1 + $0x2c] sm:$0xf]
      %v336 = vld [vmem:[%s1 + $0x30] sm:$0xf]
      %v337 = vld [vmem:[%s1 + $0x34] sm:$0xf]
      %v338 = vld [vmem:[%s1 + $0x38] sm:$0xf]
      %v339 = vld [vmem:[%s1 + $0x3c] sm:$0xf]
      %v340 = vld [vmem:[%s1 + $0x40] sm:$0xf]
      %v341 = vld [vmem:[%s1 + $0x44] sm:$0xf]
      %v342 = vld [vmem:[%s1 + $0x48] sm:$0xf]
      %v343 = vld [vmem:[%s1 + $0x4c] sm:$0xf]
      %v344 = vld [vmem:[%s1 + $0x50] sm:$0xf]
      %v345 = vld [vmem:[%s1 + $0x54] sm:$0xf]
      %v346 = vld [vmem:[%s1 + $0x58] sm:$0xf]
      %v347 = vld [vmem:[%s1 + $0x5c] sm:$0xf]
      %v348 = vld [vmem:[%s1 + $0x60] sm:$0xf]
      %v349 = vld [vmem:[%s1 + $0x64] sm:$0xf]
      %v350 = vld [vmem:[%s1 + $0x68] sm:$0xf]
      %v351 = vld [vmem:[%s1 + $0x6c] sm:$0xf]
      %v352 = vld [vmem:[%s1 + $0x70] sm:$0xf]
      %v353 = vld [vmem:[%s1 + $0x74] sm:$0xf]
      %v354 = vld [vmem:[%s1 + $0x78] sm:$0xf]
      %v355 = vld [vmem:[%s1 + $0x7c] sm:$0xf]
      %v356 = vld [vmem:[%s1 + $0x80] sm:$0xf]
      %v357 = vld [vmem:[%s1 + $0x84] sm:$0xf]
      %v358 = vld [vmem:[%s1 + $0x88] sm:$0xf]
      %v359 = vld [vmem:[%s1 + $0x8c] sm:$0xf]
      %v360 = vld [vmem:[%s1 + $0x90] sm:$0xf]
      %v361 = vld [vmem:[%s1 + $0x94] sm:$0xf]
      %v362 = vld [vmem:[%s1 + $0x98] sm:$0xf]
      %v363 = vld [vmem:[%s1 + $0x9c] sm:$0xf]
      %v364 = vld [vmem:[%s1 + $0xa0] sm:$0xf]
      %v365 = vld [vmem:[%s1 + $0xa4] sm:$0xf]
      %v366 = vld [vmem:[%s1 + $0xa8] sm:$0xf]
      %v367 = vld [vmem:[%s1 + $0xac] sm:$0xf]
      %v368 = vld [vmem:[%s1 + $0xb0] sm:$0xf]
      %v369 = vld [vmem:[%s1 + $0xb4] sm:$0xf]
      %v370 = vld [vmem:[%s1 + $0xb8] sm:$0xf]
      %v371 = vld [vmem:[%s1 + $0xbc] sm:$0xf]
      %v372 = vld [vmem:[%s1 + $0xc0] sm:$0xf]
      %v373 = vld [vmem:[%s1 + $0xc4] sm:$0xf]
      %v374 = vld [vmem:[%s1 + $0xc8] sm:$0xf]
      %v375 = vld [vmem:[%s1 + $0xcc] sm:$0xf]
      %v376 = vld [vmem:[%s1 + $0xd0] sm:$0xf]
      %v377 = vld [vmem:[%s1 + $0xd4] sm:$0xf]
      %v378 = vld [vmem:[%s1 + $0xd8] sm:$0xf]
      %v379 = vld [vmem:[%s1 + $0xdc] sm:$0xf]
      %v380 = vld [vmem:[%s1 + $0xe0] sm:$0xf]
      %v381 = vld [vmem:[%s1 + $0xe4] sm:$0xf]
      %v382 = vld [vmem:[%s1 + $0xe8] sm:$0xf]
      %v383 = vld [vmem:[%s1 + $0xec] sm:$0xf]
      %v384 = vld [vmem:[%s1 + $0xf0] sm:$0xf]
      %v385 = vld [vmem:[%s1 + $0xf4] sm:$0xf]
      %v386 = vld [vmem:[%s1 + $0xf8] sm:$0xf]
      %v387 = vld [vmem:[%s1 + $0xfc] sm:$0xf]
      %v388 = vld [vmem:[%s1 + $0x100] sm:$0xf]
      %v389 = vld [vmem:[%s1 + $0x104] sm:$0xf]
      %v390 = vld [vmem:[%s1 + $0x108] sm:$0xf]
      %v391 = vld [vmem:[%s1 + $0x10c] sm:$0xf]
      %v392 = vld [vmem:[%s1 + $0x110] sm:$0xf]
      %v393 = vld [vmem:[%s1 + $0x114] sm:$0xf]
      %v394 = vld [vmem:[%s1 + $0x118] sm:$0xf]
      %v395 = vld [vmem:[%s1 + $0x11c] sm:$0xf]
      %v396 = vld [vmem:[%s1 + $0x120] sm:$0xf]
      %v397 = vld [vmem:[%s1 + $0x124] sm:$0xf]
      %v398 = vld [vmem:[%s1 + $0x128] sm:$0xf]
      %v399 = vld [vmem:[%s1 + $0x12c] sm:$0xf]
      %v400 = vld [vmem:[%s1 + $0x130] sm:$0xf]
      %v401 = vld [vmem:[%s1 + $0x134] sm:$0xf]
      %v402 = vld [vmem:[%s1 + $0x138] sm:$0xf]
      %v403 = vld [vmem:[%s1 + $0x13c] sm:$0xf]
      %v404 = vld [vmem:[%s1 + $0x140] sm:$0xf]
      %v405 = vld [vmem:[%s1 + $0x144] sm:$0xf]
      %v406 = vld [vmem:[%s1 + $0x148] sm:$0xf]
      %v407 = vld [vmem:[%s1 + $0x14c] sm:$0xf]
      %v408 = vld [vmem:[%s1 + $0x150] sm:$0xf]
      %v409 = vld [vmem:[%s1 + $0x154] sm:$0xf]
      %v410 = vld [vmem:[%s1 + $0x158] sm:$0xf]
      %v411 = vld [vmem:[%s1 + $0x15c] sm:$0xf]
      %v412 = vld [vmem:[%s1 + $0x160] sm:$0xf]
      %v413 = vld [vmem:[%s1 + $0x164] sm:$0xf]
      %v414 = vld [vmem:[%s1 + $0x168] sm:$0xf]
      %v415 = vld [vmem:[%s1 + $0x16c] sm:$0xf]
      %v416 = vld [vmem:[%s1 + $0x170] sm:$0xf]
      %v417 = vld [vmem:[%s1 + $0x174] sm:$0xf]
      %v418 = vld [vmem:[%s1 + $0x178] sm:$0xf]
      %v419 = vld [vmem:[%s1 + $0x17c] sm:$0xf]
      %v420 = vld [vmem:[%s1 + $0x180] sm:$0xf]
      %v421 = vld [vmem:[%s1 + $0x184] sm:$0xf]
      %v422 = vld [vmem:[%s1 + $0x188] sm:$0xf]
      %v423 = vld [vmem:[%s1 + $0x18c] sm:$0xf]
      %v424 = vld [vmem:[%s1 + $0x190] sm:$0xf]
      %v425 = vld [vmem:[%s1 + $0x194] sm:$0xf]
      %v426 = vld [vmem:[%s1 + $0x198] sm:$0xf]
      %v427 = vld [vmem:[%s1 + $0x19c] sm:$0xf]
      %v428 = vld [vmem:[%s1 + $0x1a0] sm:$0xf]
      %v429 = vld [vmem:[%s1 + $0x1a4] sm:$0xf]
      %v430 = vld [vmem:[%s1 + $0x1a8] sm:$0xf]
      %v431 = vld [vmem:[%s1 + $0x1ac] sm:$0xf]
      %v432 = vld [vmem:[%s1 + $0x1b0] sm:$0xf]
      %v433 = vld [vmem:[%s1 + $0x1b4] sm:$0xf]
      %v434 = vld [vmem:[%s1 + $0x1b8] sm:$0xf]
      %v435 = vld [vmem:[%s1 + $0x1bc] sm:$0xf]
      %v436 = vld [vmem:[%s1 + $0x1c0] sm:$0xf]
      %v437 = vld [vmem:[%s1 + $0x1c4] sm:$0xf]
      %v438 = vld [vmem:[%s1 + $0x1c8] sm:$0xf]
      %v439 = vld [vmem:[%s1 + $0x1cc] sm:$0xf]
      %v440 = vld [vmem:[%s1 + $0x1d0] sm:$0xf]
      %v441 = vld [vmem:[%s1 + $0x1d4] sm:$0xf]
      %v442 = vld [vmem:[%s1 + $0x1d8] sm:$0xf]
      %v443 = vld [vmem:[%s1 + $0x1dc] sm:$0xf]
      %v444 = vld [vmem:[%s1 + $0x1e0] sm:$0xf]
      %v445 = vld [vmem:[%s1 + $0x1e4] sm:$0xf]
      %v446 = vld [vmem:[%s1 + $0x1e8] sm:$0xf]
      %v447 = vld [vmem:[%s1 + $0x1ec] sm:$0xf]
      %v448 = vld [vmem:[%s1 + $0x1f0] sm:$0xf]
      %v449 = vld [vmem:[%s1 + $0x1f4] sm:$0xf]
      %v450 = vld [vmem:[%s1 + $0x1f8] sm:$0xf]
      %v451 = vld [vmem:[%s1 + $0x1fc] sm:$0xf]
      %v452 = vld [vmem:[%s1 + $0x200] sm:$0xf]
      %v453 = vld [vmem:[%s1 + $0x204] sm:$0xf]
      %v454 = vld [vmem:[%s1 + $0x208] sm:$0xf]
      %v455 = vld [vmem:[%s1 + $0x20c] sm:$0xf]
      %v456 = vld [vmem:[%s1 + $0x210] sm:$0xf]
      %v457 = vld [vmem:[%s1 + $0x214] sm:$0xf]
      %v458 = vld [vmem:[%s1 + $0x218] sm:$0xf]
      %v459 = vld [vmem:[%s1 + $0x21c] sm:$0xf]
      %v460 = vld [vmem:[%s1 + $0x220] sm:$0xf]
      %v461 = vld [vmem:[%s1 + $0x224] sm:$0xf]
      %v462 = vld [vmem:[%s1 + $0x228] sm:$0xf]
      %v463 = vld [vmem:[%s1 + $0x22c] sm:$0xf]
      %v464 = vld [vmem:[%s1 + $0x230] sm:$0xf]
      %v465 = vld [vmem:[%s1 + $0x234] sm:$0xf]
      %v466 = vld [vmem:[%s1 + $0x238] sm:$0xf]
      %v467 = vld [vmem:[%s1 + $0x23c] sm:$0xf]
      %v468 = vld [vmem:[%s1 + $0x240] sm:$0xf]
      %v469 = vld [vmem:[%s1 + $0x244] sm:$0xf]
      %v470 = vld [vmem:[%s1 + $0x248] sm:$0xf]
      %v471 = vld [vmem:[%s1 + $0x24c] sm:$0xf]
      %v472 = vld [vmem:[%s1 + $0x250] sm:$0xf]
      %v473 = vld [vmem:[%s1 + $0x254] sm:$0xf]
      %v474 = vld [vmem:[%s1 + $0x258] sm:$0xf]
      %v475 = vld [vmem:[%s1 + $0x25c] sm:$0xf]
      %v476 = vld [vmem:[%s1 + $0x260] sm:$0xf]
      %v477 = vld [vmem:[%s1 + $0x264] sm:$0xf]
      %v478 = vld [vmem:[%s1 + $0x268] sm:$0xf]
      %v479 = vld [vmem:[%s1 + $0x26c] sm:$0xf]
      %v480 = vld [vmem:[%s1 + $0x270] sm:$0xf]
      %v481 = vld [vmem:[%s1 + $0x274] sm:$0xf]
      %v482 = vld [vmem:[%s1 + $0x278] sm:$0xf]
      %v483 = vld [vmem:[%s1 + $0x27c] sm:$0xf]
      %v484 = vld [vmem:[%s1 + $0x280] sm:$0xf]
      %v485 = vld [vmem:[%s1 + $0x284] sm:$0xf]
      %v486 = vld [vmem:[%s1 + $0x288] sm:$0xf]
      %v487 = vld [vmem:[%s1 + $0x28c] sm:$0xf]
      %v488 = vld [vmem:[%s1 + $0x290] sm:$0xf]
      %v489 = vld [vmem:[%s1 + $0x294] sm:$0xf]
      %v490 = vld [vmem:[%s1 + $0x298] sm:$0xf]
      %v491 = vld [vmem:[%s1 + $0x29c] sm:$0xf]
      %v492 = vld [vmem:[%s1 + $0x2a0] sm:$0xf]
      %v493 = vld [vmem:[%s1 + $0x2a4] sm:$0xf]
      %v494 = vld [vmem:[%s1 + $0x2a8] sm:$0xf]
      %v495 = vld [vmem:[%s1 + $0x2ac] sm:$0xf]
      %v496 = vld [vmem:[%s1 + $0x2b0] sm:$0xf]
      %v497 = vld [vmem:[%s1 + $0x2b4] sm:$0xf]
      %v498 = vld [vmem:[%s1 + $0x2b8] sm:$0xf]
      %v499 = vld [vmem:[%s1 + $0x2bc] sm:$0xf]
      %v500 = vld [vmem:[%s1 + $0x2c0] sm:$0xf]
      %v501 = vld [vmem:[%s1 + $0x2c4] sm:$0xf]
      %v502 = vld [vmem:[%s1 + $0x2c8] sm:$0xf]
      %v503 = vld [vmem:[%s1 + $0x2cc] sm:$0xf]
      %v504 = vld [vmem:[%s1 + $0x2d0] sm:$0xf]
      %v505 = vld [vmem:[%s1 + $0x2d4] sm:$0xf]
      %v506 = vld [vmem:[%s1 + $0x2d8] sm:$0xf]
      %v507 = vld [vmem:[%s1 + $0x2dc] sm:$0xf]
      %v508 = vld [vmem:[%s1 + $0x2e0] sm:$0xf]
      %v509 = vld [vmem:[%s1 + $0x2e4] sm:$0xf]
      %v510 = vld [vmem:[%s1 + $0x2e8] sm:$0xf]
      %v511 = vld [vmem:[%s1 + $0x2ec] sm:$0xf]
      %v512 = vld [vmem:[%s1 + $0x2f0] sm:$0xf]
      %v513 = vld [vmem:[%s1 + $0x2f4] sm:$0xf]
      %v514 = vld [vmem:[%s1 + $0x2f8] sm:$0xf]
      %v515 = vld [vmem:[%s1 + $0x2fc] sm:$0xf]
      %v516 = vld [vmem:[%s1 + $0x300] sm:$0xf]
      %v517 = vld [vmem:[%s1 + $0x304] sm:$0xf]
      %v518 = vld [vmem:[%s1 + $0x308] sm:$0xf]
      %v519 = vld [vmem:[%s1 + $0x30c] sm:$0xf]
      %v520 = vld [vmem:[%s1 + $0x310] sm:$0xf]
      %v521 = vld [vmem:[%s1 + $0x314] sm:$0xf]
      %v522 = vld [vmem:[%s1 + $0x318] sm:$0xf]
      %v523 = vld [vmem:[%s1 + $0x31c] sm:$0xf]
      %v524 = vld [vmem:[%s1 + $0x320] sm:$0xf]
      %v525 = vld [vmem:[%s1 + $0x324] sm:$0xf]
      %v526 = vld [vmem:[%s1 + $0x328] sm:$0xf]
      %v527 = vld [vmem:[%s1 + $0x32c] sm:$0xf]
      %v528 = vld [vmem:[%s1 + $0x330] sm:$0xf]
      %v529 = vld [vmem:[%s1 + $0x334] sm:$0xf]
      %v530 = vld [vmem:[%s1 + $0x338] sm:$0xf]
      %v531 = vld [vmem:[%s1 + $0x33c] sm:$0xf]
      %v532 = vld [vmem:[%s1 + $0x340] sm:$0xf]
      %v533 = vld [vmem:[%s1 + $0x344] sm:$0xf]
      %v534 = vld [vmem:[%s1 + $0x348] sm:$0xf]
      %v535 = vld [vmem:[%s1 + $0x34c] sm:$0xf]
      %v536 = vld [vmem:[%s1 + $0x350] sm:$0xf]
      %v537 = vld [vmem:[%s1 + $0x354] sm:$0xf]
      %v538 = vld [vmem:[%s1 + $0x358] sm:$0xf]
      %v539 = vld [vmem:[%s1 + $0x35c] sm:$0xf]
      %v540 = vld [vmem:[%s1 + $0x360] sm:$0xf]
      %v541 = vld [vmem:[%s1 + $0x364] sm:$0xf]
      %v542 = vld [vmem:[%s1 + $0x368] sm:$0xf]
      %v543 = vld [vmem:[%s1 + $0x36c] sm:$0xf]
      %v544 = vld [vmem:[%s1 + $0x370] sm:$0xf]
      %v545 = vld [vmem:[%s1 + $0x374] sm:$0xf]
      %v546 = vld [vmem:[%s1 + $0x378] sm:$0xf]
      %v547 = vld [vmem:[%s1 + $0x37c] sm:$0xf]
      %v548 = vld [vmem:[%s1 + $0x380] sm:$0xf]
      %v549 = vld [vmem:[%s1 + $0x384] sm:$0xf]
      %v550 = vld [vmem:[%s1 + $0x388] sm:$0xf]
      %v551 = vld [vmem:[%s1 + $0x38c] sm:$0xf]
      %v552 = vld [vmem:[%s1 + $0x390] sm:$0xf]
      %v553 = vld [vmem:[%s1 + $0x394] sm:$0xf]
      %v554 = vld [vmem:[%s1 + $0x398] sm:$0xf]
      %v555 = vld [vmem:[%s1 + $0x39c] sm:$0xf]
      %v556 = vld [vmem:[%s1 + $0x3a0] sm:$0xf]
      %v557 = vld [vmem:[%s1 + $0x3a4] sm:$0xf]
      %v558 = vld [vmem:[%s1 + $0x3a8] sm:$0xf]
      %v559 = vld [vmem:[%s1 + $0x3ac] sm:$0xf]
      %v560 = vld [vmem:[%s1 + $0x3b0] sm:$0xf]
      %v561 = vld [vmem:[%s1 + $0x3b4] sm:$0xf]
      %v562 = vld [vmem:[%s1 + $0x3b8] sm:$0xf]
      %v563 = vld [vmem:[%s1 + $0x3bc] sm:$0xf]
      %v564 = vld [vmem:[%s1 + $0x3c0] sm:$0xf]
      %v565 = vld [vmem:[%s1 + $0x3c4] sm:$0xf]
      %v566 = vld [vmem:[%s1 + $0x3c8] sm:$0xf]
      %v567 = vld [vmem:[%s1 + $0x3cc] sm:$0xf]
      %v568 = vld [vmem:[%s1 + $0x3d0] sm:$0xf]
      %v569 = vld [vmem:[%s1 + $0x3d4] sm:$0xf]
      %v570 = vld [vmem:[%s1 + $0x3d8] sm:$0xf]
      %v571 = vld [vmem:[%s1 + $0x3dc] sm:$0xf]
      %v572 = vld [vmem:[%s1 + $0x3e0] sm:$0xf]
      %v573 = vld [vmem:[%s1 + $0x3e4] sm:$0xf]
      %v574 = vld [vmem:[%s1 + $0x3e8] sm:$0xf]
      %v575 = vld [vmem:[%s1 + $0x3ec] sm:$0xf]
      %v576 = vld [vmem:[%s1 + $0x3f0] sm:$0xf]
      %v577 = vld [vmem:[%s1 + $0x3f4] sm:$0xf]
      %v578 = vld [vmem:[%s1 + $0x3f8] sm:$0xf]
      %v579 = vld [vmem:[%s1 + $0x3fc] sm:$0xf]
      %v580 = vld [vmem:[%s2] sm:$0x1]
      %v582 = vlaneseq
      %v583 = vshrl.u32 %v582, 7
      %v584 = vsub.s32 0, %v583
      %v585 = vrot.slane %v580, %v584
      %v595 = vunpack.c.l.b16 %v316
      %v596 = vunpack.c.h.b16 %v316
      %v597 = vunpack.c.l.b16 %v317
      %v598 = vunpack.c.h.b16 %v317
      %v599 = vunpack.c.l.b16 %v318
      %v600 = vunpack.c.h.b16 %v318
      %v601 = vunpack.c.l.b16 %v319
      %v602 = vunpack.c.h.b16 %v319
      %v603 = vunpack.c.l.b16 %v320
      %v604 = vunpack.c.h.b16 %v320
      %v605 = vunpack.c.l.b16 %v321
      %v606 = vunpack.c.h.b16 %v321
      %v607 = vunpack.c.l.b16 %v322
      %v608 = vunpack.c.h.b16 %v322
      %v609 = vunpack.c.l.b16 %v323
      %v610 = vunpack.c.h.b16 %v323
      %v611 = vpack.c.b16 %v595, %v595
      %v612 = vpack.c.b16 %v596, %v596
      %v613 = vpack.c.b16 %v597, %v597
      %v614 = vpack.c.b16 %v598, %v598
      %v615 = vpack.c.b16 %v599, %v599
      %v616 = vpack.c.b16 %v600, %v600
      %v617 = vpack.c.b16 %v601, %v601
      %v618 = vpack.c.b16 %v602, %v602
      %v619 = vpack.c.b16 %v603, %v603
      %v620 = vpack.c.b16 %v604, %v604
      %v621 = vpack.c.b16 %v605, %v605
      %v622 = vpack.c.b16 %v606, %v606
      %v623 = vpack.c.b16 %v607, %v607
      %v624 = vpack.c.b16 %v608, %v608
      %v625 = vpack.c.b16 %v609, %v609
      %v626 = vpack.c.b16 %v610, %v610
      %v899 = vunpack.c.l.b16 %v324
      %v900 = vunpack.c.l.b16 %v325
      %v901 = vunpack.c.l.b16 %v326
      %v902 = vunpack.c.l.b16 %v327
      %v903 = vunpack.c.l.b16 %v328
      %v904 = vunpack.c.l.b16 %v329
      %v905 = vunpack.c.l.b16 %v330
      %v906 = vunpack.c.l.b16 %v331
      %v907 = vunpack.c.l.b16 %v332
      %v908 = vunpack.c.l.b16 %v333
      %v909 = vunpack.c.l.b16 %v334
      %v910 = vunpack.c.l.b16 %v335
      %v911 = vunpack.c.l.b16 %v336
      %v912 = vunpack.c.l.b16 %v337
      %v913 = vunpack.c.l.b16 %v338
      %v914 = vunpack.c.l.b16 %v339
      %v915 = vunpack.c.l.b16 %v340
      %v916 = vunpack.c.l.b16 %v341
      %v917 = vunpack.c.l.b16 %v342
      %v918 = vunpack.c.l.b16 %v343
      %v919 = vunpack.c.l.b16 %v344
      %v920 = vunpack.c.l.b16 %v345
      %v921 = vunpack.c.l.b16 %v346
      %v922 = vunpack.c.l.b16 %v347
      %v923 = vunpack.c.l.b16 %v348
      %v924 = vunpack.c.l.b16 %v349
      %v925 = vunpack.c.l.b16 %v350
      %v926 = vunpack.c.l.b16 %v351
      %v927 = vunpack.c.l.b16 %v352
      %v928 = vunpack.c.l.b16 %v353
      %v929 = vunpack.c.l.b16 %v354
      %v930 = vunpack.c.l.b16 %v355
      %v931 = vunpack.c.l.b16 %v356
      %v932 = vunpack.c.l.b16 %v357
      %v933 = vunpack.c.l.b16 %v358
      %v934 = vunpack.c.l.b16 %v359
      %v935 = vunpack.c.l.b16 %v360
      %v936 = vunpack.c.l.b16 %v361
      %v937 = vunpack.c.l.b16 %v362
      %v938 = vunpack.c.l.b16 %v363
      %v939 = vunpack.c.l.b16 %v364
      %v940 = vunpack.c.l.b16 %v365
      %v941 = vunpack.c.l.b16 %v366
      %v942 = vunpack.c.l.b16 %v367
      %v943 = vunpack.c.l.b16 %v368
      %v944 = vunpack.c.l.b16 %v369
      %v945 = vunpack.c.l.b16 %v370
      %v946 = vunpack.c.l.b16 %v371
      %v947 = vunpack.c.l.b16 %v372
      %v948 = vunpack.c.l.b16 %v373
      %v949 = vunpack.c.l.b16 %v374
      %v950 = vunpack.c.l.b16 %v375
      %v951 = vunpack.c.l.b16 %v376
      %v952 = vunpack.c.l.b16 %v377
      %v953 = vunpack.c.l.b16 %v378
      %v954 = vunpack.c.l.b16 %v379
      %v955 = vunpack.c.l.b16 %v380
      %v956 = vunpack.c.l.b16 %v381
      %v957 = vunpack.c.l.b16 %v382
      %v958 = vunpack.c.l.b16 %v383
      %v959 = vunpack.c.l.b16 %v384
      %v960 = vunpack.c.l.b16 %v385
      %v961 = vunpack.c.l.b16 %v386
      %v962 = vunpack.c.l.b16 %v387
      %v963 = vunpack.c.l.b16 %v388
      %v964 = vunpack.c.l.b16 %v389
      %v965 = vunpack.c.l.b16 %v390
      %v966 = vunpack.c.l.b16 %v391
      %v967 = vunpack.c.l.b16 %v392
      %v968 = vunpack.c.l.b16 %v393
      %v969 = vunpack.c.l.b16 %v394
      %v970 = vunpack.c.l.b16 %v395
      %v971 = vunpack.c.l.b16 %v396
      %v972 = vunpack.c.l.b16 %v397
      %v973 = vunpack.c.l.b16 %v398
      %v974 = vunpack.c.l.b16 %v399
      %v975 = vunpack.c.l.b16 %v400
      %v976 = vunpack.c.l.b16 %v401
      %v977 = vunpack.c.l.b16 %v402
      %v978 = vunpack.c.l.b16 %v403
      %v979 = vunpack.c.l.b16 %v404
      %v980 = vunpack.c.l.b16 %v405
      %v981 = vunpack.c.l.b16 %v406
      %v982 = vunpack.c.l.b16 %v407
      %v983 = vunpack.c.l.b16 %v408
      %v984 = vunpack.c.l.b16 %v409
      %v985 = vunpack.c.l.b16 %v410
      %v986 = vunpack.c.l.b16 %v411
      %v987 = vunpack.c.l.b16 %v412
      %v988 = vunpack.c.l.b16 %v413
      %v989 = vunpack.c.l.b16 %v414
      %v990 = vunpack.c.l.b16 %v415
      %v991 = vunpack.c.l.b16 %v416
      %v992 = vunpack.c.l.b16 %v417
      %v993 = vunpack.c.l.b16 %v418
      %v994 = vunpack.c.l.b16 %v419
      %v995 = vunpack.c.l.b16 %v420
      %v996 = vunpack.c.l.b16 %v421
      %v997 = vunpack.c.l.b16 %v422
      %v998 = vunpack.c.l.b16 %v423
      %v999 = vunpack.c.l.b16 %v424
      %v1000 = vunpack.c.l.b16 %v425
      %v1001 = vunpack.c.l.b16 %v426
      %v1002 = vunpack.c.l.b16 %v427
      %v1003 = vunpack.c.l.b16 %v428
      %v1004 = vunpack.c.l.b16 %v429
      %v1005 = vunpack.c.l.b16 %v430
      %v1006 = vunpack.c.l.b16 %v431
      %v1007 = vunpack.c.l.b16 %v432
      %v1008 = vunpack.c.l.b16 %v433
      %v1009 = vunpack.c.l.b16 %v434
      %v1010 = vunpack.c.l.b16 %v435
      %v1011 = vunpack.c.l.b16 %v436
      %v1012 = vunpack.c.l.b16 %v437
      %v1013 = vunpack.c.l.b16 %v438
      %v1014 = vunpack.c.l.b16 %v439
      %v1015 = vunpack.c.l.b16 %v440
      %v1016 = vunpack.c.l.b16 %v441
      %v1017 = vunpack.c.l.b16 %v442
      %v1018 = vunpack.c.l.b16 %v443
      %v1019 = vunpack.c.l.b16 %v444
      %v1020 = vunpack.c.l.b16 %v445
      %v1021 = vunpack.c.l.b16 %v446
      %v1022 = vunpack.c.l.b16 %v447
      %v1023 = vunpack.c.l.b16 %v448
      %v1024 = vunpack.c.l.b16 %v449
      %v1025 = vunpack.c.l.b16 %v450
      %v1026 = vunpack.c.l.b16 %v451
      %v1027 = vunpack.c.l.b16 %v452
      %v1028 = vunpack.c.l.b16 %v453
      %v1029 = vunpack.c.l.b16 %v454
      %v1030 = vunpack.c.l.b16 %v455
      %v1031 = vunpack.c.l.b16 %v456
      %v1032 = vunpack.c.l.b16 %v457
      %v1033 = vunpack.c.l.b16 %v458
      %v1034 = vunpack.c.l.b16 %v459
      %v1035 = vunpack.c.l.b16 %v460
      %v1036 = vunpack.c.l.b16 %v461
      %v1037 = vunpack.c.l.b16 %v462
      %v1038 = vunpack.c.l.b16 %v463
      %v1039 = vunpack.c.l.b16 %v464
      %v1040 = vunpack.c.l.b16 %v465
      %v1041 = vunpack.c.l.b16 %v466
      %v1042 = vunpack.c.l.b16 %v467
      %v1043 = vunpack.c.l.b16 %v468
      %v1044 = vunpack.c.l.b16 %v469
      %v1045 = vunpack.c.l.b16 %v470
      %v1046 = vunpack.c.l.b16 %v471
      %v1047 = vunpack.c.l.b16 %v472
      %v1048 = vunpack.c.l.b16 %v473
      %v1049 = vunpack.c.l.b16 %v474
      %v1050 = vunpack.c.l.b16 %v475
      %v1051 = vunpack.c.l.b16 %v476
      %v1052 = vunpack.c.l.b16 %v477
      %v1053 = vunpack.c.l.b16 %v478
      %v1054 = vunpack.c.l.b16 %v479
      %v1055 = vunpack.c.l.b16 %v480
      %v1056 = vunpack.c.l.b16 %v481
      %v1057 = vunpack.c.l.b16 %v482
      %v1058 = vunpack.c.l.b16 %v483
      %v1059 = vunpack.c.l.b16 %v484
      %v1060 = vunpack.c.l.b16 %v485
      %v1061 = vunpack.c.l.b16 %v486
      %v1062 = vunpack.c.l.b16 %v487
      %v1063 = vunpack.c.l.b16 %v488
      %v1064 = vunpack.c.l.b16 %v489
      %v1065 = vunpack.c.l.b16 %v490
      %v1066 = vunpack.c.l.b16 %v491
      %v1067 = vunpack.c.l.b16 %v492
      %v1068 = vunpack.c.l.b16 %v493
      %v1069 = vunpack.c.l.b16 %v494
      %v1070 = vunpack.c.l.b16 %v495
      %v1071 = vunpack.c.l.b16 %v496
      %v1072 = vunpack.c.l.b16 %v497
      %v1073 = vunpack.c.l.b16 %v498
      %v1074 = vunpack.c.l.b16 %v499
      %v1075 = vunpack.c.l.b16 %v500
      %v1076 = vunpack.c.l.b16 %v501
      %v1077 = vunpack.c.l.b16 %v502
      %v1078 = vunpack.c.l.b16 %v503
      %v1079 = vunpack.c.l.b16 %v504
      %v1080 = vunpack.c.l.b16 %v505
      %v1081 = vunpack.c.l.b16 %v506
      %v1082 = vunpack.c.l.b16 %v507
      %v1083 = vunpack.c.l.b16 %v508
      %v1084 = vunpack.c.l.b16 %v509
      %v1085 = vunpack.c.l.b16 %v510
      %v1086 = vunpack.c.l.b16 %v511
      %v1087 = vunpack.c.l.b16 %v512
      %v1088 = vunpack.c.l.b16 %v513
      %v1089 = vunpack.c.l.b16 %v514
      %v1090 = vunpack.c.l.b16 %v515
      %v1091 = vunpack.c.l.b16 %v516
      %v1092 = vunpack.c.l.b16 %v517
      %v1093 = vunpack.c.l.b16 %v518
      %v1094 = vunpack.c.l.b16 %v519
      %v1095 = vunpack.c.l.b16 %v520
      %v1096 = vunpack.c.l.b16 %v521
      %v1097 = vunpack.c.l.b16 %v522
      %v1098 = vunpack.c.l.b16 %v523
      %v1099 = vunpack.c.l.b16 %v524
      %v1100 = vunpack.c.l.b16 %v525
      %v1101 = vunpack.c.l.b16 %v526
      %v1102 = vunpack.c.l.b16 %v527
      %v1103 = vunpack.c.l.b16 %v528
      %v1104 = vunpack.c.l.b16 %v529
      %v1105 = vunpack.c.l.b16 %v530
      %v1106 = vunpack.c.l.b16 %v531
      %v1107 = vunpack.c.l.b16 %v532
      %v1108 = vunpack.c.l.b16 %v533
      %v1109 = vunpack.c.l.b16 %v534
      %v1110 = vunpack.c.l.b16 %v535
      %v1111 = vunpack.c.l.b16 %v536
      %v1112 = vunpack.c.l.b16 %v537
      %v1113 = vunpack.c.l.b16 %v538
      %v1114 = vunpack.c.l.b16 %v539
      %v1115 = vunpack.c.l.b16 %v540
      %v1116 = vunpack.c.l.b16 %v541
      %v1117 = vunpack.c.l.b16 %v542
      %v1118 = vunpack.c.l.b16 %v543
      %v1119 = vunpack.c.l.b16 %v544
      %v1120 = vunpack.c.l.b16 %v545
      %v1121 = vunpack.c.l.b16 %v546
      %v1122 = vunpack.c.l.b16 %v547
      %v1123 = vunpack.c.l.b16 %v548
      %v1124 = vunpack.c.l.b16 %v549
      %v1125 = vunpack.c.l.b16 %v550
      %v1126 = vunpack.c.l.b16 %v551
      %v1127 = vunpack.c.l.b16 %v552
      %v1128 = vunpack.c.l.b16 %v553
      %v1129 = vunpack.c.l.b16 %v554
      %v1130 = vunpack.c.l.b16 %v555
      %v1131 = vunpack.c.l.b16 %v556
      %v1132 = vunpack.c.l.b16 %v557
      %v1133 = vunpack.c.l.b16 %v558
      %v1134 = vunpack.c.l.b16 %v559
      %v1135 = vunpack.c.l.b16 %v560
      %v1136 = vunpack.c.l.b16 %v561
      %v1137 = vunpack.c.l.b16 %v562
      %v1138 = vunpack.c.l.b16 %v563
      %v1139 = vunpack.c.l.b16 %v564
      %v1140 = vunpack.c.l.b16 %v565
      %v1141 = vunpack.c.l.b16 %v566
      %v1142 = vunpack.c.l.b16 %v567
      %v1143 = vunpack.c.l.b16 %v568
      %v1144 = vunpack.c.l.b16 %v569
      %v1145 = vunpack.c.l.b16 %v570
      %v1146 = vunpack.c.l.b16 %v571
      %v1147 = vunpack.c.l.b16 %v572
      %v1148 = vunpack.c.l.b16 %v573
      %v1149 = vunpack.c.l.b16 %v574
      %v1150 = vunpack.c.l.b16 %v575
      %v1151 = vunpack.c.l.b16 %v576
      %v1152 = vunpack.c.l.b16 %v577
      %v1153 = vunpack.c.l.b16 %v578
      %v1154 = vunpack.c.l.b16 %v579
      %v1155 = vpack.c.b16 %v900, %v899
      %v1156 = vpack.c.b16 %v902, %v901
      %v1157 = vpack.c.b16 %v904, %v903
      %v1158 = vpack.c.b16 %v906, %v905
      %v1159 = vpack.c.b16 %v908, %v907
      %v1160 = vpack.c.b16 %v910, %v909
      %v1161 = vpack.c.b16 %v912, %v911
      %v1162 = vpack.c.b16 %v914, %v913
      %v1163 = vpack.c.b16 %v916, %v915
      %v1164 = vpack.c.b16 %v918, %v917
      %v1165 = vpack.c.b16 %v920, %v919
      %v1166 = vpack.c.b16 %v922, %v921
      %v1167 = vpack.c.b16 %v924, %v923
      %v1168 = vpack.c.b16 %v926, %v925
      %v1169 = vpack.c.b16 %v928, %v927
      %v1170 = vpack.c.b16 %v930, %v929
      %v1171 = vpack.c.b16 %v932, %v931
      %v1172 = vpack.c.b16 %v934, %v933
      %v1173 = vpack.c.b16 %v936, %v935
      %v1174 = vpack.c.b16 %v938, %v937
      %v1175 = vpack.c.b16 %v940, %v939
      %v1176 = vpack.c.b16 %v942, %v941
      %v1177 = vpack.c.b16 %v944, %v943
      %v1178 = vpack.c.b16 %v946, %v945
      %v1179 = vpack.c.b16 %v948, %v947
      %v1180 = vpack.c.b16 %v950, %v949
      %v1181 = vpack.c.b16 %v952, %v951
      %v1182 = vpack.c.b16 %v954, %v953
      %v1183 = vpack.c.b16 %v956, %v955
      %v1184 = vpack.c.b16 %v958, %v957
      %v1185 = vpack.c.b16 %v960, %v959
      %v1186 = vpack.c.b16 %v962, %v961
      %v1187 = vpack.c.b16 %v964, %v963
      %v1188 = vpack.c.b16 %v966, %v965
      %v1189 = vpack.c.b16 %v968, %v967
      %v1190 = vpack.c.b16 %v970, %v969
      %v1191 = vpack.c.b16 %v972, %v971
      %v1192 = vpack.c.b16 %v974, %v973
      %v1193 = vpack.c.b16 %v976, %v975
      %v1194 = vpack.c.b16 %v978, %v977
      %v1195 = vpack.c.b16 %v980, %v979
      %v1196 = vpack.c.b16 %v982, %v981
      %v1197 = vpack.c.b16 %v984, %v983
      %v1198 = vpack.c.b16 %v986, %v985
      %v1199 = vpack.c.b16 %v988, %v987
      %v1200 = vpack.c.b16 %v990, %v989
      %v1201 = vpack.c.b16 %v992, %v991
      %v1202 = vpack.c.b16 %v994, %v993
      %v1203 = vpack.c.b16 %v996, %v995
      %v1204 = vpack.c.b16 %v998, %v997
      %v1205 = vpack.c.b16 %v1000, %v999
      %v1206 = vpack.c.b16 %v1002, %v1001
      %v1207 = vpack.c.b16 %v1004, %v1003
      %v1208 = vpack.c.b16 %v1006, %v1005
      %v1209 = vpack.c.b16 %v1008, %v1007
      %v1210 = vpack.c.b16 %v1010, %v1009
      %v1211 = vpack.c.b16 %v1012, %v1011
      %v1212 = vpack.c.b16 %v1014, %v1013
      %v1213 = vpack.c.b16 %v1016, %v1015
      %v1214 = vpack.c.b16 %v1018, %v1017
      %v1215 = vpack.c.b16 %v1020, %v1019
      %v1216 = vpack.c.b16 %v1022, %v1021
      %v1217 = vpack.c.b16 %v1024, %v1023
      %v1218 = vpack.c.b16 %v1026, %v1025
      %v1219 = vpack.c.b16 %v1028, %v1027
      %v1220 = vpack.c.b16 %v1030, %v1029
      %v1221 = vpack.c.b16 %v1032, %v1031
      %v1222 = vpack.c.b16 %v1034, %v1033
      %v1223 = vpack.c.b16 %v1036, %v1035
      %v1224 = vpack.c.b16 %v1038, %v1037
      %v1225 = vpack.c.b16 %v1040, %v1039
      %v1226 = vpack.c.b16 %v1042, %v1041
      %v1227 = vpack.c.b16 %v1044, %v1043
      %v1228 = vpack.c.b16 %v1046, %v1045
      %v1229 = vpack.c.b16 %v1048, %v1047
      %v1230 = vpack.c.b16 %v1050, %v1049
      %v1231 = vpack.c.b16 %v1052, %v1051
      %v1232 = vpack.c.b16 %v1054, %v1053
      %v1233 = vpack.c.b16 %v1056, %v1055
      %v1234 = vpack.c.b16 %v1058, %v1057
      %v1235 = vpack.c.b16 %v1060, %v1059
      %v1236 = vpack.c.b16 %v1062, %v1061
      %v1237 = vpack.c.b16 %v1064, %v1063
      %v1238 = vpack.c.b16 %v1066, %v1065
      %v1239 = vpack.c.b16 %v1068, %v1067
      %v1240 = vpack.c.b16 %v1070, %v1069
      %v1241 = vpack.c.b16 %v1072, %v1071
      %v1242 = vpack.c.b16 %v1074, %v1073
      %v1243 = vpack.c.b16 %v1076, %v1075
      %v1244 = vpack.c.b16 %v1078, %v1077
      %v1245 = vpack.c.b16 %v1080, %v1079
      %v1246 = vpack.c.b16 %v1082, %v1081
      %v1247 = vpack.c.b16 %v1084, %v1083
      %v1248 = vpack.c.b16 %v1086, %v1085
      %v1249 = vpack.c.b16 %v1088, %v1087
      %v1250 = vpack.c.b16 %v1090, %v1089
      %v1251 = vpack.c.b16 %v1092, %v1091
      %v1252 = vpack.c.b16 %v1094, %v1093
      %v1253 = vpack.c.b16 %v1096, %v1095
      %v1254 = vpack.c.b16 %v1098, %v1097
      %v1255 = vpack.c.b16 %v1100, %v1099
      %v1256 = vpack.c.b16 %v1102, %v1101
      %v1257 = vpack.c.b16 %v1104, %v1103
      %v1258 = vpack.c.b16 %v1106, %v1105
      %v1259 = vpack.c.b16 %v1108, %v1107
      %v1260 = vpack.c.b16 %v1110, %v1109
      %v1261 = vpack.c.b16 %v1112, %v1111
      %v1262 = vpack.c.b16 %v1114, %v1113
      %v1263 = vpack.c.b16 %v1116, %v1115
      %v1264 = vpack.c.b16 %v1118, %v1117
      %v1265 = vpack.c.b16 %v1120, %v1119
      %v1266 = vpack.c.b16 %v1122, %v1121
      %v1267 = vpack.c.b16 %v1124, %v1123
      %v1268 = vpack.c.b16 %v1126, %v1125
      %v1269 = vpack.c.b16 %v1128, %v1127
      %v1270 = vpack.c.b16 %v1130, %v1129
      %v1271 = vpack.c.b16 %v1132, %v1131
      %v1272 = vpack.c.b16 %v1134, %v1133
      %v1273 = vpack.c.b16 %v1136, %v1135
      %v1274 = vpack.c.b16 %v1138, %v1137
      %v1275 = vpack.c.b16 %v1140, %v1139
      %v1276 = vpack.c.b16 %v1142, %v1141
      %v1277 = vpack.c.b16 %v1144, %v1143
      %v1278 = vpack.c.b16 %v1146, %v1145
      %v1279 = vpack.c.b16 %v1148, %v1147
      %v1280 = vpack.c.b16 %v1150, %v1149
      %v1281 = vpack.c.b16 %v1152, %v1151
      %v1282 = vpack.c.b16 %v1154, %v1153
      %1411 = vmatprep.subr.bf16.mxu0 0
      %1412 = vmatpush1.bf16.msra.mxu0 %v1155
      %1413 = vmatprep.subr.bf16.mxu0 0
      %1414 = vmatpush1.bf16.msra.mxu0 %v1156
      %1415 = vmatprep.subr.bf16.mxu0 0
      %1416 = vmatpush1.bf16.msra.mxu0 %v1157
      %1417 = vmatprep.subr.bf16.mxu0 0
      %1418 = vmatpush1.bf16.msra.mxu0 %v1158
      %1419 = vmatprep.subr.bf16.mxu0 0
      %1420 = vmatpush1.bf16.msra.mxu0 %v1159
      %1421 = vmatprep.subr.bf16.mxu0 0
      %1422 = vmatpush1.bf16.msra.mxu0 %v1160
      %1423 = vmatprep.subr.bf16.mxu0 0
      %1424 = vmatpush1.bf16.msra.mxu0 %v1161
      %1425 = vmatprep.subr.bf16.mxu0 0
      %1426 = vmatpush1.bf16.msra.mxu0 %v1162
      %1427 = vmatprep.subr.bf16.mxu0 0
      %1428 = vmatpush1.bf16.msra.mxu0 %v1163
      %1429 = vmatprep.subr.bf16.mxu0 0
      %1430 = vmatpush1.bf16.msra.mxu0 %v1164
      %1431 = vmatprep.subr.bf16.mxu0 0
      %1432 = vmatpush1.bf16.msra.mxu0 %v1165
      %1433 = vmatprep.subr.bf16.mxu0 0
      %1434 = vmatpush1.bf16.msra.mxu0 %v1166
      %1435 = vmatprep.subr.bf16.mxu0 0
      %1436 = vmatpush1.bf16.msra.mxu0 %v1167
      %1437 = vmatprep.subr.bf16.mxu0 0
      %1438 = vmatpush1.bf16.msra.mxu0 %v1168
      %1439 = vmatprep.subr.bf16.mxu0 0
      %1440 = vmatpush1.bf16.msra.mxu0 %v1169
      %1441 = vmatprep.subr.bf16.mxu0 0
      %1442 = vmatpush1.bf16.msra.mxu0 %v1170
      %1443 = vmatprep.mubr.bf16.mxu0 %v612
      %1444 = vmatmul.mubr.bf16.gmra.mrb[0].mxu0 %v611
      %v1445 = vpop.f32.mrb[0].mxu0
      %v1446 = vadd.f32 %v585, %v1445
      %v1447 = vpop.f32.mrb[0].mxu0
      %v1448 = vpop.f32.mrb[0].mxu0
      %v1449 = vpop.f32.mrb[0].mxu0
      %1450 = vdwg.mxu0
      %1451 = vmatprep.subr.bf16.mxu0 0
      %1452 = vmatpush1.bf16.msra.mxu0 %v1171
      %1453 = vmatprep.subr.bf16.mxu0 0
      %1454 = vmatpush1.bf16.msra.mxu0 %v1172
      %1455 = vmatprep.subr.bf16.mxu0 0
      %1456 = vmatpush1.bf16.msra.mxu0 %v1173
      %1457 = vmatprep.subr.bf16.mxu0 0
      %1458 = vmatpush1.bf16.msra.mxu0 %v1174
      %1459 = vmatprep.subr.bf16.mxu0 0
      %1460 = vmatpush1.bf16.msra.mxu0 %v1175
      %1461 = vmatprep.subr.bf16.mxu0 0
      %1462 = vmatpush1.bf16.msra.mxu0 %v1176
      %1463 = vmatprep.subr.bf16.mxu0 0
      %1464 = vmatpush1.bf16.msra.mxu0 %v1177
      %1465 = vmatprep.subr.bf16.mxu0 0
      %1466 = vmatpush1.bf16.msra.mxu0 %v1178
      %1467 = vmatprep.subr.bf16.mxu0 0
      %1468 = vmatpush1.bf16.msra.mxu0 %v1179
      %1469 = vmatprep.subr.bf16.mxu0 0
      %1470 = vmatpush1.bf16.msra.mxu0 %v1180
      %1471 = vmatprep.subr.bf16.mxu0 0
      %1472 = vmatpush1.bf16.msra.mxu0 %v1181
      %1473 = vmatprep.subr.bf16.mxu0 0
      %1474 = vmatpush1.bf16.msra.mxu0 %v1182
      %1475 = vmatprep.subr.bf16.mxu0 0
      %1476 = vmatpush1.bf16.msra.mxu0 %v1183
      %1477 = vmatprep.subr.bf16.mxu0 0
      %1478 = vmatpush1.bf16.msra.mxu0 %v1184
      %1479 = vmatprep.subr.bf16.mxu0 0
      %1480 = vmatpush1.bf16.msra.mxu0 %v1185
      %1481 = vmatprep.subr.bf16.mxu0 0
      %1482 = vmatpush1.bf16.msra.mxu0 %v1186
      %1483 = vmatprep.mubr.bf16.mxu0 %v614
      %1484 = vmatmul.mubr.bf16.gmra.mrb[0].mxu0 %v613
      %v1485 = vpop.f32.mrb[0].mxu0
      %v1486 = vadd.f32 %v1446, %v1485
      %v1487 = vpop.f32.mrb[0].mxu0
      %v1488 = vpop.f32.mrb[0].mxu0
      %v1489 = vpop.f32.mrb[0].mxu0
      %1490 = vdwg.mxu0
      %1491 = vmatprep.subr.bf16.mxu0 0
      %1492 = vmatpush1.bf16.msra.mxu0 %v1187
      %1493 = vmatprep.subr.bf16.mxu0 0
      %1494 = vmatpush1.bf16.msra.mxu0 %v1188
      %1495 = vmatprep.subr.bf16.mxu0 0
      %1496 = vmatpush1.bf16.msra.mxu0 %v1189
      %1497 = vmatprep.subr.bf16.mxu0 0
      %1498 = vmatpush1.bf16.msra.mxu0 %v1190
      %1499 = vmatprep.subr.bf16.mxu0 0
      %1500 = vmatpush1.bf16.msra.mxu0 %v1191
      %1501 = vmatprep.subr.bf16.mxu0 0
      %1502 = vmatpush1.bf16.msra.mxu0 %v1192
      %1503 = vmatprep.subr.bf16.mxu0 0
      %1504 = vmatpush1.bf16.msra.mxu0 %v1193
      %1505 = vmatprep.subr.bf16.mxu0 0
      %1506 = vmatpush1.bf16.msra.mxu0 %v1194
      %1507 = vmatprep.subr.bf16.mxu0 0
      %1508 = vmatpush1.bf16.msra.mxu0 %v1195
      %1509 = vmatprep.subr.bf16.mxu0 0
      %1510 = vmatpush1.bf16.msra.mxu0 %v1196
      %1511 = vmatprep.subr.bf16.mxu0 0
      %1512 = vmatpush1.bf16.msra.mxu0 %v1197
      %1513 = vmatprep.subr.bf16.mxu0 0
      %1514 = vmatpush1.bf16.msra.mxu0 %v1198
      %1515 = vmatprep.subr.bf16.mxu0 0
      %1516 = vmatpush1.bf16.msra.mxu0 %v1199
      %1517 = vmatprep.subr.bf16.mxu0 0
      %1518 = vmatpush1.bf16.msra.mxu0 %v1200
      %1519 = vmatprep.subr.bf16.mxu0 0
      %1520 = vmatpush1.bf16.msra.mxu0 %v1201
      %1521 = vmatprep.subr.bf16.mxu0 0
      %1522 = vmatpush1.bf16.msra.mxu0 %v1202
      %1523 = vmatprep.mubr.bf16.mxu0 %v616
      %1524 = vmatmul.mubr.bf16.gmra.mrb[0].mxu0 %v615
      %v1525 = vpop.f32.mrb[0].mxu0
      %v1526 = vadd.f32 %v1486, %v1525
      %v1527 = vpop.f32.mrb[0].mxu0
      %v1528 = vpop.f32.mrb[0].mxu0
      %v1529 = vpop.f32.mrb[0].mxu0
      %1530 = vdwg.mxu0
      %1531 = vmatprep.subr.bf16.mxu0 0
      %1532 = vmatpush1.bf16.msra.mxu0 %v1203
      %1533 = vmatprep.subr.bf16.mxu0 0
      %1534 = vmatpush1.bf16.msra.mxu0 %v1204
      %1535 = vmatprep.subr.bf16.mxu0 0
      %1536 = vmatpush1.bf16.msra.mxu0 %v1205
      %1537 = vmatprep.subr.bf16.mxu0 0
      %1538 = vmatpush1.bf16.msra.mxu0 %v1206
      %1539 = vmatprep.subr.bf16.mxu0 0
      %1540 = vmatpush1.bf16.msra.mxu0 %v1207
      %1541 = vmatprep.subr.bf16.mxu0 0
      %1542 = vmatpush1.bf16.msra.mxu0 %v1208
      %1543 = vmatprep.subr.bf16.mxu0 0
      %1544 = vmatpush1.bf16.msra.mxu0 %v1209
      %1545 = vmatprep.subr.bf16.mxu0 0
      %1546 = vmatpush1.bf16.msra.mxu0 %v1210
      %1547 = vmatprep.subr.bf16.mxu0 0
      %1548 = vmatpush1.bf16.msra.mxu0 %v1211
      %1549 = vmatprep.subr.bf16.mxu0 0
      %1550 = vmatpush1.bf16.msra.mxu0 %v1212
      %1551 = vmatprep.subr.bf16.mxu0 0
      %1552 = vmatpush1.bf16.msra.mxu0 %v1213
      %1553 = vmatprep.subr.bf16.mxu0 0
      %1554 = vmatpush1.bf16.msra.mxu0 %v1214
      %1555 = vmatprep.subr.bf16.mxu0 0
      %1556 = vmatpush1.bf16.msra.mxu0 %v1215
      %1557 = vmatprep.subr.bf16.mxu0 0
      %1558 = vmatpush1.bf16.msra.mxu0 %v1216
      %1559 = vmatprep.subr.bf16.mxu0 0
      %1560 = vmatpush1.bf16.msra.mxu0 %v1217
      %1561 = vmatprep.subr.bf16.mxu0 0
      %1562 = vmatpush1.bf16.msra.mxu0 %v1218
      %1563 = vmatprep.mubr.bf16.mxu0 %v618
      %1564 = vmatmul.mubr.bf16.gmra.mrb[0].mxu0 %v617
      %v1565 = vpop.f32.mrb[0].mxu0
      %v1566 = vadd.f32 %v1526, %v1565
      %v1567 = vpop.f32.mrb[0].mxu0
      %v1568 = vpop.f32.mrb[0].mxu0
      %v1569 = vpop.f32.mrb[0].mxu0
      %1570 = vdwg.mxu0
      %1571 = vmatprep.subr.bf16.mxu0 0
      %1572 = vmatpush1.bf16.msra.mxu0 %v1219
      %1573 = vmatprep.subr.bf16.mxu0 0
      %1574 = vmatpush1.bf16.msra.mxu0 %v1220
      %1575 = vmatprep.subr.bf16.mxu0 0
      %1576 = vmatpush1.bf16.msra.mxu0 %v1221
      %1577 = vmatprep.subr.bf16.mxu0 0
      %1578 = vmatpush1.bf16.msra.mxu0 %v1222
      %1579 = vmatprep.subr.bf16.mxu0 0
      %1580 = vmatpush1.bf16.msra.mxu0 %v1223
      %1581 = vmatprep.subr.bf16.mxu0 0
      %1582 = vmatpush1.bf16.msra.mxu0 %v1224
      %1583 = vmatprep.subr.bf16.mxu0 0
      %1584 = vmatpush1.bf16.msra.mxu0 %v1225
      %1585 = vmatprep.subr.bf16.mxu0 0
      %1586 = vmatpush1.bf16.msra.mxu0 %v1226
      %1587 = vmatprep.subr.bf16.mxu0 0
      %1588 = vmatpush1.bf16.msra.mxu0 %v1227
      %1589 = vmatprep.subr.bf16.mxu0 0
      %1590 = vmatpush1.bf16.msra.mxu0 %v1228
      %1591 = vmatprep.subr.bf16.mxu0 0
      %1592 = vmatpush1.bf16.msra.mxu0 %v1229
      %1593 = vmatprep.subr.bf16.mxu0 0
      %1594 = vmatpush1.bf16.msra.mxu0 %v1230
      %1595 = vmatprep.subr.bf16.mxu0 0
      %1596 = vmatpush1.bf16.msra.mxu0 %v1231
      %1597 = vmatprep.subr.bf16.mxu0 0
      %1598 = vmatpush1.bf16.msra.mxu0 %v1232
      %1599 = vmatprep.subr.bf16.mxu0 0
      %1600 = vmatpush1.bf16.msra.mxu0 %v1233
      %1601 = vmatprep.subr.bf16.mxu0 0
      %1602 = vmatpush1.bf16.msra.mxu0 %v1234
      %1603 = vmatprep.mubr.bf16.mxu0 %v620
      %1604 = vmatmul.mubr.bf16.gmra.mrb[0].mxu0 %v619
      %v1605 = vpop.f32.mrb[0].mxu0
      %v1606 = vadd.f32 %v1566, %v1605
      %v1607 = vpop.f32.mrb[0].mxu0
      %v1608 = vpop.f32.mrb[0].mxu0
      %v1609 = vpop.f32.mrb[0].mxu0
      %1610 = vdwg.mxu0
      %1611 = vmatprep.subr.bf16.mxu0 0
      %1612 = vmatpush1.bf16.msra.mxu0 %v1235
      %1613 = vmatprep.subr.bf16.mxu0 0
      %1614 = vmatpush1.bf16.msra.mxu0 %v1236
      %1615 = vmatprep.subr.bf16.mxu0 0
      %1616 = vmatpush1.bf16.msra.mxu0 %v1237
      %1617 = vmatprep.subr.bf16.mxu0 0
      %1618 = vmatpush1.bf16.msra.mxu0 %v1238
      %1619 = vmatprep.subr.bf16.mxu0 0
      %1620 = vmatpush1.bf16.msra.mxu0 %v1239
      %1621 = vmatprep.subr.bf16.mxu0 0
      %1622 = vmatpush1.bf16.msra.mxu0 %v1240
      %1623 = vmatprep.subr.bf16.mxu0 0
      %1624 = vmatpush1.bf16.msra.mxu0 %v1241
      %1625 = vmatprep.subr.bf16.mxu0 0
      %1626 = vmatpush1.bf16.msra.mxu0 %v1242
      %1627 = vmatprep.subr.bf16.mxu0 0
      %1628 = vmatpush1.bf16.msra.mxu0 %v1243
      %1629 = vmatprep.subr.bf16.mxu0 0
      %1630 = vmatpush1.bf16.msra.mxu0 %v1244
      %1631 = vmatprep.subr.bf16.mxu0 0
      %1632 = vmatpush1.bf16.msra.mxu0 %v1245
      %1633 = vmatprep.subr.bf16.mxu0 0
      %1634 = vmatpush1.bf16.msra.mxu0 %v1246
      %1635 = vmatprep.subr.bf16.mxu0 0
      %1636 = vmatpush1.bf16.msra.mxu0 %v1247
      %1637 = vmatprep.subr.bf16.mxu0 0
      %1638 = vmatpush1.bf16.msra.mxu0 %v1248
      %1639 = vmatprep.subr.bf16.mxu0 0
      %1640 = vmatpush1.bf16.msra.mxu0 %v1249
      %1641 = vmatprep.subr.bf16.mxu0 0
      %1642 = vmatpush1.bf16.msra.mxu0 %v1250
      %1643 = vmatprep.mubr.bf16.mxu0 %v622
      %1644 = vmatmul.mubr.bf16.gmra.mrb[0].mxu0 %v621
      %v1645 = vpop.f32.mrb[0].mxu0
      %v1646 = vadd.f32 %v1606, %v1645
      %v1647 = vpop.f32.mrb[0].mxu0
      %v1648 = vpop.f32.mrb[0].mxu0
      %v1649 = vpop.f32.mrb[0].mxu0
      %1650 = vdwg.mxu0
      %1651 = vmatprep.subr.bf16.mxu0 0
      %1652 = vmatpush1.bf16.msra.mxu0 %v1251
      %1653 = vmatprep.subr.bf16.mxu0 0
      %1654 = vmatpush1.bf16.msra.mxu0 %v1252
      %1655 = vmatprep.subr.bf16.mxu0 0
      %1656 = vmatpush1.bf16.msra.mxu0 %v1253
      %1657 = vmatprep.subr.bf16.mxu0 0
      %1658 = vmatpush1.bf16.msra.mxu0 %v1254
      %1659 = vmatprep.subr.bf16.mxu0 0
      %1660 = vmatpush1.bf16.msra.mxu0 %v1255
      %1661 = vmatprep.subr.bf16.mxu0 0
      %1662 = vmatpush1.bf16.msra.mxu0 %v1256
      %1663 = vmatprep.subr.bf16.mxu0 0
      %1664 = vmatpush1.bf16.msra.mxu0 %v1257
      %1665 = vmatprep.subr.bf16.mxu0 0
      %1666 = vmatpush1.bf16.msra.mxu0 %v1258
      %1667 = vmatprep.subr.bf16.mxu0 0
      %1668 = vmatpush1.bf16.msra.mxu0 %v1259
      %1669 = vmatprep.subr.bf16.mxu0 0
      %1670 = vmatpush1.bf16.msra.mxu0 %v1260
      %1671 = vmatprep.subr.bf16.mxu0 0
      %1672 = vmatpush1.bf16.msra.mxu0 %v1261
      %1673 = vmatprep.subr.bf16.mxu0 0
      %1674 = vmatpush1.bf16.msra.mxu0 %v1262
      %1675 = vmatprep.subr.bf16.mxu0 0
      %1676 = vmatpush1.bf16.msra.mxu0 %v1263
      %1677 = vmatprep.subr.bf16.mxu0 0
      %1678 = vmatpush1.bf16.msra.mxu0 %v1264
      %1679 = vmatprep.subr.bf16.mxu0 0
      %1680 = vmatpush1.bf16.msra.mxu0 %v1265
      %1681 = vmatprep.subr.bf16.mxu0 0
      %1682 = vmatpush1.bf16.msra.mxu0 %v1266
      %1683 = vmatprep.mubr.bf16.mxu0 %v624
      %1684 = vmatmul.mubr.bf16.gmra.mrb[0].mxu0 %v623
      %v1685 = vpop.f32.mrb[0].mxu0
      %v1686 = vadd.f32 %v1646, %v1685
      %v1687 = vpop.f32.mrb[0].mxu0
      %v1688 = vpop.f32.mrb[0].mxu0
      %v1689 = vpop.f32.mrb[0].mxu0
      %1690 = vdwg.mxu0
      %1691 = vmatprep.subr.bf16.mxu0 0
      %1692 = vmatpush1.bf16.msra.mxu0 %v1267
      %1693 = vmatprep.subr.bf16.mxu0 0
      %1694 = vmatpush1.bf16.msra.mxu0 %v1268
      %1695 = vmatprep.subr.bf16.mxu0 0
      %1696 = vmatpush1.bf16.msra.mxu0 %v1269
      %1697 = vmatprep.subr.bf16.mxu0 0
      %1698 = vmatpush1.bf16.msra.mxu0 %v1270
      %1699 = vmatprep.subr.bf16.mxu0 0
      %1700 = vmatpush1.bf16.msra.mxu0 %v1271
      %1701 = vmatprep.subr.bf16.mxu0 0
      %1702 = vmatpush1.bf16.msra.mxu0 %v1272
      %1703 = vmatprep.subr.bf16.mxu0 0
      %1704 = vmatpush1.bf16.msra.mxu0 %v1273
      %1705 = vmatprep.subr.bf16.mxu0 0
      %1706 = vmatpush1.bf16.msra.mxu0 %v1274
      %1707 = vmatprep.subr.bf16.mxu0 0
      %1708 = vmatpush1.bf16.msra.mxu0 %v1275
      %1709 = vmatprep.subr.bf16.mxu0 0
      %1710 = vmatpush1.bf16.msra.mxu0 %v1276
      %1711 = vmatprep.subr.bf16.mxu0 0
      %1712 = vmatpush1.bf16.msra.mxu0 %v1277
      %1713 = vmatprep.subr.bf16.mxu0 0
      %1714 = vmatpush1.bf16.msra.mxu0 %v1278
      %1715 = vmatprep.subr.bf16.mxu0 0
      %1716 = vmatpush1.bf16.msra.mxu0 %v1279
      %1717 = vmatprep.subr.bf16.mxu0 0
      %1718 = vmatpush1.bf16.msra.mxu0 %v1280
      %1719 = vmatprep.subr.bf16.mxu0 0
      %1720 = vmatpush1.bf16.msra.mxu0 %v1281
      %1721 = vmatprep.subr.bf16.mxu0 0
      %1722 = vmatpush1.bf16.msra.mxu0 %v1282
      %1723 = vmatprep.mubr.bf16.mxu0 %v626
      %1724 = vmatmul.mubr.bf16.gmra.mrb[0].mxu0 %v625
      %v1725 = vpop.f32.mrb[0].mxu0
      %v1726 = vadd.f32 %v1686, %v1725
      %v1727 = vpop.f32.mrb[0].mxu0
      %v1728 = vpop.f32.mrb[0].mxu0
      %v1729 = vpop.f32.mrb[0].mxu0
      %1730 = vdwg.mxu0
      %v1731 = vmax.f32 %v1726, 0.0
      %v1732 = vpack.c.bf16 %v1731, %v1731
      %v1733 = vld [vmem:[%s3] sm:$0xf]
      %v1734 = vld [vmem:[%s3 + $0x4] sm:$0xf]
      %v1735 = vld [vmem:[%s3 + $0x8] sm:$0xf]
      %v1736 = vld [vmem:[%s3 + $0xc] sm:$0xf]
      %v1737 = vld [vmem:[%s3 + $0x10] sm:$0xf]
      %v1738 = vld [vmem:[%s3 + $0x14] sm:$0xf]
      %v1739 = vld [vmem:[%s3 + $0x18] sm:$0xf]
      %v1740 = vld [vmem:[%s3 + $0x1c] sm:$0xf]
      %v1741 = vld [vmem:[%s3 + $0x20] sm:$0xf]
      %v1742 = vld [vmem:[%s3 + $0x24] sm:$0xf]
      %v1743 = vld [vmem:[%s3 + $0x28] sm:$0xf]
      %v1744 = vld [vmem:[%s3 + $0x2c] sm:$0xf]
      %v1745 = vld [vmem:[%s3 + $0x30] sm:$0xf]
      %v1746 = vld [vmem:[%s3 + $0x34] sm:$0xf]
      %v1747 = vld [vmem:[%s3 + $0x38] sm:$0xf]
      %v1748 = vld [vmem:[%s3 + $0x3c] sm:$0xf]
      %v1749 = vld [vmem:[%s4] sm:$0x1]
      %v1751 = vlaneseq
      %v1752 = vshrl.u32 %v1751, 7
      %v1753 = vsub.s32 0, %v1752
      %v1754 = vrot.slane %v1749, %v1753
      %v1772 = vunpack.c.l.b16 %v1733
      %v1773 = vunpack.c.l.b16 %v1734
      %v1774 = vunpack.c.l.b16 %v1735
      %v1775 = vunpack.c.l.b16 %v1736
      %v1776 = vunpack.c.l.b16 %v1737
      %v1777 = vunpack.c.l.b16 %v1738
      %v1778 = vunpack.c.l.b16 %v1739
      %v1779 = vunpack.c.l.b16 %v1740
      %v1780 = vunpack.c.l.b16 %v1741
      %v1781 = vunpack.c.l.b16 %v1742
      %v1782 = vunpack.c.l.b16 %v1743
      %v1783 = vunpack.c.l.b16 %v1744
      %v1784 = vunpack.c.l.b16 %v1745
      %v1785 = vunpack.c.l.b16 %v1746
      %v1786 = vunpack.c.l.b16 %v1747
      %v1787 = vunpack.c.l.b16 %v1748
      %v1788 = vpack.c.b16 %v1773, %v1772
      %v1789 = vpack.c.b16 %v1775, %v1774
      %v1790 = vpack.c.b16 %v1777, %v1776
      %v1791 = vpack.c.b16 %v1779, %v1778
      %v1792 = vpack.c.b16 %v1781, %v1780
      %v1793 = vpack.c.b16 %v1783, %v1782
      %v1794 = vpack.c.b16 %v1785, %v1784
      %v1795 = vpack.c.b16 %v1787, %v1786
      %1804 = vmatprep.subr.bf16.mxu0 0
      %1805 = vmatpush1.bf16.msra.mxu0 %v1788
      %1806 = vmatprep.subr.bf16.mxu0 0
      %1807 = vmatpush1.bf16.msra.mxu0 %v1789
      %1808 = vmatprep.subr.bf16.mxu0 0
      %1809 = vmatpush1.bf16.msra.mxu0 %v1790
      %1810 = vmatprep.subr.bf16.mxu0 0
      %1811 = vmatpush1.bf16.msra.mxu0 %v1791
      %1812 = vmatprep.subr.bf16.mxu0 0
      %1813 = vmatpush1.bf16.msra.mxu0 %v1792
      %1814 = vmatprep.subr.bf16.mxu0 0
      %1815 = vmatpush1.bf16.msra.mxu0 %v1793
      %1816 = vmatprep.subr.bf16.mxu0 0
      %1817 = vmatpush1.bf16.msra.mxu0 %v1794
      %1818 = vmatprep.subr.bf16.mxu0 0
      %1819 = vmatpush1.bf16.msra.mxu0 %v1795
      %1820 = vmatprep.subr.bf16.mxu0 0
      %1821 = vmatpush1.bf16.msra.mxu0 0
      %1822 = vmatprep.subr.bf16.mxu0 0
      %1823 = vmatpush1.bf16.msra.mxu0 0
      %1824 = vmatprep.subr.bf16.mxu0 0
      %1825 = vmatpush1.bf16.msra.mxu0 0
      %1826 = vmatprep.subr.bf16.mxu0 0
      %1827 = vmatpush1.bf16.msra.mxu0 0
      %1828 = vmatprep.subr.bf16.mxu0 0
      %1829 = vmatpush1.bf16.msra.mxu0 0
      %1830 = vmatprep.subr.bf16.mxu0 0
      %1831 = vmatpush1.bf16.msra.mxu0 0
      %1832 = vmatprep.subr.bf16.mxu0 0
      %1833 = vmatpush1.bf16.msra.mxu0 0
      %1834 = vmatprep.subr.bf16.mxu0 0
      %1835 = vmatpush1.bf16.msra.mxu0 0
      %1836 = vmatprep.mubr.bf16.mxu0 0
      %1837 = vmatmul.mubr.bf16.gmra.mrb[0].mxu0 %v1732
      %v1838 = vpop.f32.mrb[0].mxu0
      %v1839 = vadd.f32 %v1754, %v1838
      %v1840 = vpop.f32.mrb[0].mxu0
      %v1841 = vpop.f32.mrb[0].mxu0
      %v1842 = vpop.f32.mrb[0].mxu0
      %1843 = vdwg.mxu0
      %v1844 = vmax.f32 %v1839, 0.0
      %v1845 = vpack.c.bf16 %v1844, %v1844
      %v1846 = vld [vmem:[%s5] sm:$0xff]
      %v1847 = vld [vmem:[%s5 + $0x8] sm:$0xff]
      %v1848 = vld [vmem:[%s5 + $0x10] sm:$0xff]
      %v1849 = vld [vmem:[%s5 + $0x18] sm:$0xff]
      %v1850 = vld [vmem:[%s5 + $0x20] sm:$0xff]
      %v1851 = vld [vmem:[%s5 + $0x28] sm:$0xff]
      %v1852 = vld [vmem:[%s5 + $0x30] sm:$0xff]
      %v1853 = vld [vmem:[%s5 + $0x38] sm:$0xff]
      %v1854 = vld [vmem:[%s5 + $0x40] sm:$0xff]
      %v1855 = vld [vmem:[%s5 + $0x48] sm:$0xff]
      %v1856 = vld [vmem:[%s5 + $0x50] sm:$0xff]
      %v1857 = vld [vmem:[%s5 + $0x58] sm:$0xff]
      %v1858 = vld [vmem:[%s5 + $0x60] sm:$0xff]
      %v1859 = vld [vmem:[%s5 + $0x68] sm:$0xff]
      %v1860 = vld [vmem:[%s5 + $0x70] sm:$0xff]
      %v1861 = vld [vmem:[%s5 + $0x78] sm:$0xff]
      %v1862 = vld [vmem:[%s6] sm:$0x3]
      %v1864 = vlaneseq
      %v1865 = vshrl.u32 %v1864, 7
      %v1866 = vsub.s32 0, %v1865
      %v1867 = vrot.slane %v1862, %v1866
      %v1868 = vlaneseq
      %v1869 = vshrl.u32 %v1868, 7
      %v1870 = vsub.s32 1, %v1869
      %v1871 = vrot.slane %v1862, %v1870
      %v1890 = vunpack.c.l.b16 %v1846
      %v1891 = vunpack.c.h.b16 %v1846
      %v1892 = vunpack.c.l.b16 %v1847
      %v1893 = vunpack.c.h.b16 %v1847
      %v1894 = vunpack.c.l.b16 %v1848
      %v1895 = vunpack.c.h.b16 %v1848
      %v1896 = vunpack.c.l.b16 %v1849
      %v1897 = vunpack.c.h.b16 %v1849
      %v1898 = vunpack.c.l.b16 %v1850
      %v1899 = vunpack.c.h.b16 %v1850
      %v1900 = vunpack.c.l.b16 %v1851
      %v1901 = vunpack.c.h.b16 %v1851
      %v1902 = vunpack.c.l.b16 %v1852
      %v1903 = vunpack.c.h.b16 %v1852
      %v1904 = vunpack.c.l.b16 %v1853
      %v1905 = vunpack.c.h.b16 %v1853
      %v1906 = vunpack.c.l.b16 %v1854
      %v1907 = vunpack.c.h.b16 %v1854
      %v1908 = vunpack.c.l.b16 %v1855
      %v1909 = vunpack.c.h.b16 %v1855
      %v1910 = vunpack.c.l.b16 %v1856
      %v1911 = vunpack.c.h.b16 %v1856
      %v1912 = vunpack.c.l.b16 %v1857
      %v1913 = vunpack.c.h.b16 %v1857
      %v1914 = vunpack.c.l.b16 %v1858
      %v1915 = vunpack.c.h.b16 %v1858
      %v1916 = vunpack.c.l.b16 %v1859
      %v1917 = vunpack.c.h.b16 %v1859
      %v1918 = vunpack.c.l.b16 %v1860
      %v1919 = vunpack.c.h.b16 %v1860
      %v1920 = vunpack.c.l.b16 %v1861
      %v1921 = vunpack.c.h.b16 %v1861
      %v1922 = vpack.c.b16 %v1892, %v1890
      %v1923 = vpack.c.b16 %v1893, %v1891
      %v1924 = vpack.c.b16 %v1896, %v1894
      %v1925 = vpack.c.b16 %v1897, %v1895
      %v1926 = vpack.c.b16 %v1900, %v1898
      %v1927 = vpack.c.b16 %v1901, %v1899
      %v1928 = vpack.c.b16 %v1904, %v1902
      %v1929 = vpack.c.b16 %v1905, %v1903
      %v1930 = vpack.c.b16 %v1908, %v1906
      %v1931 = vpack.c.b16 %v1909, %v1907
      %v1932 = vpack.c.b16 %v1912, %v1910
      %v1933 = vpack.c.b16 %v1913, %v1911
      %v1934 = vpack.c.b16 %v1916, %v1914
      %v1935 = vpack.c.b16 %v1917, %v1915
      %v1936 = vpack.c.b16 %v1920, %v1918
      %v1937 = vpack.c.b16 %v1921, %v1919
      %1954 = vmatprep.subr.bf16.mxu0 %v1923
      %1955 = vmatpush1.bf16.msra.mxu0 %v1922
      %1956 = vmatprep.subr.bf16.mxu0 %v1925
      %1957 = vmatpush1.bf16.msra.mxu0 %v1924
      %1958 = vmatprep.subr.bf16.mxu0 %v1927
      %1959 = vmatpush1.bf16.msra.mxu0 %v1926
      %1960 = vmatprep.subr.bf16.mxu0 %v1929
      %1961 = vmatpush1.bf16.msra.mxu0 %v1928
      %1962 = vmatprep.subr.bf16.mxu0 %v1931
      %1963 = vmatpush1.bf16.msra.mxu0 %v1930
      %1964 = vmatprep.subr.bf16.mxu0 %v1933
      %1965 = vmatpush1.bf16.msra.mxu0 %v1932
      %1966 = vmatprep.subr.bf16.mxu0 %v1935
      %1967 = vmatpush1.bf16.msra.mxu0 %v1934
      %1968 = vmatprep.subr.bf16.mxu0 %v1937
      %1969 = vmatpush1.bf16.msra.mxu0 %v1936
      %1970 = vmatprep.subr.bf16.mxu0 0
      %1971 = vmatpush1.bf16.msra.mxu0 0
      %1972 = vmatprep.subr.bf16.mxu0 0
      %1973 = vmatpush1.bf16.msra.mxu0 0
      %1974 = vmatprep.subr.bf16.mxu0 0
      %1975 = vmatpush1.bf16.msra.mxu0 0
      %1976 = vmatprep.subr.bf16.mxu0 0
      %1977 = vmatpush1.bf16.msra.mxu0 0
      %1978 = vmatprep.subr.bf16.mxu0 0
      %1979 = vmatpush1.bf16.msra.mxu0 0
      %1980 = vmatprep.subr.bf16.mxu0 0
      %1981 = vmatpush1.bf16.msra.mxu0 0
      %1982 = vmatprep.subr.bf16.mxu0 0
      %1983 = vmatpush1.bf16.msra.mxu0 0
      %1984 = vmatprep.subr.bf16.mxu0 0
      %1985 = vmatpush1.bf16.msra.mxu0 0
      %1986 = vmatprep.mubr.bf16.mxu0 0
      %1987 = vmatmul.mubr.bf16.gmra.mrb[0].mxu0 %v1845
      %v1988 = vpop.f32.mrb[0].mxu0
      %v1989 = vadd.f32 %v1867, %v1988
      %v1990 = vpop.f32.mrb[0].mxu0
      %v1991 = vadd.f32 %v1871, %v1990
      %v1992 = vpop.f32.mrb[0].mxu0
      %v1993 = vpop.f32.mrb[0].mxu0
      %1994 = vdwg.mxu0
      %v1995 = vlaneseq
      %v1996 = vand.u32 %v1995, 127
      %vm1997 = vcmp.lt.s32.totalorder %v1996, 5
      %v1998 = vsel %vm1997, %v1989, -1e+30
      %1999 = vmax.xlane.f32.xlu0 %v1998
      %v2000 = vpop.xlane.xlu0 %1999
      %v2001 = vsub.f32 %v1998, %v2000
      %v2002 = vmul.f32 %v2001, 1.442695
      %v2003 = vpow.pop %v2002
      %2004 = vadd.xlane.f32.xlu0 %v2003
      %v2005 = vpop.xlane.xlu0 %2004
      %v2006 = vrcp.pop %v2005
      %v2007 = vmul.f32 %v2003, %v2006
      %2008 = vst [vmem:[%s310] sm:$0xff] %v2007
      %2009 = vst [vmem:[%s314] sm:$0xff] %v1991
      %p2010 = scmp.lt.s32.totalorder %s20, 1
      %s2011 = scalar_select %p2010, %s20, 1
      %s2012 = smul.addr %s2011, 8
      %s2013 = scalar_lea.vmem %s7, %s2012
      %p2014 = scmp.lt.s32.totalorder %s20, 1
      %s2015 = scalar_select %p2014, %s20, 1
      %s2016 = smul.addr %s2015, 8
      %s2017 = scalar_lea.vmem %s8, %s2016
      // Predicated region
      $region49: #{_forward_impl.5} parent=47 // pred_check
        %p2018 = pneg %p190
      $region50: #{_forward_impl.5} parent=47 // pred_check_branch
        %2020 = sbr.rel (%p2018) target = $region52
      $region51: #{_forward_impl.5} parent=47 // pred_region
        _
      $region52: #{_forward_impl.5} parent=47 // pred_fallthru
        _
      // Predicated region
      $region53: #{_forward_impl.5} parent=47 // pred_check
        %p2021 = pneg %p216
      $region54: #{_forward_impl.5} parent=47 // pred_check_branch
        %2023 = sbr.rel (%p2021) target = $region56
      $region55: #{_forward_impl.5} parent=47 // pred_region
        _
      $region56: #{_forward_impl.5} parent=47 // pred_fallthru
        _
    $region48: #{_forward_impl.5} parent=5 // pred_fallthru
      _
    %p2024 = scmp.le.s32.totalorder 2, %s15
    // Predicated region
    $region57: #{_forward_impl.5} parent=5 // pred_check
      %p2025 = pneg %p2024
    $region58: #{_forward_impl.5} parent=5 // pred_check_branch
      %2027 = sbr.rel (%p2025) target = $region60
    $region59: #{_forward_impl.5} parent=5 // pred_region
      %s2028 = ssub.s32 %s15, 2
      // Predicated region
      $region61: #{_forward_impl.5} parent=59 // pred_check
        %p2029 = pneg %p196
      $region62: #{_forward_impl.5} parent=59 // pred_check_branch
        %2031 = sbr.rel (%p2029) target = $region64
      $region63: #{_forward_impl.5} parent=59 // pred_region
        %p2032 = scmp.lt.s32.totalorder %s21, 1
        %s2033 = scalar_select %p2032, %s21, 1
        %s2034 = smul.addr %s2033, 8
        %s2035 = scalar_lea.vmem %s7, %s2034
      $region64: #{_forward_impl.5} parent=59 // pred_fallthru
        _
      // Predicated region
      $region65: #{_forward_impl.5} parent=59 // pred_check
        %p2036 = pneg %p222
      $region66: #{_forward_impl.5} parent=59 // pred_check_branch
        %2038 = sbr.rel (%p2036) target = $region68
      $region67: #{_forward_impl.5} parent=59 // pred_region
        %p2039 = scmp.lt.s32.totalorder %s21, 1
        %s2040 = scalar_select %p2039, %s21, 1
        %s2041 = smul.addr %s2040, 8
        %s2042 = scalar_lea.vmem %s8, %s2041
      $region68: #{_forward_impl.5} parent=59 // pred_fallthru
        _
    $region60: #{_forward_impl.5} parent=5 // pred_fallthru
      _
  $region6: #{_forward_impl.5} parent=0 // loop_footer
    %s19 = sadd.s32 1, %s15
  $region7: #{_forward_impl.5} parent=0 // loop_footer_branch
    %14 = sbr.rel target = $region3
  $region8: #{_forward_impl.5} parent=0 // loop_exit
    _

</llo_original>
